<compile_context>
chip_gen: v7x
topology: tpu7x:2x2x1
jax: 0.10.0
libtpu: 0.0.40
codegen_flags: <defaults>
</compile_context>

<pallas_src>
import functools

import numpy as np

import jax
import jax.numpy as jnp
from jax.experimental import pallas as pl
from jax.experimental.pallas import tpu as pltpu


# --------------------------------------------------------------------------
# Kernel 1: average voxelization (scatter expressed as in-VMEM one-hot matmul)
# --------------------------------------------------------------------------
def _voxelize_kernel(idx_ref, feat_ref, out_ref, acc_ref, *, r3, cin):
    t = pl.program_id(1)

    @pl.when(t == 0)
    def _():
        acc_ref[...] = jnp.zeros(acc_ref.shape, acc_ref.dtype)

    idx = idx_ref[0]                                    # (tile_n, 1) int32
    tn = idx.shape[0]
    # one-hot built in VMEM only (never in HBM): (tile_n, r3)
    onehot = (jax.lax.broadcasted_iota(jnp.int32, (tn, r3), 1)
              == idx).astype(jnp.float32)
    # feat_ref[0]: (cin + 1, tile_n)  (last row = ones -> voxel counts)
    acc_ref[...] += jnp.dot(feat_ref[0], onehot,
                            preferred_element_type=jnp.float32)

    @pl.when(t == pl.num_programs(1) - 1)
    def _():
        cnt = jnp.maximum(acc_ref[cin:cin + 1, :], 1.0)
        out_ref[0] = acc_ref[:cin, :] / cnt


def voxelize_avg(idx, feat_aug, r3, cin, tile_n):
    """idx: (B, N, 1) int32 flat voxel id; feat_aug: (B, Cin+1, N) f32."""
    B, _, N = feat_aug.shape
    nt = N // tile_n
    kern = functools.partial(_voxelize_kernel, r3=r3, cin=cin)
    return pl.pallas_call(
        kern,
        out_shape=jax.ShapeDtypeStruct((B, cin, r3), jnp.float32),
        grid=(B, nt),
        in_specs=[pl.BlockSpec((1, tile_n, 1), lambda b, t: (b, t, 0)),
                  pl.BlockSpec((1, cin + 1, tile_n), lambda b, t: (b, 0, t))],
        out_specs=pl.BlockSpec((1, cin, r3), lambda b, t: (b, 0, 0)),
        scratch_shapes=[pltpu.VMEM((cin + 1, r3), jnp.float32)],
        compiler_params=pltpu.CompilerParams(
            dimension_semantics=("parallel", "arbitrary")),
    )(idx, feat_aug)


# --------------------------------------------------------------------------
# Kernel 2: tap-accumulated Conv3d + bias + BN batch statistics
#           (fuses the previous layer's BN affine + LeakyReLU on the input)
# --------------------------------------------------------------------------
def _conv3d_kernel(x_ref, w_ref, m_ref, b_ref, s_ref, t_ref, y_ref, st_ref, *,
                   R, k, apply_act, slope):
    r3 = R * R * R
    p = k // 2
    x = x_ref[0]                                        # (cin, r3) f32
    if apply_act:                                       # fused prev-layer BN+LReLU
        a = x * s_ref[...] + t_ref[...]
        x = jnp.where(a > 0, a, slope * a)

    cout = y_ref.shape[1]
    acc = jnp.zeros((cout, r3), jnp.float32)
    ti = 0
    for kd in range(k):
        for kh in range(k):
            for kw in range(k):
                s = ((kd - p) * R + (kh - p)) * R + (kw - p)
                xs = x if s == 0 else pltpu.roll(x, (-s) % r3, 1)
                xs = (xs * m_ref[ti]).astype(jnp.bfloat16)   # zero-pad boundary
                acc = acc + jnp.dot(w_ref[ti], xs,
                                    preferred_element_type=jnp.float32)
                ti += 1
    y = acc + b_ref[...]                                 # (cout, r3)
    y_ref[0] = y
    # per-channel sum / sum-of-squares for BatchNorm batch statistics
    st_ref[0, :, 0:1] = jnp.sum(y, axis=1, keepdims=True)
    st_ref[0, :, 1:2] = jnp.sum(y * y, axis=1, keepdims=True)


def conv3d_stats(x, w_taps, masks, bias, scale_in, shift_in, *, R, k,
                 apply_act, slope):
    B, cin, r3 = x.shape
    cout = w_taps.shape[1]
    kern = functools.partial(_conv3d_kernel, R=R, k=k,
                             apply_act=apply_act, slope=slope)
    return pl.pallas_call(
        kern,
        out_shape=(jax.ShapeDtypeStruct((B, cout, r3), jnp.float32),
                   jax.ShapeDtypeStruct((B, cout, 2), jnp.float32)),
        grid=(B,),
        in_specs=[pl.BlockSpec((1, cin, r3), lambda b: (b, 0, 0)),
                  pl.BlockSpec((k ** 3, cout, cin), lambda b: (0, 0, 0)),
                  pl.BlockSpec((k ** 3, 1, r3), lambda b: (0, 0, 0)),
                  pl.BlockSpec((cout, 1), lambda b: (0, 0)),
                  pl.BlockSpec((cin, 1), lambda b: (0, 0)),
                  pl.BlockSpec((cin, 1), lambda b: (0, 0))],
        out_specs=(pl.BlockSpec((1, cout, r3), lambda b: (b, 0, 0)),
                   pl.BlockSpec((1, cout, 2), lambda b: (b, 0, 0))),
        compiler_params=pltpu.CompilerParams(
            dimension_semantics=("parallel",)),
    )(x, w_taps, masks, bias, scale_in, shift_in)


# --------------------------------------------------------------------------
# Kernel 3: point branch 1x1 conv (SharedMLP matmul) + BN batch statistics
# --------------------------------------------------------------------------
def _point_mlp_kernel(x_ref, w_ref, b_ref, y_ref, st_ref):
    y = jnp.dot(w_ref[...], x_ref[0],
                preferred_element_type=jnp.float32) + b_ref[...]
    y_ref[0] = y
    st_ref[0, 0, :, 0:1] = jnp.sum(y, axis=1, keepdims=True)
    st_ref[0, 0, :, 1:2] = jnp.sum(y * y, axis=1, keepdims=True)


def point_mlp(x, w, bias, tile_n):
    B, cin, N = x.shape
    cout = w.shape[0]
    nt = N // tile_n
    return pl.pallas_call(
        _point_mlp_kernel,
        out_shape=(jax.ShapeDtypeStruct((B, cout, N), jnp.float32),
                   jax.ShapeDtypeStruct((B, nt, cout, 2), jnp.float32)),
        grid=(B, nt),
        in_specs=[pl.BlockSpec((1, cin, tile_n), lambda b, t: (b, 0, t)),
                  pl.BlockSpec((cout, cin), lambda b, t: (0, 0)),
                  pl.BlockSpec((cout, 1), lambda b, t: (0, 0))],
        out_specs=(pl.BlockSpec((1, cout, tile_n), lambda b, t: (b, 0, t)),
                   pl.BlockSpec((1, 1, cout, 2), lambda b, t: (b, t, 0, 0))),
        compiler_params=pltpu.CompilerParams(
            dimension_semantics=("parallel", "parallel")),
    )(x, w, bias)


# --------------------------------------------------------------------------
# Kernel 4: fused [voxel BN+LeakyReLU] -> trilinear devoxelize ->
#           + [point BN+ReLU]  (interp matrix built per tile in VMEM)
# --------------------------------------------------------------------------
def _devox_fuse_kernel(y2_ref, s2_ref, t2_ref, ci_ref, cw_ref, yp_ref, sp_ref,
                       tp_ref, o_ref, *, r3, slope):
    vox = y2_ref[0] * s2_ref[...] + t2_ref[...]          # (cout, r3)
    vox = jnp.where(vox > 0, vox, slope * vox)           # LeakyReLU(0.1)

    ci = ci_ref[0]                                       # (8, tile_n) int32
    cw = cw_ref[0]                                       # (8, tile_n) f32
    tn = ci.shape[1]
    iota = jax.lax.broadcasted_iota(jnp.int32, (r3, tn), 0)
    interp = jnp.zeros((r3, tn), jnp.float32)
    for c in range(8):
        interp = interp + jnp.where(iota == ci[c:c + 1, :],
                                    cw[c:c + 1, :], 0.0)
    vox_pts = jnp.dot(vox, interp,
                      preferred_element_type=jnp.float32)   # (cout, tile_n)

    pt = yp_ref[0] * sp_ref[...] + tp_ref[...]
    o_ref[0] = vox_pts + jnp.maximum(pt, 0.0)               # ReLU point branch


def devox_fuse(y2, s2, t2, cidx, cwgt, yp, sp, tp, tile_n, slope=0.1):
    B, cout, r3 = y2.shape
    N = cidx.shape[2]
    nt = N // tile_n
    kern = functools.partial(_devox_fuse_kernel, r3=r3, slope=slope)
    return pl.pallas_call(
        kern,
        out_shape=jax.ShapeDtypeStruct((B, cout, N), jnp.float32),
        grid=(B, nt),
        in_specs=[pl.BlockSpec((1, cout, r3), lambda b, t: (b, 0, 0)),
                  pl.BlockSpec((cout, 1), lambda b, t: (0, 0)),
                  pl.BlockSpec((cout, 1), lambda b, t: (0, 0)),
                  pl.BlockSpec((1, 8, tile_n), lambda b, t: (b, 0, t)),
                  pl.BlockSpec((1, 8, tile_n), lambda b, t: (b, 0, t)),
                  pl.BlockSpec((1, cout, tile_n), lambda b, t: (b, 0, t)),
                  pl.BlockSpec((cout, 1), lambda b, t: (0, 0)),
                  pl.BlockSpec((cout, 1), lambda b, t: (0, 0))],
        out_specs=pl.BlockSpec((1, cout, tile_n), lambda b, t: (b, 0, t)),
        compiler_params=pltpu.CompilerParams(
            dimension_semantics=("parallel", "parallel")),
    )(y2, s2, t2, cidx, cwgt, yp, sp, tp)


# --------------------------------------------------------------------------
# Host-side helpers
# --------------------------------------------------------------------------
def conv_tap_masks(R, k):
    """Precomputed zero-padding masks per tap, shape (k^3, 1, R^3) f32."""
    p = k // 2
    z, y, x = np.meshgrid(np.arange(R), np.arange(R), np.arange(R),
                          indexing="ij")
    z, y, x = z.reshape(-1), y.reshape(-1), x.reshape(-1)
    masks = np.zeros((k ** 3, 1, R ** 3), np.float32)
    t = 0
    for kd in range(k):
        for kh in range(k):
            for kw in range(k):
                dz, dy, dx = kd - p, kh - p, kw - p
                ok = ((z + dz >= 0) & (z + dz < R) &
                      (y + dy >= 0) & (y + dy < R) &
                      (x + dx >= 0) & (x + dx < R))
                masks[t, 0, :] = ok.astype(np.float32)
                t += 1
    return jnp.asarray(masks)


def bn_affine_from_stats(stats, gamma, beta, eps, count):
    """stats: (C, 2) = [sum, sum_of_squares] -> folded (scale, shift) (C, 1)."""
    mean = stats[:, 0] / count
    var = jnp.maximum(stats[:, 1] / count - mean * mean, 0.0)   # biased var
    scale = gamma / jnp.sqrt(var + eps)
    shift = beta - mean * scale
    return scale.reshape(-1, 1), shift.reshape(-1, 1)


def init_params(key, cin, cout, k):
    ks = jax.random.split(key, 6)

    def u(kk, shape, fan_in):
        bound = 1.0 / jnp.sqrt(float(fan_in))
        return jax.random.uniform(kk, shape, jnp.float32, -bound, bound)

    return dict(
        # Conv3d(cin, cout, k) / Conv3d(cout, cout, k)
        w1=u(ks[0], (cout, cin, k, k, k), cin * k ** 3),
        b1=u(ks[1], (cout,), cin * k ** 3),
        g1=jnp.ones((cout,), jnp.float32), be1=jnp.zeros((cout,), jnp.float32),
        w2=u(ks[2], (cout, cout, k, k, k), cout * k ** 3),
        b2=u(ks[3], (cout,), cout * k ** 3),
        g2=jnp.ones((cout,), jnp.float32), be2=jnp.zeros((cout,), jnp.float32),
        # SharedMLP: Conv1d(cin, cout, 1)
        wp=u(ks[4], (cout, cin, 1), cin),
        bp=u(ks[5], (cout,), cin),
        gp=jnp.ones((cout,), jnp.float32), bep=jnp.zeros((cout,), jnp.float32),
    )


# --------------------------------------------------------------------------
# PVConv forward
# --------------------------------------------------------------------------
def pvconv_forward(features, coords, params, *, resolution, kernel_size,
                   eps_vox=0.0):
    B, Cin, N = features.shape
    R = resolution
    R3 = R * R * R
    k = kernel_size
    Cout = params["b1"].shape[0]
    features = features.astype(jnp.float32)
    coords = coords.astype(jnp.float32)

    # Demo: one point tile; at large N choose a multiple of 128 dividing N.
    tile_n = N

    # ---- Voxelization coord normalization (normalize=True, eps=0) ----------
    norm = coords - coords.mean(axis=2, keepdims=True)
    norm = norm / (jnp.linalg.norm(norm, axis=1, keepdims=True)
                   .max(axis=2, keepdims=True) * 2.0 + eps_vox) + 0.5
    norm_coords = jnp.clip(norm * R, 0.0, R - 1)                 # (B, 3, N)
    vox_idx = jnp.round(norm_coords).astype(jnp.int32)
    flat = (vox_idx[:, 0] * R + vox_idx[:, 1]) * R + vox_idx[:, 2]   # (B, N)

    # ---- avg_voxelize (Pallas, indices + ones channel for counts) ----------
    feat_aug = jnp.concatenate(
        [features, jnp.ones((B, 1, N), jnp.float32)], axis=1)    # (B, Cin+1, N)
    vox = voxelize_avg(flat.reshape(B, N, 1), feat_aug, R3, Cin, tile_n)

    # ---- voxel layers: [Conv3d -> BN(1e-4) -> LeakyReLU(0.1)] x 2 ----------
    masks = conv_tap_masks(R, k)
    w1 = params["w1"].transpose(2, 3, 4, 0, 1).reshape(k ** 3, Cout, Cin)
    w2 = params["w2"].transpose(2, 3, 4, 0, 1).reshape(k ** 3, Cout, Cout)
    w1 = w1.astype(jnp.bfloat16)
    w2 = w2.astype(jnp.bfloat16)

    ones_in = jnp.ones((Cin, 1), jnp.float32)
    zeros_in = jnp.zeros((Cin, 1), jnp.float32)
    y1, st1 = conv3d_stats(vox, w1, masks, params["b1"].reshape(Cout, 1),
                           ones_in, zeros_in, R=R, k=k,
                           apply_act=False, slope=0.1)
    s1, sh1 = bn_affine_from_stats(st1.sum(axis=0), params["g1"],
                                   params["be1"], 1e-4, B * R3)
    # layer-1 BN affine + LeakyReLU fused into layer-2's conv input load
    y2, st2 = conv3d_stats(y1, w2, masks, params["b2"].reshape(Cout, 1),
                           s1, sh1, R=R, k=k, apply_act=True, slope=0.1)
    s2, sh2 = bn_affine_from_stats(st2.sum(axis=0), params["g2"],
                                   params["be2"], 1e-4, B * R3)

    # ---- point branch: Conv1d(1x1) -> BN(1e-5) -> ReLU ---------------------
    wp = params["wp"][:, :, 0].astype(jnp.bfloat16)              # (Cout, Cin)
    yp, stp = point_mlp(features.astype(jnp.bfloat16), wp,
                        params["bp"].reshape(Cout, 1), tile_n)
    sp, shp = bn_affine_from_stats(stp.sum(axis=(0, 1)), params["gp"],
                                   params["bep"], 1e-5, B * N)

    # ---- trilinear corner indices / weights (cheap JAX glue) ---------------
    lo = jnp.floor(norm_coords)
    frac = norm_coords - lo
    lo_i = lo.astype(jnp.int32)
    hi_i = jnp.minimum(lo_i + 1, R - 1)
    ci_list, cw_list = [], []
    for bx in (0, 1):
        for by in (0, 1):
            for bz in (0, 1):
                ix = hi_i[:, 0] if bx else lo_i[:, 0]
                iy = hi_i[:, 1] if by else lo_i[:, 1]
                iz = hi_i[:, 2] if bz else lo_i[:, 2]
                wx = frac[:, 0] if bx else (1.0 - frac[:, 0])
                wy = frac[:, 1] if by else (1.0 - frac[:, 1])
                wz = frac[:, 2] if bz else (1.0 - frac[:, 2])
                ci_list.append((ix * R + iy) * R + iz)
                cw_list.append(wx * wy * wz)
    cidx = jnp.stack(ci_list, axis=1)                            # (B, 8, N)
    cwgt = jnp.stack(cw_list, axis=1)                            # (B, 8, N)

    # ---- fused: voxel BN+LReLU -> devoxelize -> + point BN+ReLU ------------
    fused = devox_fuse(y2, s2, sh2, cidx, cwgt, yp, sp, shp, tile_n)
    return fused, coords


# --------------------------------------------------------------------------
if __name__ == "__main__":
    key = jax.random.PRNGKey(0)
    B, Cin, Cout, N, R, K = 2, 4, 8, 64, 4, 3

    k_feat, k_coord, k_param = jax.random.split(key, 3)
    features = jax.random.normal(k_feat, (B, Cin, N), jnp.float32)
    coords = jax.random.normal(k_coord, (B, 3, N), jnp.float32)
    params = init_params(k_param, Cin, Cout, K)

    fwd = jax.jit(functools.partial(pvconv_forward, resolution=R,
                                    kernel_size=K))
    fused, out_coords = fwd(features, coords, params)
    jax.block_until_ready(fused)

    assert fused.shape == (B, Cout, N)
    assert out_coords.shape == (B, 3, N)
    assert bool(jnp.all(jnp.isfinite(fused)))
    print("KERNEL_OK")
</pallas_src>

<mosaic_0001>
module attributes {stable_mosaic.version = 11 : i64} {
  func.func @_voxelize_kernel(%arg0: i32, %arg1: i32, %arg2: memref<1x64x1xi32, #tpu.memory_space<vmem>>, %arg3: memref<1x5x64xf32, #tpu.memory_space<vmem>>, %arg4: memref<1x4x64xf32, #tpu.memory_space<vmem>>, %arg5: memref<5x64xf32, #tpu.memory_space<vmem>>) attributes {dimension_semantics = [#tpu.dimension_semantics<parallel>, #tpu.dimension_semantics<arbitrary>], iteration_bounds = array<i64: 2, 1>, scalar_prefetch = 0 : i64, scratch_operands = 1 : i64, tpu.core_type = #tpu.core_type<tc>, window_params = [{transform_indices = @transform_0, window_bounds = array<i64: 1, 64, 1>}, {transform_indices = @transform_1, window_bounds = array<i64: 1, 5, 64>}, {transform_indices = @transform_2, window_bounds = array<i64: 1, 4, 64>}]} {
    %c0_i32 = arith.constant 0 : i32
    %0 = arith.cmpi eq, %arg1, %c0_i32 : i32
    %1 = arith.extui %0 : i1 to i32
    %c0_i32_0 = arith.constant 0 : i32
    %2 = arith.cmpi ne, %1, %c0_i32_0 : i32
    scf.if %2 {
      %cst_12 = arith.constant 0.000000e+00 : f32
      %19 = vector.broadcast %cst_12 : f32 to vector<5x64xf32>
      %c0_13 = arith.constant 0 : index
      %c0_14 = arith.constant 0 : index
      %20 = vector.load %arg5[%c0_13, %c0_14] : memref<5x64xf32, #tpu.memory_space<vmem>>, vector<5x64xf32>
      tpu.vector_store %arg5[%c0_13, %c0_14], %19 {strides = array<i32>} : memref<5x64xf32, #tpu.memory_space<vmem>>, vector<5x64xf32>,
    } else {
    }
    %c0 = arith.constant 0 : index
    %c0_1 = arith.constant 0 : index
    %c0_2 = arith.constant 0 : index
    %3 = vector.load %arg2[%c0, %c0_1, %c0_2] : memref<1x64x1xi32, #tpu.memory_space<vmem>>, vector<1x64x1xi32>
    %4 = vector.shape_cast %3 : vector<1x64x1xi32> to vector<64x1xi32>
    %5 = tpu.iota {dimensions = array<i32: 1>} : vector<64x64xi32>
    %6 = vector.broadcast %4 : vector<64x1xi32> to vector<64x64xi32>
    %7 = arith.cmpi eq, %5, %6 : vector<64x64xi32>
    %8 = arith.extui %7 : vector<64x64xi1> to vector<64x64xi32>
    %9 = arith.sitofp %8 : vector<64x64xi32> to vector<64x64xf32>
    %c0_3 = arith.constant 0 : index
    %c0_4 = arith.constant 0 : index
    %10 = vector.load %arg5[%c0_3, %c0_4] : memref<5x64xf32, #tpu.memory_space<vmem>>, vector<5x64xf32>
    %c0_5 = arith.constant 0 : index
    %c0_6 = arith.constant 0 : index
    %c0_7 = arith.constant 0 : index
    %11 = vector.load %arg3[%c0_5, %c0_6, %c0_7] : memref<1x5x64xf32, #tpu.memory_space<vmem>>, vector<1x5x64xf32>
    %12 = vector.shape_cast %11 : vector<1x5x64xf32> to vector<5x64xf32>
    %cst = arith.constant dense<0.000000e+00> : vector<5x64xf32>
    %13 = tpu.matmul %12, %9, %cst {dimension_numbers = #tpu.dot_dimension_numbers<[1], [0], [0], [1], [0, 0, 1, 1], [], []>} : vector<5x64xf32>, vector<64x64xf32>, vector<5x64xf32> -> vector<5x64xf32>
    %14 = arith.addf %10, %13 : vector<5x64xf32>
    %c0_8 = arith.constant 0 : index
    %c0_9 = arith.constant 0 : index
    %15 = vector.load %arg5[%c0_8, %c0_9] : memref<5x64xf32, #tpu.memory_space<vmem>>, vector<5x64xf32>
    tpu.vector_store %arg5[%c0_8, %c0_9], %14 {strides = array<i32>} : memref<5x64xf32, #tpu.memory_space<vmem>>, vector<5x64xf32>,
    %c0_i32_10 = arith.constant 0 : i32
    %16 = arith.cmpi eq, %arg1, %c0_i32_10 : i32
    %17 = arith.extui %16 : i1 to i32
    %c0_i32_11 = arith.constant 0 : i32
    %18 = arith.cmpi ne, %17, %c0_i32_11 : i32
    scf.if %18 {
      %c4 = arith.constant 4 : index
      %c0_12 = arith.constant 0 : index
      %19 = vector.load %arg5[%c4, %c0_12] : memref<5x64xf32, #tpu.memory_space<vmem>>, vector<1x64xf32>
      %cst_13 = arith.constant 1.000000e+00 : f32
      %20 = vector.broadcast %cst_13 : f32 to vector<1x64xf32>
      %21 = arith.maximumf %19, %20 : vector<1x64xf32>
      %c0_14 = arith.constant 0 : index
      %c0_15 = arith.constant 0 : index
      %22 = vector.load %arg5[%c0_14, %c0_15] : memref<5x64xf32, #tpu.memory_space<vmem>>, vector<4x64xf32>
      %23 = vector.broadcast %21 : vector<1x64xf32> to vector<4x64xf32>
      %24 = arith.divf %22, %23 : vector<4x64xf32>
      %c0_16 = arith.constant 0 : index
      %c0_17 = arith.constant 0 : index
      %c0_18 = arith.constant 0 : index
      %25 = vector.load %arg4[%c0_16, %c0_17, %c0_18] : memref<1x4x64xf32, #tpu.memory_space<vmem>>, vector<1x4x64xf32>
      %26 = vector.shape_cast %25 : vector<1x4x64xf32> to vector<4x64xf32>
      %27 = vector.shape_cast %24 : vector<4x64xf32> to vector<1x4x64xf32>
      tpu.vector_store %arg4[%c0_16, %c0_17, %c0_18], %27 {strides = array<i32>} : memref<1x4x64xf32, #tpu.memory_space<vmem>>, vector<1x4x64xf32>,
    } else {
    }
    return
  }
  func.func @transform_0(%arg0: i32, %arg1: i32) -> (i32, i32, i32) {
    %c0_i32 = arith.constant 0 : i32
    %c0_i32_0 = arith.constant 0 : i32
    return %arg0, %arg1, %c0_i32 : i32, i32, i32
  }
  func.func @transform_1(%arg0: i32, %arg1: i32) -> (i32, i32, i32) {
    %c0_i32 = arith.constant 0 : i32
    %c0_i32_0 = arith.constant 0 : i32
    return %arg0, %c0_i32, %arg1 : i32, i32, i32
  }
  func.func @transform_2(%arg0: i32, %arg1: i32) -> (i32, i32, i32) {
    %c0_i32 = arith.constant 0 : i32
    %c0_i32_0 = arith.constant 0 : i32
    %c0_i32_1 = arith.constant 0 : i32
    return %arg0, %c0_i32, %c0_i32_0 : i32, i32, i32
  }
}

module attributes {stable_mosaic.version = 11 : i64} {
  func.func @_conv3d_kernel(%arg0: i32, %arg1: memref<1x4x64xf32, #tpu.memory_space<vmem>>, %arg2: memref<27x8x4xbf16, #tpu.memory_space<vmem>>, %arg3: memref<27x1x64xf32, #tpu.memory_space<vmem>>, %arg4: memref<8x1xf32, #tpu.memory_space<vmem>>, %arg5: memref<4x1xf32, #tpu.memory_space<vmem>>, %arg6: memref<4x1xf32, #tpu.memory_space<vmem>>, %arg7: memref<1x8x64xf32, #tpu.memory_space<vmem>>, %arg8: memref<1x8x2xf32, #tpu.memory_space<vmem>>) attributes {dimension_semantics = [#tpu.dimension_semantics<parallel>], iteration_bounds = array<i64: 2>, scalar_prefetch = 0 : i64, scratch_operands = 0 : i64, tpu.core_type = #tpu.core_type<tc>, window_params = [{transform_indices = @transform_0, window_bounds = array<i64: 1, 4, 64>}, {pipeline_mode = #tpu.pipeline_mode<synchronous>, transform_indices = @transform_1, window_bounds = array<i64: 27, 8, 4>}, {pipeline_mode = #tpu.pipeline_mode<synchronous>, transform_indices = @transform_2, window_bounds = array<i64: 27, 1, 64>}, {pipeline_mode = #tpu.pipeline_mode<synchronous>, transform_indices = @transform_3, window_bounds = array<i64: 8, 1>}, {pipeline_mode = #tpu.pipeline_mode<synchronous>, transform_indices = @transform_4, window_bounds = array<i64: 4, 1>}, {pipeline_mode = #tpu.pipeline_mode<synchronous>, transform_indices = @transform_5, window_bounds = array<i64: 4, 1>}, {transform_indices = @transform_6, window_bounds = array<i64: 1, 8, 64>}, {transform_indices = @transform_7, window_bounds = array<i64: 1, 8, 2>}]} {
    %c0 = arith.constant 0 : index
    %c0_0 = arith.constant 0 : index
    %c0_1 = arith.constant 0 : index
    %0 = vector.load %arg1[%c0, %c0_0, %c0_1] : memref<1x4x64xf32, #tpu.memory_space<vmem>>, vector<1x4x64xf32>
    %1 = vector.shape_cast %0 : vector<1x4x64xf32> to vector<4x64xf32>
    %cst = arith.constant 0.000000e+00 : f32
    %2 = vector.broadcast %cst : f32 to vector<8x64xf32>
    %c21_i32 = arith.constant 21 : i32
    %3 = tpu.dynamic_rotate %1 by %c21_i32 dim 1 : vector<4x64xf32>, i32 -> vector<4x64xf32>
    %c0_2 = arith.constant 0 : index
    %c0_3 = arith.constant 0 : index
    %c0_4 = arith.constant 0 : index
    %4 = vector.load %arg3[%c0_2, %c0_3, %c0_4] : memref<27x1x64xf32, #tpu.memory_space<vmem>>, vector<1x1x64xf32>
    %5 = vector.shape_cast %4 : vector<1x1x64xf32> to vector<1x64xf32>
    %6 = vector.broadcast %5 : vector<1x64xf32> to vector<4x64xf32>
    %7 = arith.mulf %3, %6 : vector<4x64xf32>
    %8 = arith.truncf %7 : vector<4x64xf32> to vector<4x64xbf16>
    %c0_5 = arith.constant 0 : index
    %c0_6 = arith.constant 0 : index
    %c0_7 = arith.constant 0 : index
    %9 = vector.load %arg2[%c0_5, %c0_6, %c0_7] : memref<27x8x4xbf16, #tpu.memory_space<vmem>>, vector<1x8x4xbf16>
    %10 = vector.shape_cast %9 : vector<1x8x4xbf16> to vector<8x4xbf16>
    %cst_8 = arith.constant dense<0.000000e+00> : vector<8x64xf32>
    %11 = tpu.matmul %10, %8, %cst_8 {dimension_numbers = #tpu.dot_dimension_numbers<[1], [0], [0], [1], [0, 0, 1, 1], [], []>} : vector<8x4xbf16>, vector<4x64xbf16>, vector<8x64xf32> -> vector<8x64xf32>
    %12 = arith.addf %2, %11 : vector<8x64xf32>
    %c20_i32 = arith.constant 20 : i32
    %13 = tpu.dynamic_rotate %1 by %c20_i32 dim 1 : vector<4x64xf32>, i32 -> vector<4x64xf32>
    %c1 = arith.constant 1 : index
    %c0_9 = arith.constant 0 : index
    %c0_10 = arith.constant 0 : index
    %14 = vector.load %arg3[%c1, %c0_9, %c0_10] : memref<27x1x64xf32, #tpu.memory_space<vmem>>, vector<1x1x64xf32>
    %15 = vector.shape_cast %14 : vector<1x1x64xf32> to vector<1x64xf32>
    %16 = vector.broadcast %15 : vector<1x64xf32> to vector<4x64xf32>
    %17 = arith.mulf %13, %16 : vector<4x64xf32>
    %18 = arith.truncf %17 : vector<4x64xf32> to vector<4x64xbf16>
    %c1_11 = arith.constant 1 : index
    %c0_12 = arith.constant 0 : index
    %c0_13 = arith.constant 0 : index
    %19 = vector.load %arg2[%c1_11, %c0_12, %c0_13] : memref<27x8x4xbf16, #tpu.memory_space<vmem>>, vector<1x8x4xbf16>
    %20 = vector.shape_cast %19 : vector<1x8x4xbf16> to vector<8x4xbf16>
    %cst_14 = arith.constant dense<0.000000e+00> : vector<8x64xf32>
    %21 = tpu.matmul %20, %18, %cst_14 {dimension_numbers = #tpu.dot_dimension_numbers<[1], [0], [0], [1], [0, 0, 1, 1], [], []>} : vector<8x4xbf16>, vector<4x64xbf16>, vector<8x64xf32> -> vector<8x64xf32>
    %22 = arith.addf %12, %21 : vector<8x64xf32>
    %c19_i32 = arith.constant 19 : i32
    %23 = tpu.dynamic_rotate %1 by %c19_i32 dim 1 : vector<4x64xf32>, i32 -> vector<4x64xf32>
    %c2 = arith.constant 2 : index
    %c0_15 = arith.constant 0 : index
    %c0_16 = arith.constant 0 : index
    %24 = vector.load %arg3[%c2, %c0_15, %c0_16] : memref<27x1x64xf32, #tpu.memory_space<vmem>>, vector<1x1x64xf32>
    %25 = vector.shape_cast %24 : vector<1x1x64xf32> to vector<1x64xf32>
    %26 = vector.broadcast %25 : vector<1x64xf32> to vector<4x64xf32>
    %27 = arith.mulf %23, %26 : vector<4x64xf32>
    %28 = arith.truncf %27 : vector<4x64xf32> to vector<4x64xbf16>
    %c2_17 = arith.constant 2 : index
    %c0_18 = arith.constant 0 : index
    %c0_19 = arith.constant 0 : index
    %29 = vector.load %arg2[%c2_17, %c0_18, %c0_19] : memref<27x8x4xbf16, #tpu.memory_space<vmem>>, vector<1x8x4xbf16>
    %30 = vector.shape_cast %29 : vector<1x8x4xbf16> to vector<8x4xbf16>
    %cst_20 = arith.constant dense<0.000000e+00> : vector<8x64xf32>
    %31 = tpu.matmul %30, %28, %cst_20 {dimension_numbers = #tpu.dot_dimension_numbers<[1], [0], [0], [1], [0, 0, 1, 1], [], []>} : vector<8x4xbf16>, vector<4x64xbf16>, vector<8x64xf32> -> vector<8x64xf32>
    %32 = arith.addf %22, %31 : vector<8x64xf32>
    %c17_i32 = arith.constant 17 : i32
    %33 = tpu.dynamic_rotate %1 by %c17_i32 dim 1 : vector<4x64xf32>, i32 -> vector<4x64xf32>
    %c3 = arith.constant 3 : index
    %c0_21 = arith.constant 0 : index
    %c0_22 = arith.constant 0 : index
    %34 = vector.load %arg3[%c3, %c0_21, %c0_22] : memref<27x1x64xf32, #tpu.memory_space<vmem>>, vector<1x1x64xf32>
    %35 = vector.shape_cast %34 : vector<1x1x64xf32> to vector<1x64xf32>
    %36 = vector.broadcast %35 : vector<1x64xf32> to vector<4x64xf32>
    %37 = arith.mulf %33, %36 : vector<4x64xf32>
    %38 = arith.truncf %37 : vector<4x64xf32> to vector<4x64xbf16>
    %c3_23 = arith.constant 3 : index
    %c0_24 = arith.constant 0 : index
    %c0_25 = arith.constant 0 : index
    %39 = vector.load %arg2[%c3_23, %c0_24, %c0_25] : memref<27x8x4xbf16, #tpu.memory_space<vmem>>, vector<1x8x4xbf16>
    %40 = vector.shape_cast %39 : vector<1x8x4xbf16> to vector<8x4xbf16>
    %cst_26 = arith.constant dense<0.000000e+00> : vector<8x64xf32>
    %41 = tpu.matmul %40, %38, %cst_26 {dimension_numbers = #tpu.dot_dimension_numbers<[1], [0], [0], [1], [0, 0, 1, 1], [], []>} : vector<8x4xbf16>, vector<4x64xbf16>, vector<8x64xf32> -> vector<8x64xf32>
    %42 = arith.addf %32, %41 : vector<8x64xf32>
    %c16_i32 = arith.constant 16 : i32
    %43 = tpu.dynamic_rotate %1 by %c16_i32 dim 1 : vector<4x64xf32>, i32 -> vector<4x64xf32>
    %c4 = arith.constant 4 : index
    %c0_27 = arith.constant 0 : index
    %c0_28 = arith.constant 0 : index
    %44 = vector.load %arg3[%c4, %c0_27, %c0_28] : memref<27x1x64xf32, #tpu.memory_space<vmem>>, vector<1x1x64xf32>
    %45 = vector.shape_cast %44 : vector<1x1x64xf32> to vector<1x64xf32>
    %46 = vector.broadcast %45 : vector<1x64xf32> to vector<4x64xf32>
    %47 = arith.mulf %43, %46 : vector<4x64xf32>
    %48 = arith.truncf %47 : vector<4x64xf32> to vector<4x64xbf16>
    %c4_29 = arith.constant 4 : index
    %c0_30 = arith.constant 0 : index
    %c0_31 = arith.constant 0 : index
    %49 = vector.load %arg2[%c4_29, %c0_30, %c0_31] : memref<27x8x4xbf16, #tpu.memory_space<vmem>>, vector<1x8x4xbf16>
    %50 = vector.shape_cast %49 : vector<1x8x4xbf16> to vector<8x4xbf16>
    %cst_32 = arith.constant dense<0.000000e+00> : vector<8x64xf32>
    %51 = tpu.matmul %50, %48, %cst_32 {dimension_numbers = #tpu.dot_dimension_numbers<[1], [0], [0], [1], [0, 0, 1, 1], [], []>} : vector<8x4xbf16>, vector<4x64xbf16>, vector<8x64xf32> -> vector<8x64xf32>
    %52 = arith.addf %42, %51 : vector<8x64xf32>
    %c15_i32 = arith.constant 15 : i32
    %53 = tpu.dynamic_rotate %1 by %c15_i32 dim 1 : vector<4x64xf32>, i32 -> vector<4x64xf32>
    %c5 = arith.constant 5 : index
    %c0_33 = arith.constant 0 : index
    %c0_34 = arith.constant 0 : index
    %54 = vector.load %arg3[%c5, %c0_33, %c0_34] : memref<27x1x64xf32, #tpu.memory_space<vmem>>, vector<1x1x64xf32>
    %55 = vector.shape_cast %54 : vector<1x1x64xf32> to vector<1x64xf32>
    %56 = vector.broadcast %55 : vector<1x64xf32> to vector<4x64xf32>
    %57 = arith.mulf %53, %56 : vector<4x64xf32>
    %58 = arith.truncf %57 : vector<4x64xf32> to vector<4x64xbf16>
    %c5_35 = arith.constant 5 : index
    %c0_36 = arith.constant 0 : index
    %c0_37 = arith.constant 0 : index
    %59 = vector.load %arg2[%c5_35, %c0_36, %c0_37] : memref<27x8x4xbf16, #tpu.memory_space<vmem>>, vector<1x8x4xbf16>
    %60 = vector.shape_cast %59 : vector<1x8x4xbf16> to vector<8x4xbf16>
    %cst_38 = arith.constant dense<0.000000e+00> : vector<8x64xf32>
    %61 = tpu.matmul %60, %58, %cst_38 {dimension_numbers = #tpu.dot_dimension_numbers<[1], [0], [0], [1], [0, 0, 1, 1], [], []>} : vector<8x4xbf16>, vector<4x64xbf16>, vector<8x64xf32> -> vector<8x64xf32>
    %62 = arith.addf %52, %61 : vector<8x64xf32>
    %c13_i32 = arith.constant 13 : i32
    %63 = tpu.dynamic_rotate %1 by %c13_i32 dim 1 : vector<4x64xf32>, i32 -> vector<4x64xf32>
    %c6 = arith.constant 6 : index
    %c0_39 = arith.constant 0 : index
    %c0_40 = arith.constant 0 : index
    %64 = vector.load %arg3[%c6, %c0_39, %c0_40] : memref<27x1x64xf32, #tpu.memory_space<vmem>>, vector<1x1x64xf32>
    %65 = vector.shape_cast %64 : vector<1x1x64xf32> to vector<1x64xf32>
    %66 = vector.broadcast %65 : vector<1x64xf32> to vector<4x64xf32>
    %67 = arith.mulf %63, %66 : vector<4x64xf32>
    %68 = arith.truncf %67 : vector<4x64xf32> to vector<4x64xbf16>
    %c6_41 = arith.constant 6 : index
    %c0_42 = arith.constant 0 : index
    %c0_43 = arith.constant 0 : index
    %69 = vector.load %arg2[%c6_41, %c0_42, %c0_43] : memref<27x8x4xbf16, #tpu.memory_space<vmem>>, vector<1x8x4xbf16>
    %70 = vector.shape_cast %69 : vector<1x8x4xbf16> to vector<8x4xbf16>
    %cst_44 = arith.constant dense<0.000000e+00> : vector<8x64xf32>
    %71 = tpu.matmul %70, %68, %cst_44 {dimension_numbers = #tpu.dot_dimension_numbers<[1], [0], [0], [1], [0, 0, 1, 1], [], []>} : vector<8x4xbf16>, vector<4x64xbf16>, vector<8x64xf32> -> vector<8x64xf32>
    %72 = arith.addf %62, %71 : vector<8x64xf32>
    %c12_i32 = arith.constant 12 : i32
    %73 = tpu.dynamic_rotate %1 by %c12_i32 dim 1 : vector<4x64xf32>, i32 -> vector<4x64xf32>
    %c7 = arith.constant 7 : index
    %c0_45 = arith.constant 0 : index
    %c0_46 = arith.constant 0 : index
    %74 = vector.load %arg3[%c7, %c0_45, %c0_46] : memref<27x1x64xf32, #tpu.memory_space<vmem>>, vector<1x1x64xf32>
    %75 = vector.shape_cast %74 : vector<1x1x64xf32> to vector<1x64xf32>
    %76 = vector.broadcast %75 : vector<1x64xf32> to vector<4x64xf32>
    %77 = arith.mulf %73, %76 : vector<4x64xf32>
    %78 = arith.truncf %77 : vector<4x64xf32> to vector<4x64xbf16>
    %c7_47 = arith.constant 7 : index
    %c0_48 = arith.constant 0 : index
    %c0_49 = arith.constant 0 : index
    %79 = vector.load %arg2[%c7_47, %c0_48, %c0_49] : memref<27x8x4xbf16, #tpu.memory_space<vmem>>, vector<1x8x4xbf16>
    %80 = vector.shape_cast %79 : vector<1x8x4xbf16> to vector<8x4xbf16>
    %cst_50 = arith.constant dense<0.000000e+00> : vector<8x64xf32>
    %81 = tpu.matmul %80, %78, %cst_50 {dimension_numbers = #tpu.dot_dimension_numbers<[1], [0], [0], [1], [0, 0, 1, 1], [], []>} : vector<8x4xbf16>, vector<4x64xbf16>, vector<8x64xf32> -> vector<8x64xf32>
    %82 = arith.addf %72, %81 : vector<8x64xf32>
    %c11_i32 = arith.constant 11 : i32
    %83 = tpu.dynamic_rotate %1 by %c11_i32 dim 1 : vector<4x64xf32>, i32 -> vector<4x64xf32>
    %c8 = arith.constant 8 : index
    %c0_51 = arith.constant 0 : index
    %c0_52 = arith.constant 0 : index
    %84 = vector.load %arg3[%c8, %c0_51, %c0_52] : memref<27x1x64xf32, #tpu.memory_space<vmem>>, vector<1x1x64xf32>
    %85 = vector.shape_cast %84 : vector<1x1x64xf32> to vector<1x64xf32>
    %86 = vector.broadcast %85 : vector<1x64xf32> to vector<4x64xf32>
    %87 = arith.mulf %83, %86 : vector<4x64xf32>
    %88 = arith.truncf %87 : vector<4x64xf32> to vector<4x64xbf16>
    %c8_53 = arith.constant 8 : index
    %c0_54 = arith.constant 0 : index
    %c0_55 = arith.constant 0 : index
    %89 = vector.load %arg2[%c8_53, %c0_54, %c0_55] : memref<27x8x4xbf16, #tpu.memory_space<vmem>>, vector<1x8x4xbf16>
    %90 = vector.shape_cast %89 : vector<1x8x4xbf16> to vector<8x4xbf16>
    %cst_56 = arith.constant dense<0.000000e+00> : vector<8x64xf32>
    %91 = tpu.matmul %90, %88, %cst_56 {dimension_numbers = #tpu.dot_dimension_numbers<[1], [0], [0], [1], [0, 0, 1, 1], [], []>} : vector<8x4xbf16>, vector<4x64xbf16>, vector<8x64xf32> -> vector<8x64xf32>
    %92 = arith.addf %82, %91 : vector<8x64xf32>
    %c5_i32 = arith.constant 5 : i32
    %93 = tpu.dynamic_rotate %1 by %c5_i32 dim 1 : vector<4x64xf32>, i32 -> vector<4x64xf32>
    %c9 = arith.constant 9 : index
    %c0_57 = arith.constant 0 : index
    %c0_58 = arith.constant 0 : index
    %94 = vector.load %arg3[%c9, %c0_57, %c0_58] : memref<27x1x64xf32, #tpu.memory_space<vmem>>, vector<1x1x64xf32>
    %95 = vector.shape_cast %94 : vector<1x1x64xf32> to vector<1x64xf32>
    %96 = vector.broadcast %95 : vector<1x64xf32> to vector<4x64xf32>
    %97 = arith.mulf %93, %96 : vector<4x64xf32>
    %98 = arith.truncf %97 : vector<4x64xf32> to vector<4x64xbf16>
    %c9_59 = arith.constant 9 : index
    %c0_60 = arith.constant 0 : index
    %c0_61 = arith.constant 0 : index
    %99 = vector.load %arg2[%c9_59, %c0_60, %c0_61] : memref<27x8x4xbf16, #tpu.memory_space<vmem>>, vector<1x8x4xbf16>
    %100 = vector.shape_cast %99 : vector<1x8x4xbf16> to vector<8x4xbf16>
    %cst_62 = arith.constant dense<0.000000e+00> : vector<8x64xf32>
    %101 = tpu.matmul %100, %98, %cst_62 {dimension_numbers = #tpu.dot_dimension_numbers<[1], [0], [0], [1], [0, 0, 1, 1], [], []>} : vector<8x4xbf16>, vector<4x64xbf16>, vector<8x64xf32> -> vector<8x64xf32>
    %102 = arith.addf %92, %101 : vector<8x64xf32>
    %c4_i32 = arith.constant 4 : i32
    %103 = tpu.dynamic_rotate %1 by %c4_i32 dim 1 : vector<4x64xf32>, i32 -> vector<4x64xf32>
    %c10 = arith.constant 10 : index
    %c0_63 = arith.constant 0 : index
    %c0_64 = arith.constant 0 : index
    %104 = vector.load %arg3[%c10, %c0_63, %c0_64] : memref<27x1x64xf32, #tpu.memory_space<vmem>>, vector<1x1x64xf32>
    %105 = vector.shape_cast %104 : vector<1x1x64xf32> to vector<1x64xf32>
    %106 = vector.broadcast %105 : vector<1x64xf32> to vector<4x64xf32>
    %107 = arith.mulf %103, %106 : vector<4x64xf32>
    %108 = arith.truncf %107 : vector<4x64xf32> to vector<4x64xbf16>
    %c10_65 = arith.constant 10 : index
    %c0_66 = arith.constant 0 : index
    %c0_67 = arith.constant 0 : index
    %109 = vector.load %arg2[%c10_65, %c0_66, %c0_67] : memref<27x8x4xbf16, #tpu.memory_space<vmem>>, vector<1x8x4xbf16>
    %110 = vector.shape_cast %109 : vector<1x8x4xbf16> to vector<8x4xbf16>
    %cst_68 = arith.constant dense<0.000000e+00> : vector<8x64xf32>
    %111 = tpu.matmul %110, %108, %cst_68 {dimension_numbers = #tpu.dot_dimension_numbers<[1], [0], [0], [1], [0, 0, 1, 1], [], []>} : vector<8x4xbf16>, vector<4x64xbf16>, vector<8x64xf32> -> vector<8x64xf32>
    %112 = arith.addf %102, %111 : vector<8x64xf32>
    %c3_i32 = arith.constant 3 : i32
    %113 = tpu.dynamic_rotate %1 by %c3_i32 dim 1 : vector<4x64xf32>, i32 -> vector<4x64xf32>
    %c11 = arith.constant 11 : index
    %c0_69 = arith.constant 0 : index
    %c0_70 = arith.constant 0 : index
    %114 = vector.load %arg3[%c11, %c0_69, %c0_70] : memref<27x1x64xf32, #tpu.memory_space<vmem>>, vector<1x1x64xf32>
    %115 = vector.shape_cast %114 : vector<1x1x64xf32> to vector<1x64xf32>
    %116 = vector.broadcast %115 : vector<1x64xf32> to vector<4x64xf32>
    %117 = arith.mulf %113, %116 : vector<4x64xf32>
    %118 = arith.truncf %117 : vector<4x64xf32> to vector<4x64xbf16>
    %c11_71 = arith.constant 11 : index
    %c0_72 = arith.constant 0 : index
    %c0_73 = arith.constant 0 : index
    %119 = vector.load %arg2[%c11_71, %c0_72, %c0_73] : memref<27x8x4xbf16, #tpu.memory_space<vmem>>, vector<1x8x4xbf16>
    %120 = vector.shape_cast %119 : vector<1x8x4xbf16> to vector<8x4xbf16>
    %cst_74 = arith.constant dense<0.000000e+00> : vector<8x64xf32>
    %121 = tpu.matmul %120, %118, %cst_74 {dimension_numbers = #tpu.dot_dimension_numbers<[1], [0], [0], [1], [0, 0, 1, 1], [], []>} : vector<8x4xbf16>, vector<4x64xbf16>, vector<8x64xf32> -> vector<8x64xf32>
    %122 = arith.addf %112, %121 : vector<8x64xf32>
    %c1_i32 = arith.constant 1 : i32
    %123 = tpu.dynamic_rotate %1 by %c1_i32 dim 1 : vector<4x64xf32>, i32 -> vector<4x64xf32>
    %c12 = arith.constant 12 : index
    %c0_75 = arith.constant 0 : index
    %c0_76 = arith.constant 0 : index
    %124 = vector.load %arg3[%c12, %c0_75, %c0_76] : memref<27x1x64xf32, #tpu.memory_space<vmem>>, vector<1x1x64xf32>
    %125 = vector.shape_cast %124 : vector<1x1x64xf32> to vector<1x64xf32>
    %126 = vector.broadcast %125 : vector<1x64xf32> to vector<4x64xf32>
    %127 = arith.mulf %123, %126 : vector<4x64xf32>
    %128 = arith.truncf %127 : vector<4x64xf32> to vector<4x64xbf16>
    %c12_77 = arith.constant 12 : index
    %c0_78 = arith.constant 0 : index
    %c0_79 = arith.constant 0 : index
    %129 = vector.load %arg2[%c12_77, %c0_78, %c0_79] : memref<27x8x4xbf16, #tpu.memory_space<vmem>>, vector<1x8x4xbf16>
    %130 = vector.shape_cast %129 : vector<1x8x4xbf16> to vector<8x4xbf16>
    %cst_80 = arith.constant dense<0.000000e+00> : vector<8x64xf32>
    %131 = tpu.matmul %130, %128, %cst_80 {dimension_numbers = #tpu.dot_dimension_numbers<[1], [0], [0], [1], [0, 0, 1, 1], [], []>} : vector<8x4xbf16>, vector<4x64xbf16>, vector<8x64xf32> -> vector<8x64xf32>
    %132 = arith.addf %122, %131 : vector<8x64xf32>
    %c13 = arith.constant 13 : index
    %c0_81 = arith.constant 0 : index
    %c0_82 = arith.constant 0 : index
    %133 = vector.load %arg3[%c13, %c0_81, %c0_82] : memref<27x1x64xf32, #tpu.memory_space<vmem>>, vector<1x1x64xf32>
    %134 = vector.shape_cast %133 : vector<1x1x64xf32> to vector<1x64xf32>
    %135 = vector.broadcast %134 : vector<1x64xf32> to vector<4x64xf32>
    %136 = arith.mulf %1, %135 : vector<4x64xf32>
    %137 = arith.truncf %136 : vector<4x64xf32> to vector<4x64xbf16>
    %c13_83 = arith.constant 13 : index
    %c0_84 = arith.constant 0 : index
    %c0_85 = arith.constant 0 : index
    %138 = vector.load %arg2[%c13_83, %c0_84, %c0_85] : memref<27x8x4xbf16, #tpu.memory_space<vmem>>, vector<1x8x4xbf16>
    %139 = vector.shape_cast %138 : vector<1x8x4xbf16> to vector<8x4xbf16>
    %cst_86 = arith.constant dense<0.000000e+00> : vector<8x64xf32>
    %140 = tpu.matmul %139, %137, %cst_86 {dimension_numbers = #tpu.dot_dimension_numbers<[1], [0], [0], [1], [0, 0, 1, 1], [], []>} : vector<8x4xbf16>, vector<4x64xbf16>, vector<8x64xf32> -> vector<8x64xf32>
    %141 = arith.addf %132, %140 : vector<8x64xf32>
    %c63_i32 = arith.constant 63 : i32
    %142 = tpu.dynamic_rotate %1 by %c63_i32 dim 1 : vector<4x64xf32>, i32 -> vector<4x64xf32>
    %c14 = arith.constant 14 : index
    %c0_87 = arith.constant 0 : index
    %c0_88 = arith.constant 0 : index
    %143 = vector.load %arg3[%c14, %c0_87, %c0_88] : memref<27x1x64xf32, #tpu.memory_space<vmem>>, vector<1x1x64xf32>
    %144 = vector.shape_cast %143 : vector<1x1x64xf32> to vector<1x64xf32>
    %145 = vector.broadcast %144 : vector<1x64xf32> to vector<4x64xf32>
    %146 = arith.mulf %142, %145 : vector<4x64xf32>
    %147 = arith.truncf %146 : vector<4x64xf32> to vector<4x64xbf16>
    %c14_89 = arith.constant 14 : index
    %c0_90 = arith.constant 0 : index
    %c0_91 = arith.constant 0 : index
    %148 = vector.load %arg2[%c14_89, %c0_90, %c0_91] : memref<27x8x4xbf16, #tpu.memory_space<vmem>>, vector<1x8x4xbf16>
    %149 = vector.shape_cast %148 : vector<1x8x4xbf16> to vector<8x4xbf16>
    %cst_92 = arith.constant dense<0.000000e+00> : vector<8x64xf32>
    %150 = tpu.matmul %149, %147, %cst_92 {dimension_numbers = #tpu.dot_dimension_numbers<[1], [0], [0], [1], [0, 0, 1, 1], [], []>} : vector<8x4xbf16>, vector<4x64xbf16>, vector<8x64xf32> -> vector<8x64xf32>
    %151 = arith.addf %141, %150 : vector<8x64xf32>
    %c61_i32 = arith.constant 61 : i32
    %152 = tpu.dynamic_rotate %1 by %c61_i32 dim 1 : vector<4x64xf32>, i32 -> vector<4x64xf32>
    %c15 = arith.constant 15 : index
    %c0_93 = arith.constant 0 : index
    %c0_94 = arith.constant 0 : index
    %153 = vector.load %arg3[%c15, %c0_93, %c0_94] : memref<27x1x64xf32, #tpu.memory_space<vmem>>, vector<1x1x64xf32>
    %154 = vector.shape_cast %153 : vector<1x1x64xf32> to vector<1x64xf32>
    %155 = vector.broadcast %154 : vector<1x64xf32> to vector<4x64xf32>
    %156 = arith.mulf %152, %155 : vector<4x64xf32>
    %157 = arith.truncf %156 : vector<4x64xf32> to vector<4x64xbf16>
    %c15_95 = arith.constant 15 : index
    %c0_96 = arith.constant 0 : index
    %c0_97 = arith.constant 0 : index
    %158 = vector.load %arg2[%c15_95, %c0_96, %c0_97] : memref<27x8x4xbf16, #tpu.memory_space<vmem>>, vector<1x8x4xbf16>
    %159 = vector.shape_cast %158 : vector<1x8x4xbf16> to vector<8x4xbf16>
    %cst_98 = arith.constant dense<0.000000e+00> : vector<8x64xf32>
    %160 = tpu.matmul %159, %157, %cst_98 {dimension_numbers = #tpu.dot_dimension_numbers<[1], [0], [0], [1], [0, 0, 1, 1], [], []>} : vector<8x4xbf16>, vector<4x64xbf16>, vector<8x64xf32> -> vector<8x64xf32>
    %161 = arith.addf %151, %160 : vector<8x64xf32>
    %c60_i32 = arith.constant 60 : i32
    %162 = tpu.dynamic_rotate %1 by %c60_i32 dim 1 : vector<4x64xf32>, i32 -> vector<4x64xf32>
    %c16 = arith.constant 16 : index
    %c0_99 = arith.constant 0 : index
    %c0_100 = arith.constant 0 : index
    %163 = vector.load %arg3[%c16, %c0_99, %c0_100] : memref<27x1x64xf32, #tpu.memory_space<vmem>>, vector<1x1x64xf32>
    %164 = vector.shape_cast %163 : vector<1x1x64xf32> to vector<1x64xf32>
    %165 = vector.broadcast %164 : vector<1x64xf32> to vector<4x64xf32>
    %166 = arith.mulf %162, %165 : vector<4x64xf32>
    %167 = arith.truncf %166 : vector<4x64xf32> to vector<4x64xbf16>
    %c16_101 = arith.constant 16 : index
    %c0_102 = arith.constant 0 : index
    %c0_103 = arith.constant 0 : index
    %168 = vector.load %arg2[%c16_101, %c0_102, %c0_103] : memref<27x8x4xbf16, #tpu.memory_space<vmem>>, vector<1x8x4xbf16>
    %169 = vector.shape_cast %168 : vector<1x8x4xbf16> to vector<8x4xbf16>
    %cst_104 = arith.constant dense<0.000000e+00> : vector<8x64xf32>
    %170 = tpu.matmul %169, %167, %cst_104 {dimension_numbers = #tpu.dot_dimension_numbers<[1], [0], [0], [1], [0, 0, 1, 1], [], []>} : vector<8x4xbf16>, vector<4x64xbf16>, vector<8x64xf32> -> vector<8x64xf32>
    %171 = arith.addf %161, %170 : vector<8x64xf32>
    %c59_i32 = arith.constant 59 : i32
    %172 = tpu.dynamic_rotate %1 by %c59_i32 dim 1 : vector<4x64xf32>, i32 -> vector<4x64xf32>
    %c17 = arith.constant 17 : index
    %c0_105 = arith.constant 0 : index
    %c0_106 = arith.constant 0 : index
    %173 = vector.load %arg3[%c17, %c0_105, %c0_106] : memref<27x1x64xf32, #tpu.memory_space<vmem>>, vector<1x1x64xf32>
    %174 = vector.shape_cast %173 : vector<1x1x64xf32> to vector<1x64xf32>
    %175 = vector.broadcast %174 : vector<1x64xf32> to vector<4x64xf32>
    %176 = arith.mulf %172, %175 : vector<4x64xf32>
    %177 = arith.truncf %176 : vector<4x64xf32> to vector<4x64xbf16>
    %c17_107 = arith.constant 17 : index
    %c0_108 = arith.constant 0 : index
    %c0_109 = arith.constant 0 : index
    %178 = vector.load %arg2[%c17_107, %c0_108, %c0_109] : memref<27x8x4xbf16, #tpu.memory_space<vmem>>, vector<1x8x4xbf16>
    %179 = vector.shape_cast %178 : vector<1x8x4xbf16> to vector<8x4xbf16>
    %cst_110 = arith.constant dense<0.000000e+00> : vector<8x64xf32>
    %180 = tpu.matmul %179, %177, %cst_110 {dimension_numbers = #tpu.dot_dimension_numbers<[1], [0], [0], [1], [0, 0, 1, 1], [], []>} : vector<8x4xbf16>, vector<4x64xbf16>, vector<8x64xf32> -> vector<8x64xf32>
    %181 = arith.addf %171, %180 : vector<8x64xf32>
    %c53_i32 = arith.constant 53 : i32
    %182 = tpu.dynamic_rotate %1 by %c53_i32 dim 1 : vector<4x64xf32>, i32 -> vector<4x64xf32>
    %c18 = arith.constant 18 : index
    %c0_111 = arith.constant 0 : index
    %c0_112 = arith.constant 0 : index
    %183 = vector.load %arg3[%c18, %c0_111, %c0_112] : memref<27x1x64xf32, #tpu.memory_space<vmem>>, vector<1x1x64xf32>
    %184 = vector.shape_cast %183 : vector<1x1x64xf32> to vector<1x64xf32>
    %185 = vector.broadcast %184 : vector<1x64xf32> to vector<4x64xf32>
    %186 = arith.mulf %182, %185 : vector<4x64xf32>
    %187 = arith.truncf %186 : vector<4x64xf32> to vector<4x64xbf16>
    %c18_113 = arith.constant 18 : index
    %c0_114 = arith.constant 0 : index
    %c0_115 = arith.constant 0 : index
    %188 = vector.load %arg2[%c18_113, %c0_114, %c0_115] : memref<27x8x4xbf16, #tpu.memory_space<vmem>>, vector<1x8x4xbf16>
    %189 = vector.shape_cast %188 : vector<1x8x4xbf16> to vector<8x4xbf16>
    %cst_116 = arith.constant dense<0.000000e+00> : vector<8x64xf32>
    %190 = tpu.matmul %189, %187, %cst_116 {dimension_numbers = #tpu.dot_dimension_numbers<[1], [0], [0], [1], [0, 0, 1, 1], [], []>} : vector<8x4xbf16>, vector<4x64xbf16>, vector<8x64xf32> -> vector<8x64xf32>
    %191 = arith.addf %181, %190 : vector<8x64xf32>
    %c52_i32 = arith.constant 52 : i32
    %192 = tpu.dynamic_rotate %1 by %c52_i32 dim 1 : vector<4x64xf32>, i32 -> vector<4x64xf32>
    %c19 = arith.constant 19 : index
    %c0_117 = arith.constant 0 : index
    %c0_118 = arith.constant 0 : index
    %193 = vector.load %arg3[%c19, %c0_117, %c0_118] : memref<27x1x64xf32, #tpu.memory_space<vmem>>, vector<1x1x64xf32>
    %194 = vector.shape_cast %193 : vector<1x1x64xf32> to vector<1x64xf32>
    %195 = vector.broadcast %194 : vector<1x64xf32> to vector<4x64xf32>
    %196 = arith.mulf %192, %195 : vector<4x64xf32>
    %197 = arith.truncf %196 : vector<4x64xf32> to vector<4x64xbf16>
    %c19_119 = arith.constant 19 : index
    %c0_120 = arith.constant 0 : index
    %c0_121 = arith.constant 0 : index
    %198 = vector.load %arg2[%c19_119, %c0_120, %c0_121] : memref<27x8x4xbf16, #tpu.memory_space<vmem>>, vector<1x8x4xbf16>
    %199 = vector.shape_cast %198 : vector<1x8x4xbf16> to vector<8x4xbf16>
    %cst_122 = arith.constant dense<0.000000e+00> : vector<8x64xf32>
    %200 = tpu.matmul %199, %197, %cst_122 {dimension_numbers = #tpu.dot_dimension_numbers<[1], [0], [0], [1], [0, 0, 1, 1], [], []>} : vector<8x4xbf16>, vector<4x64xbf16>, vector<8x64xf32> -> vector<8x64xf32>
    %201 = arith.addf %191, %200 : vector<8x64xf32>
    %c51_i32 = arith.constant 51 : i32
    %202 = tpu.dynamic_rotate %1 by %c51_i32 dim 1 : vector<4x64xf32>, i32 -> vector<4x64xf32>
    %c20 = arith.constant 20 : index
    %c0_123 = arith.constant 0 : index
    %c0_124 = arith.constant 0 : index
    %203 = vector.load %arg3[%c20, %c0_123, %c0_124] : memref<27x1x64xf32, #tpu.memory_space<vmem>>, vector<1x1x64xf32>
    %204 = vector.shape_cast %203 : vector<1x1x64xf32> to vector<1x64xf32>
    %205 = vector.broadcast %204 : vector<1x64xf32> to vector<4x64xf32>
    %206 = arith.mulf %202, %205 : vector<4x64xf32>
    %207 = arith.truncf %206 : vector<4x64xf32> to vector<4x64xbf16>
    %c20_125 = arith.constant 20 : index
    %c0_126 = arith.constant 0 : index
    %c0_127 = arith.constant 0 : index
    %208 = vector.load %arg2[%c20_125, %c0_126, %c0_127] : memref<27x8x4xbf16, #tpu.memory_space<vmem>>, vector<1x8x4xbf16>
    %209 = vector.shape_cast %208 : vector<1x8x4xbf16> to vector<8x4xbf16>
    %cst_128 = arith.constant dense<0.000000e+00> : vector<8x64xf32>
    %210 = tpu.matmul %209, %207, %cst_128 {dimension_numbers = #tpu.dot_dimension_numbers<[1], [0], [0], [1], [0, 0, 1, 1], [], []>} : vector<8x4xbf16>, vector<4x64xbf16>, vector<8x64xf32> -> vector<8x64xf32>
    %211 = arith.addf %201, %210 : vector<8x64xf32>
    %c49_i32 = arith.constant 49 : i32
    %212 = tpu.dynamic_rotate %1 by %c49_i32 dim 1 : vector<4x64xf32>, i32 -> vector<4x64xf32>
    %c21 = arith.constant 21 : index
    %c0_129 = arith.constant 0 : index
    %c0_130 = arith.constant 0 : index
    %213 = vector.load %arg3[%c21, %c0_129, %c0_130] : memref<27x1x64xf32, #tpu.memory_space<vmem>>, vector<1x1x64xf32>
    %214 = vector.shape_cast %213 : vector<1x1x64xf32> to vector<1x64xf32>
    %215 = vector.broadcast %214 : vector<1x64xf32> to vector<4x64xf32>
    %216 = arith.mulf %212, %215 : vector<4x64xf32>
    %217 = arith.truncf %216 : vector<4x64xf32> to vector<4x64xbf16>
    %c21_131 = arith.constant 21 : index
    %c0_132 = arith.constant 0 : index
    %c0_133 = arith.constant 0 : index
    %218 = vector.load %arg2[%c21_131, %c0_132, %c0_133] : memref<27x8x4xbf16, #tpu.memory_space<vmem>>, vector<1x8x4xbf16>
    %219 = vector.shape_cast %218 : vector<1x8x4xbf16> to vector<8x4xbf16>
    %cst_134 = arith.constant dense<0.000000e+00> : vector<8x64xf32>
    %220 = tpu.matmul %219, %217, %cst_134 {dimension_numbers = #tpu.dot_dimension_numbers<[1], [0], [0], [1], [0, 0, 1, 1], [], []>} : vector<8x4xbf16>, vector<4x64xbf16>, vector<8x64xf32> -> vector<8x64xf32>
    %221 = arith.addf %211, %220 : vector<8x64xf32>
    %c48_i32 = arith.constant 48 : i32
    %222 = tpu.dynamic_rotate %1 by %c48_i32 dim 1 : vector<4x64xf32>, i32 -> vector<4x64xf32>
    %c22 = arith.constant 22 : index
    %c0_135 = arith.constant 0 : index
    %c0_136 = arith.constant 0 : index
    %223 = vector.load %arg3[%c22, %c0_135, %c0_136] : memref<27x1x64xf32, #tpu.memory_space<vmem>>, vector<1x1x64xf32>
    %224 = vector.shape_cast %223 : vector<1x1x64xf32> to vector<1x64xf32>
    %225 = vector.broadcast %224 : vector<1x64xf32> to vector<4x64xf32>
    %226 = arith.mulf %222, %225 : vector<4x64xf32>
    %227 = arith.truncf %226 : vector<4x64xf32> to vector<4x64xbf16>
    %c22_137 = arith.constant 22 : index
    %c0_138 = arith.constant 0 : index
    %c0_139 = arith.constant 0 : index
    %228 = vector.load %arg2[%c22_137, %c0_138, %c0_139] : memref<27x8x4xbf16, #tpu.memory_space<vmem>>, vector<1x8x4xbf16>
    %229 = vector.shape_cast %228 : vector<1x8x4xbf16> to vector<8x4xbf16>
    %cst_140 = arith.constant dense<0.000000e+00> : vector<8x64xf32>
    %230 = tpu.matmul %229, %227, %cst_140 {dimension_numbers = #tpu.dot_dimension_numbers<[1], [0], [0], [1], [0, 0, 1, 1], [], []>} : vector<8x4xbf16>, vector<4x64xbf16>, vector<8x64xf32> -> vector<8x64xf32>
    %231 = arith.addf %221, %230 : vector<8x64xf32>
    %c47_i32 = arith.constant 47 : i32
    %232 = tpu.dynamic_rotate %1 by %c47_i32 dim 1 : vector<4x64xf32>, i32 -> vector<4x64xf32>
    %c23 = arith.constant 23 : index
    %c0_141 = arith.constant 0 : index
    %c0_142 = arith.constant 0 : index
    %233 = vector.load %arg3[%c23, %c0_141, %c0_142] : memref<27x1x64xf32, #tpu.memory_space<vmem>>, vector<1x1x64xf32>
    %234 = vector.shape_cast %233 : vector<1x1x64xf32> to vector<1x64xf32>
    %235 = vector.broadcast %234 : vector<1x64xf32> to vector<4x64xf32>
    %236 = arith.mulf %232, %235 : vector<4x64xf32>
    %237 = arith.truncf %236 : vector<4x64xf32> to vector<4x64xbf16>
    %c23_143 = arith.constant 23 : index
    %c0_144 = arith.constant 0 : index
    %c0_145 = arith.constant 0 : index
    %238 = vector.load %arg2[%c23_143, %c0_144, %c0_145] : memref<27x8x4xbf16, #tpu.memory_space<vmem>>, vector<1x8x4xbf16>
    %239 = vector.shape_cast %238 : vector<1x8x4xbf16> to vector<8x4xbf16>
    %cst_146 = arith.constant dense<0.000000e+00> : vector<8x64xf32>
    %240 = tpu.matmul %239, %237, %cst_146 {dimension_numbers = #tpu.dot_dimension_numbers<[1], [0], [0], [1], [0, 0, 1, 1], [], []>} : vector<8x4xbf16>, vector<4x64xbf16>, vector<8x64xf32> -> vector<8x64xf32>
    %241 = arith.addf %231, %240 : vector<8x64xf32>
    %c45_i32 = arith.constant 45 : i32
    %242 = tpu.dynamic_rotate %1 by %c45_i32 dim 1 : vector<4x64xf32>, i32 -> vector<4x64xf32>
    %c24 = arith.constant 24 : index
    %c0_147 = arith.constant 0 : index
    %c0_148 = arith.constant 0 : index
    %243 = vector.load %arg3[%c24, %c0_147, %c0_148] : memref<27x1x64xf32, #tpu.memory_space<vmem>>, vector<1x1x64xf32>
    %244 = vector.shape_cast %243 : vector<1x1x64xf32> to vector<1x64xf32>
    %245 = vector.broadcast %244 : vector<1x64xf32> to vector<4x64xf32>
    %246 = arith.mulf %242, %245 : vector<4x64xf32>
    %247 = arith.truncf %246 : vector<4x64xf32> to vector<4x64xbf16>
    %c24_149 = arith.constant 24 : index
    %c0_150 = arith.constant 0 : index
    %c0_151 = arith.constant 0 : index
    %248 = vector.load %arg2[%c24_149, %c0_150, %c0_151] : memref<27x8x4xbf16, #tpu.memory_space<vmem>>, vector<1x8x4xbf16>
    %249 = vector.shape_cast %248 : vector<1x8x4xbf16> to vector<8x4xbf16>
    %cst_152 = arith.constant dense<0.000000e+00> : vector<8x64xf32>
    %250 = tpu.matmul %249, %247, %cst_152 {dimension_numbers = #tpu.dot_dimension_numbers<[1], [0], [0], [1], [0, 0, 1, 1], [], []>} : vector<8x4xbf16>, vector<4x64xbf16>, vector<8x64xf32> -> vector<8x64xf32>
    %251 = arith.addf %241, %250 : vector<8x64xf32>
    %c44_i32 = arith.constant 44 : i32
    %252 = tpu.dynamic_rotate %1 by %c44_i32 dim 1 : vector<4x64xf32>, i32 -> vector<4x64xf32>
    %c25 = arith.constant 25 : index
    %c0_153 = arith.constant 0 : index
    %c0_154 = arith.constant 0 : index
    %253 = vector.load %arg3[%c25, %c0_153, %c0_154] : memref<27x1x64xf32, #tpu.memory_space<vmem>>, vector<1x1x64xf32>
    %254 = vector.shape_cast %253 : vector<1x1x64xf32> to vector<1x64xf32>
    %255 = vector.broadcast %254 : vector<1x64xf32> to vector<4x64xf32>
    %256 = arith.mulf %252, %255 : vector<4x64xf32>
    %257 = arith.truncf %256 : vector<4x64xf32> to vector<4x64xbf16>
    %c25_155 = arith.constant 25 : index
    %c0_156 = arith.constant 0 : index
    %c0_157 = arith.constant 0 : index
    %258 = vector.load %arg2[%c25_155, %c0_156, %c0_157] : memref<27x8x4xbf16, #tpu.memory_space<vmem>>, vector<1x8x4xbf16>
    %259 = vector.shape_cast %258 : vector<1x8x4xbf16> to vector<8x4xbf16>
    %cst_158 = arith.constant dense<0.000000e+00> : vector<8x64xf32>
    %260 = tpu.matmul %259, %257, %cst_158 {dimension_numbers = #tpu.dot_dimension_numbers<[1], [0], [0], [1], [0, 0, 1, 1], [], []>} : vector<8x4xbf16>, vector<4x64xbf16>, vector<8x64xf32> -> vector<8x64xf32>
    %261 = arith.addf %251, %260 : vector<8x64xf32>
    %c43_i32 = arith.constant 43 : i32
    %262 = tpu.dynamic_rotate %1 by %c43_i32 dim 1 : vector<4x64xf32>, i32 -> vector<4x64xf32>
    %c26 = arith.constant 26 : index
    %c0_159 = arith.constant 0 : index
    %c0_160 = arith.constant 0 : index
    %263 = vector.load %arg3[%c26, %c0_159, %c0_160] : memref<27x1x64xf32, #tpu.memory_space<vmem>>, vector<1x1x64xf32>
    %264 = vector.shape_cast %263 : vector<1x1x64xf32> to vector<1x64xf32>
    %265 = vector.broadcast %264 : vector<1x64xf32> to vector<4x64xf32>
    %266 = arith.mulf %262, %265 : vector<4x64xf32>
    %267 = arith.truncf %266 : vector<4x64xf32> to vector<4x64xbf16>
    %c26_161 = arith.constant 26 : index
    %c0_162 = arith.constant 0 : index
    %c0_163 = arith.constant 0 : index
    %268 = vector.load %arg2[%c26_161, %c0_162, %c0_163] : memref<27x8x4xbf16, #tpu.memory_space<vmem>>, vector<1x8x4xbf16>
    %269 = vector.shape_cast %268 : vector<1x8x4xbf16> to vector<8x4xbf16>
    %cst_164 = arith.constant dense<0.000000e+00> : vector<8x64xf32>
    %270 = tpu.matmul %269, %267, %cst_164 {dimension_numbers = #tpu.dot_dimension_numbers<[1], [0], [0], [1], [0, 0, 1, 1], [], []>} : vector<8x4xbf16>, vector<4x64xbf16>, vector<8x64xf32> -> vector<8x64xf32>
    %271 = arith.addf %261, %270 : vector<8x64xf32>
    %c0_165 = arith.constant 0 : index
    %c0_166 = arith.constant 0 : index
    %272 = vector.load %arg4[%c0_165, %c0_166] : memref<8x1xf32, #tpu.memory_space<vmem>>, vector<8x1xf32>
    %273 = vector.broadcast %272 : vector<8x1xf32> to vector<8x64xf32>
    %274 = arith.addf %271, %273 : vector<8x64xf32>
    %c0_167 = arith.constant 0 : index
    %c0_168 = arith.constant 0 : index
    %c0_169 = arith.constant 0 : index
    %275 = vector.load %arg7[%c0_167, %c0_168, %c0_169] : memref<1x8x64xf32, #tpu.memory_space<vmem>>, vector<1x8x64xf32>
    %276 = vector.shape_cast %275 : vector<1x8x64xf32> to vector<8x64xf32>
    %277 = vector.shape_cast %274 : vector<8x64xf32> to vector<1x8x64xf32>
    tpu.vector_store %arg7[%c0_167, %c0_168, %c0_169], %277 {strides = array<i32>} : memref<1x8x64xf32, #tpu.memory_space<vmem>>, vector<1x8x64xf32>,
    %cst_170 = arith.constant dense<0.000000e+00> : vector<8xf32>
    %278 = vector.multi_reduction <add>, %274, %cst_170 [1] : vector<8x64xf32> to vector<8xf32>
    %279 = vector.shape_cast %278 : vector<8xf32> to vector<8x1xf32>
    %c0_171 = arith.constant 0 : index
    %c0_172 = arith.constant 0 : index
    %c0_173 = arith.constant 0 : index
    %280 = vector.load %arg8[%c0_171, %c0_172, %c0_173] : memref<1x8x2xf32, #tpu.memory_space<vmem>>, vector<1x8x1xf32>
    %281 = vector.shape_cast %280 : vector<1x8x1xf32> to vector<8x1xf32>
    %282 = vector.shape_cast %279 : vector<8x1xf32> to vector<1x8x1xf32>
    tpu.vector_store %arg8[%c0_171, %c0_172, %c0_173], %282 {strides = array<i32>} : memref<1x8x2xf32, #tpu.memory_space<vmem>>, vector<1x8x1xf32>,
    %283 = arith.mulf %274, %274 : vector<8x64xf32>
    %cst_174 = arith.constant dense<0.000000e+00> : vector<8xf32>
    %284 = vector.multi_reduction <add>, %283, %cst_174 [1] : vector<8x64xf32> to vector<8xf32>
    %285 = vector.shape_cast %284 : vector<8xf32> to vector<8x1xf32>
    %c0_175 = arith.constant 0 : index
    %c0_176 = arith.constant 0 : index
    %c1_177 = arith.constant 1 : index
    %286 = vector.load %arg8[%c0_175, %c0_176, %c1_177] : memref<1x8x2xf32, #tpu.memory_space<vmem>>, vector<1x8x1xf32>
    %287 = vector.shape_cast %286 : vector<1x8x1xf32> to vector<8x1xf32>
    %288 = vector.shape_cast %285 : vector<8x1xf32> to vector<1x8x1xf32>
    tpu.vector_store %arg8[%c0_175, %c0_176, %c1_177], %288 {strides = array<i32>} : memref<1x8x2xf32, #tpu.memory_space<vmem>>, vector<1x8x1xf32>,
    return
  }
  func.func @transform_0(%arg0: i32) -> (i32, i32, i32) {
    %c0_i32 = arith.constant 0 : i32
    %c0_i32_0 = arith.constant 0 : i32
    %c0_i32_1 = arith.constant 0 : i32
    return %arg0, %c0_i32, %c0_i32_0 : i32, i32, i32
  }
  func.func @transform_1(%arg0: i32) -> (i32, i32, i32) {
    %c0_i32 = arith.constant 0 : i32
    %c0_i32_0 = arith.constant 0 : i32
    %c0_i32_1 = arith.constant 0 : i32
    %c0_i32_2 = arith.constant 0 : i32
    return %c0_i32, %c0_i32_0, %c0_i32_1 : i32, i32, i32
  }
  func.func @transform_2(%arg0: i32) -> (i32, i32, i32) {
    %c0_i32 = arith.constant 0 : i32
    %c0_i32_0 = arith.constant 0 : i32
    %c0_i32_1 = arith.constant 0 : i32
    %c0_i32_2 = arith.constant 0 : i32
    return %c0_i32, %c0_i32_0, %c0_i32_1 : i32, i32, i32
  }
  func.func @transform_3(%arg0: i32) -> (i32, i32) {
    %c0_i32 = arith.constant 0 : i32
    %c0_i32_0 = arith.constant 0 : i32
    %c0_i32_1 = arith.constant 0 : i32
    return %c0_i32, %c0_i32_0 : i32, i32
  }
  func.func @transform_4(%arg0: i32) -> (i32, i32) {
    %c0_i32 = arith.constant 0 : i32
    %c0_i32_0 = arith.constant 0 : i32
    %c0_i32_1 = arith.constant 0 : i32
    return %c0_i32, %c0_i32_0 : i32, i32
  }
  func.func @transform_5(%arg0: i32) -> (i32, i32) {
    %c0_i32 = arith.constant 0 : i32
    %c0_i32_0 = arith.constant 0 : i32
    %c0_i32_1 = arith.constant 0 : i32
    return %c0_i32, %c0_i32_0 : i32, i32
  }
  func.func @transform_6(%arg0: i32) -> (i32, i32, i32) {
    %c0_i32 = arith.constant 0 : i32
    %c0_i32_0 = arith.constant 0 : i32
    %c0_i32_1 = arith.constant 0 : i32
    return %arg0, %c0_i32, %c0_i32_0 : i32, i32, i32
  }
  func.func @transform_7(%arg0: i32) -> (i32, i32, i32) {
    %c0_i32 = arith.constant 0 : i32
    %c0_i32_0 = arith.constant 0 : i32
    %c0_i32_1 = arith.constant 0 : i32
    return %arg0, %c0_i32, %c0_i32_0 : i32, i32, i32
  }
}

module attributes {stable_mosaic.version = 11 : i64} {
  func.func @_point_mlp_kernel(%arg0: i32, %arg1: i32, %arg2: memref<1x4x64xbf16, #tpu.memory_space<vmem>>, %arg3: memref<8x4xbf16, #tpu.memory_space<vmem>>, %arg4: memref<8x1xf32, #tpu.memory_space<vmem>>, %arg5: memref<1x8x64xf32, #tpu.memory_space<vmem>>, %arg6: memref<1x1x8x2xf32, #tpu.memory_space<vmem>>) attributes {dimension_semantics = [#tpu.dimension_semantics<parallel>, #tpu.dimension_semantics<parallel>], iteration_bounds = array<i64: 2, 1>, scalar_prefetch = 0 : i64, scratch_operands = 0 : i64, tpu.core_type = #tpu.core_type<tc>, window_params = [{transform_indices = @transform_0, window_bounds = array<i64: 1, 4, 64>}, {pipeline_mode = #tpu.pipeline_mode<synchronous>, transform_indices = @transform_1, window_bounds = array<i64: 8, 4>}, {pipeline_mode = #tpu.pipeline_mode<synchronous>, transform_indices = @transform_2, window_bounds = array<i64: 8, 1>}, {transform_indices = @transform_3, window_bounds = array<i64: 1, 8, 64>}, {transform_indices = @transform_4, window_bounds = array<i64: 1, 1, 8, 2>}]} {
    %c0 = arith.constant 0 : index
    %c0_0 = arith.constant 0 : index
    %0 = vector.load %arg3[%c0, %c0_0] : memref<8x4xbf16, #tpu.memory_space<vmem>>, vector<8x4xbf16>
    %c0_1 = arith.constant 0 : index
    %c0_2 = arith.constant 0 : index
    %c0_3 = arith.constant 0 : index
    %1 = vector.load %arg2[%c0_1, %c0_2, %c0_3] : memref<1x4x64xbf16, #tpu.memory_space<vmem>>, vector<1x4x64xbf16>
    %2 = vector.shape_cast %1 : vector<1x4x64xbf16> to vector<4x64xbf16>
    %cst = arith.constant dense<0.000000e+00> : vector<8x64xf32>
    %3 = tpu.matmul %0, %2, %cst {dimension_numbers = #tpu.dot_dimension_numbers<[1], [0], [0], [1], [0, 0, 1, 1], [], []>} : vector<8x4xbf16>, vector<4x64xbf16>, vector<8x64xf32> -> vector<8x64xf32>
    %c0_4 = arith.constant 0 : index
    %c0_5 = arith.constant 0 : index
    %4 = vector.load %arg4[%c0_4, %c0_5] : memref<8x1xf32, #tpu.memory_space<vmem>>, vector<8x1xf32>
    %5 = vector.broadcast %4 : vector<8x1xf32> to vector<8x64xf32>
    %6 = arith.addf %3, %5 : vector<8x64xf32>
    %c0_6 = arith.constant 0 : index
    %c0_7 = arith.constant 0 : index
    %c0_8 = arith.constant 0 : index
    %7 = vector.load %arg5[%c0_6, %c0_7, %c0_8] : memref<1x8x64xf32, #tpu.memory_space<vmem>>, vector<1x8x64xf32>
    %8 = vector.shape_cast %7 : vector<1x8x64xf32> to vector<8x64xf32>
    %9 = vector.shape_cast %6 : vector<8x64xf32> to vector<1x8x64xf32>
    tpu.vector_store %arg5[%c0_6, %c0_7, %c0_8], %9 {strides = array<i32>} : memref<1x8x64xf32, #tpu.memory_space<vmem>>, vector<1x8x64xf32>,
    %cst_9 = arith.constant dense<0.000000e+00> : vector<8xf32>
    %10 = vector.multi_reduction <add>, %6, %cst_9 [1] : vector<8x64xf32> to vector<8xf32>
    %11 = vector.shape_cast %10 : vector<8xf32> to vector<8x1xf32>
    %c0_10 = arith.constant 0 : index
    %c0_11 = arith.constant 0 : index
    %c0_12 = arith.constant 0 : index
    %c0_13 = arith.constant 0 : index
    %12 = vector.load %arg6[%c0_10, %c0_11, %c0_12, %c0_13] : memref<1x1x8x2xf32, #tpu.memory_space<vmem>>, vector<1x1x8x1xf32>
    %13 = vector.shape_cast %12 : vector<1x1x8x1xf32> to vector<8x1xf32>
    %14 = vector.shape_cast %11 : vector<8x1xf32> to vector<1x1x8x1xf32>
    tpu.vector_store %arg6[%c0_10, %c0_11, %c0_12, %c0_13], %14 {strides = array<i32>} : memref<1x1x8x2xf32, #tpu.memory_space<vmem>>, vector<1x1x8x1xf32>,
    %15 = arith.mulf %6, %6 : vector<8x64xf32>
    %cst_14 = arith.constant dense<0.000000e+00> : vector<8xf32>
    %16 = vector.multi_reduction <add>, %15, %cst_14 [1] : vector<8x64xf32> to vector<8xf32>
    %17 = vector.shape_cast %16 : vector<8xf32> to vector<8x1xf32>
    %c0_15 = arith.constant 0 : index
    %c0_16 = arith.constant 0 : index
    %c0_17 = arith.constant 0 : index
    %c1 = arith.constant 1 : index
    %18 = vector.load %arg6[%c0_15, %c0_16, %c0_17, %c1] : memref<1x1x8x2xf32, #tpu.memory_space<vmem>>, vector<1x1x8x1xf32>
    %19 = vector.shape_cast %18 : vector<1x1x8x1xf32> to vector<8x1xf32>
    %20 = vector.shape_cast %17 : vector<8x1xf32> to vector<1x1x8x1xf32>
    tpu.vector_store %arg6[%c0_15, %c0_16, %c0_17, %c1], %20 {strides = array<i32>} : memref<1x1x8x2xf32, #tpu.memory_space<vmem>>, vector<1x1x8x1xf32>,
    return
  }
  func.func @transform_0(%arg0: i32, %arg1: i32) -> (i32, i32, i32) {
    %c0_i32 = arith.constant 0 : i32
    %c0_i32_0 = arith.constant 0 : i32
    return %arg0, %c0_i32, %arg1 : i32, i32, i32
  }
  func.func @transform_1(%arg0: i32, %arg1: i32) -> (i32, i32) {
    %c0_i32 = arith.constant 0 : i32
    %c0_i32_0 = arith.constant 0 : i32
    %c0_i32_1 = arith.constant 0 : i32
    return %c0_i32, %c0_i32_0 : i32, i32
  }
  func.func @transform_2(%arg0: i32, %arg1: i32) -> (i32, i32) {
    %c0_i32 = arith.constant 0 : i32
    %c0_i32_0 = arith.constant 0 : i32
    %c0_i32_1 = arith.constant 0 : i32
    return %c0_i32, %c0_i32_0 : i32, i32
  }
  func.func @transform_3(%arg0: i32, %arg1: i32) -> (i32, i32, i32) {
    %c0_i32 = arith.constant 0 : i32
    %c0_i32_0 = arith.constant 0 : i32
    return %arg0, %c0_i32, %arg1 : i32, i32, i32
  }
  func.func @transform_4(%arg0: i32, %arg1: i32) -> (i32, i32, i32, i32) {
    %c0_i32 = arith.constant 0 : i32
    %c0_i32_0 = arith.constant 0 : i32
    %c0_i32_1 = arith.constant 0 : i32
    return %arg0, %arg1, %c0_i32, %c0_i32_0 : i32, i32, i32, i32
  }
}

module attributes {stable_mosaic.version = 11 : i64} {
  func.func @_conv3d_kernel(%arg0: i32, %arg1: memref<1x8x64xf32, #tpu.memory_space<vmem>>, %arg2: memref<27x8x8xbf16, #tpu.memory_space<vmem>>, %arg3: memref<27x1x64xf32, #tpu.memory_space<vmem>>, %arg4: memref<8x1xf32, #tpu.memory_space<vmem>>, %arg5: memref<8x1xf32, #tpu.memory_space<vmem>>, %arg6: memref<8x1xf32, #tpu.memory_space<vmem>>, %arg7: memref<1x8x64xf32, #tpu.memory_space<vmem>>, %arg8: memref<1x8x2xf32, #tpu.memory_space<vmem>>) attributes {dimension_semantics = [#tpu.dimension_semantics<parallel>], iteration_bounds = array<i64: 2>, scalar_prefetch = 0 : i64, scratch_operands = 0 : i64, tpu.core_type = #tpu.core_type<tc>, window_params = [{transform_indices = @transform_0, window_bounds = array<i64: 1, 8, 64>}, {pipeline_mode = #tpu.pipeline_mode<synchronous>, transform_indices = @transform_1, window_bounds = array<i64: 27, 8, 8>}, {pipeline_mode = #tpu.pipeline_mode<synchronous>, transform_indices = @transform_2, window_bounds = array<i64: 27, 1, 64>}, {pipeline_mode = #tpu.pipeline_mode<synchronous>, transform_indices = @transform_3, window_bounds = array<i64: 8, 1>}, {pipeline_mode = #tpu.pipeline_mode<synchronous>, transform_indices = @transform_4, window_bounds = array<i64: 8, 1>}, {pipeline_mode = #tpu.pipeline_mode<synchronous>, transform_indices = @transform_5, window_bounds = array<i64: 8, 1>}, {transform_indices = @transform_6, window_bounds = array<i64: 1, 8, 64>}, {transform_indices = @transform_7, window_bounds = array<i64: 1, 8, 2>}]} {
    %c0 = arith.constant 0 : index
    %c0_0 = arith.constant 0 : index
    %c0_1 = arith.constant 0 : index
    %0 = vector.load %arg1[%c0, %c0_0, %c0_1] : memref<1x8x64xf32, #tpu.memory_space<vmem>>, vector<1x8x64xf32>
    %1 = vector.shape_cast %0 : vector<1x8x64xf32> to vector<8x64xf32>
    %c0_2 = arith.constant 0 : index
    %c0_3 = arith.constant 0 : index
    %2 = vector.load %arg5[%c0_2, %c0_3] : memref<8x1xf32, #tpu.memory_space<vmem>>, vector<8x1xf32>
    %3 = vector.broadcast %2 : vector<8x1xf32> to vector<8x64xf32>
    %4 = arith.mulf %1, %3 : vector<8x64xf32>
    %c0_4 = arith.constant 0 : index
    %c0_5 = arith.constant 0 : index
    %5 = vector.load %arg6[%c0_4, %c0_5] : memref<8x1xf32, #tpu.memory_space<vmem>>, vector<8x1xf32>
    %6 = vector.broadcast %5 : vector<8x1xf32> to vector<8x64xf32>
    %7 = arith.addf %4, %6 : vector<8x64xf32>
    %cst = arith.constant 0.000000e+00 : f32
    %8 = vector.broadcast %cst : f32 to vector<8x64xf32>
    %9 = arith.cmpf ogt, %7, %8 : vector<8x64xf32>
    %cst_6 = arith.constant 1.000000e-01 : f32
    %10 = vector.broadcast %cst_6 : f32 to vector<8x64xf32>
    %11 = arith.mulf %10, %7 : vector<8x64xf32>
    %12 = arith.select %9, %7, %11 : vector<8x64xi1>, vector<8x64xf32>
    %cst_7 = arith.constant 0.000000e+00 : f32
    %13 = vector.broadcast %cst_7 : f32 to vector<8x64xf32>
    %c21_i32 = arith.constant 21 : i32
    %14 = tpu.dynamic_rotate %12 by %c21_i32 dim 1 : vector<8x64xf32>, i32 -> vector<8x64xf32>
    %c0_8 = arith.constant 0 : index
    %c0_9 = arith.constant 0 : index
    %c0_10 = arith.constant 0 : index
    %15 = vector.load %arg3[%c0_8, %c0_9, %c0_10] : memref<27x1x64xf32, #tpu.memory_space<vmem>>, vector<1x1x64xf32>
    %16 = vector.shape_cast %15 : vector<1x1x64xf32> to vector<1x64xf32>
    %17 = vector.broadcast %16 : vector<1x64xf32> to vector<8x64xf32>
    %18 = arith.mulf %14, %17 : vector<8x64xf32>
    %19 = arith.truncf %18 : vector<8x64xf32> to vector<8x64xbf16>
    %c0_11 = arith.constant 0 : index
    %c0_12 = arith.constant 0 : index
    %c0_13 = arith.constant 0 : index
    %20 = vector.load %arg2[%c0_11, %c0_12, %c0_13] : memref<27x8x8xbf16, #tpu.memory_space<vmem>>, vector<1x8x8xbf16>
    %21 = vector.shape_cast %20 : vector<1x8x8xbf16> to vector<8x8xbf16>
    %cst_14 = arith.constant dense<0.000000e+00> : vector<8x64xf32>
    %22 = tpu.matmul %21, %19, %cst_14 {dimension_numbers = #tpu.dot_dimension_numbers<[1], [0], [0], [1], [0, 0, 1, 1], [], []>} : vector<8x8xbf16>, vector<8x64xbf16>, vector<8x64xf32> -> vector<8x64xf32>
    %23 = arith.addf %13, %22 : vector<8x64xf32>
    %c20_i32 = arith.constant 20 : i32
    %24 = tpu.dynamic_rotate %12 by %c20_i32 dim 1 : vector<8x64xf32>, i32 -> vector<8x64xf32>
    %c1 = arith.constant 1 : index
    %c0_15 = arith.constant 0 : index
    %c0_16 = arith.constant 0 : index
    %25 = vector.load %arg3[%c1, %c0_15, %c0_16] : memref<27x1x64xf32, #tpu.memory_space<vmem>>, vector<1x1x64xf32>
    %26 = vector.shape_cast %25 : vector<1x1x64xf32> to vector<1x64xf32>
    %27 = vector.broadcast %26 : vector<1x64xf32> to vector<8x64xf32>
    %28 = arith.mulf %24, %27 : vector<8x64xf32>
    %29 = arith.truncf %28 : vector<8x64xf32> to vector<8x64xbf16>
    %c1_17 = arith.constant 1 : index
    %c0_18 = arith.constant 0 : index
    %c0_19 = arith.constant 0 : index
    %30 = vector.load %arg2[%c1_17, %c0_18, %c0_19] : memref<27x8x8xbf16, #tpu.memory_space<vmem>>, vector<1x8x8xbf16>
    %31 = vector.shape_cast %30 : vector<1x8x8xbf16> to vector<8x8xbf16>
    %cst_20 = arith.constant dense<0.000000e+00> : vector<8x64xf32>
    %32 = tpu.matmul %31, %29, %cst_20 {dimension_numbers = #tpu.dot_dimension_numbers<[1], [0], [0], [1], [0, 0, 1, 1], [], []>} : vector<8x8xbf16>, vector<8x64xbf16>, vector<8x64xf32> -> vector<8x64xf32>
    %33 = arith.addf %23, %32 : vector<8x64xf32>
    %c19_i32 = arith.constant 19 : i32
    %34 = tpu.dynamic_rotate %12 by %c19_i32 dim 1 : vector<8x64xf32>, i32 -> vector<8x64xf32>
    %c2 = arith.constant 2 : index
    %c0_21 = arith.constant 0 : index
    %c0_22 = arith.constant 0 : index
    %35 = vector.load %arg3[%c2, %c0_21, %c0_22] : memref<27x1x64xf32, #tpu.memory_space<vmem>>, vector<1x1x64xf32>
    %36 = vector.shape_cast %35 : vector<1x1x64xf32> to vector<1x64xf32>
    %37 = vector.broadcast %36 : vector<1x64xf32> to vector<8x64xf32>
    %38 = arith.mulf %34, %37 : vector<8x64xf32>
    %39 = arith.truncf %38 : vector<8x64xf32> to vector<8x64xbf16>
    %c2_23 = arith.constant 2 : index
    %c0_24 = arith.constant 0 : index
    %c0_25 = arith.constant 0 : index
    %40 = vector.load %arg2[%c2_23, %c0_24, %c0_25] : memref<27x8x8xbf16, #tpu.memory_space<vmem>>, vector<1x8x8xbf16>
    %41 = vector.shape_cast %40 : vector<1x8x8xbf16> to vector<8x8xbf16>
    %cst_26 = arith.constant dense<0.000000e+00> : vector<8x64xf32>
    %42 = tpu.matmul %41, %39, %cst_26 {dimension_numbers = #tpu.dot_dimension_numbers<[1], [0], [0], [1], [0, 0, 1, 1], [], []>} : vector<8x8xbf16>, vector<8x64xbf16>, vector<8x64xf32> -> vector<8x64xf32>
    %43 = arith.addf %33, %42 : vector<8x64xf32>
    %c17_i32 = arith.constant 17 : i32
    %44 = tpu.dynamic_rotate %12 by %c17_i32 dim 1 : vector<8x64xf32>, i32 -> vector<8x64xf32>
    %c3 = arith.constant 3 : index
    %c0_27 = arith.constant 0 : index
    %c0_28 = arith.constant 0 : index
    %45 = vector.load %arg3[%c3, %c0_27, %c0_28] : memref<27x1x64xf32, #tpu.memory_space<vmem>>, vector<1x1x64xf32>
    %46 = vector.shape_cast %45 : vector<1x1x64xf32> to vector<1x64xf32>
    %47 = vector.broadcast %46 : vector<1x64xf32> to vector<8x64xf32>
    %48 = arith.mulf %44, %47 : vector<8x64xf32>
    %49 = arith.truncf %48 : vector<8x64xf32> to vector<8x64xbf16>
    %c3_29 = arith.constant 3 : index
    %c0_30 = arith.constant 0 : index
    %c0_31 = arith.constant 0 : index
    %50 = vector.load %arg2[%c3_29, %c0_30, %c0_31] : memref<27x8x8xbf16, #tpu.memory_space<vmem>>, vector<1x8x8xbf16>
    %51 = vector.shape_cast %50 : vector<1x8x8xbf16> to vector<8x8xbf16>
    %cst_32 = arith.constant dense<0.000000e+00> : vector<8x64xf32>
    %52 = tpu.matmul %51, %49, %cst_32 {dimension_numbers = #tpu.dot_dimension_numbers<[1], [0], [0], [1], [0, 0, 1, 1], [], []>} : vector<8x8xbf16>, vector<8x64xbf16>, vector<8x64xf32> -> vector<8x64xf32>
    %53 = arith.addf %43, %52 : vector<8x64xf32>
    %c16_i32 = arith.constant 16 : i32
    %54 = tpu.dynamic_rotate %12 by %c16_i32 dim 1 : vector<8x64xf32>, i32 -> vector<8x64xf32>
    %c4 = arith.constant 4 : index
    %c0_33 = arith.constant 0 : index
    %c0_34 = arith.constant 0 : index
    %55 = vector.load %arg3[%c4, %c0_33, %c0_34] : memref<27x1x64xf32, #tpu.memory_space<vmem>>, vector<1x1x64xf32>
    %56 = vector.shape_cast %55 : vector<1x1x64xf32> to vector<1x64xf32>
    %57 = vector.broadcast %56 : vector<1x64xf32> to vector<8x64xf32>
    %58 = arith.mulf %54, %57 : vector<8x64xf32>
    %59 = arith.truncf %58 : vector<8x64xf32> to vector<8x64xbf16>
    %c4_35 = arith.constant 4 : index
    %c0_36 = arith.constant 0 : index
    %c0_37 = arith.constant 0 : index
    %60 = vector.load %arg2[%c4_35, %c0_36, %c0_37] : memref<27x8x8xbf16, #tpu.memory_space<vmem>>, vector<1x8x8xbf16>
    %61 = vector.shape_cast %60 : vector<1x8x8xbf16> to vector<8x8xbf16>
    %cst_38 = arith.constant dense<0.000000e+00> : vector<8x64xf32>
    %62 = tpu.matmul %61, %59, %cst_38 {dimension_numbers = #tpu.dot_dimension_numbers<[1], [0], [0], [1], [0, 0, 1, 1], [], []>} : vector<8x8xbf16>, vector<8x64xbf16>, vector<8x64xf32> -> vector<8x64xf32>
    %63 = arith.addf %53, %62 : vector<8x64xf32>
    %c15_i32 = arith.constant 15 : i32
    %64 = tpu.dynamic_rotate %12 by %c15_i32 dim 1 : vector<8x64xf32>, i32 -> vector<8x64xf32>
    %c5 = arith.constant 5 : index
    %c0_39 = arith.constant 0 : index
    %c0_40 = arith.constant 0 : index
    %65 = vector.load %arg3[%c5, %c0_39, %c0_40] : memref<27x1x64xf32, #tpu.memory_space<vmem>>, vector<1x1x64xf32>
    %66 = vector.shape_cast %65 : vector<1x1x64xf32> to vector<1x64xf32>
    %67 = vector.broadcast %66 : vector<1x64xf32> to vector<8x64xf32>
    %68 = arith.mulf %64, %67 : vector<8x64xf32>
    %69 = arith.truncf %68 : vector<8x64xf32> to vector<8x64xbf16>
    %c5_41 = arith.constant 5 : index
    %c0_42 = arith.constant 0 : index
    %c0_43 = arith.constant 0 : index
    %70 = vector.load %arg2[%c5_41, %c0_42, %c0_43] : memref<27x8x8xbf16, #tpu.memory_space<vmem>>, vector<1x8x8xbf16>
    %71 = vector.shape_cast %70 : vector<1x8x8xbf16> to vector<8x8xbf16>
    %cst_44 = arith.constant dense<0.000000e+00> : vector<8x64xf32>
    %72 = tpu.matmul %71, %69, %cst_44 {dimension_numbers = #tpu.dot_dimension_numbers<[1], [0], [0], [1], [0, 0, 1, 1], [], []>} : vector<8x8xbf16>, vector<8x64xbf16>, vector<8x64xf32> -> vector<8x64xf32>
    %73 = arith.addf %63, %72 : vector<8x64xf32>
    %c13_i32 = arith.constant 13 : i32
    %74 = tpu.dynamic_rotate %12 by %c13_i32 dim 1 : vector<8x64xf32>, i32 -> vector<8x64xf32>
    %c6 = arith.constant 6 : index
    %c0_45 = arith.constant 0 : index
    %c0_46 = arith.constant 0 : index
    %75 = vector.load %arg3[%c6, %c0_45, %c0_46] : memref<27x1x64xf32, #tpu.memory_space<vmem>>, vector<1x1x64xf32>
    %76 = vector.shape_cast %75 : vector<1x1x64xf32> to vector<1x64xf32>
    %77 = vector.broadcast %76 : vector<1x64xf32> to vector<8x64xf32>
    %78 = arith.mulf %74, %77 : vector<8x64xf32>
    %79 = arith.truncf %78 : vector<8x64xf32> to vector<8x64xbf16>
    %c6_47 = arith.constant 6 : index
    %c0_48 = arith.constant 0 : index
    %c0_49 = arith.constant 0 : index
    %80 = vector.load %arg2[%c6_47, %c0_48, %c0_49] : memref<27x8x8xbf16, #tpu.memory_space<vmem>>, vector<1x8x8xbf16>
    %81 = vector.shape_cast %80 : vector<1x8x8xbf16> to vector<8x8xbf16>
    %cst_50 = arith.constant dense<0.000000e+00> : vector<8x64xf32>
    %82 = tpu.matmul %81, %79, %cst_50 {dimension_numbers = #tpu.dot_dimension_numbers<[1], [0], [0], [1], [0, 0, 1, 1], [], []>} : vector<8x8xbf16>, vector<8x64xbf16>, vector<8x64xf32> -> vector<8x64xf32>
    %83 = arith.addf %73, %82 : vector<8x64xf32>
    %c12_i32 = arith.constant 12 : i32
    %84 = tpu.dynamic_rotate %12 by %c12_i32 dim 1 : vector<8x64xf32>, i32 -> vector<8x64xf32>
    %c7 = arith.constant 7 : index
    %c0_51 = arith.constant 0 : index
    %c0_52 = arith.constant 0 : index
    %85 = vector.load %arg3[%c7, %c0_51, %c0_52] : memref<27x1x64xf32, #tpu.memory_space<vmem>>, vector<1x1x64xf32>
    %86 = vector.shape_cast %85 : vector<1x1x64xf32> to vector<1x64xf32>
    %87 = vector.broadcast %86 : vector<1x64xf32> to vector<8x64xf32>
    %88 = arith.mulf %84, %87 : vector<8x64xf32>
    %89 = arith.truncf %88 : vector<8x64xf32> to vector<8x64xbf16>
    %c7_53 = arith.constant 7 : index
    %c0_54 = arith.constant 0 : index
    %c0_55 = arith.constant 0 : index
    %90 = vector.load %arg2[%c7_53, %c0_54, %c0_55] : memref<27x8x8xbf16, #tpu.memory_space<vmem>>, vector<1x8x8xbf16>
    %91 = vector.shape_cast %90 : vector<1x8x8xbf16> to vector<8x8xbf16>
    %cst_56 = arith.constant dense<0.000000e+00> : vector<8x64xf32>
    %92 = tpu.matmul %91, %89, %cst_56 {dimension_numbers = #tpu.dot_dimension_numbers<[1], [0], [0], [1], [0, 0, 1, 1], [], []>} : vector<8x8xbf16>, vector<8x64xbf16>, vector<8x64xf32> -> vector<8x64xf32>
    %93 = arith.addf %83, %92 : vector<8x64xf32>
    %c11_i32 = arith.constant 11 : i32
    %94 = tpu.dynamic_rotate %12 by %c11_i32 dim 1 : vector<8x64xf32>, i32 -> vector<8x64xf32>
    %c8 = arith.constant 8 : index
    %c0_57 = arith.constant 0 : index
    %c0_58 = arith.constant 0 : index
    %95 = vector.load %arg3[%c8, %c0_57, %c0_58] : memref<27x1x64xf32, #tpu.memory_space<vmem>>, vector<1x1x64xf32>
    %96 = vector.shape_cast %95 : vector<1x1x64xf32> to vector<1x64xf32>
    %97 = vector.broadcast %96 : vector<1x64xf32> to vector<8x64xf32>
    %98 = arith.mulf %94, %97 : vector<8x64xf32>
    %99 = arith.truncf %98 : vector<8x64xf32> to vector<8x64xbf16>
    %c8_59 = arith.constant 8 : index
    %c0_60 = arith.constant 0 : index
    %c0_61 = arith.constant 0 : index
    %100 = vector.load %arg2[%c8_59, %c0_60, %c0_61] : memref<27x8x8xbf16, #tpu.memory_space<vmem>>, vector<1x8x8xbf16>
    %101 = vector.shape_cast %100 : vector<1x8x8xbf16> to vector<8x8xbf16>
    %cst_62 = arith.constant dense<0.000000e+00> : vector<8x64xf32>
    %102 = tpu.matmul %101, %99, %cst_62 {dimension_numbers = #tpu.dot_dimension_numbers<[1], [0], [0], [1], [0, 0, 1, 1], [], []>} : vector<8x8xbf16>, vector<8x64xbf16>, vector<8x64xf32> -> vector<8x64xf32>
    %103 = arith.addf %93, %102 : vector<8x64xf32>
    %c5_i32 = arith.constant 5 : i32
    %104 = tpu.dynamic_rotate %12 by %c5_i32 dim 1 : vector<8x64xf32>, i32 -> vector<8x64xf32>
    %c9 = arith.constant 9 : index
    %c0_63 = arith.constant 0 : index
    %c0_64 = arith.constant 0 : index
    %105 = vector.load %arg3[%c9, %c0_63, %c0_64] : memref<27x1x64xf32, #tpu.memory_space<vmem>>, vector<1x1x64xf32>
    %106 = vector.shape_cast %105 : vector<1x1x64xf32> to vector<1x64xf32>
    %107 = vector.broadcast %106 : vector<1x64xf32> to vector<8x64xf32>
    %108 = arith.mulf %104, %107 : vector<8x64xf32>
    %109 = arith.truncf %108 : vector<8x64xf32> to vector<8x64xbf16>
    %c9_65 = arith.constant 9 : index
    %c0_66 = arith.constant 0 : index
    %c0_67 = arith.constant 0 : index
    %110 = vector.load %arg2[%c9_65, %c0_66, %c0_67] : memref<27x8x8xbf16, #tpu.memory_space<vmem>>, vector<1x8x8xbf16>
    %111 = vector.shape_cast %110 : vector<1x8x8xbf16> to vector<8x8xbf16>
    %cst_68 = arith.constant dense<0.000000e+00> : vector<8x64xf32>
    %112 = tpu.matmul %111, %109, %cst_68 {dimension_numbers = #tpu.dot_dimension_numbers<[1], [0], [0], [1], [0, 0, 1, 1], [], []>} : vector<8x8xbf16>, vector<8x64xbf16>, vector<8x64xf32> -> vector<8x64xf32>
    %113 = arith.addf %103, %112 : vector<8x64xf32>
    %c4_i32 = arith.constant 4 : i32
    %114 = tpu.dynamic_rotate %12 by %c4_i32 dim 1 : vector<8x64xf32>, i32 -> vector<8x64xf32>
    %c10 = arith.constant 10 : index
    %c0_69 = arith.constant 0 : index
    %c0_70 = arith.constant 0 : index
    %115 = vector.load %arg3[%c10, %c0_69, %c0_70] : memref<27x1x64xf32, #tpu.memory_space<vmem>>, vector<1x1x64xf32>
    %116 = vector.shape_cast %115 : vector<1x1x64xf32> to vector<1x64xf32>
    %117 = vector.broadcast %116 : vector<1x64xf32> to vector<8x64xf32>
    %118 = arith.mulf %114, %117 : vector<8x64xf32>
    %119 = arith.truncf %118 : vector<8x64xf32> to vector<8x64xbf16>
    %c10_71 = arith.constant 10 : index
    %c0_72 = arith.constant 0 : index
    %c0_73 = arith.constant 0 : index
    %120 = vector.load %arg2[%c10_71, %c0_72, %c0_73] : memref<27x8x8xbf16, #tpu.memory_space<vmem>>, vector<1x8x8xbf16>
    %121 = vector.shape_cast %120 : vector<1x8x8xbf16> to vector<8x8xbf16>
    %cst_74 = arith.constant dense<0.000000e+00> : vector<8x64xf32>
    %122 = tpu.matmul %121, %119, %cst_74 {dimension_numbers = #tpu.dot_dimension_numbers<[1], [0], [0], [1], [0, 0, 1, 1], [], []>} : vector<8x8xbf16>, vector<8x64xbf16>, vector<8x64xf32> -> vector<8x64xf32>
    %123 = arith.addf %113, %122 : vector<8x64xf32>
    %c3_i32 = arith.constant 3 : i32
    %124 = tpu.dynamic_rotate %12 by %c3_i32 dim 1 : vector<8x64xf32>, i32 -> vector<8x64xf32>
    %c11 = arith.constant 11 : index
    %c0_75 = arith.constant 0 : index
    %c0_76 = arith.constant 0 : index
    %125 = vector.load %arg3[%c11, %c0_75, %c0_76] : memref<27x1x64xf32, #tpu.memory_space<vmem>>, vector<1x1x64xf32>
    %126 = vector.shape_cast %125 : vector<1x1x64xf32> to vector<1x64xf32>
    %127 = vector.broadcast %126 : vector<1x64xf32> to vector<8x64xf32>
    %128 = arith.mulf %124, %127 : vector<8x64xf32>
    %129 = arith.truncf %128 : vector<8x64xf32> to vector<8x64xbf16>
    %c11_77 = arith.constant 11 : index
    %c0_78 = arith.constant 0 : index
    %c0_79 = arith.constant 0 : index
    %130 = vector.load %arg2[%c11_77, %c0_78, %c0_79] : memref<27x8x8xbf16, #tpu.memory_space<vmem>>, vector<1x8x8xbf16>
    %131 = vector.shape_cast %130 : vector<1x8x8xbf16> to vector<8x8xbf16>
    %cst_80 = arith.constant dense<0.000000e+00> : vector<8x64xf32>
    %132 = tpu.matmul %131, %129, %cst_80 {dimension_numbers = #tpu.dot_dimension_numbers<[1], [0], [0], [1], [0, 0, 1, 1], [], []>} : vector<8x8xbf16>, vector<8x64xbf16>, vector<8x64xf32> -> vector<8x64xf32>
    %133 = arith.addf %123, %132 : vector<8x64xf32>
    %c1_i32 = arith.constant 1 : i32
    %134 = tpu.dynamic_rotate %12 by %c1_i32 dim 1 : vector<8x64xf32>, i32 -> vector<8x64xf32>
    %c12 = arith.constant 12 : index
    %c0_81 = arith.constant 0 : index
    %c0_82 = arith.constant 0 : index
    %135 = vector.load %arg3[%c12, %c0_81, %c0_82] : memref<27x1x64xf32, #tpu.memory_space<vmem>>, vector<1x1x64xf32>
    %136 = vector.shape_cast %135 : vector<1x1x64xf32> to vector<1x64xf32>
    %137 = vector.broadcast %136 : vector<1x64xf32> to vector<8x64xf32>
    %138 = arith.mulf %134, %137 : vector<8x64xf32>
    %139 = arith.truncf %138 : vector<8x64xf32> to vector<8x64xbf16>
    %c12_83 = arith.constant 12 : index
    %c0_84 = arith.constant 0 : index
    %c0_85 = arith.constant 0 : index
    %140 = vector.load %arg2[%c12_83, %c0_84, %c0_85] : memref<27x8x8xbf16, #tpu.memory_space<vmem>>, vector<1x8x8xbf16>
    %141 = vector.shape_cast %140 : vector<1x8x8xbf16> to vector<8x8xbf16>
    %cst_86 = arith.constant dense<0.000000e+00> : vector<8x64xf32>
    %142 = tpu.matmul %141, %139, %cst_86 {dimension_numbers = #tpu.dot_dimension_numbers<[1], [0], [0], [1], [0, 0, 1, 1], [], []>} : vector<8x8xbf16>, vector<8x64xbf16>, vector<8x64xf32> -> vector<8x64xf32>
    %143 = arith.addf %133, %142 : vector<8x64xf32>
    %c13 = arith.constant 13 : index
    %c0_87 = arith.constant 0 : index
    %c0_88 = arith.constant 0 : index
    %144 = vector.load %arg3[%c13, %c0_87, %c0_88] : memref<27x1x64xf32, #tpu.memory_space<vmem>>, vector<1x1x64xf32>
    %145 = vector.shape_cast %144 : vector<1x1x64xf32> to vector<1x64xf32>
    %146 = vector.broadcast %145 : vector<1x64xf32> to vector<8x64xf32>
    %147 = arith.mulf %12, %146 : vector<8x64xf32>
    %148 = arith.truncf %147 : vector<8x64xf32> to vector<8x64xbf16>
    %c13_89 = arith.constant 13 : index
    %c0_90 = arith.constant 0 : index
    %c0_91 = arith.constant 0 : index
    %149 = vector.load %arg2[%c13_89, %c0_90, %c0_91] : memref<27x8x8xbf16, #tpu.memory_space<vmem>>, vector<1x8x8xbf16>
    %150 = vector.shape_cast %149 : vector<1x8x8xbf16> to vector<8x8xbf16>
    %cst_92 = arith.constant dense<0.000000e+00> : vector<8x64xf32>
    %151 = tpu.matmul %150, %148, %cst_92 {dimension_numbers = #tpu.dot_dimension_numbers<[1], [0], [0], [1], [0, 0, 1, 1], [], []>} : vector<8x8xbf16>, vector<8x64xbf16>, vector<8x64xf32> -> vector<8x64xf32>
    %152 = arith.addf %143, %151 : vector<8x64xf32>
    %c63_i32 = arith.constant 63 : i32
    %153 = tpu.dynamic_rotate %12 by %c63_i32 dim 1 : vector<8x64xf32>, i32 -> vector<8x64xf32>
    %c14 = arith.constant 14 : index
    %c0_93 = arith.constant 0 : index
    %c0_94 = arith.constant 0 : index
    %154 = vector.load %arg3[%c14, %c0_93, %c0_94] : memref<27x1x64xf32, #tpu.memory_space<vmem>>, vector<1x1x64xf32>
    %155 = vector.shape_cast %154 : vector<1x1x64xf32> to vector<1x64xf32>
    %156 = vector.broadcast %155 : vector<1x64xf32> to vector<8x64xf32>
    %157 = arith.mulf %153, %156 : vector<8x64xf32>
    %158 = arith.truncf %157 : vector<8x64xf32> to vector<8x64xbf16>
    %c14_95 = arith.constant 14 : index
    %c0_96 = arith.constant 0 : index
    %c0_97 = arith.constant 0 : index
    %159 = vector.load %arg2[%c14_95, %c0_96, %c0_97] : memref<27x8x8xbf16, #tpu.memory_space<vmem>>, vector<1x8x8xbf16>
    %160 = vector.shape_cast %159 : vector<1x8x8xbf16> to vector<8x8xbf16>
    %cst_98 = arith.constant dense<0.000000e+00> : vector<8x64xf32>
    %161 = tpu.matmul %160, %158, %cst_98 {dimension_numbers = #tpu.dot_dimension_numbers<[1], [0], [0], [1], [0, 0, 1, 1], [], []>} : vector<8x8xbf16>, vector<8x64xbf16>, vector<8x64xf32> -> vector<8x64xf32>
    %162 = arith.addf %152, %161 : vector<8x64xf32>
    %c61_i32 = arith.constant 61 : i32
    %163 = tpu.dynamic_rotate %12 by %c61_i32 dim 1 : vector<8x64xf32>, i32 -> vector<8x64xf32>
    %c15 = arith.constant 15 : index
    %c0_99 = arith.constant 0 : index
    %c0_100 = arith.constant 0 : index
    %164 = vector.load %arg3[%c15, %c0_99, %c0_100] : memref<27x1x64xf32, #tpu.memory_space<vmem>>, vector<1x1x64xf32>
    %165 = vector.shape_cast %164 : vector<1x1x64xf32> to vector<1x64xf32>
    %166 = vector.broadcast %165 : vector<1x64xf32> to vector<8x64xf32>
    %167 = arith.mulf %163, %166 : vector<8x64xf32>
    %168 = arith.truncf %167 : vector<8x64xf32> to vector<8x64xbf16>
    %c15_101 = arith.constant 15 : index
    %c0_102 = arith.constant 0 : index
    %c0_103 = arith.constant 0 : index
    %169 = vector.load %arg2[%c15_101, %c0_102, %c0_103] : memref<27x8x8xbf16, #tpu.memory_space<vmem>>, vector<1x8x8xbf16>
    %170 = vector.shape_cast %169 : vector<1x8x8xbf16> to vector<8x8xbf16>
    %cst_104 = arith.constant dense<0.000000e+00> : vector<8x64xf32>
    %171 = tpu.matmul %170, %168, %cst_104 {dimension_numbers = #tpu.dot_dimension_numbers<[1], [0], [0], [1], [0, 0, 1, 1], [], []>} : vector<8x8xbf16>, vector<8x64xbf16>, vector<8x64xf32> -> vector<8x64xf32>
    %172 = arith.addf %162, %171 : vector<8x64xf32>
    %c60_i32 = arith.constant 60 : i32
    %173 = tpu.dynamic_rotate %12 by %c60_i32 dim 1 : vector<8x64xf32>, i32 -> vector<8x64xf32>
    %c16 = arith.constant 16 : index
    %c0_105 = arith.constant 0 : index
    %c0_106 = arith.constant 0 : index
    %174 = vector.load %arg3[%c16, %c0_105, %c0_106] : memref<27x1x64xf32, #tpu.memory_space<vmem>>, vector<1x1x64xf32>
    %175 = vector.shape_cast %174 : vector<1x1x64xf32> to vector<1x64xf32>
    %176 = vector.broadcast %175 : vector<1x64xf32> to vector<8x64xf32>
    %177 = arith.mulf %173, %176 : vector<8x64xf32>
    %178 = arith.truncf %177 : vector<8x64xf32> to vector<8x64xbf16>
    %c16_107 = arith.constant 16 : index
    %c0_108 = arith.constant 0 : index
    %c0_109 = arith.constant 0 : index
    %179 = vector.load %arg2[%c16_107, %c0_108, %c0_109] : memref<27x8x8xbf16, #tpu.memory_space<vmem>>, vector<1x8x8xbf16>
    %180 = vector.shape_cast %179 : vector<1x8x8xbf16> to vector<8x8xbf16>
    %cst_110 = arith.constant dense<0.000000e+00> : vector<8x64xf32>
    %181 = tpu.matmul %180, %178, %cst_110 {dimension_numbers = #tpu.dot_dimension_numbers<[1], [0], [0], [1], [0, 0, 1, 1], [], []>} : vector<8x8xbf16>, vector<8x64xbf16>, vector<8x64xf32> -> vector<8x64xf32>
    %182 = arith.addf %172, %181 : vector<8x64xf32>
    %c59_i32 = arith.constant 59 : i32
    %183 = tpu.dynamic_rotate %12 by %c59_i32 dim 1 : vector<8x64xf32>, i32 -> vector<8x64xf32>
    %c17 = arith.constant 17 : index
    %c0_111 = arith.constant 0 : index
    %c0_112 = arith.constant 0 : index
    %184 = vector.load %arg3[%c17, %c0_111, %c0_112] : memref<27x1x64xf32, #tpu.memory_space<vmem>>, vector<1x1x64xf32>
    %185 = vector.shape_cast %184 : vector<1x1x64xf32> to vector<1x64xf32>
    %186 = vector.broadcast %185 : vector<1x64xf32> to vector<8x64xf32>
    %187 = arith.mulf %183, %186 : vector<8x64xf32>
    %188 = arith.truncf %187 : vector<8x64xf32> to vector<8x64xbf16>
    %c17_113 = arith.constant 17 : index
    %c0_114 = arith.constant 0 : index
    %c0_115 = arith.constant 0 : index
    %189 = vector.load %arg2[%c17_113, %c0_114, %c0_115] : memref<27x8x8xbf16, #tpu.memory_space<vmem>>, vector<1x8x8xbf16>
    %190 = vector.shape_cast %189 : vector<1x8x8xbf16> to vector<8x8xbf16>
    %cst_116 = arith.constant dense<0.000000e+00> : vector<8x64xf32>
    %191 = tpu.matmul %190, %188, %cst_116 {dimension_numbers = #tpu.dot_dimension_numbers<[1], [0], [0], [1], [0, 0, 1, 1], [], []>} : vector<8x8xbf16>, vector<8x64xbf16>, vector<8x64xf32> -> vector<8x64xf32>
    %192 = arith.addf %182, %191 : vector<8x64xf32>
    %c53_i32 = arith.constant 53 : i32
    %193 = tpu.dynamic_rotate %12 by %c53_i32 dim 1 : vector<8x64xf32>, i32 -> vector<8x64xf32>
    %c18 = arith.constant 18 : index
    %c0_117 = arith.constant 0 : index
    %c0_118 = arith.constant 0 : index
    %194 = vector.load %arg3[%c18, %c0_117, %c0_118] : memref<27x1x64xf32, #tpu.memory_space<vmem>>, vector<1x1x64xf32>
    %195 = vector.shape_cast %194 : vector<1x1x64xf32> to vector<1x64xf32>
    %196 = vector.broadcast %195 : vector<1x64xf32> to vector<8x64xf32>
    %197 = arith.mulf %193, %196 : vector<8x64xf32>
    %198 = arith.truncf %197 : vector<8x64xf32> to vector<8x64xbf16>
    %c18_119 = arith.constant 18 : index
    %c0_120 = arith.constant 0 : index
    %c0_121 = arith.constant 0 : index
    %199 = vector.load %arg2[%c18_119, %c0_120, %c0_121] : memref<27x8x8xbf16, #tpu.memory_space<vmem>>, vector<1x8x8xbf16>
    %200 = vector.shape_cast %199 : vector<1x8x8xbf16> to vector<8x8xbf16>
    %cst_122 = arith.constant dense<0.000000e+00> : vector<8x64xf32>
    %201 = tpu.matmul %200, %198, %cst_122 {dimension_numbers = #tpu.dot_dimension_numbers<[1], [0], [0], [1], [0, 0, 1, 1], [], []>} : vector<8x8xbf16>, vector<8x64xbf16>, vector<8x64xf32> -> vector<8x64xf32>
    %202 = arith.addf %192, %201 : vector<8x64xf32>
    %c52_i32 = arith.constant 52 : i32
    %203 = tpu.dynamic_rotate %12 by %c52_i32 dim 1 : vector<8x64xf32>, i32 -> vector<8x64xf32>
    %c19 = arith.constant 19 : index
    %c0_123 = arith.constant 0 : index
    %c0_124 = arith.constant 0 : index
    %204 = vector.load %arg3[%c19, %c0_123, %c0_124] : memref<27x1x64xf32, #tpu.memory_space<vmem>>, vector<1x1x64xf32>
    %205 = vector.shape_cast %204 : vector<1x1x64xf32> to vector<1x64xf32>
    %206 = vector.broadcast %205 : vector<1x64xf32> to vector<8x64xf32>
    %207 = arith.mulf %203, %206 : vector<8x64xf32>
    %208 = arith.truncf %207 : vector<8x64xf32> to vector<8x64xbf16>
    %c19_125 = arith.constant 19 : index
    %c0_126 = arith.constant 0 : index
    %c0_127 = arith.constant 0 : index
    %209 = vector.load %arg2[%c19_125, %c0_126, %c0_127] : memref<27x8x8xbf16, #tpu.memory_space<vmem>>, vector<1x8x8xbf16>
    %210 = vector.shape_cast %209 : vector<1x8x8xbf16> to vector<8x8xbf16>
    %cst_128 = arith.constant dense<0.000000e+00> : vector<8x64xf32>
    %211 = tpu.matmul %210, %208, %cst_128 {dimension_numbers = #tpu.dot_dimension_numbers<[1], [0], [0], [1], [0, 0, 1, 1], [], []>} : vector<8x8xbf16>, vector<8x64xbf16>, vector<8x64xf32> -> vector<8x64xf32>
    %212 = arith.addf %202, %211 : vector<8x64xf32>
    %c51_i32 = arith.constant 51 : i32
    %213 = tpu.dynamic_rotate %12 by %c51_i32 dim 1 : vector<8x64xf32>, i32 -> vector<8x64xf32>
    %c20 = arith.constant 20 : index
    %c0_129 = arith.constant 0 : index
    %c0_130 = arith.constant 0 : index
    %214 = vector.load %arg3[%c20, %c0_129, %c0_130] : memref<27x1x64xf32, #tpu.memory_space<vmem>>, vector<1x1x64xf32>
    %215 = vector.shape_cast %214 : vector<1x1x64xf32> to vector<1x64xf32>
    %216 = vector.broadcast %215 : vector<1x64xf32> to vector<8x64xf32>
    %217 = arith.mulf %213, %216 : vector<8x64xf32>
    %218 = arith.truncf %217 : vector<8x64xf32> to vector<8x64xbf16>
    %c20_131 = arith.constant 20 : index
    %c0_132 = arith.constant 0 : index
    %c0_133 = arith.constant 0 : index
    %219 = vector.load %arg2[%c20_131, %c0_132, %c0_133] : memref<27x8x8xbf16, #tpu.memory_space<vmem>>, vector<1x8x8xbf16>
    %220 = vector.shape_cast %219 : vector<1x8x8xbf16> to vector<8x8xbf16>
    %cst_134 = arith.constant dense<0.000000e+00> : vector<8x64xf32>
    %221 = tpu.matmul %220, %218, %cst_134 {dimension_numbers = #tpu.dot_dimension_numbers<[1], [0], [0], [1], [0, 0, 1, 1], [], []>} : vector<8x8xbf16>, vector<8x64xbf16>, vector<8x64xf32> -> vector<8x64xf32>
    %222 = arith.addf %212, %221 : vector<8x64xf32>
    %c49_i32 = arith.constant 49 : i32
    %223 = tpu.dynamic_rotate %12 by %c49_i32 dim 1 : vector<8x64xf32>, i32 -> vector<8x64xf32>
    %c21 = arith.constant 21 : index
    %c0_135 = arith.constant 0 : index
    %c0_136 = arith.constant 0 : index
    %224 = vector.load %arg3[%c21, %c0_135, %c0_136] : memref<27x1x64xf32, #tpu.memory_space<vmem>>, vector<1x1x64xf32>
    %225 = vector.shape_cast %224 : vector<1x1x64xf32> to vector<1x64xf32>
    %226 = vector.broadcast %225 : vector<1x64xf32> to vector<8x64xf32>
    %227 = arith.mulf %223, %226 : vector<8x64xf32>
    %228 = arith.truncf %227 : vector<8x64xf32> to vector<8x64xbf16>
    %c21_137 = arith.constant 21 : index
    %c0_138 = arith.constant 0 : index
    %c0_139 = arith.constant 0 : index
    %229 = vector.load %arg2[%c21_137, %c0_138, %c0_139] : memref<27x8x8xbf16, #tpu.memory_space<vmem>>, vector<1x8x8xbf16>
    %230 = vector.shape_cast %229 : vector<1x8x8xbf16> to vector<8x8xbf16>
    %cst_140 = arith.constant dense<0.000000e+00> : vector<8x64xf32>
    %231 = tpu.matmul %230, %228, %cst_140 {dimension_numbers = #tpu.dot_dimension_numbers<[1], [0], [0], [1], [0, 0, 1, 1], [], []>} : vector<8x8xbf16>, vector<8x64xbf16>, vector<8x64xf32> -> vector<8x64xf32>
    %232 = arith.addf %222, %231 : vector<8x64xf32>
    %c48_i32 = arith.constant 48 : i32
    %233 = tpu.dynamic_rotate %12 by %c48_i32 dim 1 : vector<8x64xf32>, i32 -> vector<8x64xf32>
    %c22 = arith.constant 22 : index
    %c0_141 = arith.constant 0 : index
    %c0_142 = arith.constant 0 : index
    %234 = vector.load %arg3[%c22, %c0_141, %c0_142] : memref<27x1x64xf32, #tpu.memory_space<vmem>>, vector<1x1x64xf32>
    %235 = vector.shape_cast %234 : vector<1x1x64xf32> to vector<1x64xf32>
    %236 = vector.broadcast %235 : vector<1x64xf32> to vector<8x64xf32>
    %237 = arith.mulf %233, %236 : vector<8x64xf32>
    %238 = arith.truncf %237 : vector<8x64xf32> to vector<8x64xbf16>
    %c22_143 = arith.constant 22 : index
    %c0_144 = arith.constant 0 : index
    %c0_145 = arith.constant 0 : index
    %239 = vector.load %arg2[%c22_143, %c0_144, %c0_145] : memref<27x8x8xbf16, #tpu.memory_space<vmem>>, vector<1x8x8xbf16>
    %240 = vector.shape_cast %239 : vector<1x8x8xbf16> to vector<8x8xbf16>
    %cst_146 = arith.constant dense<0.000000e+00> : vector<8x64xf32>
    %241 = tpu.matmul %240, %238, %cst_146 {dimension_numbers = #tpu.dot_dimension_numbers<[1], [0], [0], [1], [0, 0, 1, 1], [], []>} : vector<8x8xbf16>, vector<8x64xbf16>, vector<8x64xf32> -> vector<8x64xf32>
    %242 = arith.addf %232, %241 : vector<8x64xf32>
    %c47_i32 = arith.constant 47 : i32
    %243 = tpu.dynamic_rotate %12 by %c47_i32 dim 1 : vector<8x64xf32>, i32 -> vector<8x64xf32>
    %c23 = arith.constant 23 : index
    %c0_147 = arith.constant 0 : index
    %c0_148 = arith.constant 0 : index
    %244 = vector.load %arg3[%c23, %c0_147, %c0_148] : memref<27x1x64xf32, #tpu.memory_space<vmem>>, vector<1x1x64xf32>
    %245 = vector.shape_cast %244 : vector<1x1x64xf32> to vector<1x64xf32>
    %246 = vector.broadcast %245 : vector<1x64xf32> to vector<8x64xf32>
    %247 = arith.mulf %243, %246 : vector<8x64xf32>
    %248 = arith.truncf %247 : vector<8x64xf32> to vector<8x64xbf16>
    %c23_149 = arith.constant 23 : index
    %c0_150 = arith.constant 0 : index
    %c0_151 = arith.constant 0 : index
    %249 = vector.load %arg2[%c23_149, %c0_150, %c0_151] : memref<27x8x8xbf16, #tpu.memory_space<vmem>>, vector<1x8x8xbf16>
    %250 = vector.shape_cast %249 : vector<1x8x8xbf16> to vector<8x8xbf16>
    %cst_152 = arith.constant dense<0.000000e+00> : vector<8x64xf32>
    %251 = tpu.matmul %250, %248, %cst_152 {dimension_numbers = #tpu.dot_dimension_numbers<[1], [0], [0], [1], [0, 0, 1, 1], [], []>} : vector<8x8xbf16>, vector<8x64xbf16>, vector<8x64xf32> -> vector<8x64xf32>
    %252 = arith.addf %242, %251 : vector<8x64xf32>
    %c45_i32 = arith.constant 45 : i32
    %253 = tpu.dynamic_rotate %12 by %c45_i32 dim 1 : vector<8x64xf32>, i32 -> vector<8x64xf32>
    %c24 = arith.constant 24 : index
    %c0_153 = arith.constant 0 : index
    %c0_154 = arith.constant 0 : index
    %254 = vector.load %arg3[%c24, %c0_153, %c0_154] : memref<27x1x64xf32, #tpu.memory_space<vmem>>, vector<1x1x64xf32>
    %255 = vector.shape_cast %254 : vector<1x1x64xf32> to vector<1x64xf32>
    %256 = vector.broadcast %255 : vector<1x64xf32> to vector<8x64xf32>
    %257 = arith.mulf %253, %256 : vector<8x64xf32>
    %258 = arith.truncf %257 : vector<8x64xf32> to vector<8x64xbf16>
    %c24_155 = arith.constant 24 : index
    %c0_156 = arith.constant 0 : index
    %c0_157 = arith.constant 0 : index
    %259 = vector.load %arg2[%c24_155, %c0_156, %c0_157] : memref<27x8x8xbf16, #tpu.memory_space<vmem>>, vector<1x8x8xbf16>
    %260 = vector.shape_cast %259 : vector<1x8x8xbf16> to vector<8x8xbf16>
    %cst_158 = arith.constant dense<0.000000e+00> : vector<8x64xf32>
    %261 = tpu.matmul %260, %258, %cst_158 {dimension_numbers = #tpu.dot_dimension_numbers<[1], [0], [0], [1], [0, 0, 1, 1], [], []>} : vector<8x8xbf16>, vector<8x64xbf16>, vector<8x64xf32> -> vector<8x64xf32>
    %262 = arith.addf %252, %261 : vector<8x64xf32>
    %c44_i32 = arith.constant 44 : i32
    %263 = tpu.dynamic_rotate %12 by %c44_i32 dim 1 : vector<8x64xf32>, i32 -> vector<8x64xf32>
    %c25 = arith.constant 25 : index
    %c0_159 = arith.constant 0 : index
    %c0_160 = arith.constant 0 : index
    %264 = vector.load %arg3[%c25, %c0_159, %c0_160] : memref<27x1x64xf32, #tpu.memory_space<vmem>>, vector<1x1x64xf32>
    %265 = vector.shape_cast %264 : vector<1x1x64xf32> to vector<1x64xf32>
    %266 = vector.broadcast %265 : vector<1x64xf32> to vector<8x64xf32>
    %267 = arith.mulf %263, %266 : vector<8x64xf32>
    %268 = arith.truncf %267 : vector<8x64xf32> to vector<8x64xbf16>
    %c25_161 = arith.constant 25 : index
    %c0_162 = arith.constant 0 : index
    %c0_163 = arith.constant 0 : index
    %269 = vector.load %arg2[%c25_161, %c0_162, %c0_163] : memref<27x8x8xbf16, #tpu.memory_space<vmem>>, vector<1x8x8xbf16>
    %270 = vector.shape_cast %269 : vector<1x8x8xbf16> to vector<8x8xbf16>
    %cst_164 = arith.constant dense<0.000000e+00> : vector<8x64xf32>
    %271 = tpu.matmul %270, %268, %cst_164 {dimension_numbers = #tpu.dot_dimension_numbers<[1], [0], [0], [1], [0, 0, 1, 1], [], []>} : vector<8x8xbf16>, vector<8x64xbf16>, vector<8x64xf32> -> vector<8x64xf32>
    %272 = arith.addf %262, %271 : vector<8x64xf32>
    %c43_i32 = arith.constant 43 : i32
    %273 = tpu.dynamic_rotate %12 by %c43_i32 dim 1 : vector<8x64xf32>, i32 -> vector<8x64xf32>
    %c26 = arith.constant 26 : index
    %c0_165 = arith.constant 0 : index
    %c0_166 = arith.constant 0 : index
    %274 = vector.load %arg3[%c26, %c0_165, %c0_166] : memref<27x1x64xf32, #tpu.memory_space<vmem>>, vector<1x1x64xf32>
    %275 = vector.shape_cast %274 : vector<1x1x64xf32> to vector<1x64xf32>
    %276 = vector.broadcast %275 : vector<1x64xf32> to vector<8x64xf32>
    %277 = arith.mulf %273, %276 : vector<8x64xf32>
    %278 = arith.truncf %277 : vector<8x64xf32> to vector<8x64xbf16>
    %c26_167 = arith.constant 26 : index
    %c0_168 = arith.constant 0 : index
    %c0_169 = arith.constant 0 : index
    %279 = vector.load %arg2[%c26_167, %c0_168, %c0_169] : memref<27x8x8xbf16, #tpu.memory_space<vmem>>, vector<1x8x8xbf16>
    %280 = vector.shape_cast %279 : vector<1x8x8xbf16> to vector<8x8xbf16>
    %cst_170 = arith.constant dense<0.000000e+00> : vector<8x64xf32>
    %281 = tpu.matmul %280, %278, %cst_170 {dimension_numbers = #tpu.dot_dimension_numbers<[1], [0], [0], [1], [0, 0, 1, 1], [], []>} : vector<8x8xbf16>, vector<8x64xbf16>, vector<8x64xf32> -> vector<8x64xf32>
    %282 = arith.addf %272, %281 : vector<8x64xf32>
    %c0_171 = arith.constant 0 : index
    %c0_172 = arith.constant 0 : index
    %283 = vector.load %arg4[%c0_171, %c0_172] : memref<8x1xf32, #tpu.memory_space<vmem>>, vector<8x1xf32>
    %284 = vector.broadcast %283 : vector<8x1xf32> to vector<8x64xf32>
    %285 = arith.addf %282, %284 : vector<8x64xf32>
    %c0_173 = arith.constant 0 : index
    %c0_174 = arith.constant 0 : index
    %c0_175 = arith.constant 0 : index
    %286 = vector.load %arg7[%c0_173, %c0_174, %c0_175] : memref<1x8x64xf32, #tpu.memory_space<vmem>>, vector<1x8x64xf32>
    %287 = vector.shape_cast %286 : vector<1x8x64xf32> to vector<8x64xf32>
    %288 = vector.shape_cast %285 : vector<8x64xf32> to vector<1x8x64xf32>
    tpu.vector_store %arg7[%c0_173, %c0_174, %c0_175], %288 {strides = array<i32>} : memref<1x8x64xf32, #tpu.memory_space<vmem>>, vector<1x8x64xf32>,
    %cst_176 = arith.constant dense<0.000000e+00> : vector<8xf32>
    %289 = vector.multi_reduction <add>, %285, %cst_176 [1] : vector<8x64xf32> to vector<8xf32>
    %290 = vector.shape_cast %289 : vector<8xf32> to vector<8x1xf32>
    %c0_177 = arith.constant 0 : index
    %c0_178 = arith.constant 0 : index
    %c0_179 = arith.constant 0 : index
    %291 = vector.load %arg8[%c0_177, %c0_178, %c0_179] : memref<1x8x2xf32, #tpu.memory_space<vmem>>, vector<1x8x1xf32>
    %292 = vector.shape_cast %291 : vector<1x8x1xf32> to vector<8x1xf32>
    %293 = vector.shape_cast %290 : vector<8x1xf32> to vector<1x8x1xf32>
    tpu.vector_store %arg8[%c0_177, %c0_178, %c0_179], %293 {strides = array<i32>} : memref<1x8x2xf32, #tpu.memory_space<vmem>>, vector<1x8x1xf32>,
    %294 = arith.mulf %285, %285 : vector<8x64xf32>
    %cst_180 = arith.constant dense<0.000000e+00> : vector<8xf32>
    %295 = vector.multi_reduction <add>, %294, %cst_180 [1] : vector<8x64xf32> to vector<8xf32>
    %296 = vector.shape_cast %295 : vector<8xf32> to vector<8x1xf32>
    %c0_181 = arith.constant 0 : index
    %c0_182 = arith.constant 0 : index
    %c1_183 = arith.constant 1 : index
    %297 = vector.load %arg8[%c0_181, %c0_182, %c1_183] : memref<1x8x2xf32, #tpu.memory_space<vmem>>, vector<1x8x1xf32>
    %298 = vector.shape_cast %297 : vector<1x8x1xf32> to vector<8x1xf32>
    %299 = vector.shape_cast %296 : vector<8x1xf32> to vector<1x8x1xf32>
    tpu.vector_store %arg8[%c0_181, %c0_182, %c1_183], %299 {strides = array<i32>} : memref<1x8x2xf32, #tpu.memory_space<vmem>>, vector<1x8x1xf32>,
    return
  }
  func.func @transform_0(%arg0: i32) -> (i32, i32, i32) {
    %c0_i32 = arith.constant 0 : i32
    %c0_i32_0 = arith.constant 0 : i32
    %c0_i32_1 = arith.constant 0 : i32
    return %arg0, %c0_i32, %c0_i32_0 : i32, i32, i32
  }
  func.func @transform_1(%arg0: i32) -> (i32, i32, i32) {
    %c0_i32 = arith.constant 0 : i32
    %c0_i32_0 = arith.constant 0 : i32
    %c0_i32_1 = arith.constant 0 : i32
    %c0_i32_2 = arith.constant 0 : i32
    return %c0_i32, %c0_i32_0, %c0_i32_1 : i32, i32, i32
  }
  func.func @transform_2(%arg0: i32) -> (i32, i32, i32) {
    %c0_i32 = arith.constant 0 : i32
    %c0_i32_0 = arith.constant 0 : i32
    %c0_i32_1 = arith.constant 0 : i32
    %c0_i32_2 = arith.constant 0 : i32
    return %c0_i32, %c0_i32_0, %c0_i32_1 : i32, i32, i32
  }
  func.func @transform_3(%arg0: i32) -> (i32, i32) {
    %c0_i32 = arith.constant 0 : i32
    %c0_i32_0 = arith.constant 0 : i32
    %c0_i32_1 = arith.constant 0 : i32
    return %c0_i32, %c0_i32_0 : i32, i32
  }
  func.func @transform_4(%arg0: i32) -> (i32, i32) {
    %c0_i32 = arith.constant 0 : i32
    %c0_i32_0 = arith.constant 0 : i32
    %c0_i32_1 = arith.constant 0 : i32
    return %c0_i32, %c0_i32_0 : i32, i32
  }
  func.func @transform_5(%arg0: i32) -> (i32, i32) {
    %c0_i32 = arith.constant 0 : i32
    %c0_i32_0 = arith.constant 0 : i32
    %c0_i32_1 = arith.constant 0 : i32
    return %c0_i32, %c0_i32_0 : i32, i32
  }
  func.func @transform_6(%arg0: i32) -> (i32, i32, i32) {
    %c0_i32 = arith.constant 0 : i32
    %c0_i32_0 = arith.constant 0 : i32
    %c0_i32_1 = arith.constant 0 : i32
    return %arg0, %c0_i32, %c0_i32_0 : i32, i32, i32
  }
  func.func @transform_7(%arg0: i32) -> (i32, i32, i32) {
    %c0_i32 = arith.constant 0 : i32
    %c0_i32_0 = arith.constant 0 : i32
    %c0_i32_1 = arith.constant 0 : i32
    return %arg0, %c0_i32, %c0_i32_0 : i32, i32, i32
  }
}

module attributes {stable_mosaic.version = 11 : i64} {
  func.func @_devox_fuse_kernel(%arg0: i32, %arg1: i32, %arg2: memref<1x8x64xf32, #tpu.memory_space<vmem>>, %arg3: memref<8x1xf32, #tpu.memory_space<vmem>>, %arg4: memref<8x1xf32, #tpu.memory_space<vmem>>, %arg5: memref<1x8x64xi32, #tpu.memory_space<vmem>>, %arg6: memref<1x8x64xf32, #tpu.memory_space<vmem>>, %arg7: memref<1x8x64xf32, #tpu.memory_space<vmem>>, %arg8: memref<8x1xf32, #tpu.memory_space<vmem>>, %arg9: memref<8x1xf32, #tpu.memory_space<vmem>>, %arg10: memref<1x8x64xf32, #tpu.memory_space<vmem>>) attributes {dimension_semantics = [#tpu.dimension_semantics<parallel>, #tpu.dimension_semantics<parallel>], iteration_bounds = array<i64: 2, 1>, scalar_prefetch = 0 : i64, scratch_operands = 0 : i64, tpu.core_type = #tpu.core_type<tc>, window_params = [{transform_indices = @transform_0, window_bounds = array<i64: 1, 8, 64>}, {pipeline_mode = #tpu.pipeline_mode<synchronous>, transform_indices = @transform_1, window_bounds = array<i64: 8, 1>}, {pipeline_mode = #tpu.pipeline_mode<synchronous>, transform_indices = @transform_2, window_bounds = array<i64: 8, 1>}, {transform_indices = @transform_3, window_bounds = array<i64: 1, 8, 64>}, {transform_indices = @transform_4, window_bounds = array<i64: 1, 8, 64>}, {transform_indices = @transform_5, window_bounds = array<i64: 1, 8, 64>}, {pipeline_mode = #tpu.pipeline_mode<synchronous>, transform_indices = @transform_6, window_bounds = array<i64: 8, 1>}, {pipeline_mode = #tpu.pipeline_mode<synchronous>, transform_indices = @transform_7, window_bounds = array<i64: 8, 1>}, {transform_indices = @transform_8, window_bounds = array<i64: 1, 8, 64>}]} {
    %c0 = arith.constant 0 : index
    %c0_0 = arith.constant 0 : index
    %c0_1 = arith.constant 0 : index
    %0 = vector.load %arg2[%c0, %c0_0, %c0_1] : memref<1x8x64xf32, #tpu.memory_space<vmem>>, vector<1x8x64xf32>
    %1 = vector.shape_cast %0 : vector<1x8x64xf32> to vector<8x64xf32>
    %c0_2 = arith.constant 0 : index
    %c0_3 = arith.constant 0 : index
    %2 = vector.load %arg3[%c0_2, %c0_3] : memref<8x1xf32, #tpu.memory_space<vmem>>, vector<8x1xf32>
    %3 = vector.broadcast %2 : vector<8x1xf32> to vector<8x64xf32>
    %4 = arith.mulf %1, %3 : vector<8x64xf32>
    %c0_4 = arith.constant 0 : index
    %c0_5 = arith.constant 0 : index
    %5 = vector.load %arg4[%c0_4, %c0_5] : memref<8x1xf32, #tpu.memory_space<vmem>>, vector<8x1xf32>
    %6 = vector.broadcast %5 : vector<8x1xf32> to vector<8x64xf32>
    %7 = arith.addf %4, %6 : vector<8x64xf32>
    %cst = arith.constant 0.000000e+00 : f32
    %8 = vector.broadcast %cst : f32 to vector<8x64xf32>
    %9 = arith.cmpf ogt, %7, %8 : vector<8x64xf32>
    %cst_6 = arith.constant 1.000000e-01 : f32
    %10 = vector.broadcast %cst_6 : f32 to vector<8x64xf32>
    %11 = arith.mulf %10, %7 : vector<8x64xf32>
    %12 = arith.select %9, %7, %11 : vector<8x64xi1>, vector<8x64xf32>
    %c0_7 = arith.constant 0 : index
    %c0_8 = arith.constant 0 : index
    %c0_9 = arith.constant 0 : index
    %13 = vector.load %arg5[%c0_7, %c0_8, %c0_9] : memref<1x8x64xi32, #tpu.memory_space<vmem>>, vector<1x8x64xi32>
    %14 = vector.shape_cast %13 : vector<1x8x64xi32> to vector<8x64xi32>
    %c0_10 = arith.constant 0 : index
    %c0_11 = arith.constant 0 : index
    %c0_12 = arith.constant 0 : index
    %15 = vector.load %arg6[%c0_10, %c0_11, %c0_12] : memref<1x8x64xf32, #tpu.memory_space<vmem>>, vector<1x8x64xf32>
    %16 = vector.shape_cast %15 : vector<1x8x64xf32> to vector<8x64xf32>
    %17 = tpu.iota {dimensions = array<i32: 0>} : vector<64x64xi32>
    %cst_13 = arith.constant 0.000000e+00 : f32
    %18 = vector.broadcast %cst_13 : f32 to vector<64x64xf32>
    %19 = vector.extract_strided_slice %14 {offsets = [0, 0], sizes = [1, 64], strides = [1, 1]} : vector<8x64xi32> to vector<1x64xi32>
    %20 = vector.broadcast %19 : vector<1x64xi32> to vector<64x64xi32>
    %21 = arith.cmpi eq, %17, %20 : vector<64x64xi32>
    %22 = vector.extract_strided_slice %16 {offsets = [0, 0], sizes = [1, 64], strides = [1, 1]} : vector<8x64xf32> to vector<1x64xf32>
    %cst_14 = arith.constant 0.000000e+00 : f32
    %23 = vector.shape_cast %22 : vector<1x64xf32> to vector<1x64xf32>
    %24 = vector.broadcast %23 : vector<1x64xf32> to vector<64x64xf32>
    %25 = vector.broadcast %cst_14 : f32 to vector<64x64xf32>
    %26 = arith.select %21, %24, %25 : vector<64x64xi1>, vector<64x64xf32>
    %27 = arith.addf %18, %26 : vector<64x64xf32>
    %28 = vector.extract_strided_slice %14 {offsets = [1, 0], sizes = [1, 64], strides = [1, 1]} : vector<8x64xi32> to vector<1x64xi32>
    %29 = vector.broadcast %28 : vector<1x64xi32> to vector<64x64xi32>
    %30 = arith.cmpi eq, %17, %29 : vector<64x64xi32>
    %31 = vector.extract_strided_slice %16 {offsets = [1, 0], sizes = [1, 64], strides = [1, 1]} : vector<8x64xf32> to vector<1x64xf32>
    %cst_15 = arith.constant 0.000000e+00 : f32
    %32 = vector.shape_cast %31 : vector<1x64xf32> to vector<1x64xf32>
    %33 = vector.broadcast %32 : vector<1x64xf32> to vector<64x64xf32>
    %34 = vector.broadcast %cst_15 : f32 to vector<64x64xf32>
    %35 = arith.select %30, %33, %34 : vector<64x64xi1>, vector<64x64xf32>
    %36 = arith.addf %27, %35 : vector<64x64xf32>
    %37 = vector.extract_strided_slice %14 {offsets = [2, 0], sizes = [1, 64], strides = [1, 1]} : vector<8x64xi32> to vector<1x64xi32>
    %38 = vector.broadcast %37 : vector<1x64xi32> to vector<64x64xi32>
    %39 = arith.cmpi eq, %17, %38 : vector<64x64xi32>
    %40 = vector.extract_strided_slice %16 {offsets = [2, 0], sizes = [1, 64], strides = [1, 1]} : vector<8x64xf32> to vector<1x64xf32>
    %cst_16 = arith.constant 0.000000e+00 : f32
    %41 = vector.shape_cast %40 : vector<1x64xf32> to vector<1x64xf32>
    %42 = vector.broadcast %41 : vector<1x64xf32> to vector<64x64xf32>
    %43 = vector.broadcast %cst_16 : f32 to vector<64x64xf32>
    %44 = arith.select %39, %42, %43 : vector<64x64xi1>, vector<64x64xf32>
    %45 = arith.addf %36, %44 : vector<64x64xf32>
    %46 = vector.extract_strided_slice %14 {offsets = [3, 0], sizes = [1, 64], strides = [1, 1]} : vector<8x64xi32> to vector<1x64xi32>
    %47 = vector.broadcast %46 : vector<1x64xi32> to vector<64x64xi32>
    %48 = arith.cmpi eq, %17, %47 : vector<64x64xi32>
    %49 = vector.extract_strided_slice %16 {offsets = [3, 0], sizes = [1, 64], strides = [1, 1]} : vector<8x64xf32> to vector<1x64xf32>
    %cst_17 = arith.constant 0.000000e+00 : f32
    %50 = vector.shape_cast %49 : vector<1x64xf32> to vector<1x64xf32>
    %51 = vector.broadcast %50 : vector<1x64xf32> to vector<64x64xf32>
    %52 = vector.broadcast %cst_17 : f32 to vector<64x64xf32>
    %53 = arith.select %48, %51, %52 : vector<64x64xi1>, vector<64x64xf32>
    %54 = arith.addf %45, %53 : vector<64x64xf32>
    %55 = vector.extract_strided_slice %14 {offsets = [4, 0], sizes = [1, 64], strides = [1, 1]} : vector<8x64xi32> to vector<1x64xi32>
    %56 = vector.broadcast %55 : vector<1x64xi32> to vector<64x64xi32>
    %57 = arith.cmpi eq, %17, %56 : vector<64x64xi32>
    %58 = vector.extract_strided_slice %16 {offsets = [4, 0], sizes = [1, 64], strides = [1, 1]} : vector<8x64xf32> to vector<1x64xf32>
    %cst_18 = arith.constant 0.000000e+00 : f32
    %59 = vector.shape_cast %58 : vector<1x64xf32> to vector<1x64xf32>
    %60 = vector.broadcast %59 : vector<1x64xf32> to vector<64x64xf32>
    %61 = vector.broadcast %cst_18 : f32 to vector<64x64xf32>
    %62 = arith.select %57, %60, %61 : vector<64x64xi1>, vector<64x64xf32>
    %63 = arith.addf %54, %62 : vector<64x64xf32>
    %64 = vector.extract_strided_slice %14 {offsets = [5, 0], sizes = [1, 64], strides = [1, 1]} : vector<8x64xi32> to vector<1x64xi32>
    %65 = vector.broadcast %64 : vector<1x64xi32> to vector<64x64xi32>
    %66 = arith.cmpi eq, %17, %65 : vector<64x64xi32>
    %67 = vector.extract_strided_slice %16 {offsets = [5, 0], sizes = [1, 64], strides = [1, 1]} : vector<8x64xf32> to vector<1x64xf32>
    %cst_19 = arith.constant 0.000000e+00 : f32
    %68 = vector.shape_cast %67 : vector<1x64xf32> to vector<1x64xf32>
    %69 = vector.broadcast %68 : vector<1x64xf32> to vector<64x64xf32>
    %70 = vector.broadcast %cst_19 : f32 to vector<64x64xf32>
    %71 = arith.select %66, %69, %70 : vector<64x64xi1>, vector<64x64xf32>
    %72 = arith.addf %63, %71 : vector<64x64xf32>
    %73 = vector.extract_strided_slice %14 {offsets = [6, 0], sizes = [1, 64], strides = [1, 1]} : vector<8x64xi32> to vector<1x64xi32>
    %74 = vector.broadcast %73 : vector<1x64xi32> to vector<64x64xi32>
    %75 = arith.cmpi eq, %17, %74 : vector<64x64xi32>
    %76 = vector.extract_strided_slice %16 {offsets = [6, 0], sizes = [1, 64], strides = [1, 1]} : vector<8x64xf32> to vector<1x64xf32>
    %cst_20 = arith.constant 0.000000e+00 : f32
    %77 = vector.shape_cast %76 : vector<1x64xf32> to vector<1x64xf32>
    %78 = vector.broadcast %77 : vector<1x64xf32> to vector<64x64xf32>
    %79 = vector.broadcast %cst_20 : f32 to vector<64x64xf32>
    %80 = arith.select %75, %78, %79 : vector<64x64xi1>, vector<64x64xf32>
    %81 = arith.addf %72, %80 : vector<64x64xf32>
    %82 = vector.extract_strided_slice %14 {offsets = [7, 0], sizes = [1, 64], strides = [1, 1]} : vector<8x64xi32> to vector<1x64xi32>
    %83 = vector.broadcast %82 : vector<1x64xi32> to vector<64x64xi32>
    %84 = arith.cmpi eq, %17, %83 : vector<64x64xi32>
    %85 = vector.extract_strided_slice %16 {offsets = [7, 0], sizes = [1, 64], strides = [1, 1]} : vector<8x64xf32> to vector<1x64xf32>
    %cst_21 = arith.constant 0.000000e+00 : f32
    %86 = vector.shape_cast %85 : vector<1x64xf32> to vector<1x64xf32>
    %87 = vector.broadcast %86 : vector<1x64xf32> to vector<64x64xf32>
    %88 = vector.broadcast %cst_21 : f32 to vector<64x64xf32>
    %89 = arith.select %84, %87, %88 : vector<64x64xi1>, vector<64x64xf32>
    %90 = arith.addf %81, %89 : vector<64x64xf32>
    %cst_22 = arith.constant dense<0.000000e+00> : vector<8x64xf32>
    %91 = tpu.matmul %12, %90, %cst_22 {dimension_numbers = #tpu.dot_dimension_numbers<[1], [0], [0], [1], [0, 0, 1, 1], [], []>} : vector<8x64xf32>, vector<64x64xf32>, vector<8x64xf32> -> vector<8x64xf32>
    %c0_23 = arith.constant 0 : index
    %c0_24 = arith.constant 0 : index
    %c0_25 = arith.constant 0 : index
    %92 = vector.load %arg7[%c0_23, %c0_24, %c0_25] : memref<1x8x64xf32, #tpu.memory_space<vmem>>, vector<1x8x64xf32>
    %93 = vector.shape_cast %92 : vector<1x8x64xf32> to vector<8x64xf32>
    %c0_26 = arith.constant 0 : index
    %c0_27 = arith.constant 0 : index
    %94 = vector.load %arg8[%c0_26, %c0_27] : memref<8x1xf32, #tpu.memory_space<vmem>>, vector<8x1xf32>
    %95 = vector.broadcast %94 : vector<8x1xf32> to vector<8x64xf32>
    %96 = arith.mulf %93, %95 : vector<8x64xf32>
    %c0_28 = arith.constant 0 : index
    %c0_29 = arith.constant 0 : index
    %97 = vector.load %arg9[%c0_28, %c0_29] : memref<8x1xf32, #tpu.memory_space<vmem>>, vector<8x1xf32>
    %98 = vector.broadcast %97 : vector<8x1xf32> to vector<8x64xf32>
    %99 = arith.addf %96, %98 : vector<8x64xf32>
    %cst_30 = arith.constant 0.000000e+00 : f32
    %100 = vector.broadcast %cst_30 : f32 to vector<8x64xf32>
    %101 = arith.maximumf %99, %100 : vector<8x64xf32>
    %102 = arith.addf %91, %101 : vector<8x64xf32>
    %c0_31 = arith.constant 0 : index
    %c0_32 = arith.constant 0 : index
    %c0_33 = arith.constant 0 : index
    %103 = vector.load %arg10[%c0_31, %c0_32, %c0_33] : memref<1x8x64xf32, #tpu.memory_space<vmem>>, vector<1x8x64xf32>
    %104 = vector.shape_cast %103 : vector<1x8x64xf32> to vector<8x64xf32>
    %105 = vector.shape_cast %102 : vector<8x64xf32> to vector<1x8x64xf32>
    tpu.vector_store %arg10[%c0_31, %c0_32, %c0_33], %105 {strides = array<i32>} : memref<1x8x64xf32, #tpu.memory_space<vmem>>, vector<1x8x64xf32>,
    return
  }
  func.func @transform_0(%arg0: i32, %arg1: i32) -> (i32, i32, i32) {
    %c0_i32 = arith.constant 0 : i32
    %c0_i32_0 = arith.constant 0 : i32
    %c0_i32_1 = arith.constant 0 : i32
    return %arg0, %c0_i32, %c0_i32_0 : i32, i32, i32
  }
  func.func @transform_1(%arg0: i32, %arg1: i32) -> (i32, i32) {
    %c0_i32 = arith.constant 0 : i32
    %c0_i32_0 = arith.constant 0 : i32
    %c0_i32_1 = arith.constant 0 : i32
    return %c0_i32, %c0_i32_0 : i32, i32
  }
  func.func @transform_2(%arg0: i32, %arg1: i32) -> (i32, i32) {
    %c0_i32 = arith.constant 0 : i32
    %c0_i32_0 = arith.constant 0 : i32
    %c0_i32_1 = arith.constant 0 : i32
    return %c0_i32, %c0_i32_0 : i32, i32
  }
  func.func @transform_3(%arg0: i32, %arg1: i32) -> (i32, i32, i32) {
    %c0_i32 = arith.constant 0 : i32
    %c0_i32_0 = arith.constant 0 : i32
    return %arg0, %c0_i32, %arg1 : i32, i32, i32
  }
  func.func @transform_4(%arg0: i32, %arg1: i32) -> (i32, i32, i32) {
    %c0_i32 = arith.constant 0 : i32
    %c0_i32_0 = arith.constant 0 : i32
    return %arg0, %c0_i32, %arg1 : i32, i32, i32
  }
  func.func @transform_5(%arg0: i32, %arg1: i32) -> (i32, i32, i32) {
    %c0_i32 = arith.constant 0 : i32
    %c0_i32_0 = arith.constant 0 : i32
    return %arg0, %c0_i32, %arg1 : i32, i32, i32
  }
  func.func @transform_6(%arg0: i32, %arg1: i32) -> (i32, i32) {
    %c0_i32 = arith.constant 0 : i32
    %c0_i32_0 = arith.constant 0 : i32
    %c0_i32_1 = arith.constant 0 : i32
    return %c0_i32, %c0_i32_0 : i32, i32
  }
  func.func @transform_7(%arg0: i32, %arg1: i32) -> (i32, i32) {
    %c0_i32 = arith.constant 0 : i32
    %c0_i32_0 = arith.constant 0 : i32
    %c0_i32_1 = arith.constant 0 : i32
    return %c0_i32, %c0_i32_0 : i32, i32
  }
  func.func @transform_8(%arg0: i32, %arg1: i32) -> (i32, i32, i32) {
    %c0_i32 = arith.constant 0 : i32
    %c0_i32_0 = arith.constant 0 : i32
    return %arg0, %c0_i32, %arg1 : i32, i32, i32
  }
}

</mosaic_0001>

<llo_original>
// kernel: pvconv_forward.5
$region0: #{pvconv_forward.5}
  #allocation0 [shape = 'u32[]', space=smem, size = 0x4, offset = 0x4, fixed_abs, tag = 'smem constant byte address 0x4 - core index']
  #allocation1 [shape = 'u32[144,128]{1,0:T(1,128)}', space=vmem, size = 0x12000, scoped, tag = 'internal scratch']
  #allocation2 [shape = 'f32[5,64]{1,0:T(8,128)}', space=vmem, size = 0x1000, scoped, tag = 'scratch operand']
  %s0 = inlined_call_operand.vmem [shape: s32[2,64,1], index: 0, kind: input, shape index: {}]
  %s1 = inlined_call_operand.vmem [shape: f32[2,5,64], index: 1, kind: input, shape index: {}]
  %s2 = inlined_call_operand.vmem [shape: f32[2,4,64], index: 2, kind: output, shape index: {}]
  %s3 = sld [smem:[#allocation0]]
  $region49: #{pvconv_forward.5} parent=0
    _
  %s5 = ssub.s32 1, %s3
  %s6 = scalar_select 0, %s5, %s3
  loop: start=0, step=1, limit=4
  $region2: #{pvconv_forward.5} parent=0 // loop_pre_header
    _
  $region3: #{pvconv_forward.5} parent=0 // loop_header
    %s8 = sphi 0, %s12
    %p9 = scmp.ge.s32.totalorder %s8, 4
    %s15 = sphi 0, %s27
    %s16 = sphi 0, %s23
    %s17 = sphi 0, %s15
    %s18 = sphi 0, %s16
    %s19 = sphi 0, %s17
    %s20 = sphi 0, %s18
    %s32 = sphi 0, %s34
    %s35 = sphi 0, %s32
    %s36 = sphi 0, %s35
    %s52 = sphi 0, %s36
    %s60 = sphi 0, %s62
    %s63 = sphi 0, %s60
    %s64 = sphi 0, %s63
    %s80 = sphi 0, %s64
    %s86 = sphi 0, %s88
    %s89 = sphi 0, %s86
    %s90 = sphi 0, %s89
    %s106 = sphi 0, %s90
  $region4: #{pvconv_forward.5} parent=0 // loop_header_branch
    %11 = sbr.rel (%p9) target = $region8
  $region5: #{pvconv_forward.5} parent=0 // loop_body
    %s13 = ssub.s32 %s8, 1
    %s14 = ssub.s32 %s8, 2
    %s21 = sadd.s32 1, %s16
    %p22 = scmp.ge.s32.totalorder %s21, 1
    %s23 = scalar_select %p22, 0, %s21
    %s24 = sadd.s32 1, %s15
    %s25 = scalar_select %p22, %s24, %s15
    %p26 = scmp.ge.s32.totalorder %s25, 2
    %s27 = scalar_select %p26, 0, %s25
    %s28 = ssub.s32 %s15, %s27
    %s29 = ssub.s32 %s16, %s23
    %s30 = sor.u32 %s28, %s29
    %p31 = scmp.eq.s32.totalorder %s30, 0
    %s33 = sadd.s32 %s32, 1
    %s34 = scalar_select %p31, %s32, %s33
    %p37 = pneg %p31
    %p38 = scmp.eq.s32.totalorder %s8, 1
    %p39 = por %p37, %p38
    %p40 = scmp.ne.s32.totalorder %s32, %s35
    %p41 = scmp.eq.s32.totalorder %s8, 0
    %p42 = por %p40, %p41
    %p43 = scmp.ne.s32.totalorder %s32, %s35
    %p44 = scmp.eq.s32.totalorder %s13, 1
    %p45 = por %p43, %p44
    %p46 = scmp.ne.s32.totalorder %s35, %s36
    %p47 = scmp.eq.s32.totalorder %s13, 0
    %p48 = por %p46, %p47
    %p49 = scmp.ne.s32.totalorder %s35, %s36
    %p50 = scmp.eq.s32.totalorder %s14, 1
    %p51 = por %p49, %p50
    %p53 = scmp.ne.s32.totalorder %s36, %s52
    %p54 = scmp.eq.s32.totalorder %s14, 0
    %p55 = por %p53, %p54
    %s56 = ssub.s32 %s15, %s27
    %s57 = ssub.s32 %s16, %s23
    %s58 = sor.u32 %s56, %s57
    %p59 = scmp.eq.s32.totalorder %s58, 0
    %s61 = sadd.s32 %s60, 1
    %s62 = scalar_select %p59, %s60, %s61
    %p65 = pneg %p59
    %p66 = scmp.eq.s32.totalorder %s8, 1
    %p67 = por %p65, %p66
    %p68 = scmp.ne.s32.totalorder %s60, %s63
    %p69 = scmp.eq.s32.totalorder %s8, 0
    %p70 = por %p68, %p69
    %p71 = scmp.ne.s32.totalorder %s60, %s63
    %p72 = scmp.eq.s32.totalorder %s13, 1
    %p73 = por %p71, %p72
    %p74 = scmp.ne.s32.totalorder %s63, %s64
    %p75 = scmp.eq.s32.totalorder %s13, 0
    %p76 = por %p74, %p75
    %p77 = scmp.ne.s32.totalorder %s63, %s64
    %p78 = scmp.eq.s32.totalorder %s14, 1
    %p79 = por %p77, %p78
    %p81 = scmp.ne.s32.totalorder %s64, %s80
    %p82 = scmp.eq.s32.totalorder %s14, 0
    %p83 = por %p81, %p82
    %s84 = ssub.s32 %s15, %s27
    %p85 = scmp.eq.s32.totalorder %s84, 0
    %s87 = sadd.s32 %s86, 1
    %s88 = scalar_select %p85, %s86, %s87
    %p91 = pneg %p85
    %p92 = scmp.eq.s32.totalorder %s8, 1
    %p93 = por %p91, %p92
    %p94 = scmp.ne.s32.totalorder %s86, %s89
    %p95 = scmp.eq.s32.totalorder %s8, 0
    %p96 = por %p94, %p95
    %p97 = scmp.ne.s32.totalorder %s86, %s89
    %p98 = scmp.eq.s32.totalorder %s13, 1
    %p99 = por %p97, %p98
    %p100 = scmp.ne.s32.totalorder %s89, %s90
    %p101 = scmp.eq.s32.totalorder %s13, 0
    %p102 = por %p100, %p101
    %p103 = scmp.ne.s32.totalorder %s89, %s90
    %p104 = scmp.eq.s32.totalorder %s14, 1
    %p105 = por %p103, %p104
    %p107 = scmp.ne.s32.totalorder %s90, %s106
    %p108 = scmp.eq.s32.totalorder %s14, 0
    %p109 = por %p107, %p108
    %p110 = scmp.le.s32.totalorder 1, %s8
    %p111 = scmp.lt.s32.totalorder %s8, 3
    %p112 = pnand %p110, %p111
    %p113 = pneg %p112
    // Predicated region
    $region9: #{pvconv_forward.5} parent=5 // pred_check
      _
    $region10: #{pvconv_forward.5} parent=5 // pred_check_branch
      %115 = sbr.rel (%p112) target = $region12
    $region11: #{pvconv_forward.5} parent=5 // pred_region
      %s116 = ssub.s32 %s8, 1
    $region12: #{pvconv_forward.5} parent=5 // pred_fallthru
      _
    %p117 = scmp.lt.s32.totalorder %s8, 2
    // Predicated region
    $region13: #{pvconv_forward.5} parent=5 // pred_check
      %p118 = pneg %p117
    $region14: #{pvconv_forward.5} parent=5 // pred_check_branch
      %120 = sbr.rel (%p118) target = $region16
    $region15: #{pvconv_forward.5} parent=5 // pred_region
      // Predicated region
      $region17: #{pvconv_forward.5} parent=15 // pred_check
        %p121 = pneg %p42
      $region18: #{pvconv_forward.5} parent=15 // pred_check_branch
        %123 = sbr.rel (%p121) target = $region20
      $region19: #{pvconv_forward.5} parent=15 // pred_region
        %s124 = smul.u32 8, %s16
        %p125 = scmp.lt.s32.totalorder %s15, 1
        %s126 = scalar_select %p125, %s15, 1
        %p127 = scmp.lt.s32.totalorder %s124, 7
        %s128 = scalar_select %p127, %s124, 7
        %s129 = smul.addr %s126, 8
        %s130 = sadd.s32 %s128, %s129
        %s131 = smul.addr %s130, 8
        %s132 = scalar_lea.vmem %s0, %s131
        %s133 = smul.u32 8, %s16
      $region20: #{pvconv_forward.5} parent=15 // pred_fallthru
        _
      // Predicated region
      $region21: #{pvconv_forward.5} parent=15 // pred_check
        %p134 = pneg %p70
      $region22: #{pvconv_forward.5} parent=15 // pred_check_branch
        %136 = sbr.rel (%p134) target = $region24
      $region23: #{pvconv_forward.5} parent=15 // pred_region
        %p137 = scmp.lt.s32.totalorder %s15, 1
        %s138 = scalar_select %p137, %s15, 1
        %p139 = scmp.lt.s32.totalorder %s16, 0
        %s140 = scalar_select %p139, %s16, 0
        %s141 = sadd.s32 %s140, %s138
        %s142 = smul.addr %s141, 8
        %s143 = scalar_lea.vmem %s1, %s142
      $region24: #{pvconv_forward.5} parent=15 // pred_fallthru
        _
    $region16: #{pvconv_forward.5} parent=5 // pred_fallthru
      _
    %p144 = scmp.le.s32.totalorder 1, %s8
    %p145 = scmp.lt.s32.totalorder %s8, 3
    %p146 = pnand %p144, %p145
    %p147 = pneg %p146
    // Predicated region
    $region25: #{pvconv_forward.5} parent=5 // pred_check
      _
    $region26: #{pvconv_forward.5} parent=5 // pred_check_branch
      %149 = sbr.rel (%p146) target = $region28
    $region27: #{pvconv_forward.5} parent=5 // pred_region
      %s150 = ssub.s32 %s8, 1
      %s151 = smul.u32 8, %s18
      %p152 = scmp.lt.s32.totalorder %s17, 1
      %s153 = scalar_select %p152, %s17, 1
      %p154 = scmp.lt.s32.totalorder %s151, 7
      %s155 = scalar_select %p154, %s151, 7
      %s156 = smul.addr %s153, 8
      %s157 = sadd.s32 %s155, %s156
      %s158 = smul.addr %s157, 8
      %s159 = scalar_lea.vmem %s0, %s158
      %p160 = pneg %p48
      %p161 = pneg %p45
      %p162 = scmp.lt.s32.totalorder %s17, 1
      %s163 = scalar_select %p162, %s17, 1
      %p164 = scmp.lt.s32.totalorder %s18, 0
      %s165 = scalar_select %p164, %s18, 0
      %s166 = sadd.s32 %s165, %s163
      %s167 = smul.addr %s166, 8
      %s168 = scalar_lea.vmem %s1, %s167
      %p169 = pneg %p76
      %p170 = pneg %p73
      %p171 = pneg %p102
      %p172 = pneg %p99
      %p173 = scmp.lt.s32.totalorder %s17, 1
      %s174 = scalar_select %p173, %s17, 1
      %s175 = smul.addr %s174, 4
      %s176 = scalar_lea.vmem %s2, %s175
      %s177 = smul.u32 8, %s18
      %p178 = scmp.lt.s32.totalorder %s17, 1
      %s179 = scalar_select %p178, %s17, 1
      %p180 = scmp.lt.s32.totalorder %s177, 7
      %s181 = scalar_select %p180, %s177, 7
      %s182 = smul.addr %s179, 8
      %s183 = sadd.s32 %s181, %s182
      %s184 = smul.addr %s183, 8
      %s185 = scalar_lea.vmem %s0, %s184
      %s186 = smul.u32 8, %s18
      %p187 = scmp.lt.s32.totalorder %s17, 1
      %s188 = scalar_select %p187, %s17, 1
      %p189 = scmp.lt.s32.totalorder %s18, 0
      %s190 = scalar_select %p189, %s18, 0
      %s191 = sadd.s32 %s190, %s188
      %s192 = smul.addr %s191, 8
      %s193 = scalar_lea.vmem %s1, %s192
      %p194 = scmp.lt.s32.totalorder %s17, 1
      %s195 = scalar_select %p194, %s17, 1
      %s196 = smul.addr %s195, 4
      %s197 = scalar_lea.vmem %s2, %s196
      %p198 = scmp.eq.s32.totalorder %s18, 0
      // Predicated region
      $region29: #{pvconv_forward.5} parent=27 // pred_check
        %p199 = pneg %p198
      $region30: #{pvconv_forward.5} parent=27 // pred_check_branch
        %201 = sbr.rel (%p199) target = $region32
      $region31: #{pvconv_forward.5} parent=27 // pred_region
        %vm202 = vcmask 520192
        %203 = vst.msk [vmem:[#allocation2] sm:$0x1f] %vm202, 0.0
      $region32: #{pvconv_forward.5} parent=27 // pred_fallthru
        _
      %v204 = vld [vmem:[%s185] sm:$0xff]
      %v205 = vld [vmem:[%s185 + $0x8] sm:$0xff]
      %v206 = vld [vmem:[%s185 + $0x10] sm:$0xff]
      %v207 = vld [vmem:[%s185 + $0x18] sm:$0xff]
      %v208 = vld [vmem:[%s185 + $0x20] sm:$0xff]
      %v209 = vld [vmem:[%s185 + $0x28] sm:$0xff]
      %v210 = vld [vmem:[%s185 + $0x30] sm:$0xff]
      %v211 = vld [vmem:[%s185 + $0x38] sm:$0xff]
      %v212 = vlaneseq
      %v213 = vand.u32 %v212, 127
      %214 = vset.pattern.permute.xlu0 0
      %215 = vperm.xlu0 %214, %v204
      %v216 = vpop.permute.xlu0 %215
      %217 = vset.pattern.permute.xlu0 0
      %218 = vperm.xlu0 %217, %v205
      %v219 = vpop.permute.xlu0 %218
      %220 = vset.pattern.permute.xlu0 0
      %221 = vperm.xlu0 %220, %v206
      %v222 = vpop.permute.xlu0 %221
      %223 = vset.pattern.permute.xlu0 0
      %224 = vperm.xlu0 %223, %v207
      %v225 = vpop.permute.xlu0 %224
      %226 = vset.pattern.permute.xlu0 0
      %227 = vperm.xlu0 %226, %v208
      %v228 = vpop.permute.xlu0 %227
      %229 = vset.pattern.permute.xlu0 0
      %230 = vperm.xlu0 %229, %v209
      %v231 = vpop.permute.xlu0 %230
      %232 = vset.pattern.permute.xlu0 0
      %233 = vperm.xlu0 %232, %v210
      %v234 = vpop.permute.xlu0 %233
      %235 = vset.pattern.permute.xlu0 0
      %236 = vperm.xlu0 %235, %v211
      %v237 = vpop.permute.xlu0 %236
      %vm238 = vcmp.eq.s32.totalorder %v213, %v216
      %vm239 = vcmp.eq.s32.totalorder %v213, %v219
      %vm240 = vcmp.eq.s32.totalorder %v213, %v222
      %vm241 = vcmp.eq.s32.totalorder %v213, %v225
      %vm242 = vcmp.eq.s32.totalorder %v213, %v228
      %vm243 = vcmp.eq.s32.totalorder %v213, %v231
      %vm244 = vcmp.eq.s32.totalorder %v213, %v234
      %vm245 = vcmp.eq.s32.totalorder %v213, %v237
      %v246 = vsel %vm238, 1, 0
      %v247 = vsel %vm239, 1, 0
      %v248 = vsel %vm240, 1, 0
      %v249 = vsel %vm241, 1, 0
      %v250 = vsel %vm242, 1, 0
      %v251 = vsel %vm243, 1, 0
      %v252 = vsel %vm244, 1, 0
      %v253 = vsel %vm245, 1, 0
      %v254 = vcvt.s32.f32 %v246
      %v255 = vcvt.s32.f32 %v247
      %v256 = vcvt.s32.f32 %v248
      %v257 = vcvt.s32.f32 %v249
      %v258 = vcvt.s32.f32 %v250
      %v259 = vcvt.s32.f32 %v251
      %v260 = vcvt.s32.f32 %v252
      %v261 = vcvt.s32.f32 %v253
      %v262 = vld [vmem:[#allocation2] sm:$0x1f]
      %v263 = vld [vmem:[%s193] sm:$0x1f]
      %vm264 = vcmask 523264
      %v266 = vsel %vm264, %v263, 0
      %268 = vmatprep.subr.mxu0 0.0
      %269 = vmatpush1.msra.mxu0 %v254
      %270 = vmatprep.subr.mxu0 0.0
      %271 = vmatpush1.msra.mxu0 %v255
      %272 = vmatprep.subr.mxu0 0.0
      %273 = vmatpush1.msra.mxu0 %v256
      %274 = vmatprep.subr.mxu0 0.0
      %275 = vmatpush1.msra.mxu0 %v257
      %276 = vmatprep.subr.mxu0 0.0
      %277 = vmatpush1.msra.mxu0 %v258
      %278 = vmatprep.subr.mxu0 0.0
      %279 = vmatpush1.msra.mxu0 %v259
      %280 = vmatprep.subr.mxu0 0.0
      %281 = vmatpush1.msra.mxu0 %v260
      %282 = vmatprep.subr.mxu0 0.0
      %283 = vmatpush1.msra.mxu0 %v261
      %284 = vmatprep.subr.mxu0 0.0
      %285 = vmatpush1.msra.mxu0 0.0
      %286 = vmatprep.subr.mxu0 0.0
      %287 = vmatpush1.msra.mxu0 0.0
      %288 = vmatprep.subr.mxu0 0.0
      %289 = vmatpush1.msra.mxu0 0.0
      %290 = vmatprep.subr.mxu0 0.0
      %291 = vmatpush1.msra.mxu0 0.0
      %292 = vmatprep.subr.mxu0 0.0
      %293 = vmatpush1.msra.mxu0 0.0
      %294 = vmatprep.subr.mxu0 0.0
      %295 = vmatpush1.msra.mxu0 0.0
      %296 = vmatprep.subr.mxu0 0.0
      %297 = vmatpush1.msra.mxu0 0.0
      %298 = vmatprep.subr.mxu0 0.0
      %299 = vmatpush1.msra.mxu0 0.0
      %300 = vmatprep.subr.mxu0 0.0
      %301 = vmatpush1.msra.mxu0 0.0
      %302 = vmatprep.subr.mxu0 0.0
      %303 = vmatpush1.msra.mxu0 0.0
      %304 = vmatprep.subr.mxu0 0.0
      %305 = vmatpush1.msra.mxu0 0.0
      %306 = vmatprep.subr.mxu0 0.0
      %307 = vmatpush1.msra.mxu0 0.0
      %308 = vmatprep.subr.mxu0 0.0
      %309 = vmatpush1.msra.mxu0 0.0
      %310 = vmatprep.subr.mxu0 0.0
      %311 = vmatpush1.msra.mxu0 0.0
      %312 = vmatprep.subr.mxu0 0.0
      %313 = vmatpush1.msra.mxu0 0.0
      %314 = vmatprep.subr.mxu0 0.0
      %315 = vmatpush1.msra.mxu0 0.0
      %316 = vmatprep.subr.mxu0 0.0
      %317 = vmatpush1.msra.mxu0 0.0
      %318 = vmatprep.subr.mxu0 0.0
      %319 = vmatpush1.msra.mxu0 0.0
      %320 = vmatprep.subr.mxu0 0.0
      %321 = vmatpush1.msra.mxu0 0.0
      %322 = vmatprep.subr.mxu0 0.0
      %323 = vmatpush1.msra.mxu0 0.0
      %324 = vmatprep.subr.mxu0 0.0
      %325 = vmatpush1.msra.mxu0 0.0
      %326 = vmatprep.subr.mxu0 0.0
      %327 = vmatpush1.msra.mxu0 0.0
      %328 = vmatprep.subr.mxu0 0.0
      %329 = vmatpush1.msra.mxu0 0.0
      %330 = vmatprep.subr.mxu0 0.0
      %331 = vmatpush1.msra.mxu0 0.0
      %332 = vmatprep.mubr.f32.mxu0 0.0
      %333 = vmatmul.mubr.f32.gmra.mrb[0].mxu0 %v266
      %v334 = vpop.f32.mrb[0].mxu0
      %v335 = vadd.f32 0.0, %v334
      %v336 = vpop.f32.mrb[0].mxu0
      %337 = vdwg.mxu0
      %v338 = vadd.f32 %v262, %v335
      %vm339 = vcmask 520192
      %340 = vst.msk [vmem:[#allocation2] sm:$0x1f] %vm339, %v338
      // Predicated region
      $region33: #{pvconv_forward.5} parent=27 // pred_check
        %p341 = pneg %p198
      $region34: #{pvconv_forward.5} parent=27 // pred_check_branch
        %343 = sbr.rel (%p341) target = $region36
      $region35: #{pvconv_forward.5} parent=27 // pred_region
        %v344 = vld [vmem:[#allocation2 + $0x4] sm:$0x1]
        %v345 = vmax.f32 %v344, 1.0
        %v346 = vld [vmem:[#allocation2] sm:$0xf]
        %v347 = vlaneseq
        %v348 = vshrl.u32 %v347, 7
        %v349 = vsub.s32 0, %v348
        %v350 = vrot.slane %v345, %v349
        %v351 = vrcp.pop %v350
        %v352 = vmul.f32 %v346, %v351
        %vm353 = vcmask 519168
        %354 = vst.msk [vmem:[%s197] sm:$0xf] %vm353, %v352
      $region36: #{pvconv_forward.5} parent=27 // pred_fallthru
        _
      %p355 = scmp.lt.s32.totalorder %s17, 1
      %s356 = scalar_select %p355, %s17, 1
      %s357 = smul.addr %s356, 4
      %s358 = scalar_lea.vmem %s2, %s357
      // Predicated region
      $region37: #{pvconv_forward.5} parent=27 // pred_check
        %p359 = pneg %p99
      $region38: #{pvconv_forward.5} parent=27 // pred_check_branch
        %361 = sbr.rel (%p359) target = $region40
      $region39: #{pvconv_forward.5} parent=27 // pred_region
        _
      $region40: #{pvconv_forward.5} parent=27 // pred_fallthru
        _
    $region28: #{pvconv_forward.5} parent=5 // pred_fallthru
      _
    %p362 = scmp.le.s32.totalorder 2, %s8
    // Predicated region
    $region41: #{pvconv_forward.5} parent=5 // pred_check
      %p363 = pneg %p362
    $region42: #{pvconv_forward.5} parent=5 // pred_check_branch
      %365 = sbr.rel (%p363) target = $region44
    $region43: #{pvconv_forward.5} parent=5 // pred_region
      %s366 = ssub.s32 %s8, 2
      // Predicated region
      $region45: #{pvconv_forward.5} parent=43 // pred_check
        %p367 = pneg %p105
      $region46: #{pvconv_forward.5} parent=43 // pred_check_branch
        %369 = sbr.rel (%p367) target = $region48
      $region47: #{pvconv_forward.5} parent=43 // pred_region
        %p370 = scmp.lt.s32.totalorder %s19, 1
        %s371 = scalar_select %p370, %s19, 1
        %s372 = smul.addr %s371, 4
        %s373 = scalar_lea.vmem %s2, %s372
      $region48: #{pvconv_forward.5} parent=43 // pred_fallthru
        _
    $region44: #{pvconv_forward.5} parent=5 // pred_fallthru
      _
  $region6: #{pvconv_forward.5} parent=0 // loop_footer
    %s12 = sadd.s32 1, %s8
  $region7: #{pvconv_forward.5} parent=0 // loop_footer_branch
    %7 = sbr.rel target = $region3
  $region8: #{pvconv_forward.5} parent=0 // loop_exit
    _

// kernel: pvconv_forward.8
$region0: #{pvconv_forward.8}
  #allocation0 [shape = 'u32[]', space=smem, size = 0x4, offset = 0x4, fixed_abs, tag = 'smem constant byte address 0x4 - core index']
  #allocation1 [shape = 'u32[144,128]{1,0:T(1,128)}', space=vmem, size = 0x12000, scoped, tag = 'internal scratch']
  %s0 = inlined_call_operand.vmem [shape: bf16[2,4,64], index: 0, kind: input, shape index: {}]
  %s1 = inlined_call_operand.vmem [shape: bf16[8,4], index: 1, kind: input, shape index: {}]
  %s2 = inlined_call_operand.vmem [shape: f32[8,1], index: 2, kind: input, shape index: {}]
  %s3 = inlined_call_operand.vmem [shape: f32[2,8,64], index: 3, kind: output, shape index: {0}]
  %s4 = inlined_call_operand.vmem [shape: f32[2,1,8,2], index: 4, kind: output, shape index: {1}]
  %5 = xla_tuple %s3, %s4
  %s6 = sld [smem:[#allocation0]]
  $region53: #{pvconv_forward.8} parent=0
    _
  %s8 = ssub.s32 1, %s6
  %s9 = scalar_select 0, %s8, %s6
  loop: start=0, step=1, limit=4
  $region2: #{pvconv_forward.8} parent=0 // loop_pre_header
    _
  $region3: #{pvconv_forward.8} parent=0 // loop_header
    %s11 = sphi 0, %s15
    %p12 = scmp.ge.s32.totalorder %s11, 4
    %s18 = sphi 0, %s30
    %s19 = sphi 0, %s26
    %s20 = sphi 0, %s18
    %s21 = sphi 0, %s19
    %s22 = sphi 0, %s20
    %s23 = sphi 0, %s21
    %s35 = sphi 0, %s37
    %s38 = sphi 0, %s35
    %s39 = sphi 0, %s38
    %s55 = sphi 0, %s39
    %s59 = sphi 0, %s59
    %s61 = sphi 0, %s59
    %s62 = sphi 0, %s61
    %s76 = sphi 0, %s62
    %s80 = sphi 0, %s80
    %s82 = sphi 0, %s80
    %s83 = sphi 0, %s82
    %s97 = sphi 0, %s83
    %s105 = sphi 0, %s107
    %s108 = sphi 0, %s105
    %s109 = sphi 0, %s108
    %s125 = sphi 0, %s109
    %s133 = sphi 0, %s135
    %s136 = sphi 0, %s133
    %s137 = sphi 0, %s136
    %s153 = sphi 0, %s137
  $region4: #{pvconv_forward.8} parent=0 // loop_header_branch
    %14 = sbr.rel (%p12) target = $region8
  $region5: #{pvconv_forward.8} parent=0 // loop_body
    %s16 = ssub.s32 %s11, 1
    %s17 = ssub.s32 %s11, 2
    %s24 = sadd.s32 1, %s19
    %p25 = scmp.ge.s32.totalorder %s24, 1
    %s26 = scalar_select %p25, 0, %s24
    %s27 = sadd.s32 1, %s18
    %s28 = scalar_select %p25, %s27, %s18
    %p29 = scmp.ge.s32.totalorder %s28, 2
    %s30 = scalar_select %p29, 0, %s28
    %s31 = ssub.s32 %s18, %s30
    %s32 = ssub.s32 %s19, %s26
    %s33 = sor.u32 %s31, %s32
    %p34 = scmp.eq.s32.totalorder %s33, 0
    %s36 = sadd.s32 %s35, 1
    %s37 = scalar_select %p34, %s35, %s36
    %p40 = pneg %p34
    %p41 = scmp.eq.s32.totalorder %s11, 1
    %p42 = por %p40, %p41
    %p43 = scmp.ne.s32.totalorder %s35, %s38
    %p44 = scmp.eq.s32.totalorder %s11, 0
    %p45 = por %p43, %p44
    %p46 = scmp.ne.s32.totalorder %s35, %s38
    %p47 = scmp.eq.s32.totalorder %s16, 1
    %p48 = por %p46, %p47
    %p49 = scmp.ne.s32.totalorder %s38, %s39
    %p50 = scmp.eq.s32.totalorder %s16, 0
    %p51 = por %p49, %p50
    %p52 = scmp.ne.s32.totalorder %s38, %s39
    %p53 = scmp.eq.s32.totalorder %s17, 1
    %p54 = por %p52, %p53
    %p56 = scmp.ne.s32.totalorder %s39, %s55
    %p57 = scmp.eq.s32.totalorder %s17, 0
    %p58 = por %p56, %p57
    %s60 = sadd.s32 %s59, 1
    %p63 = scmp.eq.s32.totalorder %s11, 1
    %p64 = scmp.ne.s32.totalorder %s59, %s61
    %p65 = scmp.eq.s32.totalorder %s11, 0
    %p66 = por %p64, %p65
    %p67 = scmp.ne.s32.totalorder %s59, %s61
    %p68 = scmp.eq.s32.totalorder %s16, 1
    %p69 = por %p67, %p68
    %p70 = scmp.ne.s32.totalorder %s61, %s62
    %p71 = scmp.eq.s32.totalorder %s16, 0
    %p72 = por %p70, %p71
    %p73 = scmp.ne.s32.totalorder %s61, %s62
    %p74 = scmp.eq.s32.totalorder %s17, 1
    %p75 = por %p73, %p74
    %p77 = scmp.ne.s32.totalorder %s62, %s76
    %p78 = scmp.eq.s32.totalorder %s17, 0
    %p79 = por %p77, %p78
    %s81 = sadd.s32 %s80, 1
    %p84 = scmp.eq.s32.totalorder %s11, 1
    %p85 = scmp.ne.s32.totalorder %s80, %s82
    %p86 = scmp.eq.s32.totalorder %s11, 0
    %p87 = por %p85, %p86
    %p88 = scmp.ne.s32.totalorder %s80, %s82
    %p89 = scmp.eq.s32.totalorder %s16, 1
    %p90 = por %p88, %p89
    %p91 = scmp.ne.s32.totalorder %s82, %s83
    %p92 = scmp.eq.s32.totalorder %s16, 0
    %p93 = por %p91, %p92
    %p94 = scmp.ne.s32.totalorder %s82, %s83
    %p95 = scmp.eq.s32.totalorder %s17, 1
    %p96 = por %p94, %p95
    %p98 = scmp.ne.s32.totalorder %s83, %s97
    %p99 = scmp.eq.s32.totalorder %s17, 0
    %p100 = por %p98, %p99
    %s101 = ssub.s32 %s18, %s30
    %s102 = ssub.s32 %s19, %s26
    %s103 = sor.u32 %s101, %s102
    %p104 = scmp.eq.s32.totalorder %s103, 0
    %s106 = sadd.s32 %s105, 1
    %s107 = scalar_select %p104, %s105, %s106
    %p110 = pneg %p104
    %p111 = scmp.eq.s32.totalorder %s11, 1
    %p112 = por %p110, %p111
    %p113 = scmp.ne.s32.totalorder %s105, %s108
    %p114 = scmp.eq.s32.totalorder %s11, 0
    %p115 = por %p113, %p114
    %p116 = scmp.ne.s32.totalorder %s105, %s108
    %p117 = scmp.eq.s32.totalorder %s16, 1
    %p118 = por %p116, %p117
    %p119 = scmp.ne.s32.totalorder %s108, %s109
    %p120 = scmp.eq.s32.totalorder %s16, 0
    %p121 = por %p119, %p120
    %p122 = scmp.ne.s32.totalorder %s108, %s109
    %p123 = scmp.eq.s32.totalorder %s17, 1
    %p124 = por %p122, %p123
    %p126 = scmp.ne.s32.totalorder %s109, %s125
    %p127 = scmp.eq.s32.totalorder %s17, 0
    %p128 = por %p126, %p127
    %s129 = ssub.s32 %s18, %s30
    %s130 = ssub.s32 %s19, %s26
    %s131 = sor.u32 %s129, %s130
    %p132 = scmp.eq.s32.totalorder %s131, 0
    %s134 = sadd.s32 %s133, 1
    %s135 = scalar_select %p132, %s133, %s134
    %p138 = pneg %p132
    %p139 = scmp.eq.s32.totalorder %s11, 1
    %p140 = por %p138, %p139
    %p141 = scmp.ne.s32.totalorder %s133, %s136
    %p142 = scmp.eq.s32.totalorder %s11, 0
    %p143 = por %p141, %p142
    %p144 = scmp.ne.s32.totalorder %s133, %s136
    %p145 = scmp.eq.s32.totalorder %s16, 1
    %p146 = por %p144, %p145
    %p147 = scmp.ne.s32.totalorder %s136, %s137
    %p148 = scmp.eq.s32.totalorder %s16, 0
    %p149 = por %p147, %p148
    %p150 = scmp.ne.s32.totalorder %s136, %s137
    %p151 = scmp.eq.s32.totalorder %s17, 1
    %p152 = por %p150, %p151
    %p154 = scmp.ne.s32.totalorder %s137, %s153
    %p155 = scmp.eq.s32.totalorder %s17, 0
    %p156 = por %p154, %p155
    %p157 = scmp.le.s32.totalorder 1, %s11
    %p158 = scmp.lt.s32.totalorder %s11, 3
    %p159 = pnand %p157, %p158
    %p160 = pneg %p159
    // Predicated region
    $region9: #{pvconv_forward.8} parent=5 // pred_check
      _
    $region10: #{pvconv_forward.8} parent=5 // pred_check_branch
      %162 = sbr.rel (%p159) target = $region12
    $region11: #{pvconv_forward.8} parent=5 // pred_region
      %s163 = ssub.s32 %s11, 1
      // Predicated region
      $region13: #{pvconv_forward.8} parent=11 // pred_check
        %p164 = pneg %p72
      $region14: #{pvconv_forward.8} parent=11 // pred_check_branch
        %166 = sbr.rel (%p164) target = $region16
      $region15: #{pvconv_forward.8} parent=11 // pred_region
        _
      $region16: #{pvconv_forward.8} parent=11 // pred_fallthru
        _
      // Predicated region
      $region17: #{pvconv_forward.8} parent=11 // pred_check
        %p167 = pneg %p93
      $region18: #{pvconv_forward.8} parent=11 // pred_check_branch
        %169 = sbr.rel (%p167) target = $region20
      $region19: #{pvconv_forward.8} parent=11 // pred_region
        _
      $region20: #{pvconv_forward.8} parent=11 // pred_fallthru
        _
    $region12: #{pvconv_forward.8} parent=5 // pred_fallthru
      _
    %p170 = scmp.lt.s32.totalorder %s11, 2
    // Predicated region
    $region21: #{pvconv_forward.8} parent=5 // pred_check
      %p171 = pneg %p170
    $region22: #{pvconv_forward.8} parent=5 // pred_check_branch
      %173 = sbr.rel (%p171) target = $region24
    $region23: #{pvconv_forward.8} parent=5 // pred_region
      // Predicated region
      $region25: #{pvconv_forward.8} parent=23 // pred_check
        %p174 = pneg %p45
      $region26: #{pvconv_forward.8} parent=23 // pred_check_branch
        %176 = sbr.rel (%p174) target = $region28
      $region27: #{pvconv_forward.8} parent=23 // pred_region
        %p177 = scmp.lt.s32.totalorder %s18, 1
        %s178 = scalar_select %p177, %s18, 1
        %p179 = scmp.lt.s32.totalorder %s19, 0
        %s180 = scalar_select %p179, %s19, 0
        %s181 = sadd.s32 %s180, %s178
        %s182 = smul.addr %s181, 2
        %s183 = scalar_lea.vmem %s0, %s182
      $region28: #{pvconv_forward.8} parent=23 // pred_fallthru
        _
    $region24: #{pvconv_forward.8} parent=5 // pred_fallthru
      _
    %p184 = scmp.le.s32.totalorder 1, %s11
    %p185 = scmp.lt.s32.totalorder %s11, 3
    %p186 = pnand %p184, %p185
    %p187 = pneg %p186
    // Predicated region
    $region29: #{pvconv_forward.8} parent=5 // pred_check
      _
    $region30: #{pvconv_forward.8} parent=5 // pred_check_branch
      %189 = sbr.rel (%p186) target = $region32
    $region31: #{pvconv_forward.8} parent=5 // pred_region
      %s190 = ssub.s32 %s11, 1
      %p191 = scmp.lt.s32.totalorder %s20, 1
      %s192 = scalar_select %p191, %s20, 1
      %p193 = scmp.lt.s32.totalorder %s21, 0
      %s194 = scalar_select %p193, %s21, 0
      %s195 = sadd.s32 %s194, %s192
      %s196 = smul.addr %s195, 2
      %s197 = scalar_lea.vmem %s0, %s196
      %p198 = pneg %p51
      %p199 = pneg %p48
      %p200 = pneg %p72
      %p201 = pneg %p69
      %p202 = pneg %p93
      %p203 = pneg %p90
      %p204 = pneg %p121
      %p205 = pneg %p118
      %p206 = scmp.lt.s32.totalorder %s20, 1
      %s207 = scalar_select %p206, %s20, 1
      %p208 = scmp.lt.s32.totalorder %s21, 0
      %s209 = scalar_select %p208, %s21, 0
      %s210 = sadd.s32 %s209, %s207
      %s211 = smul.addr %s210, 8
      %s212 = scalar_lea.vmem %s3, %s211
      %p213 = pneg %p149
      %p214 = pneg %p146
      %p215 = scmp.lt.s32.totalorder %s20, 1
      %s216 = scalar_select %p215, %s20, 1
      %p217 = scmp.lt.s32.totalorder %s21, 0
      %s218 = scalar_select %p217, %s21, 0
      %s219 = sadd.s32 %s218, %s216
      %s220 = smul.addr %s219, 8
      %s221 = scalar_lea.vmem %s4, %s220
      %p222 = scmp.lt.s32.totalorder %s20, 1
      %s223 = scalar_select %p222, %s20, 1
      %p224 = scmp.lt.s32.totalorder %s21, 0
      %s225 = scalar_select %p224, %s21, 0
      %s226 = sadd.s32 %s225, %s223
      %s227 = smul.addr %s226, 2
      %s228 = scalar_lea.vmem %s0, %s227
      %p229 = scmp.lt.s32.totalorder %s20, 1
      %s230 = scalar_select %p229, %s20, 1
      %p231 = scmp.lt.s32.totalorder %s21, 0
      %s232 = scalar_select %p231, %s21, 0
      %s233 = sadd.s32 %s232, %s230
      %s234 = smul.addr %s233, 8
      %s235 = scalar_lea.vmem %s3, %s234
      %p236 = scmp.lt.s32.totalorder %s20, 1
      %s237 = scalar_select %p236, %s20, 1
      %p238 = scmp.lt.s32.totalorder %s21, 0
      %s239 = scalar_select %p238, %s21, 0
      %s240 = sadd.s32 %s239, %s237
      %s241 = smul.addr %s240, 8
      %s242 = scalar_lea.vmem %s4, %s241
      %v244 = vld [vmem:[%s1] sm:$0xf]
      %v245 = vld [vmem:[%s228] sm:$0x3]
      %v246 = vld [vmem:[%s2] sm:$0xff]
      %248 = vset.pattern.permute.xlu0 0
      %249 = vperm.xlu0 %248, %v246
      %v250 = vpop.permute.xlu0 %249
      %vm252 = vcmask 31744
      %v254 = vsel %vm252, %v244, 0
      %vm256 = vcmask 1041408
      %v258 = vsel %vm256, %v245, 0
      %260 = vmatprep.subr.bf16.mxu0 0
      %261 = vmatpush1.bf16.msra.mxu0 %v258
      %262 = vmatprep.subr.bf16.mxu0 0
      %263 = vmatpush1.bf16.msra.mxu0 0
      %264 = vmatprep.subr.bf16.mxu0 0
      %265 = vmatpush1.bf16.msra.mxu0 0
      %266 = vmatprep.subr.bf16.mxu0 0
      %267 = vmatpush1.bf16.msra.mxu0 0
      %268 = vmatprep.subr.bf16.mxu0 0
      %269 = vmatpush1.bf16.msra.mxu0 0
      %270 = vmatprep.subr.bf16.mxu0 0
      %271 = vmatpush1.bf16.msra.mxu0 0
      %272 = vmatprep.subr.bf16.mxu0 0
      %273 = vmatpush1.bf16.msra.mxu0 0
      %274 = vmatprep.subr.bf16.mxu0 0
      %275 = vmatpush1.bf16.msra.mxu0 0
      %276 = vmatprep.subr.bf16.mxu0 0
      %277 = vmatpush1.bf16.msra.mxu0 0
      %278 = vmatprep.subr.bf16.mxu0 0
      %279 = vmatpush1.bf16.msra.mxu0 0
      %280 = vmatprep.subr.bf16.mxu0 0
      %281 = vmatpush1.bf16.msra.mxu0 0
      %282 = vmatprep.subr.bf16.mxu0 0
      %283 = vmatpush1.bf16.msra.mxu0 0
      %284 = vmatprep.subr.bf16.mxu0 0
      %285 = vmatpush1.bf16.msra.mxu0 0
      %286 = vmatprep.subr.bf16.mxu0 0
      %287 = vmatpush1.bf16.msra.mxu0 0
      %288 = vmatprep.subr.bf16.mxu0 0
      %289 = vmatpush1.bf16.msra.mxu0 0
      %290 = vmatprep.subr.bf16.mxu0 0
      %291 = vmatpush1.bf16.msra.mxu0 0
      %292 = vmatprep.mubr.bf16.mxu0 0
      %293 = vmatmul.mubr.bf16.gmra.mrb[0].mxu0 %v254
      %v294 = vpop.f32.mrb[0].mxu0
      %v295 = vadd.f32 %v250, %v294
      %v296 = vpop.f32.mrb[0].mxu0
      %v297 = vpop.f32.mrb[0].mxu0
      %v298 = vpop.f32.mrb[0].mxu0
      %299 = vdwg.mxu0
      %vm300 = vcmask 523264
      %301 = vst.msk [vmem:[%s235] sm:$0xff] %vm300, %v295
      %v302 = vsel %vm300, %v295, 0.0
      %303 = vadd.xlane.f32.xlu0 %v302
      %v304 = vpop.xlane.xlu0 %303
      %vm305 = vcmask 7168
      %306 = vst.msk [vmem:[%s242] sm:$0xff] %vm305, %v304
      %v307 = vmul.f32 %v295, %v295
      %v308 = vsel %vm300, %v307, 0.0
      %309 = vadd.xlane.f32.xlu0 %v308
      %v310 = vpop.xlane.xlu0 %309
      %vm311 = vcmask 15368
      %312 = vst.msk [vmem:[%s242] sm:$0xff] %vm311, %v310
      %p313 = scmp.lt.s32.totalorder %s20, 1
      %s314 = scalar_select %p313, %s20, 1
      %p315 = scmp.lt.s32.totalorder %s21, 0
      %s316 = scalar_select %p315, %s21, 0
      %s317 = sadd.s32 %s316, %s314
      %s318 = smul.addr %s317, 8
      %s319 = scalar_lea.vmem %s3, %s318
      %p320 = scmp.lt.s32.totalorder %s20, 1
      %s321 = scalar_select %p320, %s20, 1
      %p322 = scmp.lt.s32.totalorder %s21, 0
      %s323 = scalar_select %p322, %s21, 0
      %s324 = sadd.s32 %s323, %s321
      %s325 = smul.addr %s324, 8
      %s326 = scalar_lea.vmem %s4, %s325
      // Predicated region
      $region33: #{pvconv_forward.8} parent=31 // pred_check
        %p327 = pneg %p118
      $region34: #{pvconv_forward.8} parent=31 // pred_check_branch
        %329 = sbr.rel (%p327) target = $region36
      $region35: #{pvconv_forward.8} parent=31 // pred_region
        _
      $region36: #{pvconv_forward.8} parent=31 // pred_fallthru
        _
      // Predicated region
      $region37: #{pvconv_forward.8} parent=31 // pred_check
        %p330 = pneg %p146
      $region38: #{pvconv_forward.8} parent=31 // pred_check_branch
        %332 = sbr.rel (%p330) target = $region40
      $region39: #{pvconv_forward.8} parent=31 // pred_region
        _
      $region40: #{pvconv_forward.8} parent=31 // pred_fallthru
        _
    $region32: #{pvconv_forward.8} parent=5 // pred_fallthru
      _
    %p333 = scmp.le.s32.totalorder 2, %s11
    // Predicated region
    $region41: #{pvconv_forward.8} parent=5 // pred_check
      %p334 = pneg %p333
    $region42: #{pvconv_forward.8} parent=5 // pred_check_branch
      %336 = sbr.rel (%p334) target = $region44
    $region43: #{pvconv_forward.8} parent=5 // pred_region
      %s337 = ssub.s32 %s11, 2
      // Predicated region
      $region45: #{pvconv_forward.8} parent=43 // pred_check
        %p338 = pneg %p124
      $region46: #{pvconv_forward.8} parent=43 // pred_check_branch
        %340 = sbr.rel (%p338) target = $region48
      $region47: #{pvconv_forward.8} parent=43 // pred_region
        %p341 = scmp.lt.s32.totalorder %s22, 1
        %s342 = scalar_select %p341, %s22, 1
        %p343 = scmp.lt.s32.totalorder %s23, 0
        %s344 = scalar_select %p343, %s23, 0
        %s345 = sadd.s32 %s344, %s342
        %s346 = smul.addr %s345, 8
        %s347 = scalar_lea.vmem %s3, %s346
      $region48: #{pvconv_forward.8} parent=43 // pred_fallthru
        _
      // Predicated region
      $region49: #{pvconv_forward.8} parent=43 // pred_check
        %p348 = pneg %p152
      $region50: #{pvconv_forward.8} parent=43 // pred_check_branch
        %350 = sbr.rel (%p348) target = $region52
      $region51: #{pvconv_forward.8} parent=43 // pred_region
        %p351 = scmp.lt.s32.totalorder %s22, 1
        %s352 = scalar_select %p351, %s22, 1
        %p353 = scmp.lt.s32.totalorder %s23, 0
        %s354 = scalar_select %p353, %s23, 0
        %s355 = sadd.s32 %s354, %s352
        %s356 = smul.addr %s355, 8
        %s357 = scalar_lea.vmem %s4, %s356
      $region52: #{pvconv_forward.8} parent=43 // pred_fallthru
        _
    $region44: #{pvconv_forward.8} parent=5 // pred_fallthru
      _
  $region6: #{pvconv_forward.8} parent=0 // loop_footer
    %s15 = sadd.s32 1, %s11
  $region7: #{pvconv_forward.8} parent=0 // loop_footer_branch
    %10 = sbr.rel target = $region3
  $region8: #{pvconv_forward.8} parent=0 // loop_exit
    _

// kernel: pvconv_forward.6
$region0: #{pvconv_forward.6}
  #allocation0 [shape = 'u32[]', space=smem, size = 0x4, offset = 0x4, fixed_abs, tag = 'smem constant byte address 0x4 - core index']
  #allocation1 [shape = 'u32[144,128]{1,0:T(1,128)}', space=vmem, size = 0x12000, scoped, tag = 'internal scratch']
  %s0 = inlined_call_operand.vmem [shape: f32[2,4,64], index: 0, kind: input, shape index: {}]
  %s1 = inlined_call_operand.vmem [shape: bf16[27,8,4], index: 1, kind: input, shape index: {}]
  %s2 = inlined_call_operand.vmem [shape: f32[27,1,64], index: 2, kind: input, shape index: {}]
  %s3 = inlined_call_operand.vmem [shape: f32[8,1], index: 3, kind: input, shape index: {}]
  %s4 = inlined_call_operand.vmem [shape: f32[4,1], index: 4, kind: input, shape index: {}]
  %s5 = inlined_call_operand.vmem [shape: f32[4,1], index: 5, kind: input, shape index: {}]
  %s6 = inlined_call_operand.vmem [shape: f32[2,8,64], index: 6, kind: output, shape index: {0}]
  %s7 = inlined_call_operand.vmem [shape: f32[2,8,2], index: 7, kind: output, shape index: {1}]
  %8 = xla_tuple %s6, %s7
  %s9 = sld [smem:[#allocation0]]
  $region65: #{pvconv_forward.6} parent=0
    _
  %s11 = ssub.s32 1, %s9
  %s12 = scalar_select 0, %s11, %s9
  loop: start=0, step=1, limit=4
  $region2: #{pvconv_forward.6} parent=0 // loop_pre_header
    _
  $region3: #{pvconv_forward.6} parent=0 // loop_header
    %s14 = sphi 0, %s18
    %p15 = scmp.ge.s32.totalorder %s14, 4
    %s24 = sphi 0, %s26
    %s27 = sphi 0, %s24
    %s28 = sphi 0, %s27
    %s44 = sphi 0, %s28
    %s48 = sphi 0, %s48
    %s50 = sphi 0, %s48
    %s51 = sphi 0, %s50
    %s65 = sphi 0, %s51
    %s69 = sphi 0, %s69
    %s71 = sphi 0, %s69
    %s72 = sphi 0, %s71
    %s86 = sphi 0, %s72
    %s90 = sphi 0, %s90
    %s92 = sphi 0, %s90
    %s93 = sphi 0, %s92
    %s107 = sphi 0, %s93
    %s111 = sphi 0, %s111
    %s113 = sphi 0, %s111
    %s114 = sphi 0, %s113
    %s128 = sphi 0, %s114
    %s132 = sphi 0, %s132
    %s134 = sphi 0, %s132
    %s135 = sphi 0, %s134
    %s149 = sphi 0, %s135
    %s155 = sphi 0, %s157
    %s158 = sphi 0, %s155
    %s159 = sphi 0, %s158
    %s175 = sphi 0, %s159
    %s181 = sphi 0, %s183
    %s184 = sphi 0, %s181
    %s185 = sphi 0, %s184
    %s201 = sphi 0, %s185
  $region4: #{pvconv_forward.6} parent=0 // loop_header_branch
    %17 = sbr.rel (%p15) target = $region8
  $region5: #{pvconv_forward.6} parent=0 // loop_body
    %s19 = ssub.s32 %s14, 1
    %s20 = ssub.s32 %s14, 2
    %s21 = sadd.s32 %s14, 1
    %s22 = ssub.s32 %s14, %s21
    %p23 = scmp.eq.s32.totalorder %s22, 0
    %s25 = sadd.s32 %s24, 1
    %s26 = scalar_select %p23, %s24, %s25
    %p29 = pneg %p23
    %p30 = scmp.eq.s32.totalorder %s14, 1
    %p31 = por %p29, %p30
    %p32 = scmp.ne.s32.totalorder %s24, %s27
    %p33 = scmp.eq.s32.totalorder %s14, 0
    %p34 = por %p32, %p33
    %p35 = scmp.ne.s32.totalorder %s24, %s27
    %p36 = scmp.eq.s32.totalorder %s19, 1
    %p37 = por %p35, %p36
    %p38 = scmp.ne.s32.totalorder %s27, %s28
    %p39 = scmp.eq.s32.totalorder %s19, 0
    %p40 = por %p38, %p39
    %p41 = scmp.ne.s32.totalorder %s27, %s28
    %p42 = scmp.eq.s32.totalorder %s20, 1
    %p43 = por %p41, %p42
    %p45 = scmp.ne.s32.totalorder %s28, %s44
    %p46 = scmp.eq.s32.totalorder %s20, 0
    %p47 = por %p45, %p46
    %s49 = sadd.s32 %s48, 1
    %p52 = scmp.eq.s32.totalorder %s14, 1
    %p53 = scmp.ne.s32.totalorder %s48, %s50
    %p54 = scmp.eq.s32.totalorder %s14, 0
    %p55 = por %p53, %p54
    %p56 = scmp.ne.s32.totalorder %s48, %s50
    %p57 = scmp.eq.s32.totalorder %s19, 1
    %p58 = por %p56, %p57
    %p59 = scmp.ne.s32.totalorder %s50, %s51
    %p60 = scmp.eq.s32.totalorder %s19, 0
    %p61 = por %p59, %p60
    %p62 = scmp.ne.s32.totalorder %s50, %s51
    %p63 = scmp.eq.s32.totalorder %s20, 1
    %p64 = por %p62, %p63
    %p66 = scmp.ne.s32.totalorder %s51, %s65
    %p67 = scmp.eq.s32.totalorder %s20, 0
    %p68 = por %p66, %p67
    %s70 = sadd.s32 %s69, 1
    %p73 = scmp.eq.s32.totalorder %s14, 1
    %p74 = scmp.ne.s32.totalorder %s69, %s71
    %p75 = scmp.eq.s32.totalorder %s14, 0
    %p76 = por %p74, %p75
    %p77 = scmp.ne.s32.totalorder %s69, %s71
    %p78 = scmp.eq.s32.totalorder %s19, 1
    %p79 = por %p77, %p78
    %p80 = scmp.ne.s32.totalorder %s71, %s72
    %p81 = scmp.eq.s32.totalorder %s19, 0
    %p82 = por %p80, %p81
    %p83 = scmp.ne.s32.totalorder %s71, %s72
    %p84 = scmp.eq.s32.totalorder %s20, 1
    %p85 = por %p83, %p84
    %p87 = scmp.ne.s32.totalorder %s72, %s86
    %p88 = scmp.eq.s32.totalorder %s20, 0
    %p89 = por %p87, %p88
    %s91 = sadd.s32 %s90, 1
    %p94 = scmp.eq.s32.totalorder %s14, 1
    %p95 = scmp.ne.s32.totalorder %s90, %s92
    %p96 = scmp.eq.s32.totalorder %s14, 0
    %p97 = por %p95, %p96
    %p98 = scmp.ne.s32.totalorder %s90, %s92
    %p99 = scmp.eq.s32.totalorder %s19, 1
    %p100 = por %p98, %p99
    %p101 = scmp.ne.s32.totalorder %s92, %s93
    %p102 = scmp.eq.s32.totalorder %s19, 0
    %p103 = por %p101, %p102
    %p104 = scmp.ne.s32.totalorder %s92, %s93
    %p105 = scmp.eq.s32.totalorder %s20, 1
    %p106 = por %p104, %p105
    %p108 = scmp.ne.s32.totalorder %s93, %s107
    %p109 = scmp.eq.s32.totalorder %s20, 0
    %p110 = por %p108, %p109
    %s112 = sadd.s32 %s111, 1
    %p115 = scmp.eq.s32.totalorder %s14, 1
    %p116 = scmp.ne.s32.totalorder %s111, %s113
    %p117 = scmp.eq.s32.totalorder %s14, 0
    %p118 = por %p116, %p117
    %p119 = scmp.ne.s32.totalorder %s111, %s113
    %p120 = scmp.eq.s32.totalorder %s19, 1
    %p121 = por %p119, %p120
    %p122 = scmp.ne.s32.totalorder %s113, %s114
    %p123 = scmp.eq.s32.totalorder %s19, 0
    %p124 = por %p122, %p123
    %p125 = scmp.ne.s32.totalorder %s113, %s114
    %p126 = scmp.eq.s32.totalorder %s20, 1
    %p127 = por %p125, %p126
    %p129 = scmp.ne.s32.totalorder %s114, %s128
    %p130 = scmp.eq.s32.totalorder %s20, 0
    %p131 = por %p129, %p130
    %s133 = sadd.s32 %s132, 1
    %p136 = scmp.eq.s32.totalorder %s14, 1
    %p137 = scmp.ne.s32.totalorder %s132, %s134
    %p138 = scmp.eq.s32.totalorder %s14, 0
    %p139 = por %p137, %p138
    %p140 = scmp.ne.s32.totalorder %s132, %s134
    %p141 = scmp.eq.s32.totalorder %s19, 1
    %p142 = por %p140, %p141
    %p143 = scmp.ne.s32.totalorder %s134, %s135
    %p144 = scmp.eq.s32.totalorder %s19, 0
    %p145 = por %p143, %p144
    %p146 = scmp.ne.s32.totalorder %s134, %s135
    %p147 = scmp.eq.s32.totalorder %s20, 1
    %p148 = por %p146, %p147
    %p150 = scmp.ne.s32.totalorder %s135, %s149
    %p151 = scmp.eq.s32.totalorder %s20, 0
    %p152 = por %p150, %p151
    %s153 = ssub.s32 %s14, %s21
    %p154 = scmp.eq.s32.totalorder %s153, 0
    %s156 = sadd.s32 %s155, 1
    %s157 = scalar_select %p154, %s155, %s156
    %p160 = pneg %p154
    %p161 = scmp.eq.s32.totalorder %s14, 1
    %p162 = por %p160, %p161
    %p163 = scmp.ne.s32.totalorder %s155, %s158
    %p164 = scmp.eq.s32.totalorder %s14, 0
    %p165 = por %p163, %p164
    %p166 = scmp.ne.s32.totalorder %s155, %s158
    %p167 = scmp.eq.s32.totalorder %s19, 1
    %p168 = por %p166, %p167
    %p169 = scmp.ne.s32.totalorder %s158, %s159
    %p170 = scmp.eq.s32.totalorder %s19, 0
    %p171 = por %p169, %p170
    %p172 = scmp.ne.s32.totalorder %s158, %s159
    %p173 = scmp.eq.s32.totalorder %s20, 1
    %p174 = por %p172, %p173
    %p176 = scmp.ne.s32.totalorder %s159, %s175
    %p177 = scmp.eq.s32.totalorder %s20, 0
    %p178 = por %p176, %p177
    %s179 = ssub.s32 %s14, %s21
    %p180 = scmp.eq.s32.totalorder %s179, 0
    %s182 = sadd.s32 %s181, 1
    %s183 = scalar_select %p180, %s181, %s182
    %p186 = pneg %p180
    %p187 = scmp.eq.s32.totalorder %s14, 1
    %p188 = por %p186, %p187
    %p189 = scmp.ne.s32.totalorder %s181, %s184
    %p190 = scmp.eq.s32.totalorder %s14, 0
    %p191 = por %p189, %p190
    %p192 = scmp.ne.s32.totalorder %s181, %s184
    %p193 = scmp.eq.s32.totalorder %s19, 1
    %p194 = por %p192, %p193
    %p195 = scmp.ne.s32.totalorder %s184, %s185
    %p196 = scmp.eq.s32.totalorder %s19, 0
    %p197 = por %p195, %p196
    %p198 = scmp.ne.s32.totalorder %s184, %s185
    %p199 = scmp.eq.s32.totalorder %s20, 1
    %p200 = por %p198, %p199
    %p202 = scmp.ne.s32.totalorder %s185, %s201
    %p203 = scmp.eq.s32.totalorder %s20, 0
    %p204 = por %p202, %p203
    %p205 = scmp.le.s32.totalorder 1, %s14
    %p206 = scmp.lt.s32.totalorder %s14, 3
    %p207 = pnand %p205, %p206
    %p208 = pneg %p207
    // Predicated region
    $region9: #{pvconv_forward.6} parent=5 // pred_check
      _
    $region10: #{pvconv_forward.6} parent=5 // pred_check_branch
      %210 = sbr.rel (%p207) target = $region12
    $region11: #{pvconv_forward.6} parent=5 // pred_region
      %s211 = ssub.s32 %s14, 1
      // Predicated region
      $region13: #{pvconv_forward.6} parent=11 // pred_check
        %p212 = pneg %p61
      $region14: #{pvconv_forward.6} parent=11 // pred_check_branch
        %214 = sbr.rel (%p212) target = $region16
      $region15: #{pvconv_forward.6} parent=11 // pred_region
        _
      $region16: #{pvconv_forward.6} parent=11 // pred_fallthru
        _
      // Predicated region
      $region17: #{pvconv_forward.6} parent=11 // pred_check
        %p215 = pneg %p82
      $region18: #{pvconv_forward.6} parent=11 // pred_check_branch
        %217 = sbr.rel (%p215) target = $region20
      $region19: #{pvconv_forward.6} parent=11 // pred_region
        _
      $region20: #{pvconv_forward.6} parent=11 // pred_fallthru
        _
      // Predicated region
      $region21: #{pvconv_forward.6} parent=11 // pred_check
        %p218 = pneg %p103
      $region22: #{pvconv_forward.6} parent=11 // pred_check_branch
        %220 = sbr.rel (%p218) target = $region24
      $region23: #{pvconv_forward.6} parent=11 // pred_region
        _
      $region24: #{pvconv_forward.6} parent=11 // pred_fallthru
        _
      // Predicated region
      $region25: #{pvconv_forward.6} parent=11 // pred_check
        %p221 = pneg %p124
      $region26: #{pvconv_forward.6} parent=11 // pred_check_branch
        %223 = sbr.rel (%p221) target = $region28
      $region27: #{pvconv_forward.6} parent=11 // pred_region
        _
      $region28: #{pvconv_forward.6} parent=11 // pred_fallthru
        _
      // Predicated region
      $region29: #{pvconv_forward.6} parent=11 // pred_check
        %p224 = pneg %p145
      $region30: #{pvconv_forward.6} parent=11 // pred_check_branch
        %226 = sbr.rel (%p224) target = $region32
      $region31: #{pvconv_forward.6} parent=11 // pred_region
        _
      $region32: #{pvconv_forward.6} parent=11 // pred_fallthru
        _
    $region12: #{pvconv_forward.6} parent=5 // pred_fallthru
      _
    %p227 = scmp.lt.s32.totalorder %s14, 2
    // Predicated region
    $region33: #{pvconv_forward.6} parent=5 // pred_check
      %p228 = pneg %p227
    $region34: #{pvconv_forward.6} parent=5 // pred_check_branch
      %230 = sbr.rel (%p228) target = $region36
    $region35: #{pvconv_forward.6} parent=5 // pred_region
      // Predicated region
      $region37: #{pvconv_forward.6} parent=35 // pred_check
        %p231 = pneg %p34
      $region38: #{pvconv_forward.6} parent=35 // pred_check_branch
        %233 = sbr.rel (%p231) target = $region40
      $region39: #{pvconv_forward.6} parent=35 // pred_region
        %p234 = scmp.lt.s32.totalorder %s14, 1
        %s235 = scalar_select %p234, %s14, 1
        %s236 = smul.addr %s235, 4
        %s237 = scalar_lea.vmem %s0, %s236
      $region40: #{pvconv_forward.6} parent=35 // pred_fallthru
        _
    $region36: #{pvconv_forward.6} parent=5 // pred_fallthru
      _
    %p238 = scmp.le.s32.totalorder 1, %s14
    %p239 = scmp.lt.s32.totalorder %s14, 3
    %p240 = pnand %p238, %p239
    %p241 = pneg %p240
    // Predicated region
    $region41: #{pvconv_forward.6} parent=5 // pred_check
      _
    $region42: #{pvconv_forward.6} parent=5 // pred_check_branch
      %243 = sbr.rel (%p240) target = $region44
    $region43: #{pvconv_forward.6} parent=5 // pred_region
      %s244 = ssub.s32 %s14, 1
      %p245 = scmp.lt.s32.totalorder %s19, 1
      %s246 = scalar_select %p245, %s19, 1
      %s247 = smul.addr %s246, 4
      %s248 = scalar_lea.vmem %s0, %s247
      %p249 = pneg %p40
      %p250 = pneg %p37
      %p251 = pneg %p61
      %p252 = pneg %p58
      %p253 = pneg %p82
      %p254 = pneg %p79
      %p255 = pneg %p103
      %p256 = pneg %p100
      %p257 = pneg %p124
      %p258 = pneg %p121
      %p259 = pneg %p145
      %p260 = pneg %p142
      %p261 = pneg %p171
      %p262 = pneg %p168
      %p263 = scmp.lt.s32.totalorder %s19, 1
      %s264 = scalar_select %p263, %s19, 1
      %s265 = smul.addr %s264, 8
      %s266 = scalar_lea.vmem %s6, %s265
      %p267 = pneg %p197
      %p268 = pneg %p194
      %p269 = scmp.lt.s32.totalorder %s19, 1
      %s270 = scalar_select %p269, %s19, 1
      %s271 = smul.addr %s270, 8
      %s272 = scalar_lea.vmem %s7, %s271
      %p273 = scmp.lt.s32.totalorder %s19, 1
      %s274 = scalar_select %p273, %s19, 1
      %s275 = smul.addr %s274, 4
      %s276 = scalar_lea.vmem %s0, %s275
      %p277 = scmp.lt.s32.totalorder %s19, 1
      %s278 = scalar_select %p277, %s19, 1
      %s279 = smul.addr %s278, 8
      %s280 = scalar_lea.vmem %s6, %s279
      %p281 = scmp.lt.s32.totalorder %s19, 1
      %s282 = scalar_select %p281, %s19, 1
      %s283 = smul.addr %s282, 8
      %s284 = scalar_lea.vmem %s7, %s283
      %v286 = vld [vmem:[%s276] sm:$0xf]
      %vm287 = vcmask 1048064
      %288 = vrot.lane.b32.xlu0 %v286, 64
      %v289 = vpop.permute.xlu0 %288
      %v290 = vsel %vm287, %v289, %v286
      %291 = vrot.lane.b32.xlu0 %v290, 64
      %v292 = vpop.permute.xlu0 %291
      %v293 = vsel %vm287, %v292, %v286
      %v294 = vld [vmem:[%s2] sm:$0x1]
      %v296 = vlaneseq
      %v297 = vshrl.u32 %v296, 7
      %v298 = vsub.s32 0, %v297
      %v299 = vrot.slane %v294, %v298
      %300 = vrot.lane.b32.xlu0 %v299, 43
      %v301 = vpop.permute.xlu0 %300
      %v303 = vmul.f32 %v293, %v301
      %v304 = vpack.c.bf16 %v303, %v303
      %v305 = vld [vmem:[%s1] sm:$0xf]
      %s306 = scalar_lea.vmem %s2, 1
      %v307 = vld [vmem:[%s306] sm:$0x1]
      %v309 = vlaneseq
      %v310 = vshrl.u32 %v309, 7
      %v311 = vsub.s32 0, %v310
      %v312 = vrot.slane %v307, %v311
      %313 = vrot.lane.b32.xlu0 %v312, 44
      %v314 = vpop.permute.xlu0 %313
      %v316 = vmul.f32 %v293, %v314
      %v317 = vpack.c.bf16 %v316, %v316
      %s318 = scalar_lea.vmem %s1, 4
      %v319 = vld [vmem:[%s318] sm:$0xf]
      %321 = vrot.lane.b32.xlu0 %v317, 84
      %v322 = vpop.permute.xlu0 %321
      %vm323 = vcmask 31744
      %v325 = vsel %vm323, %v319, 0
      %vm327 = vcmask 1041408
      %v329 = vsel %vm327, %v322, 0
      %331 = vmatprep.subr.bf16.mxu0 0
      %332 = vmatpush1.bf16.msra.mxu0 %v329
      %333 = vmatprep.subr.bf16.mxu0 0
      %334 = vmatpush1.bf16.msra.mxu0 0
      %335 = vmatprep.subr.bf16.mxu0 0
      %336 = vmatpush1.bf16.msra.mxu0 0
      %337 = vmatprep.subr.bf16.mxu0 0
      %338 = vmatpush1.bf16.msra.mxu0 0
      %339 = vmatprep.subr.bf16.mxu0 0
      %340 = vmatpush1.bf16.msra.mxu0 0
      %341 = vmatprep.subr.bf16.mxu0 0
      %342 = vmatpush1.bf16.msra.mxu0 0
      %343 = vmatprep.subr.bf16.mxu0 0
      %344 = vmatpush1.bf16.msra.mxu0 0
      %345 = vmatprep.subr.bf16.mxu0 0
      %346 = vmatpush1.bf16.msra.mxu0 0
      %347 = vmatprep.subr.bf16.mxu0 0
      %348 = vmatpush1.bf16.msra.mxu0 0
      %349 = vmatprep.subr.bf16.mxu0 0
      %350 = vmatpush1.bf16.msra.mxu0 0
      %351 = vmatprep.subr.bf16.mxu0 0
      %352 = vmatpush1.bf16.msra.mxu0 0
      %353 = vmatprep.subr.bf16.mxu0 0
      %354 = vmatpush1.bf16.msra.mxu0 0
      %355 = vmatprep.subr.bf16.mxu0 0
      %356 = vmatpush1.bf16.msra.mxu0 0
      %357 = vmatprep.subr.bf16.mxu0 0
      %358 = vmatpush1.bf16.msra.mxu0 0
      %359 = vmatprep.subr.bf16.mxu0 0
      %360 = vmatpush1.bf16.msra.mxu0 0
      %361 = vmatprep.subr.bf16.mxu0 0
      %362 = vmatpush1.bf16.msra.mxu0 0
      %363 = vmatprep.mubr.bf16.mxu0 0
      %364 = vmatmul.mubr.bf16.gmra.mrb[0].mxu0 %v325
      %v365 = vpop.f32.mrb[0].mxu0
      %v366 = vadd.f32 0.0, %v365
      %v367 = vpop.f32.mrb[0].mxu0
      %v368 = vpop.f32.mrb[0].mxu0
      %v369 = vpop.f32.mrb[0].mxu0
      %370 = vdwg.mxu0
      %372 = vrot.lane.b32.xlu0 %v304, 85
      %v373 = vpop.permute.xlu0 %372
      %v375 = vsel %vm323, %v305, 0
      %v378 = vsel %vm327, %v373, 0
      %380 = vmatprep.subr.bf16.mxu0 0
      %381 = vmatpush1.bf16.msra.mxu0 %v378
      %382 = vmatprep.subr.bf16.mxu0 0
      %383 = vmatpush1.bf16.msra.mxu0 0
      %384 = vmatprep.subr.bf16.mxu0 0
      %385 = vmatpush1.bf16.msra.mxu0 0
      %386 = vmatprep.subr.bf16.mxu0 0
      %387 = vmatpush1.bf16.msra.mxu0 0
      %388 = vmatprep.subr.bf16.mxu0 0
      %389 = vmatpush1.bf16.msra.mxu0 0
      %390 = vmatprep.subr.bf16.mxu0 0
      %391 = vmatpush1.bf16.msra.mxu0 0
      %392 = vmatprep.subr.bf16.mxu0 0
      %393 = vmatpush1.bf16.msra.mxu0 0
      %394 = vmatprep.subr.bf16.mxu0 0
      %395 = vmatpush1.bf16.msra.mxu0 0
      %396 = vmatprep.subr.bf16.mxu0 0
      %397 = vmatpush1.bf16.msra.mxu0 0
      %398 = vmatprep.subr.bf16.mxu0 0
      %399 = vmatpush1.bf16.msra.mxu0 0
      %400 = vmatprep.subr.bf16.mxu0 0
      %401 = vmatpush1.bf16.msra.mxu0 0
      %402 = vmatprep.subr.bf16.mxu0 0
      %403 = vmatpush1.bf16.msra.mxu0 0
      %404 = vmatprep.subr.bf16.mxu0 0
      %405 = vmatpush1.bf16.msra.mxu0 0
      %406 = vmatprep.subr.bf16.mxu0 0
      %407 = vmatpush1.bf16.msra.mxu0 0
      %408 = vmatprep.subr.bf16.mxu0 0
      %409 = vmatpush1.bf16.msra.mxu0 0
      %410 = vmatprep.subr.bf16.mxu0 0
      %411 = vmatpush1.bf16.msra.mxu0 0
      %412 = vmatprep.mubr.bf16.mxu0 0
      %413 = vmatmul.mubr.bf16.gmra.mrb[0].mxu0 %v375
      %v414 = vpop.f32.mrb[0].mxu0
      %v415 = vadd.f32 %v366, %v414
      %v416 = vpop.f32.mrb[0].mxu0
      %v417 = vpop.f32.mrb[0].mxu0
      %v418 = vpop.f32.mrb[0].mxu0
      %419 = vdwg.mxu0
      %s420 = scalar_lea.vmem %s2, 2
      %v421 = vld [vmem:[%s420] sm:$0x1]
      %v423 = vlaneseq
      %v424 = vshrl.u32 %v423, 7
      %v425 = vsub.s32 0, %v424
      %v426 = vrot.slane %v421, %v425
      %427 = vrot.lane.b32.xlu0 %v426, 45
      %v428 = vpop.permute.xlu0 %427
      %v430 = vmul.f32 %v293, %v428
      %v431 = vpack.c.bf16 %v430, %v430
      %s432 = scalar_lea.vmem %s1, 8
      %v433 = vld [vmem:[%s432] sm:$0xf]
      %435 = vrot.lane.b32.xlu0 %v431, 83
      %v436 = vpop.permute.xlu0 %435
      %v438 = vsel %vm323, %v433, 0
      %v441 = vsel %vm327, %v436, 0
      %443 = vmatprep.subr.bf16.mxu0 0
      %444 = vmatpush1.bf16.msra.mxu0 %v441
      %445 = vmatprep.subr.bf16.mxu0 0
      %446 = vmatpush1.bf16.msra.mxu0 0
      %447 = vmatprep.subr.bf16.mxu0 0
      %448 = vmatpush1.bf16.msra.mxu0 0
      %449 = vmatprep.subr.bf16.mxu0 0
      %450 = vmatpush1.bf16.msra.mxu0 0
      %451 = vmatprep.subr.bf16.mxu0 0
      %452 = vmatpush1.bf16.msra.mxu0 0
      %453 = vmatprep.subr.bf16.mxu0 0
      %454 = vmatpush1.bf16.msra.mxu0 0
      %455 = vmatprep.subr.bf16.mxu0 0
      %456 = vmatpush1.bf16.msra.mxu0 0
      %457 = vmatprep.subr.bf16.mxu0 0
      %458 = vmatpush1.bf16.msra.mxu0 0
      %459 = vmatprep.subr.bf16.mxu0 0
      %460 = vmatpush1.bf16.msra.mxu0 0
      %461 = vmatprep.subr.bf16.mxu0 0
      %462 = vmatpush1.bf16.msra.mxu0 0
      %463 = vmatprep.subr.bf16.mxu0 0
      %464 = vmatpush1.bf16.msra.mxu0 0
      %465 = vmatprep.subr.bf16.mxu0 0
      %466 = vmatpush1.bf16.msra.mxu0 0
      %467 = vmatprep.subr.bf16.mxu0 0
      %468 = vmatpush1.bf16.msra.mxu0 0
      %469 = vmatprep.subr.bf16.mxu0 0
      %470 = vmatpush1.bf16.msra.mxu0 0
      %471 = vmatprep.subr.bf16.mxu0 0
      %472 = vmatpush1.bf16.msra.mxu0 0
      %473 = vmatprep.subr.bf16.mxu0 0
      %474 = vmatpush1.bf16.msra.mxu0 0
      %475 = vmatprep.mubr.bf16.mxu0 0
      %476 = vmatmul.mubr.bf16.gmra.mrb[0].mxu0 %v438
      %v477 = vpop.f32.mrb[0].mxu0
      %v478 = vadd.f32 0.0, %v477
      %v479 = vpop.f32.mrb[0].mxu0
      %v480 = vpop.f32.mrb[0].mxu0
      %v481 = vpop.f32.mrb[0].mxu0
      %482 = vdwg.mxu0
      %v483 = vadd.f32 %v415, %v478
      %s484 = scalar_lea.vmem %s2, 3
      %v485 = vld [vmem:[%s484] sm:$0x1]
      %v487 = vlaneseq
      %v488 = vshrl.u32 %v487, 7
      %v489 = vsub.s32 0, %v488
      %v490 = vrot.slane %v485, %v489
      %491 = vrot.lane.b32.xlu0 %v490, 47
      %v492 = vpop.permute.xlu0 %491
      %v494 = vmul.f32 %v293, %v492
      %v495 = vpack.c.bf16 %v494, %v494
      %s496 = scalar_lea.vmem %s1, 12
      %v497 = vld [vmem:[%s496] sm:$0xf]
      %499 = vrot.lane.b32.xlu0 %v495, 81
      %v500 = vpop.permute.xlu0 %499
      %v502 = vsel %vm323, %v497, 0
      %v505 = vsel %vm327, %v500, 0
      %507 = vmatprep.subr.bf16.mxu0 0
      %508 = vmatpush1.bf16.msra.mxu0 %v505
      %509 = vmatprep.subr.bf16.mxu0 0
      %510 = vmatpush1.bf16.msra.mxu0 0
      %511 = vmatprep.subr.bf16.mxu0 0
      %512 = vmatpush1.bf16.msra.mxu0 0
      %513 = vmatprep.subr.bf16.mxu0 0
      %514 = vmatpush1.bf16.msra.mxu0 0
      %515 = vmatprep.subr.bf16.mxu0 0
      %516 = vmatpush1.bf16.msra.mxu0 0
      %517 = vmatprep.subr.bf16.mxu0 0
      %518 = vmatpush1.bf16.msra.mxu0 0
      %519 = vmatprep.subr.bf16.mxu0 0
      %520 = vmatpush1.bf16.msra.mxu0 0
      %521 = vmatprep.subr.bf16.mxu0 0
      %522 = vmatpush1.bf16.msra.mxu0 0
      %523 = vmatprep.subr.bf16.mxu0 0
      %524 = vmatpush1.bf16.msra.mxu0 0
      %525 = vmatprep.subr.bf16.mxu0 0
      %526 = vmatpush1.bf16.msra.mxu0 0
      %527 = vmatprep.subr.bf16.mxu0 0
      %528 = vmatpush1.bf16.msra.mxu0 0
      %529 = vmatprep.subr.bf16.mxu0 0
      %530 = vmatpush1.bf16.msra.mxu0 0
      %531 = vmatprep.subr.bf16.mxu0 0
      %532 = vmatpush1.bf16.msra.mxu0 0
      %533 = vmatprep.subr.bf16.mxu0 0
      %534 = vmatpush1.bf16.msra.mxu0 0
      %535 = vmatprep.subr.bf16.mxu0 0
      %536 = vmatpush1.bf16.msra.mxu0 0
      %537 = vmatprep.subr.bf16.mxu0 0
      %538 = vmatpush1.bf16.msra.mxu0 0
      %539 = vmatprep.mubr.bf16.mxu0 0
      %540 = vmatmul.mubr.bf16.gmra.mrb[0].mxu0 %v502
      %v541 = vpop.f32.mrb[0].mxu0
      %v542 = vadd.f32 0.0, %v541
      %v543 = vpop.f32.mrb[0].mxu0
      %v544 = vpop.f32.mrb[0].mxu0
      %v545 = vpop.f32.mrb[0].mxu0
      %546 = vdwg.mxu0
      %v547 = vadd.f32 %v483, %v542
      %s548 = scalar_lea.vmem %s2, 4
      %v549 = vld [vmem:[%s548] sm:$0x1]
      %v551 = vlaneseq
      %v552 = vshrl.u32 %v551, 7
      %v553 = vsub.s32 0, %v552
      %v554 = vrot.slane %v549, %v553
      %555 = vrot.lane.b32.xlu0 %v554, 48
      %v556 = vpop.permute.xlu0 %555
      %v558 = vmul.f32 %v293, %v556
      %v559 = vpack.c.bf16 %v558, %v558
      %s560 = scalar_lea.vmem %s1, 16
      %v561 = vld [vmem:[%s560] sm:$0xf]
      %563 = vrot.lane.b32.xlu0 %v559, 80
      %v564 = vpop.permute.xlu0 %563
      %v566 = vsel %vm323, %v561, 0
      %v569 = vsel %vm327, %v564, 0
      %571 = vmatprep.subr.bf16.mxu0 0
      %572 = vmatpush1.bf16.msra.mxu0 %v569
      %573 = vmatprep.subr.bf16.mxu0 0
      %574 = vmatpush1.bf16.msra.mxu0 0
      %575 = vmatprep.subr.bf16.mxu0 0
      %576 = vmatpush1.bf16.msra.mxu0 0
      %577 = vmatprep.subr.bf16.mxu0 0
      %578 = vmatpush1.bf16.msra.mxu0 0
      %579 = vmatprep.subr.bf16.mxu0 0
      %580 = vmatpush1.bf16.msra.mxu0 0
      %581 = vmatprep.subr.bf16.mxu0 0
      %582 = vmatpush1.bf16.msra.mxu0 0
      %583 = vmatprep.subr.bf16.mxu0 0
      %584 = vmatpush1.bf16.msra.mxu0 0
      %585 = vmatprep.subr.bf16.mxu0 0
      %586 = vmatpush1.bf16.msra.mxu0 0
      %587 = vmatprep.subr.bf16.mxu0 0
      %588 = vmatpush1.bf16.msra.mxu0 0
      %589 = vmatprep.subr.bf16.mxu0 0
      %590 = vmatpush1.bf16.msra.mxu0 0
      %591 = vmatprep.subr.bf16.mxu0 0
      %592 = vmatpush1.bf16.msra.mxu0 0
      %593 = vmatprep.subr.bf16.mxu0 0
      %594 = vmatpush1.bf16.msra.mxu0 0
      %595 = vmatprep.subr.bf16.mxu0 0
      %596 = vmatpush1.bf16.msra.mxu0 0
      %597 = vmatprep.subr.bf16.mxu0 0
      %598 = vmatpush1.bf16.msra.mxu0 0
      %599 = vmatprep.subr.bf16.mxu0 0
      %600 = vmatpush1.bf16.msra.mxu0 0
      %601 = vmatprep.subr.bf16.mxu0 0
      %602 = vmatpush1.bf16.msra.mxu0 0
      %603 = vmatprep.mubr.bf16.mxu0 0
      %604 = vmatmul.mubr.bf16.gmra.mrb[0].mxu0 %v566
      %v605 = vpop.f32.mrb[0].mxu0
      %v606 = vadd.f32 0.0, %v605
      %v607 = vpop.f32.mrb[0].mxu0
      %v608 = vpop.f32.mrb[0].mxu0
      %v609 = vpop.f32.mrb[0].mxu0
      %610 = vdwg.mxu0
      %v611 = vadd.f32 %v547, %v606
      %s612 = scalar_lea.vmem %s2, 5
      %v613 = vld [vmem:[%s612] sm:$0x1]
      %v615 = vlaneseq
      %v616 = vshrl.u32 %v615, 7
      %v617 = vsub.s32 0, %v616
      %v618 = vrot.slane %v613, %v617
      %619 = vrot.lane.b32.xlu0 %v618, 49
      %v620 = vpop.permute.xlu0 %619
      %v622 = vmul.f32 %v293, %v620
      %v623 = vpack.c.bf16 %v622, %v622
      %s624 = scalar_lea.vmem %s1, 20
      %v625 = vld [vmem:[%s624] sm:$0xf]
      %627 = vrot.lane.b32.xlu0 %v623, 79
      %v628 = vpop.permute.xlu0 %627
      %v630 = vsel %vm323, %v625, 0
      %v633 = vsel %vm327, %v628, 0
      %635 = vmatprep.subr.bf16.mxu0 0
      %636 = vmatpush1.bf16.msra.mxu0 %v633
      %637 = vmatprep.subr.bf16.mxu0 0
      %638 = vmatpush1.bf16.msra.mxu0 0
      %639 = vmatprep.subr.bf16.mxu0 0
      %640 = vmatpush1.bf16.msra.mxu0 0
      %641 = vmatprep.subr.bf16.mxu0 0
      %642 = vmatpush1.bf16.msra.mxu0 0
      %643 = vmatprep.subr.bf16.mxu0 0
      %644 = vmatpush1.bf16.msra.mxu0 0
      %645 = vmatprep.subr.bf16.mxu0 0
      %646 = vmatpush1.bf16.msra.mxu0 0
      %647 = vmatprep.subr.bf16.mxu0 0
      %648 = vmatpush1.bf16.msra.mxu0 0
      %649 = vmatprep.subr.bf16.mxu0 0
      %650 = vmatpush1.bf16.msra.mxu0 0
      %651 = vmatprep.subr.bf16.mxu0 0
      %652 = vmatpush1.bf16.msra.mxu0 0
      %653 = vmatprep.subr.bf16.mxu0 0
      %654 = vmatpush1.bf16.msra.mxu0 0
      %655 = vmatprep.subr.bf16.mxu0 0
      %656 = vmatpush1.bf16.msra.mxu0 0
      %657 = vmatprep.subr.bf16.mxu0 0
      %658 = vmatpush1.bf16.msra.mxu0 0
      %659 = vmatprep.subr.bf16.mxu0 0
      %660 = vmatpush1.bf16.msra.mxu0 0
      %661 = vmatprep.subr.bf16.mxu0 0
      %662 = vmatpush1.bf16.msra.mxu0 0
      %663 = vmatprep.subr.bf16.mxu0 0
      %664 = vmatpush1.bf16.msra.mxu0 0
      %665 = vmatprep.subr.bf16.mxu0 0
      %666 = vmatpush1.bf16.msra.mxu0 0
      %667 = vmatprep.mubr.bf16.mxu0 0
      %668 = vmatmul.mubr.bf16.gmra.mrb[0].mxu0 %v630
      %v669 = vpop.f32.mrb[0].mxu0
      %v670 = vadd.f32 0.0, %v669
      %v671 = vpop.f32.mrb[0].mxu0
      %v672 = vpop.f32.mrb[0].mxu0
      %v673 = vpop.f32.mrb[0].mxu0
      %674 = vdwg.mxu0
      %v675 = vadd.f32 %v611, %v670
      %s676 = scalar_lea.vmem %s2, 6
      %v677 = vld [vmem:[%s676] sm:$0x1]
      %v679 = vlaneseq
      %v680 = vshrl.u32 %v679, 7
      %v681 = vsub.s32 0, %v680
      %v682 = vrot.slane %v677, %v681
      %683 = vrot.lane.b32.xlu0 %v682, 51
      %v684 = vpop.permute.xlu0 %683
      %v686 = vmul.f32 %v293, %v684
      %v687 = vpack.c.bf16 %v686, %v686
      %s688 = scalar_lea.vmem %s1, 24
      %v689 = vld [vmem:[%s688] sm:$0xf]
      %691 = vrot.lane.b32.xlu0 %v687, 77
      %v692 = vpop.permute.xlu0 %691
      %v694 = vsel %vm323, %v689, 0
      %v697 = vsel %vm327, %v692, 0
      %699 = vmatprep.subr.bf16.mxu0 0
      %700 = vmatpush1.bf16.msra.mxu0 %v697
      %701 = vmatprep.subr.bf16.mxu0 0
      %702 = vmatpush1.bf16.msra.mxu0 0
      %703 = vmatprep.subr.bf16.mxu0 0
      %704 = vmatpush1.bf16.msra.mxu0 0
      %705 = vmatprep.subr.bf16.mxu0 0
      %706 = vmatpush1.bf16.msra.mxu0 0
      %707 = vmatprep.subr.bf16.mxu0 0
      %708 = vmatpush1.bf16.msra.mxu0 0
      %709 = vmatprep.subr.bf16.mxu0 0
      %710 = vmatpush1.bf16.msra.mxu0 0
      %711 = vmatprep.subr.bf16.mxu0 0
      %712 = vmatpush1.bf16.msra.mxu0 0
      %713 = vmatprep.subr.bf16.mxu0 0
      %714 = vmatpush1.bf16.msra.mxu0 0
      %715 = vmatprep.subr.bf16.mxu0 0
      %716 = vmatpush1.bf16.msra.mxu0 0
      %717 = vmatprep.subr.bf16.mxu0 0
      %718 = vmatpush1.bf16.msra.mxu0 0
      %719 = vmatprep.subr.bf16.mxu0 0
      %720 = vmatpush1.bf16.msra.mxu0 0
      %721 = vmatprep.subr.bf16.mxu0 0
      %722 = vmatpush1.bf16.msra.mxu0 0
      %723 = vmatprep.subr.bf16.mxu0 0
      %724 = vmatpush1.bf16.msra.mxu0 0
      %725 = vmatprep.subr.bf16.mxu0 0
      %726 = vmatpush1.bf16.msra.mxu0 0
      %727 = vmatprep.subr.bf16.mxu0 0
      %728 = vmatpush1.bf16.msra.mxu0 0
      %729 = vmatprep.subr.bf16.mxu0 0
      %730 = vmatpush1.bf16.msra.mxu0 0
      %731 = vmatprep.mubr.bf16.mxu0 0
      %732 = vmatmul.mubr.bf16.gmra.mrb[0].mxu0 %v694
      %v733 = vpop.f32.mrb[0].mxu0
      %v734 = vadd.f32 0.0, %v733
      %v735 = vpop.f32.mrb[0].mxu0
      %v736 = vpop.f32.mrb[0].mxu0
      %v737 = vpop.f32.mrb[0].mxu0
      %738 = vdwg.mxu0
      %v739 = vadd.f32 %v675, %v734
      %s740 = scalar_lea.vmem %s2, 7
      %v741 = vld [vmem:[%s740] sm:$0x1]
      %v743 = vlaneseq
      %v744 = vshrl.u32 %v743, 7
      %v745 = vsub.s32 0, %v744
      %v746 = vrot.slane %v741, %v745
      %747 = vrot.lane.b32.xlu0 %v746, 52
      %v748 = vpop.permute.xlu0 %747
      %v750 = vmul.f32 %v293, %v748
      %v751 = vpack.c.bf16 %v750, %v750
      %s752 = scalar_lea.vmem %s1, 28
      %v753 = vld [vmem:[%s752] sm:$0xf]
      %755 = vrot.lane.b32.xlu0 %v751, 76
      %v756 = vpop.permute.xlu0 %755
      %v758 = vsel %vm323, %v753, 0
      %v761 = vsel %vm327, %v756, 0
      %763 = vmatprep.subr.bf16.mxu0 0
      %764 = vmatpush1.bf16.msra.mxu0 %v761
      %765 = vmatprep.subr.bf16.mxu0 0
      %766 = vmatpush1.bf16.msra.mxu0 0
      %767 = vmatprep.subr.bf16.mxu0 0
      %768 = vmatpush1.bf16.msra.mxu0 0
      %769 = vmatprep.subr.bf16.mxu0 0
      %770 = vmatpush1.bf16.msra.mxu0 0
      %771 = vmatprep.subr.bf16.mxu0 0
      %772 = vmatpush1.bf16.msra.mxu0 0
      %773 = vmatprep.subr.bf16.mxu0 0
      %774 = vmatpush1.bf16.msra.mxu0 0
      %775 = vmatprep.subr.bf16.mxu0 0
      %776 = vmatpush1.bf16.msra.mxu0 0
      %777 = vmatprep.subr.bf16.mxu0 0
      %778 = vmatpush1.bf16.msra.mxu0 0
      %779 = vmatprep.subr.bf16.mxu0 0
      %780 = vmatpush1.bf16.msra.mxu0 0
      %781 = vmatprep.subr.bf16.mxu0 0
      %782 = vmatpush1.bf16.msra.mxu0 0
      %783 = vmatprep.subr.bf16.mxu0 0
      %784 = vmatpush1.bf16.msra.mxu0 0
      %785 = vmatprep.subr.bf16.mxu0 0
      %786 = vmatpush1.bf16.msra.mxu0 0
      %787 = vmatprep.subr.bf16.mxu0 0
      %788 = vmatpush1.bf16.msra.mxu0 0
      %789 = vmatprep.subr.bf16.mxu0 0
      %790 = vmatpush1.bf16.msra.mxu0 0
      %791 = vmatprep.subr.bf16.mxu0 0
      %792 = vmatpush1.bf16.msra.mxu0 0
      %793 = vmatprep.subr.bf16.mxu0 0
      %794 = vmatpush1.bf16.msra.mxu0 0
      %795 = vmatprep.mubr.bf16.mxu0 0
      %796 = vmatmul.mubr.bf16.gmra.mrb[0].mxu0 %v758
      %v797 = vpop.f32.mrb[0].mxu0
      %v798 = vadd.f32 0.0, %v797
      %v799 = vpop.f32.mrb[0].mxu0
      %v800 = vpop.f32.mrb[0].mxu0
      %v801 = vpop.f32.mrb[0].mxu0
      %802 = vdwg.mxu0
      %v803 = vadd.f32 %v739, %v798
      %s804 = scalar_lea.vmem %s2, 8
      %v805 = vld [vmem:[%s804] sm:$0x1]
      %v807 = vlaneseq
      %v808 = vshrl.u32 %v807, 7
      %v809 = vsub.s32 0, %v808
      %v810 = vrot.slane %v805, %v809
      %811 = vrot.lane.b32.xlu0 %v810, 53
      %v812 = vpop.permute.xlu0 %811
      %v814 = vmul.f32 %v293, %v812
      %v815 = vpack.c.bf16 %v814, %v814
      %s816 = scalar_lea.vmem %s1, 32
      %v817 = vld [vmem:[%s816] sm:$0xf]
      %819 = vrot.lane.b32.xlu0 %v815, 75
      %v820 = vpop.permute.xlu0 %819
      %v822 = vsel %vm323, %v817, 0
      %v825 = vsel %vm327, %v820, 0
      %827 = vmatprep.subr.bf16.mxu0 0
      %828 = vmatpush1.bf16.msra.mxu0 %v825
      %829 = vmatprep.subr.bf16.mxu0 0
      %830 = vmatpush1.bf16.msra.mxu0 0
      %831 = vmatprep.subr.bf16.mxu0 0
      %832 = vmatpush1.bf16.msra.mxu0 0
      %833 = vmatprep.subr.bf16.mxu0 0
      %834 = vmatpush1.bf16.msra.mxu0 0
      %835 = vmatprep.subr.bf16.mxu0 0
      %836 = vmatpush1.bf16.msra.mxu0 0
      %837 = vmatprep.subr.bf16.mxu0 0
      %838 = vmatpush1.bf16.msra.mxu0 0
      %839 = vmatprep.subr.bf16.mxu0 0
      %840 = vmatpush1.bf16.msra.mxu0 0
      %841 = vmatprep.subr.bf16.mxu0 0
      %842 = vmatpush1.bf16.msra.mxu0 0
      %843 = vmatprep.subr.bf16.mxu0 0
      %844 = vmatpush1.bf16.msra.mxu0 0
      %845 = vmatprep.subr.bf16.mxu0 0
      %846 = vmatpush1.bf16.msra.mxu0 0
      %847 = vmatprep.subr.bf16.mxu0 0
      %848 = vmatpush1.bf16.msra.mxu0 0
      %849 = vmatprep.subr.bf16.mxu0 0
      %850 = vmatpush1.bf16.msra.mxu0 0
      %851 = vmatprep.subr.bf16.mxu0 0
      %852 = vmatpush1.bf16.msra.mxu0 0
      %853 = vmatprep.subr.bf16.mxu0 0
      %854 = vmatpush1.bf16.msra.mxu0 0
      %855 = vmatprep.subr.bf16.mxu0 0
      %856 = vmatpush1.bf16.msra.mxu0 0
      %857 = vmatprep.subr.bf16.mxu0 0
      %858 = vmatpush1.bf16.msra.mxu0 0
      %859 = vmatprep.mubr.bf16.mxu0 0
      %860 = vmatmul.mubr.bf16.gmra.mrb[0].mxu0 %v822
      %v861 = vpop.f32.mrb[0].mxu0
      %v862 = vadd.f32 0.0, %v861
      %v863 = vpop.f32.mrb[0].mxu0
      %v864 = vpop.f32.mrb[0].mxu0
      %v865 = vpop.f32.mrb[0].mxu0
      %866 = vdwg.mxu0
      %v867 = vadd.f32 %v803, %v862
      %s868 = scalar_lea.vmem %s2, 9
      %v869 = vld [vmem:[%s868] sm:$0x1]
      %v871 = vlaneseq
      %v872 = vshrl.u32 %v871, 7
      %v873 = vsub.s32 0, %v872
      %v874 = vrot.slane %v869, %v873
      %875 = vrot.lane.b32.xlu0 %v874, 59
      %v876 = vpop.permute.xlu0 %875
      %v878 = vmul.f32 %v293, %v876
      %v879 = vpack.c.bf16 %v878, %v878
      %s880 = scalar_lea.vmem %s1, 36
      %v881 = vld [vmem:[%s880] sm:$0xf]
      %883 = vrot.lane.b32.xlu0 %v879, 69
      %v884 = vpop.permute.xlu0 %883
      %v886 = vsel %vm323, %v881, 0
      %v889 = vsel %vm327, %v884, 0
      %891 = vmatprep.subr.bf16.mxu0 0
      %892 = vmatpush1.bf16.msra.mxu0 %v889
      %893 = vmatprep.subr.bf16.mxu0 0
      %894 = vmatpush1.bf16.msra.mxu0 0
      %895 = vmatprep.subr.bf16.mxu0 0
      %896 = vmatpush1.bf16.msra.mxu0 0
      %897 = vmatprep.subr.bf16.mxu0 0
      %898 = vmatpush1.bf16.msra.mxu0 0
      %899 = vmatprep.subr.bf16.mxu0 0
      %900 = vmatpush1.bf16.msra.mxu0 0
      %901 = vmatprep.subr.bf16.mxu0 0
      %902 = vmatpush1.bf16.msra.mxu0 0
      %903 = vmatprep.subr.bf16.mxu0 0
      %904 = vmatpush1.bf16.msra.mxu0 0
      %905 = vmatprep.subr.bf16.mxu0 0
      %906 = vmatpush1.bf16.msra.mxu0 0
      %907 = vmatprep.subr.bf16.mxu0 0
      %908 = vmatpush1.bf16.msra.mxu0 0
      %909 = vmatprep.subr.bf16.mxu0 0
      %910 = vmatpush1.bf16.msra.mxu0 0
      %911 = vmatprep.subr.bf16.mxu0 0
      %912 = vmatpush1.bf16.msra.mxu0 0
      %913 = vmatprep.subr.bf16.mxu0 0
      %914 = vmatpush1.bf16.msra.mxu0 0
      %915 = vmatprep.subr.bf16.mxu0 0
      %916 = vmatpush1.bf16.msra.mxu0 0
      %917 = vmatprep.subr.bf16.mxu0 0
      %918 = vmatpush1.bf16.msra.mxu0 0
      %919 = vmatprep.subr.bf16.mxu0 0
      %920 = vmatpush1.bf16.msra.mxu0 0
      %921 = vmatprep.subr.bf16.mxu0 0
      %922 = vmatpush1.bf16.msra.mxu0 0
      %923 = vmatprep.mubr.bf16.mxu0 0
      %924 = vmatmul.mubr.bf16.gmra.mrb[0].mxu0 %v886
      %v925 = vpop.f32.mrb[0].mxu0
      %v926 = vadd.f32 0.0, %v925
      %v927 = vpop.f32.mrb[0].mxu0
      %v928 = vpop.f32.mrb[0].mxu0
      %v929 = vpop.f32.mrb[0].mxu0
      %930 = vdwg.mxu0
      %v931 = vadd.f32 %v867, %v926
      %s932 = scalar_lea.vmem %s2, 10
      %v933 = vld [vmem:[%s932] sm:$0x1]
      %v935 = vlaneseq
      %v936 = vshrl.u32 %v935, 7
      %v937 = vsub.s32 0, %v936
      %v938 = vrot.slane %v933, %v937
      %939 = vrot.lane.b32.xlu0 %v938, 60
      %v940 = vpop.permute.xlu0 %939
      %v942 = vmul.f32 %v293, %v940
      %v943 = vpack.c.bf16 %v942, %v942
      %s944 = scalar_lea.vmem %s1, 40
      %v945 = vld [vmem:[%s944] sm:$0xf]
      %947 = vrot.lane.b32.xlu0 %v943, 68
      %v948 = vpop.permute.xlu0 %947
      %v950 = vsel %vm323, %v945, 0
      %v953 = vsel %vm327, %v948, 0
      %955 = vmatprep.subr.bf16.mxu0 0
      %956 = vmatpush1.bf16.msra.mxu0 %v953
      %957 = vmatprep.subr.bf16.mxu0 0
      %958 = vmatpush1.bf16.msra.mxu0 0
      %959 = vmatprep.subr.bf16.mxu0 0
      %960 = vmatpush1.bf16.msra.mxu0 0
      %961 = vmatprep.subr.bf16.mxu0 0
      %962 = vmatpush1.bf16.msra.mxu0 0
      %963 = vmatprep.subr.bf16.mxu0 0
      %964 = vmatpush1.bf16.msra.mxu0 0
      %965 = vmatprep.subr.bf16.mxu0 0
      %966 = vmatpush1.bf16.msra.mxu0 0
      %967 = vmatprep.subr.bf16.mxu0 0
      %968 = vmatpush1.bf16.msra.mxu0 0
      %969 = vmatprep.subr.bf16.mxu0 0
      %970 = vmatpush1.bf16.msra.mxu0 0
      %971 = vmatprep.subr.bf16.mxu0 0
      %972 = vmatpush1.bf16.msra.mxu0 0
      %973 = vmatprep.subr.bf16.mxu0 0
      %974 = vmatpush1.bf16.msra.mxu0 0
      %975 = vmatprep.subr.bf16.mxu0 0
      %976 = vmatpush1.bf16.msra.mxu0 0
      %977 = vmatprep.subr.bf16.mxu0 0
      %978 = vmatpush1.bf16.msra.mxu0 0
      %979 = vmatprep.subr.bf16.mxu0 0
      %980 = vmatpush1.bf16.msra.mxu0 0
      %981 = vmatprep.subr.bf16.mxu0 0
      %982 = vmatpush1.bf16.msra.mxu0 0
      %983 = vmatprep.subr.bf16.mxu0 0
      %984 = vmatpush1.bf16.msra.mxu0 0
      %985 = vmatprep.subr.bf16.mxu0 0
      %986 = vmatpush1.bf16.msra.mxu0 0
      %987 = vmatprep.mubr.bf16.mxu0 0
      %988 = vmatmul.mubr.bf16.gmra.mrb[0].mxu0 %v950
      %v989 = vpop.f32.mrb[0].mxu0
      %v990 = vadd.f32 0.0, %v989
      %v991 = vpop.f32.mrb[0].mxu0
      %v992 = vpop.f32.mrb[0].mxu0
      %v993 = vpop.f32.mrb[0].mxu0
      %994 = vdwg.mxu0
      %v995 = vadd.f32 %v931, %v990
      %s996 = scalar_lea.vmem %s2, 11
      %v997 = vld [vmem:[%s996] sm:$0x1]
      %v999 = vlaneseq
      %v1000 = vshrl.u32 %v999, 7
      %v1001 = vsub.s32 0, %v1000
      %v1002 = vrot.slane %v997, %v1001
      %1003 = vrot.lane.b32.xlu0 %v1002, 61
      %v1004 = vpop.permute.xlu0 %1003
      %v1006 = vmul.f32 %v293, %v1004
      %v1007 = vpack.c.bf16 %v1006, %v1006
      %s1008 = scalar_lea.vmem %s1, 44
      %v1009 = vld [vmem:[%s1008] sm:$0xf]
      %1011 = vrot.lane.b32.xlu0 %v1007, 67
      %v1012 = vpop.permute.xlu0 %1011
      %v1014 = vsel %vm323, %v1009, 0
      %v1017 = vsel %vm327, %v1012, 0
      %1019 = vmatprep.subr.bf16.mxu0 0
      %1020 = vmatpush1.bf16.msra.mxu0 %v1017
      %1021 = vmatprep.subr.bf16.mxu0 0
      %1022 = vmatpush1.bf16.msra.mxu0 0
      %1023 = vmatprep.subr.bf16.mxu0 0
      %1024 = vmatpush1.bf16.msra.mxu0 0
      %1025 = vmatprep.subr.bf16.mxu0 0
      %1026 = vmatpush1.bf16.msra.mxu0 0
      %1027 = vmatprep.subr.bf16.mxu0 0
      %1028 = vmatpush1.bf16.msra.mxu0 0
      %1029 = vmatprep.subr.bf16.mxu0 0
      %1030 = vmatpush1.bf16.msra.mxu0 0
      %1031 = vmatprep.subr.bf16.mxu0 0
      %1032 = vmatpush1.bf16.msra.mxu0 0
      %1033 = vmatprep.subr.bf16.mxu0 0
      %1034 = vmatpush1.bf16.msra.mxu0 0
      %1035 = vmatprep.subr.bf16.mxu0 0
      %1036 = vmatpush1.bf16.msra.mxu0 0
      %1037 = vmatprep.subr.bf16.mxu0 0
      %1038 = vmatpush1.bf16.msra.mxu0 0
      %1039 = vmatprep.subr.bf16.mxu0 0
      %1040 = vmatpush1.bf16.msra.mxu0 0
      %1041 = vmatprep.subr.bf16.mxu0 0
      %1042 = vmatpush1.bf16.msra.mxu0 0
      %1043 = vmatprep.subr.bf16.mxu0 0
      %1044 = vmatpush1.bf16.msra.mxu0 0
      %1045 = vmatprep.subr.bf16.mxu0 0
      %1046 = vmatpush1.bf16.msra.mxu0 0
      %1047 = vmatprep.subr.bf16.mxu0 0
      %1048 = vmatpush1.bf16.msra.mxu0 0
      %1049 = vmatprep.subr.bf16.mxu0 0
      %1050 = vmatpush1.bf16.msra.mxu0 0
      %1051 = vmatprep.mubr.bf16.mxu0 0
      %1052 = vmatmul.mubr.bf16.gmra.mrb[0].mxu0 %v1014
      %v1053 = vpop.f32.mrb[0].mxu0
      %v1054 = vadd.f32 0.0, %v1053
      %v1055 = vpop.f32.mrb[0].mxu0
      %v1056 = vpop.f32.mrb[0].mxu0
      %v1057 = vpop.f32.mrb[0].mxu0
      %1058 = vdwg.mxu0
      %v1059 = vadd.f32 %v995, %v1054
      %s1060 = scalar_lea.vmem %s2, 12
      %v1061 = vld [vmem:[%s1060] sm:$0x1]
      %v1063 = vlaneseq
      %v1064 = vshrl.u32 %v1063, 7
      %v1065 = vsub.s32 0, %v1064
      %v1066 = vrot.slane %v1061, %v1065
      %1067 = vrot.lane.b32.xlu0 %v1066, 63
      %v1068 = vpop.permute.xlu0 %1067
      %v1070 = vmul.f32 %v293, %v1068
      %v1071 = vpack.c.bf16 %v1070, %v1070
      %s1072 = scalar_lea.vmem %s1, 48
      %v1073 = vld [vmem:[%s1072] sm:$0xf]
      %1075 = vrot.lane.b32.xlu0 %v1071, 65
      %v1076 = vpop.permute.xlu0 %1075
      %v1078 = vsel %vm323, %v1073, 0
      %v1081 = vsel %vm327, %v1076, 0
      %1083 = vmatprep.subr.bf16.mxu0 0
      %1084 = vmatpush1.bf16.msra.mxu0 %v1081
      %1085 = vmatprep.subr.bf16.mxu0 0
      %1086 = vmatpush1.bf16.msra.mxu0 0
      %1087 = vmatprep.subr.bf16.mxu0 0
      %1088 = vmatpush1.bf16.msra.mxu0 0
      %1089 = vmatprep.subr.bf16.mxu0 0
      %1090 = vmatpush1.bf16.msra.mxu0 0
      %1091 = vmatprep.subr.bf16.mxu0 0
      %1092 = vmatpush1.bf16.msra.mxu0 0
      %1093 = vmatprep.subr.bf16.mxu0 0
      %1094 = vmatpush1.bf16.msra.mxu0 0
      %1095 = vmatprep.subr.bf16.mxu0 0
      %1096 = vmatpush1.bf16.msra.mxu0 0
      %1097 = vmatprep.subr.bf16.mxu0 0
      %1098 = vmatpush1.bf16.msra.mxu0 0
      %1099 = vmatprep.subr.bf16.mxu0 0
      %1100 = vmatpush1.bf16.msra.mxu0 0
      %1101 = vmatprep.subr.bf16.mxu0 0
      %1102 = vmatpush1.bf16.msra.mxu0 0
      %1103 = vmatprep.subr.bf16.mxu0 0
      %1104 = vmatpush1.bf16.msra.mxu0 0
      %1105 = vmatprep.subr.bf16.mxu0 0
      %1106 = vmatpush1.bf16.msra.mxu0 0
      %1107 = vmatprep.subr.bf16.mxu0 0
      %1108 = vmatpush1.bf16.msra.mxu0 0
      %1109 = vmatprep.subr.bf16.mxu0 0
      %1110 = vmatpush1.bf16.msra.mxu0 0
      %1111 = vmatprep.subr.bf16.mxu0 0
      %1112 = vmatpush1.bf16.msra.mxu0 0
      %1113 = vmatprep.subr.bf16.mxu0 0
      %1114 = vmatpush1.bf16.msra.mxu0 0
      %1115 = vmatprep.mubr.bf16.mxu0 0
      %1116 = vmatmul.mubr.bf16.gmra.mrb[0].mxu0 %v1078
      %v1117 = vpop.f32.mrb[0].mxu0
      %v1118 = vadd.f32 0.0, %v1117
      %v1119 = vpop.f32.mrb[0].mxu0
      %v1120 = vpop.f32.mrb[0].mxu0
      %v1121 = vpop.f32.mrb[0].mxu0
      %1122 = vdwg.mxu0
      %v1123 = vadd.f32 %v1059, %v1118
      %s1124 = scalar_lea.vmem %s2, 13
      %v1125 = vld [vmem:[%s1124] sm:$0x1]
      %v1127 = vlaneseq
      %v1128 = vshrl.u32 %v1127, 7
      %v1129 = vsub.s32 0, %v1128
      %v1130 = vrot.slane %v1125, %v1129
      %v1132 = vmul.f32 %v286, %v1130
      %v1133 = vpack.c.bf16 %v1132, %v1132
      %s1134 = scalar_lea.vmem %s1, 52
      %v1135 = vld [vmem:[%s1134] sm:$0xf]
      %v1137 = vsel %vm323, %v1135, 0
      %v1140 = vsel %vm327, %v1133, 0
      %1142 = vmatprep.subr.bf16.mxu0 0
      %1143 = vmatpush1.bf16.msra.mxu0 %v1140
      %1144 = vmatprep.subr.bf16.mxu0 0
      %1145 = vmatpush1.bf16.msra.mxu0 0
      %1146 = vmatprep.subr.bf16.mxu0 0
      %1147 = vmatpush1.bf16.msra.mxu0 0
      %1148 = vmatprep.subr.bf16.mxu0 0
      %1149 = vmatpush1.bf16.msra.mxu0 0
      %1150 = vmatprep.subr.bf16.mxu0 0
      %1151 = vmatpush1.bf16.msra.mxu0 0
      %1152 = vmatprep.subr.bf16.mxu0 0
      %1153 = vmatpush1.bf16.msra.mxu0 0
      %1154 = vmatprep.subr.bf16.mxu0 0
      %1155 = vmatpush1.bf16.msra.mxu0 0
      %1156 = vmatprep.subr.bf16.mxu0 0
      %1157 = vmatpush1.bf16.msra.mxu0 0
      %1158 = vmatprep.subr.bf16.mxu0 0
      %1159 = vmatpush1.bf16.msra.mxu0 0
      %1160 = vmatprep.subr.bf16.mxu0 0
      %1161 = vmatpush1.bf16.msra.mxu0 0
      %1162 = vmatprep.subr.bf16.mxu0 0
      %1163 = vmatpush1.bf16.msra.mxu0 0
      %1164 = vmatprep.subr.bf16.mxu0 0
      %1165 = vmatpush1.bf16.msra.mxu0 0
      %1166 = vmatprep.subr.bf16.mxu0 0
      %1167 = vmatpush1.bf16.msra.mxu0 0
      %1168 = vmatprep.subr.bf16.mxu0 0
      %1169 = vmatpush1.bf16.msra.mxu0 0
      %1170 = vmatprep.subr.bf16.mxu0 0
      %1171 = vmatpush1.bf16.msra.mxu0 0
      %1172 = vmatprep.subr.bf16.mxu0 0
      %1173 = vmatpush1.bf16.msra.mxu0 0
      %1174 = vmatprep.mubr.bf16.mxu0 0
      %1175 = vmatmul.mubr.bf16.gmra.mrb[0].mxu0 %v1137
      %v1176 = vpop.f32.mrb[0].mxu0
      %v1177 = vadd.f32 0.0, %v1176
      %v1178 = vpop.f32.mrb[0].mxu0
      %v1179 = vpop.f32.mrb[0].mxu0
      %v1180 = vpop.f32.mrb[0].mxu0
      %1181 = vdwg.mxu0
      %v1182 = vadd.f32 %v1123, %v1177
      %s1183 = scalar_lea.vmem %s2, 14
      %v1184 = vld [vmem:[%s1183] sm:$0x1]
      %v1186 = vlaneseq
      %v1187 = vshrl.u32 %v1186, 7
      %v1188 = vsub.s32 0, %v1187
      %v1189 = vrot.slane %v1184, %v1188
      %1190 = vrot.lane.b32.xlu0 %v1189, 1
      %v1191 = vpop.permute.xlu0 %1190
      %v1193 = vmul.f32 %v293, %v1191
      %v1194 = vpack.c.bf16 %v1193, %v1193
      %s1195 = scalar_lea.vmem %s1, 56
      %v1196 = vld [vmem:[%s1195] sm:$0xf]
      %1198 = vrot.lane.b32.xlu0 %v1194, 127
      %v1199 = vpop.permute.xlu0 %1198
      %v1201 = vsel %vm323, %v1196, 0
      %v1204 = vsel %vm327, %v1199, 0
      %1206 = vmatprep.subr.bf16.mxu0 0
      %1207 = vmatpush1.bf16.msra.mxu0 %v1204
      %1208 = vmatprep.subr.bf16.mxu0 0
      %1209 = vmatpush1.bf16.msra.mxu0 0
      %1210 = vmatprep.subr.bf16.mxu0 0
      %1211 = vmatpush1.bf16.msra.mxu0 0
      %1212 = vmatprep.subr.bf16.mxu0 0
      %1213 = vmatpush1.bf16.msra.mxu0 0
      %1214 = vmatprep.subr.bf16.mxu0 0
      %1215 = vmatpush1.bf16.msra.mxu0 0
      %1216 = vmatprep.subr.bf16.mxu0 0
      %1217 = vmatpush1.bf16.msra.mxu0 0
      %1218 = vmatprep.subr.bf16.mxu0 0
      %1219 = vmatpush1.bf16.msra.mxu0 0
      %1220 = vmatprep.subr.bf16.mxu0 0
      %1221 = vmatpush1.bf16.msra.mxu0 0
      %1222 = vmatprep.subr.bf16.mxu0 0
      %1223 = vmatpush1.bf16.msra.mxu0 0
      %1224 = vmatprep.subr.bf16.mxu0 0
      %1225 = vmatpush1.bf16.msra.mxu0 0
      %1226 = vmatprep.subr.bf16.mxu0 0
      %1227 = vmatpush1.bf16.msra.mxu0 0
      %1228 = vmatprep.subr.bf16.mxu0 0
      %1229 = vmatpush1.bf16.msra.mxu0 0
      %1230 = vmatprep.subr.bf16.mxu0 0
      %1231 = vmatpush1.bf16.msra.mxu0 0
      %1232 = vmatprep.subr.bf16.mxu0 0
      %1233 = vmatpush1.bf16.msra.mxu0 0
      %1234 = vmatprep.subr.bf16.mxu0 0
      %1235 = vmatpush1.bf16.msra.mxu0 0
      %1236 = vmatprep.subr.bf16.mxu0 0
      %1237 = vmatpush1.bf16.msra.mxu0 0
      %1238 = vmatprep.mubr.bf16.mxu0 0
      %1239 = vmatmul.mubr.bf16.gmra.mrb[0].mxu0 %v1201
      %v1240 = vpop.f32.mrb[0].mxu0
      %v1241 = vadd.f32 0.0, %v1240
      %v1242 = vpop.f32.mrb[0].mxu0
      %v1243 = vpop.f32.mrb[0].mxu0
      %v1244 = vpop.f32.mrb[0].mxu0
      %1245 = vdwg.mxu0
      %v1246 = vadd.f32 %v1182, %v1241
      %s1247 = scalar_lea.vmem %s2, 15
      %v1248 = vld [vmem:[%s1247] sm:$0x1]
      %v1250 = vlaneseq
      %v1251 = vshrl.u32 %v1250, 7
      %v1252 = vsub.s32 0, %v1251
      %v1253 = vrot.slane %v1248, %v1252
      %1254 = vrot.lane.b32.xlu0 %v1253, 3
      %v1255 = vpop.permute.xlu0 %1254
      %v1257 = vmul.f32 %v293, %v1255
      %v1258 = vpack.c.bf16 %v1257, %v1257
      %s1259 = scalar_lea.vmem %s1, 60
      %v1260 = vld [vmem:[%s1259] sm:$0xf]
      %1262 = vrot.lane.b32.xlu0 %v1258, 125
      %v1263 = vpop.permute.xlu0 %1262
      %v1265 = vsel %vm323, %v1260, 0
      %v1268 = vsel %vm327, %v1263, 0
      %1270 = vmatprep.subr.bf16.mxu0 0
      %1271 = vmatpush1.bf16.msra.mxu0 %v1268
      %1272 = vmatprep.subr.bf16.mxu0 0
      %1273 = vmatpush1.bf16.msra.mxu0 0
      %1274 = vmatprep.subr.bf16.mxu0 0
      %1275 = vmatpush1.bf16.msra.mxu0 0
      %1276 = vmatprep.subr.bf16.mxu0 0
      %1277 = vmatpush1.bf16.msra.mxu0 0
      %1278 = vmatprep.subr.bf16.mxu0 0
      %1279 = vmatpush1.bf16.msra.mxu0 0
      %1280 = vmatprep.subr.bf16.mxu0 0
      %1281 = vmatpush1.bf16.msra.mxu0 0
      %1282 = vmatprep.subr.bf16.mxu0 0
      %1283 = vmatpush1.bf16.msra.mxu0 0
      %1284 = vmatprep.subr.bf16.mxu0 0
      %1285 = vmatpush1.bf16.msra.mxu0 0
      %1286 = vmatprep.subr.bf16.mxu0 0
      %1287 = vmatpush1.bf16.msra.mxu0 0
      %1288 = vmatprep.subr.bf16.mxu0 0
      %1289 = vmatpush1.bf16.msra.mxu0 0
      %1290 = vmatprep.subr.bf16.mxu0 0
      %1291 = vmatpush1.bf16.msra.mxu0 0
      %1292 = vmatprep.subr.bf16.mxu0 0
      %1293 = vmatpush1.bf16.msra.mxu0 0
      %1294 = vmatprep.subr.bf16.mxu0 0
      %1295 = vmatpush1.bf16.msra.mxu0 0
      %1296 = vmatprep.subr.bf16.mxu0 0
      %1297 = vmatpush1.bf16.msra.mxu0 0
      %1298 = vmatprep.subr.bf16.mxu0 0
      %1299 = vmatpush1.bf16.msra.mxu0 0
      %1300 = vmatprep.subr.bf16.mxu0 0
      %1301 = vmatpush1.bf16.msra.mxu0 0
      %1302 = vmatprep.mubr.bf16.mxu0 0
      %1303 = vmatmul.mubr.bf16.gmra.mrb[0].mxu0 %v1265
      %v1304 = vpop.f32.mrb[0].mxu0
      %v1305 = vadd.f32 0.0, %v1304
      %v1306 = vpop.f32.mrb[0].mxu0
      %v1307 = vpop.f32.mrb[0].mxu0
      %v1308 = vpop.f32.mrb[0].mxu0
      %1309 = vdwg.mxu0
      %v1310 = vadd.f32 %v1246, %v1305
      %s1311 = scalar_lea.vmem %s2, 16
      %v1312 = vld [vmem:[%s1311] sm:$0x1]
      %v1314 = vlaneseq
      %v1315 = vshrl.u32 %v1314, 7
      %v1316 = vsub.s32 0, %v1315
      %v1317 = vrot.slane %v1312, %v1316
      %1318 = vrot.lane.b32.xlu0 %v1317, 4
      %v1319 = vpop.permute.xlu0 %1318
      %v1321 = vmul.f32 %v293, %v1319
      %v1322 = vpack.c.bf16 %v1321, %v1321
      %s1323 = scalar_lea.vmem %s1, 64
      %v1324 = vld [vmem:[%s1323] sm:$0xf]
      %1326 = vrot.lane.b32.xlu0 %v1322, 124
      %v1327 = vpop.permute.xlu0 %1326
      %v1329 = vsel %vm323, %v1324, 0
      %v1332 = vsel %vm327, %v1327, 0
      %1334 = vmatprep.subr.bf16.mxu0 0
      %1335 = vmatpush1.bf16.msra.mxu0 %v1332
      %1336 = vmatprep.subr.bf16.mxu0 0
      %1337 = vmatpush1.bf16.msra.mxu0 0
      %1338 = vmatprep.subr.bf16.mxu0 0
      %1339 = vmatpush1.bf16.msra.mxu0 0
      %1340 = vmatprep.subr.bf16.mxu0 0
      %1341 = vmatpush1.bf16.msra.mxu0 0
      %1342 = vmatprep.subr.bf16.mxu0 0
      %1343 = vmatpush1.bf16.msra.mxu0 0
      %1344 = vmatprep.subr.bf16.mxu0 0
      %1345 = vmatpush1.bf16.msra.mxu0 0
      %1346 = vmatprep.subr.bf16.mxu0 0
      %1347 = vmatpush1.bf16.msra.mxu0 0
      %1348 = vmatprep.subr.bf16.mxu0 0
      %1349 = vmatpush1.bf16.msra.mxu0 0
      %1350 = vmatprep.subr.bf16.mxu0 0
      %1351 = vmatpush1.bf16.msra.mxu0 0
      %1352 = vmatprep.subr.bf16.mxu0 0
      %1353 = vmatpush1.bf16.msra.mxu0 0
      %1354 = vmatprep.subr.bf16.mxu0 0
      %1355 = vmatpush1.bf16.msra.mxu0 0
      %1356 = vmatprep.subr.bf16.mxu0 0
      %1357 = vmatpush1.bf16.msra.mxu0 0
      %1358 = vmatprep.subr.bf16.mxu0 0
      %1359 = vmatpush1.bf16.msra.mxu0 0
      %1360 = vmatprep.subr.bf16.mxu0 0
      %1361 = vmatpush1.bf16.msra.mxu0 0
      %1362 = vmatprep.subr.bf16.mxu0 0
      %1363 = vmatpush1.bf16.msra.mxu0 0
      %1364 = vmatprep.subr.bf16.mxu0 0
      %1365 = vmatpush1.bf16.msra.mxu0 0
      %1366 = vmatprep.mubr.bf16.mxu0 0
      %1367 = vmatmul.mubr.bf16.gmra.mrb[0].mxu0 %v1329
      %v1368 = vpop.f32.mrb[0].mxu0
      %v1369 = vadd.f32 0.0, %v1368
      %v1370 = vpop.f32.mrb[0].mxu0
      %v1371 = vpop.f32.mrb[0].mxu0
      %v1372 = vpop.f32.mrb[0].mxu0
      %1373 = vdwg.mxu0
      %v1374 = vadd.f32 %v1310, %v1369
      %s1375 = scalar_lea.vmem %s2, 17
      %v1376 = vld [vmem:[%s1375] sm:$0x1]
      %v1378 = vlaneseq
      %v1379 = vshrl.u32 %v1378, 7
      %v1380 = vsub.s32 0, %v1379
      %v1381 = vrot.slane %v1376, %v1380
      %1382 = vrot.lane.b32.xlu0 %v1381, 5
      %v1383 = vpop.permute.xlu0 %1382
      %v1385 = vmul.f32 %v293, %v1383
      %v1386 = vpack.c.bf16 %v1385, %v1385
      %s1387 = scalar_lea.vmem %s1, 68
      %v1388 = vld [vmem:[%s1387] sm:$0xf]
      %1390 = vrot.lane.b32.xlu0 %v1386, 123
      %v1391 = vpop.permute.xlu0 %1390
      %v1393 = vsel %vm323, %v1388, 0
      %v1396 = vsel %vm327, %v1391, 0
      %1398 = vmatprep.subr.bf16.mxu0 0
      %1399 = vmatpush1.bf16.msra.mxu0 %v1396
      %1400 = vmatprep.subr.bf16.mxu0 0
      %1401 = vmatpush1.bf16.msra.mxu0 0
      %1402 = vmatprep.subr.bf16.mxu0 0
      %1403 = vmatpush1.bf16.msra.mxu0 0
      %1404 = vmatprep.subr.bf16.mxu0 0
      %1405 = vmatpush1.bf16.msra.mxu0 0
      %1406 = vmatprep.subr.bf16.mxu0 0
      %1407 = vmatpush1.bf16.msra.mxu0 0
      %1408 = vmatprep.subr.bf16.mxu0 0
      %1409 = vmatpush1.bf16.msra.mxu0 0
      %1410 = vmatprep.subr.bf16.mxu0 0
      %1411 = vmatpush1.bf16.msra.mxu0 0
      %1412 = vmatprep.subr.bf16.mxu0 0
      %1413 = vmatpush1.bf16.msra.mxu0 0
      %1414 = vmatprep.subr.bf16.mxu0 0
      %1415 = vmatpush1.bf16.msra.mxu0 0
      %1416 = vmatprep.subr.bf16.mxu0 0
      %1417 = vmatpush1.bf16.msra.mxu0 0
      %1418 = vmatprep.subr.bf16.mxu0 0
      %1419 = vmatpush1.bf16.msra.mxu0 0
      %1420 = vmatprep.subr.bf16.mxu0 0
      %1421 = vmatpush1.bf16.msra.mxu0 0
      %1422 = vmatprep.subr.bf16.mxu0 0
      %1423 = vmatpush1.bf16.msra.mxu0 0
      %1424 = vmatprep.subr.bf16.mxu0 0
      %1425 = vmatpush1.bf16.msra.mxu0 0
      %1426 = vmatprep.subr.bf16.mxu0 0
      %1427 = vmatpush1.bf16.msra.mxu0 0
      %1428 = vmatprep.subr.bf16.mxu0 0
      %1429 = vmatpush1.bf16.msra.mxu0 0
      %1430 = vmatprep.mubr.bf16.mxu0 0
      %1431 = vmatmul.mubr.bf16.gmra.mrb[0].mxu0 %v1393
      %v1432 = vpop.f32.mrb[0].mxu0
      %v1433 = vadd.f32 0.0, %v1432
      %v1434 = vpop.f32.mrb[0].mxu0
      %v1435 = vpop.f32.mrb[0].mxu0
      %v1436 = vpop.f32.mrb[0].mxu0
      %1437 = vdwg.mxu0
      %v1438 = vadd.f32 %v1374, %v1433
      %s1439 = scalar_lea.vmem %s2, 18
      %v1440 = vld [vmem:[%s1439] sm:$0x1]
      %v1442 = vlaneseq
      %v1443 = vshrl.u32 %v1442, 7
      %v1444 = vsub.s32 0, %v1443
      %v1445 = vrot.slane %v1440, %v1444
      %1446 = vrot.lane.b32.xlu0 %v1445, 11
      %v1447 = vpop.permute.xlu0 %1446
      %v1449 = vmul.f32 %v293, %v1447
      %v1450 = vpack.c.bf16 %v1449, %v1449
      %s1451 = scalar_lea.vmem %s1, 72
      %v1452 = vld [vmem:[%s1451] sm:$0xf]
      %1454 = vrot.lane.b32.xlu0 %v1450, 117
      %v1455 = vpop.permute.xlu0 %1454
      %v1457 = vsel %vm323, %v1452, 0
      %v1460 = vsel %vm327, %v1455, 0
      %1462 = vmatprep.subr.bf16.mxu0 0
      %1463 = vmatpush1.bf16.msra.mxu0 %v1460
      %1464 = vmatprep.subr.bf16.mxu0 0
      %1465 = vmatpush1.bf16.msra.mxu0 0
      %1466 = vmatprep.subr.bf16.mxu0 0
      %1467 = vmatpush1.bf16.msra.mxu0 0
      %1468 = vmatprep.subr.bf16.mxu0 0
      %1469 = vmatpush1.bf16.msra.mxu0 0
      %1470 = vmatprep.subr.bf16.mxu0 0
      %1471 = vmatpush1.bf16.msra.mxu0 0
      %1472 = vmatprep.subr.bf16.mxu0 0
      %1473 = vmatpush1.bf16.msra.mxu0 0
      %1474 = vmatprep.subr.bf16.mxu0 0
      %1475 = vmatpush1.bf16.msra.mxu0 0
      %1476 = vmatprep.subr.bf16.mxu0 0
      %1477 = vmatpush1.bf16.msra.mxu0 0
      %1478 = vmatprep.subr.bf16.mxu0 0
      %1479 = vmatpush1.bf16.msra.mxu0 0
      %1480 = vmatprep.subr.bf16.mxu0 0
      %1481 = vmatpush1.bf16.msra.mxu0 0
      %1482 = vmatprep.subr.bf16.mxu0 0
      %1483 = vmatpush1.bf16.msra.mxu0 0
      %1484 = vmatprep.subr.bf16.mxu0 0
      %1485 = vmatpush1.bf16.msra.mxu0 0
      %1486 = vmatprep.subr.bf16.mxu0 0
      %1487 = vmatpush1.bf16.msra.mxu0 0
      %1488 = vmatprep.subr.bf16.mxu0 0
      %1489 = vmatpush1.bf16.msra.mxu0 0
      %1490 = vmatprep.subr.bf16.mxu0 0
      %1491 = vmatpush1.bf16.msra.mxu0 0
      %1492 = vmatprep.subr.bf16.mxu0 0
      %1493 = vmatpush1.bf16.msra.mxu0 0
      %1494 = vmatprep.mubr.bf16.mxu0 0
      %1495 = vmatmul.mubr.bf16.gmra.mrb[0].mxu0 %v1457
      %v1496 = vpop.f32.mrb[0].mxu0
      %v1497 = vadd.f32 0.0, %v1496
      %v1498 = vpop.f32.mrb[0].mxu0
      %v1499 = vpop.f32.mrb[0].mxu0
      %v1500 = vpop.f32.mrb[0].mxu0
      %1501 = vdwg.mxu0
      %v1502 = vadd.f32 %v1438, %v1497
      %s1503 = scalar_lea.vmem %s2, 19
      %v1504 = vld [vmem:[%s1503] sm:$0x1]
      %v1506 = vlaneseq
      %v1507 = vshrl.u32 %v1506, 7
      %v1508 = vsub.s32 0, %v1507
      %v1509 = vrot.slane %v1504, %v1508
      %1510 = vrot.lane.b32.xlu0 %v1509, 12
      %v1511 = vpop.permute.xlu0 %1510
      %v1513 = vmul.f32 %v293, %v1511
      %v1514 = vpack.c.bf16 %v1513, %v1513
      %s1515 = scalar_lea.vmem %s1, 76
      %v1516 = vld [vmem:[%s1515] sm:$0xf]
      %1518 = vrot.lane.b32.xlu0 %v1514, 116
      %v1519 = vpop.permute.xlu0 %1518
      %v1521 = vsel %vm323, %v1516, 0
      %v1524 = vsel %vm327, %v1519, 0
      %1526 = vmatprep.subr.bf16.mxu0 0
      %1527 = vmatpush1.bf16.msra.mxu0 %v1524
      %1528 = vmatprep.subr.bf16.mxu0 0
      %1529 = vmatpush1.bf16.msra.mxu0 0
      %1530 = vmatprep.subr.bf16.mxu0 0
      %1531 = vmatpush1.bf16.msra.mxu0 0
      %1532 = vmatprep.subr.bf16.mxu0 0
      %1533 = vmatpush1.bf16.msra.mxu0 0
      %1534 = vmatprep.subr.bf16.mxu0 0
      %1535 = vmatpush1.bf16.msra.mxu0 0
      %1536 = vmatprep.subr.bf16.mxu0 0
      %1537 = vmatpush1.bf16.msra.mxu0 0
      %1538 = vmatprep.subr.bf16.mxu0 0
      %1539 = vmatpush1.bf16.msra.mxu0 0
      %1540 = vmatprep.subr.bf16.mxu0 0
      %1541 = vmatpush1.bf16.msra.mxu0 0
      %1542 = vmatprep.subr.bf16.mxu0 0
      %1543 = vmatpush1.bf16.msra.mxu0 0
      %1544 = vmatprep.subr.bf16.mxu0 0
      %1545 = vmatpush1.bf16.msra.mxu0 0
      %1546 = vmatprep.subr.bf16.mxu0 0
      %1547 = vmatpush1.bf16.msra.mxu0 0
      %1548 = vmatprep.subr.bf16.mxu0 0
      %1549 = vmatpush1.bf16.msra.mxu0 0
      %1550 = vmatprep.subr.bf16.mxu0 0
      %1551 = vmatpush1.bf16.msra.mxu0 0
      %1552 = vmatprep.subr.bf16.mxu0 0
      %1553 = vmatpush1.bf16.msra.mxu0 0
      %1554 = vmatprep.subr.bf16.mxu0 0
      %1555 = vmatpush1.bf16.msra.mxu0 0
      %1556 = vmatprep.subr.bf16.mxu0 0
      %1557 = vmatpush1.bf16.msra.mxu0 0
      %1558 = vmatprep.mubr.bf16.mxu0 0
      %1559 = vmatmul.mubr.bf16.gmra.mrb[0].mxu0 %v1521
      %v1560 = vpop.f32.mrb[0].mxu0
      %v1561 = vadd.f32 0.0, %v1560
      %v1562 = vpop.f32.mrb[0].mxu0
      %v1563 = vpop.f32.mrb[0].mxu0
      %v1564 = vpop.f32.mrb[0].mxu0
      %1565 = vdwg.mxu0
      %v1566 = vadd.f32 %v1502, %v1561
      %s1567 = scalar_lea.vmem %s2, 20
      %v1568 = vld [vmem:[%s1567] sm:$0x1]
      %v1570 = vlaneseq
      %v1571 = vshrl.u32 %v1570, 7
      %v1572 = vsub.s32 0, %v1571
      %v1573 = vrot.slane %v1568, %v1572
      %1574 = vrot.lane.b32.xlu0 %v1573, 13
      %v1575 = vpop.permute.xlu0 %1574
      %v1577 = vmul.f32 %v293, %v1575
      %v1578 = vpack.c.bf16 %v1577, %v1577
      %s1579 = scalar_lea.vmem %s1, 80
      %v1580 = vld [vmem:[%s1579] sm:$0xf]
      %1582 = vrot.lane.b32.xlu0 %v1578, 115
      %v1583 = vpop.permute.xlu0 %1582
      %v1585 = vsel %vm323, %v1580, 0
      %v1588 = vsel %vm327, %v1583, 0
      %1590 = vmatprep.subr.bf16.mxu0 0
      %1591 = vmatpush1.bf16.msra.mxu0 %v1588
      %1592 = vmatprep.subr.bf16.mxu0 0
      %1593 = vmatpush1.bf16.msra.mxu0 0
      %1594 = vmatprep.subr.bf16.mxu0 0
      %1595 = vmatpush1.bf16.msra.mxu0 0
      %1596 = vmatprep.subr.bf16.mxu0 0
      %1597 = vmatpush1.bf16.msra.mxu0 0
      %1598 = vmatprep.subr.bf16.mxu0 0
      %1599 = vmatpush1.bf16.msra.mxu0 0
      %1600 = vmatprep.subr.bf16.mxu0 0
      %1601 = vmatpush1.bf16.msra.mxu0 0
      %1602 = vmatprep.subr.bf16.mxu0 0
      %1603 = vmatpush1.bf16.msra.mxu0 0
      %1604 = vmatprep.subr.bf16.mxu0 0
      %1605 = vmatpush1.bf16.msra.mxu0 0
      %1606 = vmatprep.subr.bf16.mxu0 0
      %1607 = vmatpush1.bf16.msra.mxu0 0
      %1608 = vmatprep.subr.bf16.mxu0 0
      %1609 = vmatpush1.bf16.msra.mxu0 0
      %1610 = vmatprep.subr.bf16.mxu0 0
      %1611 = vmatpush1.bf16.msra.mxu0 0
      %1612 = vmatprep.subr.bf16.mxu0 0
      %1613 = vmatpush1.bf16.msra.mxu0 0
      %1614 = vmatprep.subr.bf16.mxu0 0
      %1615 = vmatpush1.bf16.msra.mxu0 0
      %1616 = vmatprep.subr.bf16.mxu0 0
      %1617 = vmatpush1.bf16.msra.mxu0 0
      %1618 = vmatprep.subr.bf16.mxu0 0
      %1619 = vmatpush1.bf16.msra.mxu0 0
      %1620 = vmatprep.subr.bf16.mxu0 0
      %1621 = vmatpush1.bf16.msra.mxu0 0
      %1622 = vmatprep.mubr.bf16.mxu0 0
      %1623 = vmatmul.mubr.bf16.gmra.mrb[0].mxu0 %v1585
      %v1624 = vpop.f32.mrb[0].mxu0
      %v1625 = vadd.f32 0.0, %v1624
      %v1626 = vpop.f32.mrb[0].mxu0
      %v1627 = vpop.f32.mrb[0].mxu0
      %v1628 = vpop.f32.mrb[0].mxu0
      %1629 = vdwg.mxu0
      %v1630 = vadd.f32 %v1566, %v1625
      %s1631 = scalar_lea.vmem %s2, 21
      %v1632 = vld [vmem:[%s1631] sm:$0x1]
      %v1634 = vlaneseq
      %v1635 = vshrl.u32 %v1634, 7
      %v1636 = vsub.s32 0, %v1635
      %v1637 = vrot.slane %v1632, %v1636
      %1638 = vrot.lane.b32.xlu0 %v1637, 15
      %v1639 = vpop.permute.xlu0 %1638
      %v1641 = vmul.f32 %v293, %v1639
      %v1642 = vpack.c.bf16 %v1641, %v1641
      %s1643 = scalar_lea.vmem %s1, 84
      %v1644 = vld [vmem:[%s1643] sm:$0xf]
      %1646 = vrot.lane.b32.xlu0 %v1642, 113
      %v1647 = vpop.permute.xlu0 %1646
      %v1649 = vsel %vm323, %v1644, 0
      %v1652 = vsel %vm327, %v1647, 0
      %1654 = vmatprep.subr.bf16.mxu0 0
      %1655 = vmatpush1.bf16.msra.mxu0 %v1652
      %1656 = vmatprep.subr.bf16.mxu0 0
      %1657 = vmatpush1.bf16.msra.mxu0 0
      %1658 = vmatprep.subr.bf16.mxu0 0
      %1659 = vmatpush1.bf16.msra.mxu0 0
      %1660 = vmatprep.subr.bf16.mxu0 0
      %1661 = vmatpush1.bf16.msra.mxu0 0
      %1662 = vmatprep.subr.bf16.mxu0 0
      %1663 = vmatpush1.bf16.msra.mxu0 0
      %1664 = vmatprep.subr.bf16.mxu0 0
      %1665 = vmatpush1.bf16.msra.mxu0 0
      %1666 = vmatprep.subr.bf16.mxu0 0
      %1667 = vmatpush1.bf16.msra.mxu0 0
      %1668 = vmatprep.subr.bf16.mxu0 0
      %1669 = vmatpush1.bf16.msra.mxu0 0
      %1670 = vmatprep.subr.bf16.mxu0 0
      %1671 = vmatpush1.bf16.msra.mxu0 0
      %1672 = vmatprep.subr.bf16.mxu0 0
      %1673 = vmatpush1.bf16.msra.mxu0 0
      %1674 = vmatprep.subr.bf16.mxu0 0
      %1675 = vmatpush1.bf16.msra.mxu0 0
      %1676 = vmatprep.subr.bf16.mxu0 0
      %1677 = vmatpush1.bf16.msra.mxu0 0
      %1678 = vmatprep.subr.bf16.mxu0 0
      %1679 = vmatpush1.bf16.msra.mxu0 0
      %1680 = vmatprep.subr.bf16.mxu0 0
      %1681 = vmatpush1.bf16.msra.mxu0 0
      %1682 = vmatprep.subr.bf16.mxu0 0
      %1683 = vmatpush1.bf16.msra.mxu0 0
      %1684 = vmatprep.subr.bf16.mxu0 0
      %1685 = vmatpush1.bf16.msra.mxu0 0
      %1686 = vmatprep.mubr.bf16.mxu0 0
      %1687 = vmatmul.mubr.bf16.gmra.mrb[0].mxu0 %v1649
      %v1688 = vpop.f32.mrb[0].mxu0
      %v1689 = vadd.f32 0.0, %v1688
      %v1690 = vpop.f32.mrb[0].mxu0
      %v1691 = vpop.f32.mrb[0].mxu0
      %v1692 = vpop.f32.mrb[0].mxu0
      %1693 = vdwg.mxu0
      %v1694 = vadd.f32 %v1630, %v1689
      %s1695 = scalar_lea.vmem %s2, 22
      %v1696 = vld [vmem:[%s1695] sm:$0x1]
      %v1698 = vlaneseq
      %v1699 = vshrl.u32 %v1698, 7
      %v1700 = vsub.s32 0, %v1699
      %v1701 = vrot.slane %v1696, %v1700
      %1702 = vrot.lane.b32.xlu0 %v1701, 16
      %v1703 = vpop.permute.xlu0 %1702
      %v1705 = vmul.f32 %v293, %v1703
      %v1706 = vpack.c.bf16 %v1705, %v1705
      %s1707 = scalar_lea.vmem %s1, 88
      %v1708 = vld [vmem:[%s1707] sm:$0xf]
      %1710 = vrot.lane.b32.xlu0 %v1706, 112
      %v1711 = vpop.permute.xlu0 %1710
      %v1713 = vsel %vm323, %v1708, 0
      %v1716 = vsel %vm327, %v1711, 0
      %1718 = vmatprep.subr.bf16.mxu0 0
      %1719 = vmatpush1.bf16.msra.mxu0 %v1716
      %1720 = vmatprep.subr.bf16.mxu0 0
      %1721 = vmatpush1.bf16.msra.mxu0 0
      %1722 = vmatprep.subr.bf16.mxu0 0
      %1723 = vmatpush1.bf16.msra.mxu0 0
      %1724 = vmatprep.subr.bf16.mxu0 0
      %1725 = vmatpush1.bf16.msra.mxu0 0
      %1726 = vmatprep.subr.bf16.mxu0 0
      %1727 = vmatpush1.bf16.msra.mxu0 0
      %1728 = vmatprep.subr.bf16.mxu0 0
      %1729 = vmatpush1.bf16.msra.mxu0 0
      %1730 = vmatprep.subr.bf16.mxu0 0
      %1731 = vmatpush1.bf16.msra.mxu0 0
      %1732 = vmatprep.subr.bf16.mxu0 0
      %1733 = vmatpush1.bf16.msra.mxu0 0
      %1734 = vmatprep.subr.bf16.mxu0 0
      %1735 = vmatpush1.bf16.msra.mxu0 0
      %1736 = vmatprep.subr.bf16.mxu0 0
      %1737 = vmatpush1.bf16.msra.mxu0 0
      %1738 = vmatprep.subr.bf16.mxu0 0
      %1739 = vmatpush1.bf16.msra.mxu0 0
      %1740 = vmatprep.subr.bf16.mxu0 0
      %1741 = vmatpush1.bf16.msra.mxu0 0
      %1742 = vmatprep.subr.bf16.mxu0 0
      %1743 = vmatpush1.bf16.msra.mxu0 0
      %1744 = vmatprep.subr.bf16.mxu0 0
      %1745 = vmatpush1.bf16.msra.mxu0 0
      %1746 = vmatprep.subr.bf16.mxu0 0
      %1747 = vmatpush1.bf16.msra.mxu0 0
      %1748 = vmatprep.subr.bf16.mxu0 0
      %1749 = vmatpush1.bf16.msra.mxu0 0
      %1750 = vmatprep.mubr.bf16.mxu0 0
      %1751 = vmatmul.mubr.bf16.gmra.mrb[0].mxu0 %v1713
      %v1752 = vpop.f32.mrb[0].mxu0
      %v1753 = vadd.f32 0.0, %v1752
      %v1754 = vpop.f32.mrb[0].mxu0
      %v1755 = vpop.f32.mrb[0].mxu0
      %v1756 = vpop.f32.mrb[0].mxu0
      %1757 = vdwg.mxu0
      %v1758 = vadd.f32 %v1694, %v1753
      %s1759 = scalar_lea.vmem %s2, 23
      %v1760 = vld [vmem:[%s1759] sm:$0x1]
      %v1762 = vlaneseq
      %v1763 = vshrl.u32 %v1762, 7
      %v1764 = vsub.s32 0, %v1763
      %v1765 = vrot.slane %v1760, %v1764
      %1766 = vrot.lane.b32.xlu0 %v1765, 17
      %v1767 = vpop.permute.xlu0 %1766
      %v1769 = vmul.f32 %v293, %v1767
      %v1770 = vpack.c.bf16 %v1769, %v1769
      %s1771 = scalar_lea.vmem %s1, 92
      %v1772 = vld [vmem:[%s1771] sm:$0xf]
      %1774 = vrot.lane.b32.xlu0 %v1770, 111
      %v1775 = vpop.permute.xlu0 %1774
      %v1777 = vsel %vm323, %v1772, 0
      %v1780 = vsel %vm327, %v1775, 0
      %1782 = vmatprep.subr.bf16.mxu0 0
      %1783 = vmatpush1.bf16.msra.mxu0 %v1780
      %1784 = vmatprep.subr.bf16.mxu0 0
      %1785 = vmatpush1.bf16.msra.mxu0 0
      %1786 = vmatprep.subr.bf16.mxu0 0
      %1787 = vmatpush1.bf16.msra.mxu0 0
      %1788 = vmatprep.subr.bf16.mxu0 0
      %1789 = vmatpush1.bf16.msra.mxu0 0
      %1790 = vmatprep.subr.bf16.mxu0 0
      %1791 = vmatpush1.bf16.msra.mxu0 0
      %1792 = vmatprep.subr.bf16.mxu0 0
      %1793 = vmatpush1.bf16.msra.mxu0 0
      %1794 = vmatprep.subr.bf16.mxu0 0
      %1795 = vmatpush1.bf16.msra.mxu0 0
      %1796 = vmatprep.subr.bf16.mxu0 0
      %1797 = vmatpush1.bf16.msra.mxu0 0
      %1798 = vmatprep.subr.bf16.mxu0 0
      %1799 = vmatpush1.bf16.msra.mxu0 0
      %1800 = vmatprep.subr.bf16.mxu0 0
      %1801 = vmatpush1.bf16.msra.mxu0 0
      %1802 = vmatprep.subr.bf16.mxu0 0
      %1803 = vmatpush1.bf16.msra.mxu0 0
      %1804 = vmatprep.subr.bf16.mxu0 0
      %1805 = vmatpush1.bf16.msra.mxu0 0
      %1806 = vmatprep.subr.bf16.mxu0 0
      %1807 = vmatpush1.bf16.msra.mxu0 0
      %1808 = vmatprep.subr.bf16.mxu0 0
      %1809 = vmatpush1.bf16.msra.mxu0 0
      %1810 = vmatprep.subr.bf16.mxu0 0
      %1811 = vmatpush1.bf16.msra.mxu0 0
      %1812 = vmatprep.subr.bf16.mxu0 0
      %1813 = vmatpush1.bf16.msra.mxu0 0
      %1814 = vmatprep.mubr.bf16.mxu0 0
      %1815 = vmatmul.mubr.bf16.gmra.mrb[0].mxu0 %v1777
      %v1816 = vpop.f32.mrb[0].mxu0
      %v1817 = vadd.f32 0.0, %v1816
      %v1818 = vpop.f32.mrb[0].mxu0
      %v1819 = vpop.f32.mrb[0].mxu0
      %v1820 = vpop.f32.mrb[0].mxu0
      %1821 = vdwg.mxu0
      %v1822 = vadd.f32 %v1758, %v1817
      %s1823 = scalar_lea.vmem %s2, 24
      %v1824 = vld [vmem:[%s1823] sm:$0x1]
      %v1826 = vlaneseq
      %v1827 = vshrl.u32 %v1826, 7
      %v1828 = vsub.s32 0, %v1827
      %v1829 = vrot.slane %v1824, %v1828
      %1830 = vrot.lane.b32.xlu0 %v1829, 19
      %v1831 = vpop.permute.xlu0 %1830
      %v1833 = vmul.f32 %v293, %v1831
      %v1834 = vpack.c.bf16 %v1833, %v1833
      %s1835 = scalar_lea.vmem %s1, 96
      %v1836 = vld [vmem:[%s1835] sm:$0xf]
      %1838 = vrot.lane.b32.xlu0 %v1834, 109
      %v1839 = vpop.permute.xlu0 %1838
      %v1841 = vsel %vm323, %v1836, 0
      %v1844 = vsel %vm327, %v1839, 0
      %1846 = vmatprep.subr.bf16.mxu0 0
      %1847 = vmatpush1.bf16.msra.mxu0 %v1844
      %1848 = vmatprep.subr.bf16.mxu0 0
      %1849 = vmatpush1.bf16.msra.mxu0 0
      %1850 = vmatprep.subr.bf16.mxu0 0
      %1851 = vmatpush1.bf16.msra.mxu0 0
      %1852 = vmatprep.subr.bf16.mxu0 0
      %1853 = vmatpush1.bf16.msra.mxu0 0
      %1854 = vmatprep.subr.bf16.mxu0 0
      %1855 = vmatpush1.bf16.msra.mxu0 0
      %1856 = vmatprep.subr.bf16.mxu0 0
      %1857 = vmatpush1.bf16.msra.mxu0 0
      %1858 = vmatprep.subr.bf16.mxu0 0
      %1859 = vmatpush1.bf16.msra.mxu0 0
      %1860 = vmatprep.subr.bf16.mxu0 0
      %1861 = vmatpush1.bf16.msra.mxu0 0
      %1862 = vmatprep.subr.bf16.mxu0 0
      %1863 = vmatpush1.bf16.msra.mxu0 0
      %1864 = vmatprep.subr.bf16.mxu0 0
      %1865 = vmatpush1.bf16.msra.mxu0 0
      %1866 = vmatprep.subr.bf16.mxu0 0
      %1867 = vmatpush1.bf16.msra.mxu0 0
      %1868 = vmatprep.subr.bf16.mxu0 0
      %1869 = vmatpush1.bf16.msra.mxu0 0
      %1870 = vmatprep.subr.bf16.mxu0 0
      %1871 = vmatpush1.bf16.msra.mxu0 0
      %1872 = vmatprep.subr.bf16.mxu0 0
      %1873 = vmatpush1.bf16.msra.mxu0 0
      %1874 = vmatprep.subr.bf16.mxu0 0
      %1875 = vmatpush1.bf16.msra.mxu0 0
      %1876 = vmatprep.subr.bf16.mxu0 0
      %1877 = vmatpush1.bf16.msra.mxu0 0
      %1878 = vmatprep.mubr.bf16.mxu0 0
      %1879 = vmatmul.mubr.bf16.gmra.mrb[0].mxu0 %v1841
      %v1880 = vpop.f32.mrb[0].mxu0
      %v1881 = vadd.f32 0.0, %v1880
      %v1882 = vpop.f32.mrb[0].mxu0
      %v1883 = vpop.f32.mrb[0].mxu0
      %v1884 = vpop.f32.mrb[0].mxu0
      %1885 = vdwg.mxu0
      %v1886 = vadd.f32 %v1822, %v1881
      %s1887 = scalar_lea.vmem %s2, 25
      %v1888 = vld [vmem:[%s1887] sm:$0x1]
      %v1890 = vlaneseq
      %v1891 = vshrl.u32 %v1890, 7
      %v1892 = vsub.s32 0, %v1891
      %v1893 = vrot.slane %v1888, %v1892
      %1894 = vrot.lane.b32.xlu0 %v1893, 20
      %v1895 = vpop.permute.xlu0 %1894
      %v1897 = vmul.f32 %v293, %v1895
      %v1898 = vpack.c.bf16 %v1897, %v1897
      %s1899 = scalar_lea.vmem %s1, 100
      %v1900 = vld [vmem:[%s1899] sm:$0xf]
      %1902 = vrot.lane.b32.xlu0 %v1898, 108
      %v1903 = vpop.permute.xlu0 %1902
      %v1905 = vsel %vm323, %v1900, 0
      %v1908 = vsel %vm327, %v1903, 0
      %1910 = vmatprep.subr.bf16.mxu0 0
      %1911 = vmatpush1.bf16.msra.mxu0 %v1908
      %1912 = vmatprep.subr.bf16.mxu0 0
      %1913 = vmatpush1.bf16.msra.mxu0 0
      %1914 = vmatprep.subr.bf16.mxu0 0
      %1915 = vmatpush1.bf16.msra.mxu0 0
      %1916 = vmatprep.subr.bf16.mxu0 0
      %1917 = vmatpush1.bf16.msra.mxu0 0
      %1918 = vmatprep.subr.bf16.mxu0 0
      %1919 = vmatpush1.bf16.msra.mxu0 0
      %1920 = vmatprep.subr.bf16.mxu0 0
      %1921 = vmatpush1.bf16.msra.mxu0 0
      %1922 = vmatprep.subr.bf16.mxu0 0
      %1923 = vmatpush1.bf16.msra.mxu0 0
      %1924 = vmatprep.subr.bf16.mxu0 0
      %1925 = vmatpush1.bf16.msra.mxu0 0
      %1926 = vmatprep.subr.bf16.mxu0 0
      %1927 = vmatpush1.bf16.msra.mxu0 0
      %1928 = vmatprep.subr.bf16.mxu0 0
      %1929 = vmatpush1.bf16.msra.mxu0 0
      %1930 = vmatprep.subr.bf16.mxu0 0
      %1931 = vmatpush1.bf16.msra.mxu0 0
      %1932 = vmatprep.subr.bf16.mxu0 0
      %1933 = vmatpush1.bf16.msra.mxu0 0
      %1934 = vmatprep.subr.bf16.mxu0 0
      %1935 = vmatpush1.bf16.msra.mxu0 0
      %1936 = vmatprep.subr.bf16.mxu0 0
      %1937 = vmatpush1.bf16.msra.mxu0 0
      %1938 = vmatprep.subr.bf16.mxu0 0
      %1939 = vmatpush1.bf16.msra.mxu0 0
      %1940 = vmatprep.subr.bf16.mxu0 0
      %1941 = vmatpush1.bf16.msra.mxu0 0
      %1942 = vmatprep.mubr.bf16.mxu0 0
      %1943 = vmatmul.mubr.bf16.gmra.mrb[0].mxu0 %v1905
      %v1944 = vpop.f32.mrb[0].mxu0
      %v1945 = vadd.f32 0.0, %v1944
      %v1946 = vpop.f32.mrb[0].mxu0
      %v1947 = vpop.f32.mrb[0].mxu0
      %v1948 = vpop.f32.mrb[0].mxu0
      %1949 = vdwg.mxu0
      %v1950 = vadd.f32 %v1886, %v1945
      %s1951 = scalar_lea.vmem %s2, 26
      %v1952 = vld [vmem:[%s1951] sm:$0x1]
      %v1954 = vlaneseq
      %v1955 = vshrl.u32 %v1954, 7
      %v1956 = vsub.s32 0, %v1955
      %v1957 = vrot.slane %v1952, %v1956
      %1958 = vrot.lane.b32.xlu0 %v1957, 21
      %v1959 = vpop.permute.xlu0 %1958
      %v1961 = vmul.f32 %v293, %v1959
      %v1962 = vpack.c.bf16 %v1961, %v1961
      %s1963 = scalar_lea.vmem %s1, 104
      %v1964 = vld [vmem:[%s1963] sm:$0xf]
      %1966 = vrot.lane.b32.xlu0 %v1962, 107
      %v1967 = vpop.permute.xlu0 %1966
      %v1969 = vsel %vm323, %v1964, 0
      %v1972 = vsel %vm327, %v1967, 0
      %1974 = vmatprep.subr.bf16.mxu0 0
      %1975 = vmatpush1.bf16.msra.mxu0 %v1972
      %1976 = vmatprep.subr.bf16.mxu0 0
      %1977 = vmatpush1.bf16.msra.mxu0 0
      %1978 = vmatprep.subr.bf16.mxu0 0
      %1979 = vmatpush1.bf16.msra.mxu0 0
      %1980 = vmatprep.subr.bf16.mxu0 0
      %1981 = vmatpush1.bf16.msra.mxu0 0
      %1982 = vmatprep.subr.bf16.mxu0 0
      %1983 = vmatpush1.bf16.msra.mxu0 0
      %1984 = vmatprep.subr.bf16.mxu0 0
      %1985 = vmatpush1.bf16.msra.mxu0 0
      %1986 = vmatprep.subr.bf16.mxu0 0
      %1987 = vmatpush1.bf16.msra.mxu0 0
      %1988 = vmatprep.subr.bf16.mxu0 0
      %1989 = vmatpush1.bf16.msra.mxu0 0
      %1990 = vmatprep.subr.bf16.mxu0 0
      %1991 = vmatpush1.bf16.msra.mxu0 0
      %1992 = vmatprep.subr.bf16.mxu0 0
      %1993 = vmatpush1.bf16.msra.mxu0 0
      %1994 = vmatprep.subr.bf16.mxu0 0
      %1995 = vmatpush1.bf16.msra.mxu0 0
      %1996 = vmatprep.subr.bf16.mxu0 0
      %1997 = vmatpush1.bf16.msra.mxu0 0
      %1998 = vmatprep.subr.bf16.mxu0 0
      %1999 = vmatpush1.bf16.msra.mxu0 0
      %2000 = vmatprep.subr.bf16.mxu0 0
      %2001 = vmatpush1.bf16.msra.mxu0 0
      %2002 = vmatprep.subr.bf16.mxu0 0
      %2003 = vmatpush1.bf16.msra.mxu0 0
      %2004 = vmatprep.subr.bf16.mxu0 0
      %2005 = vmatpush1.bf16.msra.mxu0 0
      %2006 = vmatprep.mubr.bf16.mxu0 0
      %2007 = vmatmul.mubr.bf16.gmra.mrb[0].mxu0 %v1969
      %v2008 = vpop.f32.mrb[0].mxu0
      %v2009 = vadd.f32 0.0, %v2008
      %v2010 = vpop.f32.mrb[0].mxu0
      %v2011 = vpop.f32.mrb[0].mxu0
      %v2012 = vpop.f32.mrb[0].mxu0
      %2013 = vdwg.mxu0
      %v2014 = vadd.f32 %v1950, %v2009
      %v2015 = vld [vmem:[%s3] sm:$0xff]
      %2017 = vset.pattern.permute.xlu0 0
      %2018 = vperm.xlu0 %2017, %v2015
      %v2019 = vpop.permute.xlu0 %2018
      %v2021 = vadd.f32 %v2014, %v2019
      %vm2022 = vcmask 523264
      %2023 = vst.msk [vmem:[%s280] sm:$0xff] %vm2022, %v2021
      %v2024 = vsel %vm2022, %v2021, 0.0
      %2025 = vadd.xlane.f32.xlu0 %v2024
      %v2026 = vpop.xlane.xlu0 %2025
      %vm2027 = vcmask 7168
      %2028 = vst.msk [vmem:[%s284] sm:$0xff] %vm2027, %v2026
      %v2029 = vmul.f32 %v2021, %v2021
      %v2030 = vsel %vm2022, %v2029, 0.0
      %2031 = vadd.xlane.f32.xlu0 %v2030
      %v2032 = vpop.xlane.xlu0 %2031
      %vm2033 = vcmask 15368
      %2034 = vst.msk [vmem:[%s284] sm:$0xff] %vm2033, %v2032
      %p2035 = scmp.lt.s32.totalorder %s19, 1
      %s2036 = scalar_select %p2035, %s19, 1
      %s2037 = smul.addr %s2036, 8
      %s2038 = scalar_lea.vmem %s6, %s2037
      %p2039 = scmp.lt.s32.totalorder %s19, 1
      %s2040 = scalar_select %p2039, %s19, 1
      %s2041 = smul.addr %s2040, 8
      %s2042 = scalar_lea.vmem %s7, %s2041
      // Predicated region
      $region45: #{pvconv_forward.6} parent=43 // pred_check
        %p2043 = pneg %p168
      $region46: #{pvconv_forward.6} parent=43 // pred_check_branch
        %2045 = sbr.rel (%p2043) target = $region48
      $region47: #{pvconv_forward.6} parent=43 // pred_region
        _
      $region48: #{pvconv_forward.6} parent=43 // pred_fallthru
        _
      // Predicated region
      $region49: #{pvconv_forward.6} parent=43 // pred_check
        %p2046 = pneg %p194
      $region50: #{pvconv_forward.6} parent=43 // pred_check_branch
        %2048 = sbr.rel (%p2046) target = $region52
      $region51: #{pvconv_forward.6} parent=43 // pred_region
        _
      $region52: #{pvconv_forward.6} parent=43 // pred_fallthru
        _
    $region44: #{pvconv_forward.6} parent=5 // pred_fallthru
      _
    %p2049 = scmp.le.s32.totalorder 2, %s14
    // Predicated region
    $region53: #{pvconv_forward.6} parent=5 // pred_check
      %p2050 = pneg %p2049
    $region54: #{pvconv_forward.6} parent=5 // pred_check_branch
      %2052 = sbr.rel (%p2050) target = $region56
    $region55: #{pvconv_forward.6} parent=5 // pred_region
      %s2053 = ssub.s32 %s14, 2
      // Predicated region
      $region57: #{pvconv_forward.6} parent=55 // pred_check
        %p2054 = pneg %p174
      $region58: #{pvconv_forward.6} parent=55 // pred_check_branch
        %2056 = sbr.rel (%p2054) target = $region60
      $region59: #{pvconv_forward.6} parent=55 // pred_region
        %p2057 = scmp.lt.s32.totalorder %s20, 1
        %s2058 = scalar_select %p2057, %s20, 1
        %s2059 = smul.addr %s2058, 8
        %s2060 = scalar_lea.vmem %s6, %s2059
      $region60: #{pvconv_forward.6} parent=55 // pred_fallthru
        _
      // Predicated region
      $region61: #{pvconv_forward.6} parent=55 // pred_check
        %p2061 = pneg %p200
      $region62: #{pvconv_forward.6} parent=55 // pred_check_branch
        %2063 = sbr.rel (%p2061) target = $region64
      $region63: #{pvconv_forward.6} parent=55 // pred_region
        %p2064 = scmp.lt.s32.totalorder %s20, 1
        %s2065 = scalar_select %p2064, %s20, 1
        %s2066 = smul.addr %s2065, 8
        %s2067 = scalar_lea.vmem %s7, %s2066
      $region64: #{pvconv_forward.6} parent=55 // pred_fallthru
        _
    $region56: #{pvconv_forward.6} parent=5 // pred_fallthru
      _
  $region6: #{pvconv_forward.6} parent=0 // loop_footer
    %s18 = sadd.s32 1, %s14
  $region7: #{pvconv_forward.6} parent=0 // loop_footer_branch
    %13 = sbr.rel target = $region3
  $region8: #{pvconv_forward.6} parent=0 // loop_exit
    _

// kernel: pvconv_forward.9
$region0: #{pvconv_forward.9}
  #allocation0 [shape = 'u32[]', space=smem, size = 0x4, offset = 0x4, fixed_abs, tag = 'smem constant byte address 0x4 - core index']
  #allocation1 [shape = 'u32[144,128]{1,0:T(1,128)}', space=vmem, size = 0x12000, scoped, tag = 'internal scratch']
  %s0 = inlined_call_operand.vmem [shape: f32[2,8,64], index: 0, kind: input, shape index: {}]
  %s1 = inlined_call_operand.vmem [shape: f32[8,1], index: 1, kind: input, shape index: {}]
  %s2 = inlined_call_operand.vmem [shape: f32[8,1], index: 2, kind: input, shape index: {}]
  %s3 = inlined_call_operand.vmem [shape: s32[2,8,64], index: 3, kind: input, shape index: {}]
  %s4 = inlined_call_operand.vmem [shape: f32[2,8,64], index: 4, kind: input, shape index: {}]
  %s5 = inlined_call_operand.vmem [shape: f32[2,8,64], index: 5, kind: input, shape index: {}]
  %s6 = inlined_call_operand.vmem [shape: f32[8,1], index: 6, kind: input, shape index: {}]
  %s7 = inlined_call_operand.vmem [shape: f32[8,1], index: 7, kind: input, shape index: {}]
  %s8 = inlined_call_operand.hbm [shape: f32[2,8,64], index: 8, kind: output, shape index: {}]
  %s9 = sld [smem:[#allocation0]]
  $region65: #{pvconv_forward.9} parent=0
    _
  %s11 = ssub.s32 1, %s9
  %s12 = scalar_select 0, %s11, %s9
  $region1: #{pvconv_forward.9} parent=0
    #allocation2 [shape = 'u8[8192]{0}', space=vmem, size = 0x2000, scoped, tag = 'output window, operand 0']
    #allocation3 [shape = 's32[2]{0}', space=sflag, size = 0x8, scoped, tag = 'scoped memory for pvconv_forward.9']
    %13 = vsyncpa [#allocation3], 0
    %s14 = scalar_lea.sflag [#allocation3], 1
    %15 = vsyncpa %s14, 0
    loop: start=0, step=1, limit=4
    $region2: #{pvconv_forward.9} parent=1 // loop_pre_header
      _
    $region3: #{pvconv_forward.9} parent=1 // loop_header
      %s17 = sphi 0, %s21
      %p18 = scmp.ge.s32.totalorder %s17, 4
      %s24 = sphi 0, %s36
      %s25 = sphi 0, %s32
      %s26 = sphi 0, %s24
      %s27 = sphi 0, %s25
      %s28 = sphi 0, %s26
      %s29 = sphi 0, %s27
      %s39 = sphi 0, %s41
      %s42 = sphi 0, %s39
      %s43 = sphi 0, %s42
      %s59 = sphi 0, %s43
      %s63 = sphi 0, %s63
      %s65 = sphi 0, %s63
      %s66 = sphi 0, %s65
      %s80 = sphi 0, %s66
      %s84 = sphi 0, %s84
      %s86 = sphi 0, %s84
      %s87 = sphi 0, %s86
      %s101 = sphi 0, %s87
      %s109 = sphi 0, %s111
      %s112 = sphi 0, %s109
      %s113 = sphi 0, %s112
      %s129 = sphi 0, %s113
      %s137 = sphi 0, %s139
      %s140 = sphi 0, %s137
      %s141 = sphi 0, %s140
      %s157 = sphi 0, %s141
      %s165 = sphi 0, %s167
      %s168 = sphi 0, %s165
      %s169 = sphi 0, %s168
      %s185 = sphi 0, %s169
      %s189 = sphi 0, %s189
      %s191 = sphi 0, %s189
      %s192 = sphi 0, %s191
      %s206 = sphi 0, %s192
      %s210 = sphi 0, %s210
      %s212 = sphi 0, %s210
      %s213 = sphi 0, %s212
      %s227 = sphi 0, %s213
      %s235 = sphi 0, %s237
      %s238 = sphi 0, %s235
      %s239 = sphi 0, %s238
      %s255 = sphi 0, %s239
    $region4: #{pvconv_forward.9} parent=1 // loop_header_branch
      %20 = sbr.rel (%p18) target = $region8
    $region5: #{pvconv_forward.9} parent=1 // loop_body
      %s22 = ssub.s32 %s17, 1
      %s23 = ssub.s32 %s17, 2
      %s30 = sadd.s32 1, %s25
      %p31 = scmp.ge.s32.totalorder %s30, 1
      %s32 = scalar_select %p31, 0, %s30
      %s33 = sadd.s32 1, %s24
      %s34 = scalar_select %p31, %s33, %s24
      %p35 = scmp.ge.s32.totalorder %s34, 2
      %s36 = scalar_select %p35, 0, %s34
      %s37 = ssub.s32 %s24, %s36
      %p38 = scmp.eq.s32.totalorder %s37, 0
      %s40 = sadd.s32 %s39, 1
      %s41 = scalar_select %p38, %s39, %s40
      %p44 = pneg %p38
      %p45 = scmp.eq.s32.totalorder %s17, 1
      %p46 = por %p44, %p45
      %p47 = scmp.ne.s32.totalorder %s39, %s42
      %p48 = scmp.eq.s32.totalorder %s17, 0
      %p49 = por %p47, %p48
      %p50 = scmp.ne.s32.totalorder %s39, %s42
      %p51 = scmp.eq.s32.totalorder %s22, 1
      %p52 = por %p50, %p51
      %p53 = scmp.ne.s32.totalorder %s42, %s43
      %p54 = scmp.eq.s32.totalorder %s22, 0
      %p55 = por %p53, %p54
      %p56 = scmp.ne.s32.totalorder %s42, %s43
      %p57 = scmp.eq.s32.totalorder %s23, 1
      %p58 = por %p56, %p57
      %p60 = scmp.ne.s32.totalorder %s43, %s59
      %p61 = scmp.eq.s32.totalorder %s23, 0
      %p62 = por %p60, %p61
      %s64 = sadd.s32 %s63, 1
      %p67 = scmp.eq.s32.totalorder %s17, 1
      %p68 = scmp.ne.s32.totalorder %s63, %s65
      %p69 = scmp.eq.s32.totalorder %s17, 0
      %p70 = por %p68, %p69
      %p71 = scmp.ne.s32.totalorder %s63, %s65
      %p72 = scmp.eq.s32.totalorder %s22, 1
      %p73 = por %p71, %p72
      %p74 = scmp.ne.s32.totalorder %s65, %s66
      %p75 = scmp.eq.s32.totalorder %s22, 0
      %p76 = por %p74, %p75
      %p77 = scmp.ne.s32.totalorder %s65, %s66
      %p78 = scmp.eq.s32.totalorder %s23, 1
      %p79 = por %p77, %p78
      %p81 = scmp.ne.s32.totalorder %s66, %s80
      %p82 = scmp.eq.s32.totalorder %s23, 0
      %p83 = por %p81, %p82
      %s85 = sadd.s32 %s84, 1
      %p88 = scmp.eq.s32.totalorder %s17, 1
      %p89 = scmp.ne.s32.totalorder %s84, %s86
      %p90 = scmp.eq.s32.totalorder %s17, 0
      %p91 = por %p89, %p90
      %p92 = scmp.ne.s32.totalorder %s84, %s86
      %p93 = scmp.eq.s32.totalorder %s22, 1
      %p94 = por %p92, %p93
      %p95 = scmp.ne.s32.totalorder %s86, %s87
      %p96 = scmp.eq.s32.totalorder %s22, 0
      %p97 = por %p95, %p96
      %p98 = scmp.ne.s32.totalorder %s86, %s87
      %p99 = scmp.eq.s32.totalorder %s23, 1
      %p100 = por %p98, %p99
      %p102 = scmp.ne.s32.totalorder %s87, %s101
      %p103 = scmp.eq.s32.totalorder %s23, 0
      %p104 = por %p102, %p103
      %s105 = ssub.s32 %s24, %s36
      %s106 = ssub.s32 %s25, %s32
      %s107 = sor.u32 %s105, %s106
      %p108 = scmp.eq.s32.totalorder %s107, 0
      %s110 = sadd.s32 %s109, 1
      %s111 = scalar_select %p108, %s109, %s110
      %p114 = pneg %p108
      %p115 = scmp.eq.s32.totalorder %s17, 1
      %p116 = por %p114, %p115
      %p117 = scmp.ne.s32.totalorder %s109, %s112
      %p118 = scmp.eq.s32.totalorder %s17, 0
      %p119 = por %p117, %p118
      %p120 = scmp.ne.s32.totalorder %s109, %s112
      %p121 = scmp.eq.s32.totalorder %s22, 1
      %p122 = por %p120, %p121
      %p123 = scmp.ne.s32.totalorder %s112, %s113
      %p124 = scmp.eq.s32.totalorder %s22, 0
      %p125 = por %p123, %p124
      %p126 = scmp.ne.s32.totalorder %s112, %s113
      %p127 = scmp.eq.s32.totalorder %s23, 1
      %p128 = por %p126, %p127
      %p130 = scmp.ne.s32.totalorder %s113, %s129
      %p131 = scmp.eq.s32.totalorder %s23, 0
      %p132 = por %p130, %p131
      %s133 = ssub.s32 %s24, %s36
      %s134 = ssub.s32 %s25, %s32
      %s135 = sor.u32 %s133, %s134
      %p136 = scmp.eq.s32.totalorder %s135, 0
      %s138 = sadd.s32 %s137, 1
      %s139 = scalar_select %p136, %s137, %s138
      %p142 = pneg %p136
      %p143 = scmp.eq.s32.totalorder %s17, 1
      %p144 = por %p142, %p143
      %p145 = scmp.ne.s32.totalorder %s137, %s140
      %p146 = scmp.eq.s32.totalorder %s17, 0
      %p147 = por %p145, %p146
      %p148 = scmp.ne.s32.totalorder %s137, %s140
      %p149 = scmp.eq.s32.totalorder %s22, 1
      %p150 = por %p148, %p149
      %p151 = scmp.ne.s32.totalorder %s140, %s141
      %p152 = scmp.eq.s32.totalorder %s22, 0
      %p153 = por %p151, %p152
      %p154 = scmp.ne.s32.totalorder %s140, %s141
      %p155 = scmp.eq.s32.totalorder %s23, 1
      %p156 = por %p154, %p155
      %p158 = scmp.ne.s32.totalorder %s141, %s157
      %p159 = scmp.eq.s32.totalorder %s23, 0
      %p160 = por %p158, %p159
      %s161 = ssub.s32 %s24, %s36
      %s162 = ssub.s32 %s25, %s32
      %s163 = sor.u32 %s161, %s162
      %p164 = scmp.eq.s32.totalorder %s163, 0
      %s166 = sadd.s32 %s165, 1
      %s167 = scalar_select %p164, %s165, %s166
      %p170 = pneg %p164
      %p171 = scmp.eq.s32.totalorder %s17, 1
      %p172 = por %p170, %p171
      %p173 = scmp.ne.s32.totalorder %s165, %s168
      %p174 = scmp.eq.s32.totalorder %s17, 0
      %p175 = por %p173, %p174
      %p176 = scmp.ne.s32.totalorder %s165, %s168
      %p177 = scmp.eq.s32.totalorder %s22, 1
      %p178 = por %p176, %p177
      %p179 = scmp.ne.s32.totalorder %s168, %s169
      %p180 = scmp.eq.s32.totalorder %s22, 0
      %p181 = por %p179, %p180
      %p182 = scmp.ne.s32.totalorder %s168, %s169
      %p183 = scmp.eq.s32.totalorder %s23, 1
      %p184 = por %p182, %p183
      %p186 = scmp.ne.s32.totalorder %s169, %s185
      %p187 = scmp.eq.s32.totalorder %s23, 0
      %p188 = por %p186, %p187
      %s190 = sadd.s32 %s189, 1
      %p193 = scmp.eq.s32.totalorder %s17, 1
      %p194 = scmp.ne.s32.totalorder %s189, %s191
      %p195 = scmp.eq.s32.totalorder %s17, 0
      %p196 = por %p194, %p195
      %p197 = scmp.ne.s32.totalorder %s189, %s191
      %p198 = scmp.eq.s32.totalorder %s22, 1
      %p199 = por %p197, %p198
      %p200 = scmp.ne.s32.totalorder %s191, %s192
      %p201 = scmp.eq.s32.totalorder %s22, 0
      %p202 = por %p200, %p201
      %p203 = scmp.ne.s32.totalorder %s191, %s192
      %p204 = scmp.eq.s32.totalorder %s23, 1
      %p205 = por %p203, %p204
      %p207 = scmp.ne.s32.totalorder %s192, %s206
      %p208 = scmp.eq.s32.totalorder %s23, 0
      %p209 = por %p207, %p208
      %s211 = sadd.s32 %s210, 1
      %p214 = scmp.eq.s32.totalorder %s17, 1
      %p215 = scmp.ne.s32.totalorder %s210, %s212
      %p216 = scmp.eq.s32.totalorder %s17, 0
      %p217 = por %p215, %p216
      %p218 = scmp.ne.s32.totalorder %s210, %s212
      %p219 = scmp.eq.s32.totalorder %s22, 1
      %p220 = por %p218, %p219
      %p221 = scmp.ne.s32.totalorder %s212, %s213
      %p222 = scmp.eq.s32.totalorder %s22, 0
      %p223 = por %p221, %p222
      %p224 = scmp.ne.s32.totalorder %s212, %s213
      %p225 = scmp.eq.s32.totalorder %s23, 1
      %p226 = por %p224, %p225
      %p228 = scmp.ne.s32.totalorder %s213, %s227
      %p229 = scmp.eq.s32.totalorder %s23, 0
      %p230 = por %p228, %p229
      %s231 = ssub.s32 %s24, %s36
      %s232 = ssub.s32 %s25, %s32
      %s233 = sor.u32 %s231, %s232
      %p234 = scmp.eq.s32.totalorder %s233, 0
      %s236 = sadd.s32 %s235, 1
      %s237 = scalar_select %p234, %s235, %s236
      %p240 = pneg %p234
      %p241 = scmp.eq.s32.totalorder %s17, 1
      %p242 = por %p240, %p241
      %p243 = scmp.ne.s32.totalorder %s235, %s238
      %p244 = scmp.eq.s32.totalorder %s17, 0
      %p245 = por %p243, %p244
      %p246 = scmp.ne.s32.totalorder %s235, %s238
      %p247 = scmp.eq.s32.totalorder %s22, 1
      %p248 = por %p246, %p247
      %p249 = scmp.ne.s32.totalorder %s238, %s239
      %p250 = scmp.eq.s32.totalorder %s22, 0
      %p251 = por %p249, %p250
      %p252 = scmp.ne.s32.totalorder %s238, %s239
      %p253 = scmp.eq.s32.totalorder %s23, 1
      %p254 = por %p252, %p253
      %p256 = scmp.ne.s32.totalorder %s239, %s255
      %p257 = scmp.eq.s32.totalorder %s23, 0
      %p258 = por %p256, %p257
      %p259 = scmp.le.s32.totalorder 1, %s17
      %p260 = scmp.lt.s32.totalorder %s17, 3
      %p261 = pnand %p259, %p260
      %p262 = pneg %p261
      // Predicated region
      $region9: #{pvconv_forward.9} parent=5 // pred_check
        _
      $region10: #{pvconv_forward.9} parent=5 // pred_check_branch
        %264 = sbr.rel (%p261) target = $region12
      $region11: #{pvconv_forward.9} parent=5 // pred_region
        %s265 = ssub.s32 %s17, 1
        // Predicated region
        $region13: #{pvconv_forward.9} parent=11 // pred_check
          %p266 = pneg %p76
        $region14: #{pvconv_forward.9} parent=11 // pred_check_branch
          %268 = sbr.rel (%p266) target = $region16
        $region15: #{pvconv_forward.9} parent=11 // pred_region
          _
        $region16: #{pvconv_forward.9} parent=11 // pred_fallthru
          _
        // Predicated region
        $region17: #{pvconv_forward.9} parent=11 // pred_check
          %p269 = pneg %p97
        $region18: #{pvconv_forward.9} parent=11 // pred_check_branch
          %271 = sbr.rel (%p269) target = $region20
        $region19: #{pvconv_forward.9} parent=11 // pred_region
          _
        $region20: #{pvconv_forward.9} parent=11 // pred_fallthru
          _
        // Predicated region
        $region21: #{pvconv_forward.9} parent=11 // pred_check
          %p272 = pneg %p202
        $region22: #{pvconv_forward.9} parent=11 // pred_check_branch
          %274 = sbr.rel (%p272) target = $region24
        $region23: #{pvconv_forward.9} parent=11 // pred_region
          _
        $region24: #{pvconv_forward.9} parent=11 // pred_fallthru
          _
        // Predicated region
        $region25: #{pvconv_forward.9} parent=11 // pred_check
          %p275 = pneg %p223
        $region26: #{pvconv_forward.9} parent=11 // pred_check_branch
          %277 = sbr.rel (%p275) target = $region28
        $region27: #{pvconv_forward.9} parent=11 // pred_region
          _
        $region28: #{pvconv_forward.9} parent=11 // pred_fallthru
          _
      $region12: #{pvconv_forward.9} parent=5 // pred_fallthru
        _
      %p278 = scmp.lt.s32.totalorder %s17, 2
      // Predicated region
      $region29: #{pvconv_forward.9} parent=5 // pred_check
        %p279 = pneg %p278
      $region30: #{pvconv_forward.9} parent=5 // pred_check_branch
        %281 = sbr.rel (%p279) target = $region32
      $region31: #{pvconv_forward.9} parent=5 // pred_region
        // Predicated region
        $region33: #{pvconv_forward.9} parent=31 // pred_check
          %p282 = pneg %p49
        $region34: #{pvconv_forward.9} parent=31 // pred_check_branch
          %284 = sbr.rel (%p282) target = $region36
        $region35: #{pvconv_forward.9} parent=31 // pred_region
          %p285 = scmp.lt.s32.totalorder %s24, 1
          %s286 = scalar_select %p285, %s24, 1
          %s287 = smul.addr %s286, 8
          %s288 = scalar_lea.vmem %s0, %s287
        $region36: #{pvconv_forward.9} parent=31 // pred_fallthru
          _
        // Predicated region
        $region37: #{pvconv_forward.9} parent=31 // pred_check
          %p289 = pneg %p119
        $region38: #{pvconv_forward.9} parent=31 // pred_check_branch
          %291 = sbr.rel (%p289) target = $region40
        $region39: #{pvconv_forward.9} parent=31 // pred_region
          %p292 = scmp.lt.s32.totalorder %s24, 1
          %s293 = scalar_select %p292, %s24, 1
          %p294 = scmp.lt.s32.totalorder %s25, 0
          %s295 = scalar_select %p294, %s25, 0
          %s296 = sadd.s32 %s295, %s293
          %s297 = smul.addr %s296, 8
          %s298 = scalar_lea.vmem %s3, %s297
        $region40: #{pvconv_forward.9} parent=31 // pred_fallthru
          _
        // Predicated region
        $region41: #{pvconv_forward.9} parent=31 // pred_check
          %p299 = pneg %p147
        $region42: #{pvconv_forward.9} parent=31 // pred_check_branch
          %301 = sbr.rel (%p299) target = $region44
        $region43: #{pvconv_forward.9} parent=31 // pred_region
          %p302 = scmp.lt.s32.totalorder %s24, 1
          %s303 = scalar_select %p302, %s24, 1
          %p304 = scmp.lt.s32.totalorder %s25, 0
          %s305 = scalar_select %p304, %s25, 0
          %s306 = sadd.s32 %s305, %s303
          %s307 = smul.addr %s306, 8
          %s308 = scalar_lea.vmem %s4, %s307
        $region44: #{pvconv_forward.9} parent=31 // pred_fallthru
          _
        // Predicated region
        $region45: #{pvconv_forward.9} parent=31 // pred_check
          %p309 = pneg %p175
        $region46: #{pvconv_forward.9} parent=31 // pred_check_branch
          %311 = sbr.rel (%p309) target = $region48
        $region47: #{pvconv_forward.9} parent=31 // pred_region
          %p312 = scmp.lt.s32.totalorder %s24, 1
          %s313 = scalar_select %p312, %s24, 1
          %p314 = scmp.lt.s32.totalorder %s25, 0
          %s315 = scalar_select %p314, %s25, 0
          %s316 = sadd.s32 %s315, %s313
          %s317 = smul.addr %s316, 8
          %s318 = scalar_lea.vmem %s5, %s317
        $region48: #{pvconv_forward.9} parent=31 // pred_fallthru
          _
      $region32: #{pvconv_forward.9} parent=5 // pred_fallthru
        _
      %p319 = scmp.le.s32.totalorder 1, %s17
      %p320 = scmp.lt.s32.totalorder %s17, 3
      %p321 = pnand %p319, %p320
      %p322 = pneg %p321
      // Predicated region
      $region49: #{pvconv_forward.9} parent=5 // pred_check
        _
      $region50: #{pvconv_forward.9} parent=5 // pred_check_branch
        %324 = sbr.rel (%p321) target = $region52
      $region51: #{pvconv_forward.9} parent=5 // pred_region
        %s325 = ssub.s32 %s17, 1
        %p326 = scmp.lt.s32.totalorder %s26, 1
        %s327 = scalar_select %p326, %s26, 1
        %s328 = smul.addr %s327, 8
        %s329 = scalar_lea.vmem %s0, %s328
        %p330 = pneg %p55
        %p331 = pneg %p52
        %p332 = pneg %p76
        %p333 = pneg %p73
        %p334 = pneg %p97
        %p335 = pneg %p94
        %p336 = scmp.lt.s32.totalorder %s26, 1
        %s337 = scalar_select %p336, %s26, 1
        %p338 = scmp.lt.s32.totalorder %s27, 0
        %s339 = scalar_select %p338, %s27, 0
        %s340 = sadd.s32 %s339, %s337
        %s341 = smul.addr %s340, 8
        %s342 = scalar_lea.vmem %s3, %s341
        %p343 = pneg %p125
        %p344 = pneg %p122
        %p345 = scmp.lt.s32.totalorder %s26, 1
        %s346 = scalar_select %p345, %s26, 1
        %p347 = scmp.lt.s32.totalorder %s27, 0
        %s348 = scalar_select %p347, %s27, 0
        %s349 = sadd.s32 %s348, %s346
        %s350 = smul.addr %s349, 8
        %s351 = scalar_lea.vmem %s4, %s350
        %p352 = pneg %p153
        %p353 = pneg %p150
        %p354 = scmp.lt.s32.totalorder %s26, 1
        %s355 = scalar_select %p354, %s26, 1
        %p356 = scmp.lt.s32.totalorder %s27, 0
        %s357 = scalar_select %p356, %s27, 0
        %s358 = sadd.s32 %s357, %s355
        %s359 = smul.addr %s358, 8
        %s360 = scalar_lea.vmem %s5, %s359
        %p361 = pneg %p181
        %p362 = pneg %p178
        %p363 = pneg %p202
        %p364 = pneg %p199
        %p365 = pneg %p223
        %p366 = pneg %p220
        %p367 = pneg %p251
        %p368 = pneg %p248
        %s369 = sand.u32 %s238, 1
        %s370 = scalar_lea.sflag [#allocation3], %s369
        %s371 = sand.u32 %s238, 1
        %s372 = smul.addr %s371, 8
        %s373 = scalar_lea.vmem [#allocation2], %s372
        %p374 = scmp.lt.s32.totalorder %s26, 1
        %s375 = scalar_select %p374, %s26, 1
        %s376 = smul.addr %s375, 8
        %s377 = scalar_lea.vmem %s0, %s376
        %p378 = scmp.lt.s32.totalorder %s26, 1
        %s379 = scalar_select %p378, %s26, 1
        %p380 = scmp.lt.s32.totalorder %s27, 0
        %s381 = scalar_select %p380, %s27, 0
        %s382 = sadd.s32 %s381, %s379
        %s383 = smul.addr %s382, 8
        %s384 = scalar_lea.vmem %s3, %s383
        %p385 = scmp.lt.s32.totalorder %s26, 1
        %s386 = scalar_select %p385, %s26, 1
        %p387 = scmp.lt.s32.totalorder %s27, 0
        %s388 = scalar_select %p387, %s27, 0
        %s389 = sadd.s32 %s388, %s386
        %s390 = smul.addr %s389, 8
        %s391 = scalar_lea.vmem %s4, %s390
        %p392 = scmp.lt.s32.totalorder %s26, 1
        %s393 = scalar_select %p392, %s26, 1
        %p394 = scmp.lt.s32.totalorder %s27, 0
        %s395 = scalar_select %p394, %s27, 0
        %s396 = sadd.s32 %s395, %s393
        %s397 = smul.addr %s396, 8
        %s398 = scalar_lea.vmem %s5, %s397
        %v399 = vld [vmem:[%s377] sm:$0xff]
        %v400 = vld [vmem:[%s1] sm:$0xff]
        %402 = vset.pattern.permute.xlu0 0
        %403 = vperm.xlu0 %402, %v400
        %v404 = vpop.permute.xlu0 %403
        %v406 = vmul.f32 %v399, %v404
        %v407 = vld [vmem:[%s2] sm:$0xff]
        %409 = vset.pattern.permute.xlu0 0
        %410 = vperm.xlu0 %409, %v407
        %v411 = vpop.permute.xlu0 %410
        %v413 = vadd.f32 %v406, %v411
        %vm414 = vcmp.gt.f32.partialorder %v413, 0.0
        %v415 = vmul.f32 %v413, 0.1
        %v416 = vsel %vm414, %v413, %v415
        %v417 = vld [vmem:[%s384] sm:$0xff]
        %v418 = vld [vmem:[%s391] sm:$0xff]
        %v419 = vlaneseq
        %v420 = vshrl.u32 %v419, 7
        %v421 = vadd.s32 %v420, 8
        %v422 = vadd.s32 %v420, 16
        %v423 = vadd.s32 %v420, 24
        %v424 = vadd.s32 %v420, 32
        %v425 = vadd.s32 %v420, 40
        %v426 = vadd.s32 %v420, 48
        %v427 = vadd.s32 %v420, 56
        %v428 = vlaneseq
        %v429 = vshrl.u32 %v428, 7
        %v430 = vsub.s32 0, %v429
        %v431 = vrot.slane %v417, %v430
        %vm432 = vcmp.eq.s32.totalorder %v420, %v431
        %vm433 = vcmp.eq.s32.totalorder %v421, %v431
        %vm434 = vcmp.eq.s32.totalorder %v422, %v431
        %vm435 = vcmp.eq.s32.totalorder %v423, %v431
        %vm436 = vcmp.eq.s32.totalorder %v424, %v431
        %vm437 = vcmp.eq.s32.totalorder %v425, %v431
        %vm438 = vcmp.eq.s32.totalorder %v426, %v431
        %vm439 = vcmp.eq.s32.totalorder %v427, %v431
        %v440 = vlaneseq
        %v441 = vshrl.u32 %v440, 7
        %v442 = vsub.s32 0, %v441
        %v443 = vrot.slane %v418, %v442
        %v444 = vsel %vm432, %v443, 0.0
        %v445 = vsel %vm433, %v443, 0.0
        %v446 = vsel %vm434, %v443, 0.0
        %v447 = vsel %vm435, %v443, 0.0
        %v448 = vsel %vm436, %v443, 0.0
        %v449 = vsel %vm437, %v443, 0.0
        %v450 = vsel %vm438, %v443, 0.0
        %v451 = vsel %vm439, %v443, 0.0
        %v452 = vadd.f32 %v444, 0.0
        %v453 = vadd.f32 %v445, 0.0
        %v454 = vadd.f32 %v446, 0.0
        %v455 = vadd.f32 %v447, 0.0
        %v456 = vadd.f32 %v448, 0.0
        %v457 = vadd.f32 %v449, 0.0
        %v458 = vadd.f32 %v450, 0.0
        %v459 = vadd.f32 %v451, 0.0
        %v460 = vlaneseq
        %v461 = vshrl.u32 %v460, 7
        %v462 = vsub.s32 1, %v461
        %v463 = vrot.slane %v417, %v462
        %vm464 = vcmp.eq.s32.totalorder %v420, %v463
        %vm465 = vcmp.eq.s32.totalorder %v421, %v463
        %vm466 = vcmp.eq.s32.totalorder %v422, %v463
        %vm467 = vcmp.eq.s32.totalorder %v423, %v463
        %vm468 = vcmp.eq.s32.totalorder %v424, %v463
        %vm469 = vcmp.eq.s32.totalorder %v425, %v463
        %vm470 = vcmp.eq.s32.totalorder %v426, %v463
        %vm471 = vcmp.eq.s32.totalorder %v427, %v463
        %v472 = vlaneseq
        %v473 = vshrl.u32 %v472, 7
        %v474 = vsub.s32 1, %v473
        %v475 = vrot.slane %v418, %v474
        %v476 = vsel %vm464, %v475, 0.0
        %v477 = vsel %vm465, %v475, 0.0
        %v478 = vsel %vm466, %v475, 0.0
        %v479 = vsel %vm467, %v475, 0.0
        %v480 = vsel %vm468, %v475, 0.0
        %v481 = vsel %vm469, %v475, 0.0
        %v482 = vsel %vm470, %v475, 0.0
        %v483 = vsel %vm471, %v475, 0.0
        %v484 = vadd.f32 %v452, %v476
        %v485 = vadd.f32 %v453, %v477
        %v486 = vadd.f32 %v454, %v478
        %v487 = vadd.f32 %v455, %v479
        %v488 = vadd.f32 %v456, %v480
        %v489 = vadd.f32 %v457, %v481
        %v490 = vadd.f32 %v458, %v482
        %v491 = vadd.f32 %v459, %v483
        %v492 = vlaneseq
        %v493 = vshrl.u32 %v492, 7
        %v494 = vsub.s32 2, %v493
        %v495 = vrot.slane %v417, %v494
        %vm496 = vcmp.eq.s32.totalorder %v420, %v495
        %vm497 = vcmp.eq.s32.totalorder %v421, %v495
        %vm498 = vcmp.eq.s32.totalorder %v422, %v495
        %vm499 = vcmp.eq.s32.totalorder %v423, %v495
        %vm500 = vcmp.eq.s32.totalorder %v424, %v495
        %vm501 = vcmp.eq.s32.totalorder %v425, %v495
        %vm502 = vcmp.eq.s32.totalorder %v426, %v495
        %vm503 = vcmp.eq.s32.totalorder %v427, %v495
        %v504 = vlaneseq
        %v505 = vshrl.u32 %v504, 7
        %v506 = vsub.s32 2, %v505
        %v507 = vrot.slane %v418, %v506
        %v508 = vsel %vm496, %v507, 0.0
        %v509 = vsel %vm497, %v507, 0.0
        %v510 = vsel %vm498, %v507, 0.0
        %v511 = vsel %vm499, %v507, 0.0
        %v512 = vsel %vm500, %v507, 0.0
        %v513 = vsel %vm501, %v507, 0.0
        %v514 = vsel %vm502, %v507, 0.0
        %v515 = vsel %vm503, %v507, 0.0
        %v516 = vadd.f32 %v484, %v508
        %v517 = vadd.f32 %v485, %v509
        %v518 = vadd.f32 %v486, %v510
        %v519 = vadd.f32 %v487, %v511
        %v520 = vadd.f32 %v488, %v512
        %v521 = vadd.f32 %v489, %v513
        %v522 = vadd.f32 %v490, %v514
        %v523 = vadd.f32 %v491, %v515
        %v524 = vlaneseq
        %v525 = vshrl.u32 %v524, 7
        %v526 = vsub.s32 3, %v525
        %v527 = vrot.slane %v417, %v526
        %vm528 = vcmp.eq.s32.totalorder %v420, %v527
        %vm529 = vcmp.eq.s32.totalorder %v421, %v527
        %vm530 = vcmp.eq.s32.totalorder %v422, %v527
        %vm531 = vcmp.eq.s32.totalorder %v423, %v527
        %vm532 = vcmp.eq.s32.totalorder %v424, %v527
        %vm533 = vcmp.eq.s32.totalorder %v425, %v527
        %vm534 = vcmp.eq.s32.totalorder %v426, %v527
        %vm535 = vcmp.eq.s32.totalorder %v427, %v527
        %v536 = vlaneseq
        %v537 = vshrl.u32 %v536, 7
        %v538 = vsub.s32 3, %v537
        %v539 = vrot.slane %v418, %v538
        %v540 = vsel %vm528, %v539, 0.0
        %v541 = vsel %vm529, %v539, 0.0
        %v542 = vsel %vm530, %v539, 0.0
        %v543 = vsel %vm531, %v539, 0.0
        %v544 = vsel %vm532, %v539, 0.0
        %v545 = vsel %vm533, %v539, 0.0
        %v546 = vsel %vm534, %v539, 0.0
        %v547 = vsel %vm535, %v539, 0.0
        %v548 = vadd.f32 %v516, %v540
        %v549 = vadd.f32 %v517, %v541
        %v550 = vadd.f32 %v518, %v542
        %v551 = vadd.f32 %v519, %v543
        %v552 = vadd.f32 %v520, %v544
        %v553 = vadd.f32 %v521, %v545
        %v554 = vadd.f32 %v522, %v546
        %v555 = vadd.f32 %v523, %v547
        %v556 = vlaneseq
        %v557 = vshrl.u32 %v556, 7
        %v558 = vsub.s32 4, %v557
        %v559 = vrot.slane %v417, %v558
        %vm560 = vcmp.eq.s32.totalorder %v420, %v559
        %vm561 = vcmp.eq.s32.totalorder %v421, %v559
        %vm562 = vcmp.eq.s32.totalorder %v422, %v559
        %vm563 = vcmp.eq.s32.totalorder %v423, %v559
        %vm564 = vcmp.eq.s32.totalorder %v424, %v559
        %vm565 = vcmp.eq.s32.totalorder %v425, %v559
        %vm566 = vcmp.eq.s32.totalorder %v426, %v559
        %vm567 = vcmp.eq.s32.totalorder %v427, %v559
        %v568 = vlaneseq
        %v569 = vshrl.u32 %v568, 7
        %v570 = vsub.s32 4, %v569
        %v571 = vrot.slane %v418, %v570
        %v572 = vsel %vm560, %v571, 0.0
        %v573 = vsel %vm561, %v571, 0.0
        %v574 = vsel %vm562, %v571, 0.0
        %v575 = vsel %vm563, %v571, 0.0
        %v576 = vsel %vm564, %v571, 0.0
        %v577 = vsel %vm565, %v571, 0.0
        %v578 = vsel %vm566, %v571, 0.0
        %v579 = vsel %vm567, %v571, 0.0
        %v580 = vadd.f32 %v548, %v572
        %v581 = vadd.f32 %v549, %v573
        %v582 = vadd.f32 %v550, %v574
        %v583 = vadd.f32 %v551, %v575
        %v584 = vadd.f32 %v552, %v576
        %v585 = vadd.f32 %v553, %v577
        %v586 = vadd.f32 %v554, %v578
        %v587 = vadd.f32 %v555, %v579
        %v588 = vlaneseq
        %v589 = vshrl.u32 %v588, 7
        %v590 = vsub.s32 5, %v589
        %v591 = vrot.slane %v417, %v590
        %vm592 = vcmp.eq.s32.totalorder %v420, %v591
        %vm593 = vcmp.eq.s32.totalorder %v421, %v591
        %vm594 = vcmp.eq.s32.totalorder %v422, %v591
        %vm595 = vcmp.eq.s32.totalorder %v423, %v591
        %vm596 = vcmp.eq.s32.totalorder %v424, %v591
        %vm597 = vcmp.eq.s32.totalorder %v425, %v591
        %vm598 = vcmp.eq.s32.totalorder %v426, %v591
        %vm599 = vcmp.eq.s32.totalorder %v427, %v591
        %v600 = vlaneseq
        %v601 = vshrl.u32 %v600, 7
        %v602 = vsub.s32 5, %v601
        %v603 = vrot.slane %v418, %v602
        %v604 = vsel %vm592, %v603, 0.0
        %v605 = vsel %vm593, %v603, 0.0
        %v606 = vsel %vm594, %v603, 0.0
        %v607 = vsel %vm595, %v603, 0.0
        %v608 = vsel %vm596, %v603, 0.0
        %v609 = vsel %vm597, %v603, 0.0
        %v610 = vsel %vm598, %v603, 0.0
        %v611 = vsel %vm599, %v603, 0.0
        %v612 = vadd.f32 %v580, %v604
        %v613 = vadd.f32 %v581, %v605
        %v614 = vadd.f32 %v582, %v606
        %v615 = vadd.f32 %v583, %v607
        %v616 = vadd.f32 %v584, %v608
        %v617 = vadd.f32 %v585, %v609
        %v618 = vadd.f32 %v586, %v610
        %v619 = vadd.f32 %v587, %v611
        %v620 = vlaneseq
        %v621 = vshrl.u32 %v620, 7
        %v622 = vsub.s32 6, %v621
        %v623 = vrot.slane %v417, %v622
        %vm624 = vcmp.eq.s32.totalorder %v420, %v623
        %vm625 = vcmp.eq.s32.totalorder %v421, %v623
        %vm626 = vcmp.eq.s32.totalorder %v422, %v623
        %vm627 = vcmp.eq.s32.totalorder %v423, %v623
        %vm628 = vcmp.eq.s32.totalorder %v424, %v623
        %vm629 = vcmp.eq.s32.totalorder %v425, %v623
        %vm630 = vcmp.eq.s32.totalorder %v426, %v623
        %vm631 = vcmp.eq.s32.totalorder %v427, %v623
        %v632 = vlaneseq
        %v633 = vshrl.u32 %v632, 7
        %v634 = vsub.s32 6, %v633
        %v635 = vrot.slane %v418, %v634
        %v636 = vsel %vm624, %v635, 0.0
        %v637 = vsel %vm625, %v635, 0.0
        %v638 = vsel %vm626, %v635, 0.0
        %v639 = vsel %vm627, %v635, 0.0
        %v640 = vsel %vm628, %v635, 0.0
        %v641 = vsel %vm629, %v635, 0.0
        %v642 = vsel %vm630, %v635, 0.0
        %v643 = vsel %vm631, %v635, 0.0
        %v644 = vadd.f32 %v612, %v636
        %v645 = vadd.f32 %v613, %v637
        %v646 = vadd.f32 %v614, %v638
        %v647 = vadd.f32 %v615, %v639
        %v648 = vadd.f32 %v616, %v640
        %v649 = vadd.f32 %v617, %v641
        %v650 = vadd.f32 %v618, %v642
        %v651 = vadd.f32 %v619, %v643
        %v652 = vlaneseq
        %v653 = vshrl.u32 %v652, 7
        %v654 = vsub.s32 7, %v653
        %v655 = vrot.slane %v417, %v654
        %vm656 = vcmp.eq.s32.totalorder %v420, %v655
        %vm657 = vcmp.eq.s32.totalorder %v421, %v655
        %vm658 = vcmp.eq.s32.totalorder %v422, %v655
        %vm659 = vcmp.eq.s32.totalorder %v423, %v655
        %vm660 = vcmp.eq.s32.totalorder %v424, %v655
        %vm661 = vcmp.eq.s32.totalorder %v425, %v655
        %vm662 = vcmp.eq.s32.totalorder %v426, %v655
        %vm663 = vcmp.eq.s32.totalorder %v427, %v655
        %v664 = vlaneseq
        %v665 = vshrl.u32 %v664, 7
        %v666 = vsub.s32 7, %v665
        %v667 = vrot.slane %v418, %v666
        %v668 = vsel %vm656, %v667, 0.0
        %v669 = vsel %vm657, %v667, 0.0
        %v670 = vsel %vm658, %v667, 0.0
        %v671 = vsel %vm659, %v667, 0.0
        %v672 = vsel %vm660, %v667, 0.0
        %v673 = vsel %vm661, %v667, 0.0
        %v674 = vsel %vm662, %v667, 0.0
        %v675 = vsel %vm663, %v667, 0.0
        %v676 = vadd.f32 %v644, %v668
        %v677 = vadd.f32 %v645, %v669
        %v678 = vadd.f32 %v646, %v670
        %v679 = vadd.f32 %v647, %v671
        %v680 = vadd.f32 %v648, %v672
        %v681 = vadd.f32 %v649, %v673
        %v682 = vadd.f32 %v650, %v674
        %v683 = vadd.f32 %v651, %v675
        %v684 = vld [vmem:[%s398] sm:$0xff]
        %v685 = vld [vmem:[%s6] sm:$0xff]
        %687 = vset.pattern.permute.xlu0 0
        %688 = vperm.xlu0 %687, %v685
        %v689 = vpop.permute.xlu0 %688
        %v691 = vmul.f32 %v684, %v689
        %v692 = vld [vmem:[%s7] sm:$0xff]
        %694 = vset.pattern.permute.xlu0 0
        %695 = vperm.xlu0 %694, %v692
        %v696 = vpop.permute.xlu0 %695
        %v698 = vadd.f32 %v691, %v696
        %v699 = vmax.f32 %v698, 0.0
        %vm700 = vcmask 523264
        %v702 = vsel %vm700, %v416, 0
        %704 = vmatprep.subr.mxu0 0.0
        %705 = vmatpush1.msra.mxu0 %v676
        %706 = vmatprep.subr.mxu0 0.0
        %707 = vmatpush1.msra.mxu0 %v677
        %708 = vmatprep.subr.mxu0 0.0
        %709 = vmatpush1.msra.mxu0 %v678
        %710 = vmatprep.subr.mxu0 0.0
        %711 = vmatpush1.msra.mxu0 %v679
        %712 = vmatprep.subr.mxu0 0.0
        %713 = vmatpush1.msra.mxu0 %v680
        %714 = vmatprep.subr.mxu0 0.0
        %715 = vmatpush1.msra.mxu0 %v681
        %716 = vmatprep.subr.mxu0 0.0
        %717 = vmatpush1.msra.mxu0 %v682
        %718 = vmatprep.subr.mxu0 0.0
        %719 = vmatpush1.msra.mxu0 %v683
        %720 = vmatprep.subr.mxu0 0.0
        %721 = vmatpush1.msra.mxu0 0.0
        %722 = vmatprep.subr.mxu0 0.0
        %723 = vmatpush1.msra.mxu0 0.0
        %724 = vmatprep.subr.mxu0 0.0
        %725 = vmatpush1.msra.mxu0 0.0
        %726 = vmatprep.subr.mxu0 0.0
        %727 = vmatpush1.msra.mxu0 0.0
        %728 = vmatprep.subr.mxu0 0.0
        %729 = vmatpush1.msra.mxu0 0.0
        %730 = vmatprep.subr.mxu0 0.0
        %731 = vmatpush1.msra.mxu0 0.0
        %732 = vmatprep.subr.mxu0 0.0
        %733 = vmatpush1.msra.mxu0 0.0
        %734 = vmatprep.subr.mxu0 0.0
        %735 = vmatpush1.msra.mxu0 0.0
        %736 = vmatprep.subr.mxu0 0.0
        %737 = vmatpush1.msra.mxu0 0.0
        %738 = vmatprep.subr.mxu0 0.0
        %739 = vmatpush1.msra.mxu0 0.0
        %740 = vmatprep.subr.mxu0 0.0
        %741 = vmatpush1.msra.mxu0 0.0
        %742 = vmatprep.subr.mxu0 0.0
        %743 = vmatpush1.msra.mxu0 0.0
        %744 = vmatprep.subr.mxu0 0.0
        %745 = vmatpush1.msra.mxu0 0.0
        %746 = vmatprep.subr.mxu0 0.0
        %747 = vmatpush1.msra.mxu0 0.0
        %748 = vmatprep.subr.mxu0 0.0
        %749 = vmatpush1.msra.mxu0 0.0
        %750 = vmatprep.subr.mxu0 0.0
        %751 = vmatpush1.msra.mxu0 0.0
        %752 = vmatprep.subr.mxu0 0.0
        %753 = vmatpush1.msra.mxu0 0.0
        %754 = vmatprep.subr.mxu0 0.0
        %755 = vmatpush1.msra.mxu0 0.0
        %756 = vmatprep.subr.mxu0 0.0
        %757 = vmatpush1.msra.mxu0 0.0
        %758 = vmatprep.subr.mxu0 0.0
        %759 = vmatpush1.msra.mxu0 0.0
        %760 = vmatprep.subr.mxu0 0.0
        %761 = vmatpush1.msra.mxu0 0.0
        %762 = vmatprep.subr.mxu0 0.0
        %763 = vmatpush1.msra.mxu0 0.0
        %764 = vmatprep.subr.mxu0 0.0
        %765 = vmatpush1.msra.mxu0 0.0
        %766 = vmatprep.subr.mxu0 0.0
        %767 = vmatpush1.msra.mxu0 0.0
        %768 = vmatprep.mubr.f32.mxu0 0.0
        %769 = vmatmul.mubr.f32.gmra.mrb[0].mxu0 %v702
        %v770 = vpop.f32.mrb[0].mxu0
        %v771 = vadd.f32 %v699, %v770
        %v772 = vpop.f32.mrb[0].mxu0
        %773 = vdwg.mxu0
        %774 = vst.msk [vmem:[%s373] sm:$0xff] %vm700, %v771
        %s775 = sand.u32 %s238, 1
        %s776 = scalar_lea.sflag [#allocation3], %s775
        %s777 = sand.u32 %s238, 1
        %s778 = smul.addr %s777, 8
        %s779 = scalar_lea.vmem [#allocation2], %s778
        // Predicated region
        $region53: #{pvconv_forward.9} parent=51 // pred_check
          %p780 = pneg %p248
        $region54: #{pvconv_forward.9} parent=51 // pred_check_branch
          %782 = sbr.rel (%p780) target = $region56
        $region55: #{pvconv_forward.9} parent=51 // pred_region
          %s784 = ssub.s32 128, 128
          %785 = vsyncadd %s776, %s784
          %s786 = sadd.s32 %s27, %s26
          %s787 = smul.addr %s786, 128
          %s788 = scalar_lea.hbm %s8, %s787
          %s790 = sshll.u32 %s779, 4
          %s791 = int_to_ptr.vmem [resolvable:$true] %s790
          %793 = dma.vmem_to_hbm [thread:$0]  %s791, 128, %s788, %s776
        $region56: #{pvconv_forward.9} parent=51 // pred_fallthru
          _
      $region52: #{pvconv_forward.9} parent=5 // pred_fallthru
        _
      %p794 = scmp.le.s32.totalorder 2, %s17
      // Predicated region
      $region57: #{pvconv_forward.9} parent=5 // pred_check
        %p795 = pneg %p794
      $region58: #{pvconv_forward.9} parent=5 // pred_check_branch
        %797 = sbr.rel (%p795) target = $region60
      $region59: #{pvconv_forward.9} parent=5 // pred_region
        %s798 = ssub.s32 %s17, 2
        // Predicated region
        $region61: #{pvconv_forward.9} parent=59 // pred_check
          %p799 = pneg %p254
        $region62: #{pvconv_forward.9} parent=59 // pred_check_branch
          %801 = sbr.rel (%p799) target = $region64
        $region63: #{pvconv_forward.9} parent=59 // pred_region
          %s802 = sand.u32 %s239, 1
          %s803 = scalar_lea.sflag [#allocation3], %s802
          %s804 = sand.u32 %s239, 1
          %s805 = smul.addr %s804, 8
          %s806 = scalar_lea.vmem [#allocation2], %s805
          %807 = dma.done %s803, 128
        $region64: #{pvconv_forward.9} parent=59 // pred_fallthru
          _
      $region60: #{pvconv_forward.9} parent=5 // pred_fallthru
        _
    $region6: #{pvconv_forward.9} parent=1 // loop_footer
      %s21 = sadd.s32 1, %s17
    $region7: #{pvconv_forward.9} parent=1 // loop_footer_branch
      %16 = sbr.rel target = $region3
    $region8: #{pvconv_forward.9} parent=1 // loop_exit
      _
    %808 = vsyncpa [#allocation3], 1
    %s809 = scalar_lea.sflag [#allocation3], 1
    %810 = vsyncpa %s809, 1

// kernel: pvconv_forward.7
$region0: #{pvconv_forward.7}
  #allocation0 [shape = 'u32[]', space=smem, size = 0x4, offset = 0x4, fixed_abs, tag = 'smem constant byte address 0x4 - core index']
  #allocation1 [shape = 'u32[144,128]{1,0:T(1,128)}', space=vmem, size = 0x12000, scoped, tag = 'internal scratch']
  %s0 = inlined_call_operand.vmem [shape: f32[2,8,64], index: 0, kind: input, shape index: {}]
  %s1 = inlined_call_operand.vmem [shape: bf16[27,8,8], index: 1, kind: input, shape index: {}]
  %s2 = inlined_call_operand.vmem [shape: f32[27,1,64], index: 2, kind: input, shape index: {}]
  %s3 = inlined_call_operand.vmem [shape: f32[8,1], index: 3, kind: input, shape index: {}]
  %s4 = inlined_call_operand.vmem [shape: f32[8,1], index: 4, kind: input, shape index: {}]
  %s5 = inlined_call_operand.vmem [shape: f32[8,1], index: 5, kind: input, shape index: {}]
  %s6 = inlined_call_operand.vmem [shape: f32[2,8,64], index: 6, kind: output, shape index: {0}]
  %s7 = inlined_call_operand.vmem [shape: f32[2,8,2], index: 7, kind: output, shape index: {1}]
  %8 = xla_tuple %s6, %s7
  %s9 = sld [smem:[#allocation0]]
  $region65: #{pvconv_forward.7} parent=0
    _
  %s11 = ssub.s32 1, %s9
  %s12 = scalar_select 0, %s11, %s9
  loop: start=0, step=1, limit=4
  $region2: #{pvconv_forward.7} parent=0 // loop_pre_header
    _
  $region3: #{pvconv_forward.7} parent=0 // loop_header
    %s14 = sphi 0, %s18
    %p15 = scmp.ge.s32.totalorder %s14, 4
    %s24 = sphi 0, %s26
    %s27 = sphi 0, %s24
    %s28 = sphi 0, %s27
    %s44 = sphi 0, %s28
    %s48 = sphi 0, %s48
    %s50 = sphi 0, %s48
    %s51 = sphi 0, %s50
    %s65 = sphi 0, %s51
    %s69 = sphi 0, %s69
    %s71 = sphi 0, %s69
    %s72 = sphi 0, %s71
    %s86 = sphi 0, %s72
    %s90 = sphi 0, %s90
    %s92 = sphi 0, %s90
    %s93 = sphi 0, %s92
    %s107 = sphi 0, %s93
    %s111 = sphi 0, %s111
    %s113 = sphi 0, %s111
    %s114 = sphi 0, %s113
    %s128 = sphi 0, %s114
    %s132 = sphi 0, %s132
    %s134 = sphi 0, %s132
    %s135 = sphi 0, %s134
    %s149 = sphi 0, %s135
    %s155 = sphi 0, %s157
    %s158 = sphi 0, %s155
    %s159 = sphi 0, %s158
    %s175 = sphi 0, %s159
    %s181 = sphi 0, %s183
    %s184 = sphi 0, %s181
    %s185 = sphi 0, %s184
    %s201 = sphi 0, %s185
  $region4: #{pvconv_forward.7} parent=0 // loop_header_branch
    %17 = sbr.rel (%p15) target = $region8
  $region5: #{pvconv_forward.7} parent=0 // loop_body
    %s19 = ssub.s32 %s14, 1
    %s20 = ssub.s32 %s14, 2
    %s21 = sadd.s32 %s14, 1
    %s22 = ssub.s32 %s14, %s21
    %p23 = scmp.eq.s32.totalorder %s22, 0
    %s25 = sadd.s32 %s24, 1
    %s26 = scalar_select %p23, %s24, %s25
    %p29 = pneg %p23
    %p30 = scmp.eq.s32.totalorder %s14, 1
    %p31 = por %p29, %p30
    %p32 = scmp.ne.s32.totalorder %s24, %s27
    %p33 = scmp.eq.s32.totalorder %s14, 0
    %p34 = por %p32, %p33
    %p35 = scmp.ne.s32.totalorder %s24, %s27
    %p36 = scmp.eq.s32.totalorder %s19, 1
    %p37 = por %p35, %p36
    %p38 = scmp.ne.s32.totalorder %s27, %s28
    %p39 = scmp.eq.s32.totalorder %s19, 0
    %p40 = por %p38, %p39
    %p41 = scmp.ne.s32.totalorder %s27, %s28
    %p42 = scmp.eq.s32.totalorder %s20, 1
    %p43 = por %p41, %p42
    %p45 = scmp.ne.s32.totalorder %s28, %s44
    %p46 = scmp.eq.s32.totalorder %s20, 0
    %p47 = por %p45, %p46
    %s49 = sadd.s32 %s48, 1
    %p52 = scmp.eq.s32.totalorder %s14, 1
    %p53 = scmp.ne.s32.totalorder %s48, %s50
    %p54 = scmp.eq.s32.totalorder %s14, 0
    %p55 = por %p53, %p54
    %p56 = scmp.ne.s32.totalorder %s48, %s50
    %p57 = scmp.eq.s32.totalorder %s19, 1
    %p58 = por %p56, %p57
    %p59 = scmp.ne.s32.totalorder %s50, %s51
    %p60 = scmp.eq.s32.totalorder %s19, 0
    %p61 = por %p59, %p60
    %p62 = scmp.ne.s32.totalorder %s50, %s51
    %p63 = scmp.eq.s32.totalorder %s20, 1
    %p64 = por %p62, %p63
    %p66 = scmp.ne.s32.totalorder %s51, %s65
    %p67 = scmp.eq.s32.totalorder %s20, 0
    %p68 = por %p66, %p67
    %s70 = sadd.s32 %s69, 1
    %p73 = scmp.eq.s32.totalorder %s14, 1
    %p74 = scmp.ne.s32.totalorder %s69, %s71
    %p75 = scmp.eq.s32.totalorder %s14, 0
    %p76 = por %p74, %p75
    %p77 = scmp.ne.s32.totalorder %s69, %s71
    %p78 = scmp.eq.s32.totalorder %s19, 1
    %p79 = por %p77, %p78
    %p80 = scmp.ne.s32.totalorder %s71, %s72
    %p81 = scmp.eq.s32.totalorder %s19, 0
    %p82 = por %p80, %p81
    %p83 = scmp.ne.s32.totalorder %s71, %s72
    %p84 = scmp.eq.s32.totalorder %s20, 1
    %p85 = por %p83, %p84
    %p87 = scmp.ne.s32.totalorder %s72, %s86
    %p88 = scmp.eq.s32.totalorder %s20, 0
    %p89 = por %p87, %p88
    %s91 = sadd.s32 %s90, 1
    %p94 = scmp.eq.s32.totalorder %s14, 1
    %p95 = scmp.ne.s32.totalorder %s90, %s92
    %p96 = scmp.eq.s32.totalorder %s14, 0
    %p97 = por %p95, %p96
    %p98 = scmp.ne.s32.totalorder %s90, %s92
    %p99 = scmp.eq.s32.totalorder %s19, 1
    %p100 = por %p98, %p99
    %p101 = scmp.ne.s32.totalorder %s92, %s93
    %p102 = scmp.eq.s32.totalorder %s19, 0
    %p103 = por %p101, %p102
    %p104 = scmp.ne.s32.totalorder %s92, %s93
    %p105 = scmp.eq.s32.totalorder %s20, 1
    %p106 = por %p104, %p105
    %p108 = scmp.ne.s32.totalorder %s93, %s107
    %p109 = scmp.eq.s32.totalorder %s20, 0
    %p110 = por %p108, %p109
    %s112 = sadd.s32 %s111, 1
    %p115 = scmp.eq.s32.totalorder %s14, 1
    %p116 = scmp.ne.s32.totalorder %s111, %s113
    %p117 = scmp.eq.s32.totalorder %s14, 0
    %p118 = por %p116, %p117
    %p119 = scmp.ne.s32.totalorder %s111, %s113
    %p120 = scmp.eq.s32.totalorder %s19, 1
    %p121 = por %p119, %p120
    %p122 = scmp.ne.s32.totalorder %s113, %s114
    %p123 = scmp.eq.s32.totalorder %s19, 0
    %p124 = por %p122, %p123
    %p125 = scmp.ne.s32.totalorder %s113, %s114
    %p126 = scmp.eq.s32.totalorder %s20, 1
    %p127 = por %p125, %p126
    %p129 = scmp.ne.s32.totalorder %s114, %s128
    %p130 = scmp.eq.s32.totalorder %s20, 0
    %p131 = por %p129, %p130
    %s133 = sadd.s32 %s132, 1
    %p136 = scmp.eq.s32.totalorder %s14, 1
    %p137 = scmp.ne.s32.totalorder %s132, %s134
    %p138 = scmp.eq.s32.totalorder %s14, 0
    %p139 = por %p137, %p138
    %p140 = scmp.ne.s32.totalorder %s132, %s134
    %p141 = scmp.eq.s32.totalorder %s19, 1
    %p142 = por %p140, %p141
    %p143 = scmp.ne.s32.totalorder %s134, %s135
    %p144 = scmp.eq.s32.totalorder %s19, 0
    %p145 = por %p143, %p144
    %p146 = scmp.ne.s32.totalorder %s134, %s135
    %p147 = scmp.eq.s32.totalorder %s20, 1
    %p148 = por %p146, %p147
    %p150 = scmp.ne.s32.totalorder %s135, %s149
    %p151 = scmp.eq.s32.totalorder %s20, 0
    %p152 = por %p150, %p151
    %s153 = ssub.s32 %s14, %s21
    %p154 = scmp.eq.s32.totalorder %s153, 0
    %s156 = sadd.s32 %s155, 1
    %s157 = scalar_select %p154, %s155, %s156
    %p160 = pneg %p154
    %p161 = scmp.eq.s32.totalorder %s14, 1
    %p162 = por %p160, %p161
    %p163 = scmp.ne.s32.totalorder %s155, %s158
    %p164 = scmp.eq.s32.totalorder %s14, 0
    %p165 = por %p163, %p164
    %p166 = scmp.ne.s32.totalorder %s155, %s158
    %p167 = scmp.eq.s32.totalorder %s19, 1
    %p168 = por %p166, %p167
    %p169 = scmp.ne.s32.totalorder %s158, %s159
    %p170 = scmp.eq.s32.totalorder %s19, 0
    %p171 = por %p169, %p170
    %p172 = scmp.ne.s32.totalorder %s158, %s159
    %p173 = scmp.eq.s32.totalorder %s20, 1
    %p174 = por %p172, %p173
    %p176 = scmp.ne.s32.totalorder %s159, %s175
    %p177 = scmp.eq.s32.totalorder %s20, 0
    %p178 = por %p176, %p177
    %s179 = ssub.s32 %s14, %s21
    %p180 = scmp.eq.s32.totalorder %s179, 0
    %s182 = sadd.s32 %s181, 1
    %s183 = scalar_select %p180, %s181, %s182
    %p186 = pneg %p180
    %p187 = scmp.eq.s32.totalorder %s14, 1
    %p188 = por %p186, %p187
    %p189 = scmp.ne.s32.totalorder %s181, %s184
    %p190 = scmp.eq.s32.totalorder %s14, 0
    %p191 = por %p189, %p190
    %p192 = scmp.ne.s32.totalorder %s181, %s184
    %p193 = scmp.eq.s32.totalorder %s19, 1
    %p194 = por %p192, %p193
    %p195 = scmp.ne.s32.totalorder %s184, %s185
    %p196 = scmp.eq.s32.totalorder %s19, 0
    %p197 = por %p195, %p196
    %p198 = scmp.ne.s32.totalorder %s184, %s185
    %p199 = scmp.eq.s32.totalorder %s20, 1
    %p200 = por %p198, %p199
    %p202 = scmp.ne.s32.totalorder %s185, %s201
    %p203 = scmp.eq.s32.totalorder %s20, 0
    %p204 = por %p202, %p203
    %p205 = scmp.le.s32.totalorder 1, %s14
    %p206 = scmp.lt.s32.totalorder %s14, 3
    %p207 = pnand %p205, %p206
    %p208 = pneg %p207
    // Predicated region
    $region9: #{pvconv_forward.7} parent=5 // pred_check
      _
    $region10: #{pvconv_forward.7} parent=5 // pred_check_branch
      %210 = sbr.rel (%p207) target = $region12
    $region11: #{pvconv_forward.7} parent=5 // pred_region
      %s211 = ssub.s32 %s14, 1
      // Predicated region
      $region13: #{pvconv_forward.7} parent=11 // pred_check
        %p212 = pneg %p61
      $region14: #{pvconv_forward.7} parent=11 // pred_check_branch
        %214 = sbr.rel (%p212) target = $region16
      $region15: #{pvconv_forward.7} parent=11 // pred_region
        _
      $region16: #{pvconv_forward.7} parent=11 // pred_fallthru
        _
      // Predicated region
      $region17: #{pvconv_forward.7} parent=11 // pred_check
        %p215 = pneg %p82
      $region18: #{pvconv_forward.7} parent=11 // pred_check_branch
        %217 = sbr.rel (%p215) target = $region20
      $region19: #{pvconv_forward.7} parent=11 // pred_region
        _
      $region20: #{pvconv_forward.7} parent=11 // pred_fallthru
        _
      // Predicated region
      $region21: #{pvconv_forward.7} parent=11 // pred_check
        %p218 = pneg %p103
      $region22: #{pvconv_forward.7} parent=11 // pred_check_branch
        %220 = sbr.rel (%p218) target = $region24
      $region23: #{pvconv_forward.7} parent=11 // pred_region
        _
      $region24: #{pvconv_forward.7} parent=11 // pred_fallthru
        _
      // Predicated region
      $region25: #{pvconv_forward.7} parent=11 // pred_check
        %p221 = pneg %p124
      $region26: #{pvconv_forward.7} parent=11 // pred_check_branch
        %223 = sbr.rel (%p221) target = $region28
      $region27: #{pvconv_forward.7} parent=11 // pred_region
        _
      $region28: #{pvconv_forward.7} parent=11 // pred_fallthru
        _
      // Predicated region
      $region29: #{pvconv_forward.7} parent=11 // pred_check
        %p224 = pneg %p145
      $region30: #{pvconv_forward.7} parent=11 // pred_check_branch
        %226 = sbr.rel (%p224) target = $region32
      $region31: #{pvconv_forward.7} parent=11 // pred_region
        _
      $region32: #{pvconv_forward.7} parent=11 // pred_fallthru
        _
    $region12: #{pvconv_forward.7} parent=5 // pred_fallthru
      _
    %p227 = scmp.lt.s32.totalorder %s14, 2
    // Predicated region
    $region33: #{pvconv_forward.7} parent=5 // pred_check
      %p228 = pneg %p227
    $region34: #{pvconv_forward.7} parent=5 // pred_check_branch
      %230 = sbr.rel (%p228) target = $region36
    $region35: #{pvconv_forward.7} parent=5 // pred_region
      // Predicated region
      $region37: #{pvconv_forward.7} parent=35 // pred_check
        %p231 = pneg %p34
      $region38: #{pvconv_forward.7} parent=35 // pred_check_branch
        %233 = sbr.rel (%p231) target = $region40
      $region39: #{pvconv_forward.7} parent=35 // pred_region
        %p234 = scmp.lt.s32.totalorder %s14, 1
        %s235 = scalar_select %p234, %s14, 1
        %s236 = smul.addr %s235, 8
        %s237 = scalar_lea.vmem %s0, %s236
      $region40: #{pvconv_forward.7} parent=35 // pred_fallthru
        _
    $region36: #{pvconv_forward.7} parent=5 // pred_fallthru
      _
    %p238 = scmp.le.s32.totalorder 1, %s14
    %p239 = scmp.lt.s32.totalorder %s14, 3
    %p240 = pnand %p238, %p239
    %p241 = pneg %p240
    // Predicated region
    $region41: #{pvconv_forward.7} parent=5 // pred_check
      _
    $region42: #{pvconv_forward.7} parent=5 // pred_check_branch
      %243 = sbr.rel (%p240) target = $region44
    $region43: #{pvconv_forward.7} parent=5 // pred_region
      %s244 = ssub.s32 %s14, 1
      %p245 = scmp.lt.s32.totalorder %s19, 1
      %s246 = scalar_select %p245, %s19, 1
      %s247 = smul.addr %s246, 8
      %s248 = scalar_lea.vmem %s0, %s247
      %p249 = pneg %p40
      %p250 = pneg %p37
      %p251 = pneg %p61
      %p252 = pneg %p58
      %p253 = pneg %p82
      %p254 = pneg %p79
      %p255 = pneg %p103
      %p256 = pneg %p100
      %p257 = pneg %p124
      %p258 = pneg %p121
      %p259 = pneg %p145
      %p260 = pneg %p142
      %p261 = pneg %p171
      %p262 = pneg %p168
      %p263 = scmp.lt.s32.totalorder %s19, 1
      %s264 = scalar_select %p263, %s19, 1
      %s265 = smul.addr %s264, 8
      %s266 = scalar_lea.vmem %s6, %s265
      %p267 = pneg %p197
      %p268 = pneg %p194
      %p269 = scmp.lt.s32.totalorder %s19, 1
      %s270 = scalar_select %p269, %s19, 1
      %s271 = smul.addr %s270, 8
      %s272 = scalar_lea.vmem %s7, %s271
      %p273 = scmp.lt.s32.totalorder %s19, 1
      %s274 = scalar_select %p273, %s19, 1
      %s275 = smul.addr %s274, 8
      %s276 = scalar_lea.vmem %s0, %s275
      %p277 = scmp.lt.s32.totalorder %s19, 1
      %s278 = scalar_select %p277, %s19, 1
      %s279 = smul.addr %s278, 8
      %s280 = scalar_lea.vmem %s6, %s279
      %p281 = scmp.lt.s32.totalorder %s19, 1
      %s282 = scalar_select %p281, %s19, 1
      %s283 = smul.addr %s282, 8
      %s284 = scalar_lea.vmem %s7, %s283
      %v286 = vld [vmem:[%s276] sm:$0xff]
      %v287 = vld [vmem:[%s4] sm:$0xff]
      %289 = vset.pattern.permute.xlu0 0
      %290 = vperm.xlu0 %289, %v287
      %v291 = vpop.permute.xlu0 %290
      %v293 = vmul.f32 %v286, %v291
      %v294 = vld [vmem:[%s5] sm:$0xff]
      %296 = vset.pattern.permute.xlu0 0
      %297 = vperm.xlu0 %296, %v294
      %v298 = vpop.permute.xlu0 %297
      %v300 = vadd.f32 %v293, %v298
      %vm301 = vcmp.gt.f32.partialorder %v300, 0.0
      %v302 = vmul.f32 %v300, 0.1
      %v303 = vsel %vm301, %v300, %v302
      %vm304 = vcmask 1048064
      %305 = vrot.lane.b32.xlu0 %v303, 64
      %v306 = vpop.permute.xlu0 %305
      %v307 = vsel %vm304, %v306, %v303
      %308 = vrot.lane.b32.xlu0 %v307, 64
      %v309 = vpop.permute.xlu0 %308
      %v310 = vsel %vm304, %v309, %v303
      %v311 = vld [vmem:[%s2] sm:$0x1]
      %v313 = vlaneseq
      %v314 = vshrl.u32 %v313, 7
      %v315 = vsub.s32 0, %v314
      %v316 = vrot.slane %v311, %v315
      %317 = vrot.lane.b32.xlu0 %v316, 43
      %v318 = vpop.permute.xlu0 %317
      %v320 = vmul.f32 %v310, %v318
      %v321 = vpack.c.bf16 %v320, %v320
      %v322 = vld [vmem:[%s1] sm:$0xf]
      %s323 = scalar_lea.vmem %s2, 1
      %v324 = vld [vmem:[%s323] sm:$0x1]
      %v326 = vlaneseq
      %v327 = vshrl.u32 %v326, 7
      %v328 = vsub.s32 0, %v327
      %v329 = vrot.slane %v324, %v328
      %330 = vrot.lane.b32.xlu0 %v329, 44
      %v331 = vpop.permute.xlu0 %330
      %v333 = vmul.f32 %v310, %v331
      %v334 = vpack.c.bf16 %v333, %v333
      %s335 = scalar_lea.vmem %s1, 4
      %v336 = vld [vmem:[%s335] sm:$0xf]
      %338 = vrot.lane.b32.xlu0 %v334, 84
      %v339 = vpop.permute.xlu0 %338
      %vm340 = vcmask 64512
      %v342 = vsel %vm340, %v336, 0
      %vm344 = vcmask 1043456
      %v346 = vsel %vm344, %v339, 0
      %348 = vmatprep.subr.bf16.mxu0 0
      %349 = vmatpush1.bf16.msra.mxu0 %v346
      %350 = vmatprep.subr.bf16.mxu0 0
      %351 = vmatpush1.bf16.msra.mxu0 0
      %352 = vmatprep.subr.bf16.mxu0 0
      %353 = vmatpush1.bf16.msra.mxu0 0
      %354 = vmatprep.subr.bf16.mxu0 0
      %355 = vmatpush1.bf16.msra.mxu0 0
      %356 = vmatprep.subr.bf16.mxu0 0
      %357 = vmatpush1.bf16.msra.mxu0 0
      %358 = vmatprep.subr.bf16.mxu0 0
      %359 = vmatpush1.bf16.msra.mxu0 0
      %360 = vmatprep.subr.bf16.mxu0 0
      %361 = vmatpush1.bf16.msra.mxu0 0
      %362 = vmatprep.subr.bf16.mxu0 0
      %363 = vmatpush1.bf16.msra.mxu0 0
      %364 = vmatprep.subr.bf16.mxu0 0
      %365 = vmatpush1.bf16.msra.mxu0 0
      %366 = vmatprep.subr.bf16.mxu0 0
      %367 = vmatpush1.bf16.msra.mxu0 0
      %368 = vmatprep.subr.bf16.mxu0 0
      %369 = vmatpush1.bf16.msra.mxu0 0
      %370 = vmatprep.subr.bf16.mxu0 0
      %371 = vmatpush1.bf16.msra.mxu0 0
      %372 = vmatprep.subr.bf16.mxu0 0
      %373 = vmatpush1.bf16.msra.mxu0 0
      %374 = vmatprep.subr.bf16.mxu0 0
      %375 = vmatpush1.bf16.msra.mxu0 0
      %376 = vmatprep.subr.bf16.mxu0 0
      %377 = vmatpush1.bf16.msra.mxu0 0
      %378 = vmatprep.subr.bf16.mxu0 0
      %379 = vmatpush1.bf16.msra.mxu0 0
      %380 = vmatprep.mubr.bf16.mxu0 0
      %381 = vmatmul.mubr.bf16.gmra.mrb[0].mxu0 %v342
      %v382 = vpop.f32.mrb[0].mxu0
      %v383 = vadd.f32 0.0, %v382
      %v384 = vpop.f32.mrb[0].mxu0
      %v385 = vpop.f32.mrb[0].mxu0
      %v386 = vpop.f32.mrb[0].mxu0
      %387 = vdwg.mxu0
      %389 = vrot.lane.b32.xlu0 %v321, 85
      %v390 = vpop.permute.xlu0 %389
      %v392 = vsel %vm340, %v322, 0
      %v395 = vsel %vm344, %v390, 0
      %397 = vmatprep.subr.bf16.mxu0 0
      %398 = vmatpush1.bf16.msra.mxu0 %v395
      %399 = vmatprep.subr.bf16.mxu0 0
      %400 = vmatpush1.bf16.msra.mxu0 0
      %401 = vmatprep.subr.bf16.mxu0 0
      %402 = vmatpush1.bf16.msra.mxu0 0
      %403 = vmatprep.subr.bf16.mxu0 0
      %404 = vmatpush1.bf16.msra.mxu0 0
      %405 = vmatprep.subr.bf16.mxu0 0
      %406 = vmatpush1.bf16.msra.mxu0 0
      %407 = vmatprep.subr.bf16.mxu0 0
      %408 = vmatpush1.bf16.msra.mxu0 0
      %409 = vmatprep.subr.bf16.mxu0 0
      %410 = vmatpush1.bf16.msra.mxu0 0
      %411 = vmatprep.subr.bf16.mxu0 0
      %412 = vmatpush1.bf16.msra.mxu0 0
      %413 = vmatprep.subr.bf16.mxu0 0
      %414 = vmatpush1.bf16.msra.mxu0 0
      %415 = vmatprep.subr.bf16.mxu0 0
      %416 = vmatpush1.bf16.msra.mxu0 0
      %417 = vmatprep.subr.bf16.mxu0 0
      %418 = vmatpush1.bf16.msra.mxu0 0
      %419 = vmatprep.subr.bf16.mxu0 0
      %420 = vmatpush1.bf16.msra.mxu0 0
      %421 = vmatprep.subr.bf16.mxu0 0
      %422 = vmatpush1.bf16.msra.mxu0 0
      %423 = vmatprep.subr.bf16.mxu0 0
      %424 = vmatpush1.bf16.msra.mxu0 0
      %425 = vmatprep.subr.bf16.mxu0 0
      %426 = vmatpush1.bf16.msra.mxu0 0
      %427 = vmatprep.subr.bf16.mxu0 0
      %428 = vmatpush1.bf16.msra.mxu0 0
      %429 = vmatprep.mubr.bf16.mxu0 0
      %430 = vmatmul.mubr.bf16.gmra.mrb[0].mxu0 %v392
      %v431 = vpop.f32.mrb[0].mxu0
      %v432 = vadd.f32 %v383, %v431
      %v433 = vpop.f32.mrb[0].mxu0
      %v434 = vpop.f32.mrb[0].mxu0
      %v435 = vpop.f32.mrb[0].mxu0
      %436 = vdwg.mxu0
      %s437 = scalar_lea.vmem %s2, 2
      %v438 = vld [vmem:[%s437] sm:$0x1]
      %v440 = vlaneseq
      %v441 = vshrl.u32 %v440, 7
      %v442 = vsub.s32 0, %v441
      %v443 = vrot.slane %v438, %v442
      %444 = vrot.lane.b32.xlu0 %v443, 45
      %v445 = vpop.permute.xlu0 %444
      %v447 = vmul.f32 %v310, %v445
      %v448 = vpack.c.bf16 %v447, %v447
      %s449 = scalar_lea.vmem %s1, 8
      %v450 = vld [vmem:[%s449] sm:$0xf]
      %452 = vrot.lane.b32.xlu0 %v448, 83
      %v453 = vpop.permute.xlu0 %452
      %v455 = vsel %vm340, %v450, 0
      %v458 = vsel %vm344, %v453, 0
      %460 = vmatprep.subr.bf16.mxu0 0
      %461 = vmatpush1.bf16.msra.mxu0 %v458
      %462 = vmatprep.subr.bf16.mxu0 0
      %463 = vmatpush1.bf16.msra.mxu0 0
      %464 = vmatprep.subr.bf16.mxu0 0
      %465 = vmatpush1.bf16.msra.mxu0 0
      %466 = vmatprep.subr.bf16.mxu0 0
      %467 = vmatpush1.bf16.msra.mxu0 0
      %468 = vmatprep.subr.bf16.mxu0 0
      %469 = vmatpush1.bf16.msra.mxu0 0
      %470 = vmatprep.subr.bf16.mxu0 0
      %471 = vmatpush1.bf16.msra.mxu0 0
      %472 = vmatprep.subr.bf16.mxu0 0
      %473 = vmatpush1.bf16.msra.mxu0 0
      %474 = vmatprep.subr.bf16.mxu0 0
      %475 = vmatpush1.bf16.msra.mxu0 0
      %476 = vmatprep.subr.bf16.mxu0 0
      %477 = vmatpush1.bf16.msra.mxu0 0
      %478 = vmatprep.subr.bf16.mxu0 0
      %479 = vmatpush1.bf16.msra.mxu0 0
      %480 = vmatprep.subr.bf16.mxu0 0
      %481 = vmatpush1.bf16.msra.mxu0 0
      %482 = vmatprep.subr.bf16.mxu0 0
      %483 = vmatpush1.bf16.msra.mxu0 0
      %484 = vmatprep.subr.bf16.mxu0 0
      %485 = vmatpush1.bf16.msra.mxu0 0
      %486 = vmatprep.subr.bf16.mxu0 0
      %487 = vmatpush1.bf16.msra.mxu0 0
      %488 = vmatprep.subr.bf16.mxu0 0
      %489 = vmatpush1.bf16.msra.mxu0 0
      %490 = vmatprep.subr.bf16.mxu0 0
      %491 = vmatpush1.bf16.msra.mxu0 0
      %492 = vmatprep.mubr.bf16.mxu0 0
      %493 = vmatmul.mubr.bf16.gmra.mrb[0].mxu0 %v455
      %v494 = vpop.f32.mrb[0].mxu0
      %v495 = vadd.f32 0.0, %v494
      %v496 = vpop.f32.mrb[0].mxu0
      %v497 = vpop.f32.mrb[0].mxu0
      %v498 = vpop.f32.mrb[0].mxu0
      %499 = vdwg.mxu0
      %v500 = vadd.f32 %v432, %v495
      %s501 = scalar_lea.vmem %s2, 3
      %v502 = vld [vmem:[%s501] sm:$0x1]
      %v504 = vlaneseq
      %v505 = vshrl.u32 %v504, 7
      %v506 = vsub.s32 0, %v505
      %v507 = vrot.slane %v502, %v506
      %508 = vrot.lane.b32.xlu0 %v507, 47
      %v509 = vpop.permute.xlu0 %508
      %v511 = vmul.f32 %v310, %v509
      %v512 = vpack.c.bf16 %v511, %v511
      %s513 = scalar_lea.vmem %s1, 12
      %v514 = vld [vmem:[%s513] sm:$0xf]
      %516 = vrot.lane.b32.xlu0 %v512, 81
      %v517 = vpop.permute.xlu0 %516
      %v519 = vsel %vm340, %v514, 0
      %v522 = vsel %vm344, %v517, 0
      %524 = vmatprep.subr.bf16.mxu0 0
      %525 = vmatpush1.bf16.msra.mxu0 %v522
      %526 = vmatprep.subr.bf16.mxu0 0
      %527 = vmatpush1.bf16.msra.mxu0 0
      %528 = vmatprep.subr.bf16.mxu0 0
      %529 = vmatpush1.bf16.msra.mxu0 0
      %530 = vmatprep.subr.bf16.mxu0 0
      %531 = vmatpush1.bf16.msra.mxu0 0
      %532 = vmatprep.subr.bf16.mxu0 0
      %533 = vmatpush1.bf16.msra.mxu0 0
      %534 = vmatprep.subr.bf16.mxu0 0
      %535 = vmatpush1.bf16.msra.mxu0 0
      %536 = vmatprep.subr.bf16.mxu0 0
      %537 = vmatpush1.bf16.msra.mxu0 0
      %538 = vmatprep.subr.bf16.mxu0 0
      %539 = vmatpush1.bf16.msra.mxu0 0
      %540 = vmatprep.subr.bf16.mxu0 0
      %541 = vmatpush1.bf16.msra.mxu0 0
      %542 = vmatprep.subr.bf16.mxu0 0
      %543 = vmatpush1.bf16.msra.mxu0 0
      %544 = vmatprep.subr.bf16.mxu0 0
      %545 = vmatpush1.bf16.msra.mxu0 0
      %546 = vmatprep.subr.bf16.mxu0 0
      %547 = vmatpush1.bf16.msra.mxu0 0
      %548 = vmatprep.subr.bf16.mxu0 0
      %549 = vmatpush1.bf16.msra.mxu0 0
      %550 = vmatprep.subr.bf16.mxu0 0
      %551 = vmatpush1.bf16.msra.mxu0 0
      %552 = vmatprep.subr.bf16.mxu0 0
      %553 = vmatpush1.bf16.msra.mxu0 0
      %554 = vmatprep.subr.bf16.mxu0 0
      %555 = vmatpush1.bf16.msra.mxu0 0
      %556 = vmatprep.mubr.bf16.mxu0 0
      %557 = vmatmul.mubr.bf16.gmra.mrb[0].mxu0 %v519
      %v558 = vpop.f32.mrb[0].mxu0
      %v559 = vadd.f32 0.0, %v558
      %v560 = vpop.f32.mrb[0].mxu0
      %v561 = vpop.f32.mrb[0].mxu0
      %v562 = vpop.f32.mrb[0].mxu0
      %563 = vdwg.mxu0
      %v564 = vadd.f32 %v500, %v559
      %s565 = scalar_lea.vmem %s2, 4
      %v566 = vld [vmem:[%s565] sm:$0x1]
      %v568 = vlaneseq
      %v569 = vshrl.u32 %v568, 7
      %v570 = vsub.s32 0, %v569
      %v571 = vrot.slane %v566, %v570
      %572 = vrot.lane.b32.xlu0 %v571, 48
      %v573 = vpop.permute.xlu0 %572
      %v575 = vmul.f32 %v310, %v573
      %v576 = vpack.c.bf16 %v575, %v575
      %s577 = scalar_lea.vmem %s1, 16
      %v578 = vld [vmem:[%s577] sm:$0xf]
      %580 = vrot.lane.b32.xlu0 %v576, 80
      %v581 = vpop.permute.xlu0 %580
      %v583 = vsel %vm340, %v578, 0
      %v586 = vsel %vm344, %v581, 0
      %588 = vmatprep.subr.bf16.mxu0 0
      %589 = vmatpush1.bf16.msra.mxu0 %v586
      %590 = vmatprep.subr.bf16.mxu0 0
      %591 = vmatpush1.bf16.msra.mxu0 0
      %592 = vmatprep.subr.bf16.mxu0 0
      %593 = vmatpush1.bf16.msra.mxu0 0
      %594 = vmatprep.subr.bf16.mxu0 0
      %595 = vmatpush1.bf16.msra.mxu0 0
      %596 = vmatprep.subr.bf16.mxu0 0
      %597 = vmatpush1.bf16.msra.mxu0 0
      %598 = vmatprep.subr.bf16.mxu0 0
      %599 = vmatpush1.bf16.msra.mxu0 0
      %600 = vmatprep.subr.bf16.mxu0 0
      %601 = vmatpush1.bf16.msra.mxu0 0
      %602 = vmatprep.subr.bf16.mxu0 0
      %603 = vmatpush1.bf16.msra.mxu0 0
      %604 = vmatprep.subr.bf16.mxu0 0
      %605 = vmatpush1.bf16.msra.mxu0 0
      %606 = vmatprep.subr.bf16.mxu0 0
      %607 = vmatpush1.bf16.msra.mxu0 0
      %608 = vmatprep.subr.bf16.mxu0 0
      %609 = vmatpush1.bf16.msra.mxu0 0
      %610 = vmatprep.subr.bf16.mxu0 0
      %611 = vmatpush1.bf16.msra.mxu0 0
      %612 = vmatprep.subr.bf16.mxu0 0
      %613 = vmatpush1.bf16.msra.mxu0 0
      %614 = vmatprep.subr.bf16.mxu0 0
      %615 = vmatpush1.bf16.msra.mxu0 0
      %616 = vmatprep.subr.bf16.mxu0 0
      %617 = vmatpush1.bf16.msra.mxu0 0
      %618 = vmatprep.subr.bf16.mxu0 0
      %619 = vmatpush1.bf16.msra.mxu0 0
      %620 = vmatprep.mubr.bf16.mxu0 0
      %621 = vmatmul.mubr.bf16.gmra.mrb[0].mxu0 %v583
      %v622 = vpop.f32.mrb[0].mxu0
      %v623 = vadd.f32 0.0, %v622
      %v624 = vpop.f32.mrb[0].mxu0
      %v625 = vpop.f32.mrb[0].mxu0
      %v626 = vpop.f32.mrb[0].mxu0
      %627 = vdwg.mxu0
      %v628 = vadd.f32 %v564, %v623
      %s629 = scalar_lea.vmem %s2, 5
      %v630 = vld [vmem:[%s629] sm:$0x1]
      %v632 = vlaneseq
      %v633 = vshrl.u32 %v632, 7
      %v634 = vsub.s32 0, %v633
      %v635 = vrot.slane %v630, %v634
      %636 = vrot.lane.b32.xlu0 %v635, 49
      %v637 = vpop.permute.xlu0 %636
      %v639 = vmul.f32 %v310, %v637
      %v640 = vpack.c.bf16 %v639, %v639
      %s641 = scalar_lea.vmem %s1, 20
      %v642 = vld [vmem:[%s641] sm:$0xf]
      %644 = vrot.lane.b32.xlu0 %v640, 79
      %v645 = vpop.permute.xlu0 %644
      %v647 = vsel %vm340, %v642, 0
      %v650 = vsel %vm344, %v645, 0
      %652 = vmatprep.subr.bf16.mxu0 0
      %653 = vmatpush1.bf16.msra.mxu0 %v650
      %654 = vmatprep.subr.bf16.mxu0 0
      %655 = vmatpush1.bf16.msra.mxu0 0
      %656 = vmatprep.subr.bf16.mxu0 0
      %657 = vmatpush1.bf16.msra.mxu0 0
      %658 = vmatprep.subr.bf16.mxu0 0
      %659 = vmatpush1.bf16.msra.mxu0 0
      %660 = vmatprep.subr.bf16.mxu0 0
      %661 = vmatpush1.bf16.msra.mxu0 0
      %662 = vmatprep.subr.bf16.mxu0 0
      %663 = vmatpush1.bf16.msra.mxu0 0
      %664 = vmatprep.subr.bf16.mxu0 0
      %665 = vmatpush1.bf16.msra.mxu0 0
      %666 = vmatprep.subr.bf16.mxu0 0
      %667 = vmatpush1.bf16.msra.mxu0 0
      %668 = vmatprep.subr.bf16.mxu0 0
      %669 = vmatpush1.bf16.msra.mxu0 0
      %670 = vmatprep.subr.bf16.mxu0 0
      %671 = vmatpush1.bf16.msra.mxu0 0
      %672 = vmatprep.subr.bf16.mxu0 0
      %673 = vmatpush1.bf16.msra.mxu0 0
      %674 = vmatprep.subr.bf16.mxu0 0
      %675 = vmatpush1.bf16.msra.mxu0 0
      %676 = vmatprep.subr.bf16.mxu0 0
      %677 = vmatpush1.bf16.msra.mxu0 0
      %678 = vmatprep.subr.bf16.mxu0 0
      %679 = vmatpush1.bf16.msra.mxu0 0
      %680 = vmatprep.subr.bf16.mxu0 0
      %681 = vmatpush1.bf16.msra.mxu0 0
      %682 = vmatprep.subr.bf16.mxu0 0
      %683 = vmatpush1.bf16.msra.mxu0 0
      %684 = vmatprep.mubr.bf16.mxu0 0
      %685 = vmatmul.mubr.bf16.gmra.mrb[0].mxu0 %v647
      %v686 = vpop.f32.mrb[0].mxu0
      %v687 = vadd.f32 0.0, %v686
      %v688 = vpop.f32.mrb[0].mxu0
      %v689 = vpop.f32.mrb[0].mxu0
      %v690 = vpop.f32.mrb[0].mxu0
      %691 = vdwg.mxu0
      %v692 = vadd.f32 %v628, %v687
      %s693 = scalar_lea.vmem %s2, 6
      %v694 = vld [vmem:[%s693] sm:$0x1]
      %v696 = vlaneseq
      %v697 = vshrl.u32 %v696, 7
      %v698 = vsub.s32 0, %v697
      %v699 = vrot.slane %v694, %v698
      %700 = vrot.lane.b32.xlu0 %v699, 51
      %v701 = vpop.permute.xlu0 %700
      %v703 = vmul.f32 %v310, %v701
      %v704 = vpack.c.bf16 %v703, %v703
      %s705 = scalar_lea.vmem %s1, 24
      %v706 = vld [vmem:[%s705] sm:$0xf]
      %708 = vrot.lane.b32.xlu0 %v704, 77
      %v709 = vpop.permute.xlu0 %708
      %v711 = vsel %vm340, %v706, 0
      %v714 = vsel %vm344, %v709, 0
      %716 = vmatprep.subr.bf16.mxu0 0
      %717 = vmatpush1.bf16.msra.mxu0 %v714
      %718 = vmatprep.subr.bf16.mxu0 0
      %719 = vmatpush1.bf16.msra.mxu0 0
      %720 = vmatprep.subr.bf16.mxu0 0
      %721 = vmatpush1.bf16.msra.mxu0 0
      %722 = vmatprep.subr.bf16.mxu0 0
      %723 = vmatpush1.bf16.msra.mxu0 0
      %724 = vmatprep.subr.bf16.mxu0 0
      %725 = vmatpush1.bf16.msra.mxu0 0
      %726 = vmatprep.subr.bf16.mxu0 0
      %727 = vmatpush1.bf16.msra.mxu0 0
      %728 = vmatprep.subr.bf16.mxu0 0
      %729 = vmatpush1.bf16.msra.mxu0 0
      %730 = vmatprep.subr.bf16.mxu0 0
      %731 = vmatpush1.bf16.msra.mxu0 0
      %732 = vmatprep.subr.bf16.mxu0 0
      %733 = vmatpush1.bf16.msra.mxu0 0
      %734 = vmatprep.subr.bf16.mxu0 0
      %735 = vmatpush1.bf16.msra.mxu0 0
      %736 = vmatprep.subr.bf16.mxu0 0
      %737 = vmatpush1.bf16.msra.mxu0 0
      %738 = vmatprep.subr.bf16.mxu0 0
      %739 = vmatpush1.bf16.msra.mxu0 0
      %740 = vmatprep.subr.bf16.mxu0 0
      %741 = vmatpush1.bf16.msra.mxu0 0
      %742 = vmatprep.subr.bf16.mxu0 0
      %743 = vmatpush1.bf16.msra.mxu0 0
      %744 = vmatprep.subr.bf16.mxu0 0
      %745 = vmatpush1.bf16.msra.mxu0 0
      %746 = vmatprep.subr.bf16.mxu0 0
      %747 = vmatpush1.bf16.msra.mxu0 0
      %748 = vmatprep.mubr.bf16.mxu0 0
      %749 = vmatmul.mubr.bf16.gmra.mrb[0].mxu0 %v711
      %v750 = vpop.f32.mrb[0].mxu0
      %v751 = vadd.f32 0.0, %v750
      %v752 = vpop.f32.mrb[0].mxu0
      %v753 = vpop.f32.mrb[0].mxu0
      %v754 = vpop.f32.mrb[0].mxu0
      %755 = vdwg.mxu0
      %v756 = vadd.f32 %v692, %v751
      %s757 = scalar_lea.vmem %s2, 7
      %v758 = vld [vmem:[%s757] sm:$0x1]
      %v760 = vlaneseq
      %v761 = vshrl.u32 %v760, 7
      %v762 = vsub.s32 0, %v761
      %v763 = vrot.slane %v758, %v762
      %764 = vrot.lane.b32.xlu0 %v763, 52
      %v765 = vpop.permute.xlu0 %764
      %v767 = vmul.f32 %v310, %v765
      %v768 = vpack.c.bf16 %v767, %v767
      %s769 = scalar_lea.vmem %s1, 28
      %v770 = vld [vmem:[%s769] sm:$0xf]
      %772 = vrot.lane.b32.xlu0 %v768, 76
      %v773 = vpop.permute.xlu0 %772
      %v775 = vsel %vm340, %v770, 0
      %v778 = vsel %vm344, %v773, 0
      %780 = vmatprep.subr.bf16.mxu0 0
      %781 = vmatpush1.bf16.msra.mxu0 %v778
      %782 = vmatprep.subr.bf16.mxu0 0
      %783 = vmatpush1.bf16.msra.mxu0 0
      %784 = vmatprep.subr.bf16.mxu0 0
      %785 = vmatpush1.bf16.msra.mxu0 0
      %786 = vmatprep.subr.bf16.mxu0 0
      %787 = vmatpush1.bf16.msra.mxu0 0
      %788 = vmatprep.subr.bf16.mxu0 0
      %789 = vmatpush1.bf16.msra.mxu0 0
      %790 = vmatprep.subr.bf16.mxu0 0
      %791 = vmatpush1.bf16.msra.mxu0 0
      %792 = vmatprep.subr.bf16.mxu0 0
      %793 = vmatpush1.bf16.msra.mxu0 0
      %794 = vmatprep.subr.bf16.mxu0 0
      %795 = vmatpush1.bf16.msra.mxu0 0
      %796 = vmatprep.subr.bf16.mxu0 0
      %797 = vmatpush1.bf16.msra.mxu0 0
      %798 = vmatprep.subr.bf16.mxu0 0
      %799 = vmatpush1.bf16.msra.mxu0 0
      %800 = vmatprep.subr.bf16.mxu0 0
      %801 = vmatpush1.bf16.msra.mxu0 0
      %802 = vmatprep.subr.bf16.mxu0 0
      %803 = vmatpush1.bf16.msra.mxu0 0
      %804 = vmatprep.subr.bf16.mxu0 0
      %805 = vmatpush1.bf16.msra.mxu0 0
      %806 = vmatprep.subr.bf16.mxu0 0
      %807 = vmatpush1.bf16.msra.mxu0 0
      %808 = vmatprep.subr.bf16.mxu0 0
      %809 = vmatpush1.bf16.msra.mxu0 0
      %810 = vmatprep.subr.bf16.mxu0 0
      %811 = vmatpush1.bf16.msra.mxu0 0
      %812 = vmatprep.mubr.bf16.mxu0 0
      %813 = vmatmul.mubr.bf16.gmra.mrb[0].mxu0 %v775
      %v814 = vpop.f32.mrb[0].mxu0
      %v815 = vadd.f32 0.0, %v814
      %v816 = vpop.f32.mrb[0].mxu0
      %v817 = vpop.f32.mrb[0].mxu0
      %v818 = vpop.f32.mrb[0].mxu0
      %819 = vdwg.mxu0
      %v820 = vadd.f32 %v756, %v815
      %s821 = scalar_lea.vmem %s2, 8
      %v822 = vld [vmem:[%s821] sm:$0x1]
      %v824 = vlaneseq
      %v825 = vshrl.u32 %v824, 7
      %v826 = vsub.s32 0, %v825
      %v827 = vrot.slane %v822, %v826
      %828 = vrot.lane.b32.xlu0 %v827, 53
      %v829 = vpop.permute.xlu0 %828
      %v831 = vmul.f32 %v310, %v829
      %v832 = vpack.c.bf16 %v831, %v831
      %s833 = scalar_lea.vmem %s1, 32
      %v834 = vld [vmem:[%s833] sm:$0xf]
      %836 = vrot.lane.b32.xlu0 %v832, 75
      %v837 = vpop.permute.xlu0 %836
      %v839 = vsel %vm340, %v834, 0
      %v842 = vsel %vm344, %v837, 0
      %844 = vmatprep.subr.bf16.mxu0 0
      %845 = vmatpush1.bf16.msra.mxu0 %v842
      %846 = vmatprep.subr.bf16.mxu0 0
      %847 = vmatpush1.bf16.msra.mxu0 0
      %848 = vmatprep.subr.bf16.mxu0 0
      %849 = vmatpush1.bf16.msra.mxu0 0
      %850 = vmatprep.subr.bf16.mxu0 0
      %851 = vmatpush1.bf16.msra.mxu0 0
      %852 = vmatprep.subr.bf16.mxu0 0
      %853 = vmatpush1.bf16.msra.mxu0 0
      %854 = vmatprep.subr.bf16.mxu0 0
      %855 = vmatpush1.bf16.msra.mxu0 0
      %856 = vmatprep.subr.bf16.mxu0 0
      %857 = vmatpush1.bf16.msra.mxu0 0
      %858 = vmatprep.subr.bf16.mxu0 0
      %859 = vmatpush1.bf16.msra.mxu0 0
      %860 = vmatprep.subr.bf16.mxu0 0
      %861 = vmatpush1.bf16.msra.mxu0 0
      %862 = vmatprep.subr.bf16.mxu0 0
      %863 = vmatpush1.bf16.msra.mxu0 0
      %864 = vmatprep.subr.bf16.mxu0 0
      %865 = vmatpush1.bf16.msra.mxu0 0
      %866 = vmatprep.subr.bf16.mxu0 0
      %867 = vmatpush1.bf16.msra.mxu0 0
      %868 = vmatprep.subr.bf16.mxu0 0
      %869 = vmatpush1.bf16.msra.mxu0 0
      %870 = vmatprep.subr.bf16.mxu0 0
      %871 = vmatpush1.bf16.msra.mxu0 0
      %872 = vmatprep.subr.bf16.mxu0 0
      %873 = vmatpush1.bf16.msra.mxu0 0
      %874 = vmatprep.subr.bf16.mxu0 0
      %875 = vmatpush1.bf16.msra.mxu0 0
      %876 = vmatprep.mubr.bf16.mxu0 0
      %877 = vmatmul.mubr.bf16.gmra.mrb[0].mxu0 %v839
      %v878 = vpop.f32.mrb[0].mxu0
      %v879 = vadd.f32 0.0, %v878
      %v880 = vpop.f32.mrb[0].mxu0
      %v881 = vpop.f32.mrb[0].mxu0
      %v882 = vpop.f32.mrb[0].mxu0
      %883 = vdwg.mxu0
      %v884 = vadd.f32 %v820, %v879
      %s885 = scalar_lea.vmem %s2, 9
      %v886 = vld [vmem:[%s885] sm:$0x1]
      %v888 = vlaneseq
      %v889 = vshrl.u32 %v888, 7
      %v890 = vsub.s32 0, %v889
      %v891 = vrot.slane %v886, %v890
      %892 = vrot.lane.b32.xlu0 %v891, 59
      %v893 = vpop.permute.xlu0 %892
      %v895 = vmul.f32 %v310, %v893
      %v896 = vpack.c.bf16 %v895, %v895
      %s897 = scalar_lea.vmem %s1, 36
      %v898 = vld [vmem:[%s897] sm:$0xf]
      %900 = vrot.lane.b32.xlu0 %v896, 69
      %v901 = vpop.permute.xlu0 %900
      %v903 = vsel %vm340, %v898, 0
      %v906 = vsel %vm344, %v901, 0
      %908 = vmatprep.subr.bf16.mxu0 0
      %909 = vmatpush1.bf16.msra.mxu0 %v906
      %910 = vmatprep.subr.bf16.mxu0 0
      %911 = vmatpush1.bf16.msra.mxu0 0
      %912 = vmatprep.subr.bf16.mxu0 0
      %913 = vmatpush1.bf16.msra.mxu0 0
      %914 = vmatprep.subr.bf16.mxu0 0
      %915 = vmatpush1.bf16.msra.mxu0 0
      %916 = vmatprep.subr.bf16.mxu0 0
      %917 = vmatpush1.bf16.msra.mxu0 0
      %918 = vmatprep.subr.bf16.mxu0 0
      %919 = vmatpush1.bf16.msra.mxu0 0
      %920 = vmatprep.subr.bf16.mxu0 0
      %921 = vmatpush1.bf16.msra.mxu0 0
      %922 = vmatprep.subr.bf16.mxu0 0
      %923 = vmatpush1.bf16.msra.mxu0 0
      %924 = vmatprep.subr.bf16.mxu0 0
      %925 = vmatpush1.bf16.msra.mxu0 0
      %926 = vmatprep.subr.bf16.mxu0 0
      %927 = vmatpush1.bf16.msra.mxu0 0
      %928 = vmatprep.subr.bf16.mxu0 0
      %929 = vmatpush1.bf16.msra.mxu0 0
      %930 = vmatprep.subr.bf16.mxu0 0
      %931 = vmatpush1.bf16.msra.mxu0 0
      %932 = vmatprep.subr.bf16.mxu0 0
      %933 = vmatpush1.bf16.msra.mxu0 0
      %934 = vmatprep.subr.bf16.mxu0 0
      %935 = vmatpush1.bf16.msra.mxu0 0
      %936 = vmatprep.subr.bf16.mxu0 0
      %937 = vmatpush1.bf16.msra.mxu0 0
      %938 = vmatprep.subr.bf16.mxu0 0
      %939 = vmatpush1.bf16.msra.mxu0 0
      %940 = vmatprep.mubr.bf16.mxu0 0
      %941 = vmatmul.mubr.bf16.gmra.mrb[0].mxu0 %v903
      %v942 = vpop.f32.mrb[0].mxu0
      %v943 = vadd.f32 0.0, %v942
      %v944 = vpop.f32.mrb[0].mxu0
      %v945 = vpop.f32.mrb[0].mxu0
      %v946 = vpop.f32.mrb[0].mxu0
      %947 = vdwg.mxu0
      %v948 = vadd.f32 %v884, %v943
      %s949 = scalar_lea.vmem %s2, 10
      %v950 = vld [vmem:[%s949] sm:$0x1]
      %v952 = vlaneseq
      %v953 = vshrl.u32 %v952, 7
      %v954 = vsub.s32 0, %v953
      %v955 = vrot.slane %v950, %v954
      %956 = vrot.lane.b32.xlu0 %v955, 60
      %v957 = vpop.permute.xlu0 %956
      %v959 = vmul.f32 %v310, %v957
      %v960 = vpack.c.bf16 %v959, %v959
      %s961 = scalar_lea.vmem %s1, 40
      %v962 = vld [vmem:[%s961] sm:$0xf]
      %964 = vrot.lane.b32.xlu0 %v960, 68
      %v965 = vpop.permute.xlu0 %964
      %v967 = vsel %vm340, %v962, 0
      %v970 = vsel %vm344, %v965, 0
      %972 = vmatprep.subr.bf16.mxu0 0
      %973 = vmatpush1.bf16.msra.mxu0 %v970
      %974 = vmatprep.subr.bf16.mxu0 0
      %975 = vmatpush1.bf16.msra.mxu0 0
      %976 = vmatprep.subr.bf16.mxu0 0
      %977 = vmatpush1.bf16.msra.mxu0 0
      %978 = vmatprep.subr.bf16.mxu0 0
      %979 = vmatpush1.bf16.msra.mxu0 0
      %980 = vmatprep.subr.bf16.mxu0 0
      %981 = vmatpush1.bf16.msra.mxu0 0
      %982 = vmatprep.subr.bf16.mxu0 0
      %983 = vmatpush1.bf16.msra.mxu0 0
      %984 = vmatprep.subr.bf16.mxu0 0
      %985 = vmatpush1.bf16.msra.mxu0 0
      %986 = vmatprep.subr.bf16.mxu0 0
      %987 = vmatpush1.bf16.msra.mxu0 0
      %988 = vmatprep.subr.bf16.mxu0 0
      %989 = vmatpush1.bf16.msra.mxu0 0
      %990 = vmatprep.subr.bf16.mxu0 0
      %991 = vmatpush1.bf16.msra.mxu0 0
      %992 = vmatprep.subr.bf16.mxu0 0
      %993 = vmatpush1.bf16.msra.mxu0 0
      %994 = vmatprep.subr.bf16.mxu0 0
      %995 = vmatpush1.bf16.msra.mxu0 0
      %996 = vmatprep.subr.bf16.mxu0 0
      %997 = vmatpush1.bf16.msra.mxu0 0
      %998 = vmatprep.subr.bf16.mxu0 0
      %999 = vmatpush1.bf16.msra.mxu0 0
      %1000 = vmatprep.subr.bf16.mxu0 0
      %1001 = vmatpush1.bf16.msra.mxu0 0
      %1002 = vmatprep.subr.bf16.mxu0 0
      %1003 = vmatpush1.bf16.msra.mxu0 0
      %1004 = vmatprep.mubr.bf16.mxu0 0
      %1005 = vmatmul.mubr.bf16.gmra.mrb[0].mxu0 %v967
      %v1006 = vpop.f32.mrb[0].mxu0
      %v1007 = vadd.f32 0.0, %v1006
      %v1008 = vpop.f32.mrb[0].mxu0
      %v1009 = vpop.f32.mrb[0].mxu0
      %v1010 = vpop.f32.mrb[0].mxu0
      %1011 = vdwg.mxu0
      %v1012 = vadd.f32 %v948, %v1007
      %s1013 = scalar_lea.vmem %s2, 11
      %v1014 = vld [vmem:[%s1013] sm:$0x1]
      %v1016 = vlaneseq
      %v1017 = vshrl.u32 %v1016, 7
      %v1018 = vsub.s32 0, %v1017
      %v1019 = vrot.slane %v1014, %v1018
      %1020 = vrot.lane.b32.xlu0 %v1019, 61
      %v1021 = vpop.permute.xlu0 %1020
      %v1023 = vmul.f32 %v310, %v1021
      %v1024 = vpack.c.bf16 %v1023, %v1023
      %s1025 = scalar_lea.vmem %s1, 44
      %v1026 = vld [vmem:[%s1025] sm:$0xf]
      %1028 = vrot.lane.b32.xlu0 %v1024, 67
      %v1029 = vpop.permute.xlu0 %1028
      %v1031 = vsel %vm340, %v1026, 0
      %v1034 = vsel %vm344, %v1029, 0
      %1036 = vmatprep.subr.bf16.mxu0 0
      %1037 = vmatpush1.bf16.msra.mxu0 %v1034
      %1038 = vmatprep.subr.bf16.mxu0 0
      %1039 = vmatpush1.bf16.msra.mxu0 0
      %1040 = vmatprep.subr.bf16.mxu0 0
      %1041 = vmatpush1.bf16.msra.mxu0 0
      %1042 = vmatprep.subr.bf16.mxu0 0
      %1043 = vmatpush1.bf16.msra.mxu0 0
      %1044 = vmatprep.subr.bf16.mxu0 0
      %1045 = vmatpush1.bf16.msra.mxu0 0
      %1046 = vmatprep.subr.bf16.mxu0 0
      %1047 = vmatpush1.bf16.msra.mxu0 0
      %1048 = vmatprep.subr.bf16.mxu0 0
      %1049 = vmatpush1.bf16.msra.mxu0 0
      %1050 = vmatprep.subr.bf16.mxu0 0
      %1051 = vmatpush1.bf16.msra.mxu0 0
      %1052 = vmatprep.subr.bf16.mxu0 0
      %1053 = vmatpush1.bf16.msra.mxu0 0
      %1054 = vmatprep.subr.bf16.mxu0 0
      %1055 = vmatpush1.bf16.msra.mxu0 0
      %1056 = vmatprep.subr.bf16.mxu0 0
      %1057 = vmatpush1.bf16.msra.mxu0 0
      %1058 = vmatprep.subr.bf16.mxu0 0
      %1059 = vmatpush1.bf16.msra.mxu0 0
      %1060 = vmatprep.subr.bf16.mxu0 0
      %1061 = vmatpush1.bf16.msra.mxu0 0
      %1062 = vmatprep.subr.bf16.mxu0 0
      %1063 = vmatpush1.bf16.msra.mxu0 0
      %1064 = vmatprep.subr.bf16.mxu0 0
      %1065 = vmatpush1.bf16.msra.mxu0 0
      %1066 = vmatprep.subr.bf16.mxu0 0
      %1067 = vmatpush1.bf16.msra.mxu0 0
      %1068 = vmatprep.mubr.bf16.mxu0 0
      %1069 = vmatmul.mubr.bf16.gmra.mrb[0].mxu0 %v1031
      %v1070 = vpop.f32.mrb[0].mxu0
      %v1071 = vadd.f32 0.0, %v1070
      %v1072 = vpop.f32.mrb[0].mxu0
      %v1073 = vpop.f32.mrb[0].mxu0
      %v1074 = vpop.f32.mrb[0].mxu0
      %1075 = vdwg.mxu0
      %v1076 = vadd.f32 %v1012, %v1071
      %s1077 = scalar_lea.vmem %s2, 12
      %v1078 = vld [vmem:[%s1077] sm:$0x1]
      %v1080 = vlaneseq
      %v1081 = vshrl.u32 %v1080, 7
      %v1082 = vsub.s32 0, %v1081
      %v1083 = vrot.slane %v1078, %v1082
      %1084 = vrot.lane.b32.xlu0 %v1083, 63
      %v1085 = vpop.permute.xlu0 %1084
      %v1087 = vmul.f32 %v310, %v1085
      %v1088 = vpack.c.bf16 %v1087, %v1087
      %s1089 = scalar_lea.vmem %s1, 48
      %v1090 = vld [vmem:[%s1089] sm:$0xf]
      %1092 = vrot.lane.b32.xlu0 %v1088, 65
      %v1093 = vpop.permute.xlu0 %1092
      %v1095 = vsel %vm340, %v1090, 0
      %v1098 = vsel %vm344, %v1093, 0
      %1100 = vmatprep.subr.bf16.mxu0 0
      %1101 = vmatpush1.bf16.msra.mxu0 %v1098
      %1102 = vmatprep.subr.bf16.mxu0 0
      %1103 = vmatpush1.bf16.msra.mxu0 0
      %1104 = vmatprep.subr.bf16.mxu0 0
      %1105 = vmatpush1.bf16.msra.mxu0 0
      %1106 = vmatprep.subr.bf16.mxu0 0
      %1107 = vmatpush1.bf16.msra.mxu0 0
      %1108 = vmatprep.subr.bf16.mxu0 0
      %1109 = vmatpush1.bf16.msra.mxu0 0
      %1110 = vmatprep.subr.bf16.mxu0 0
      %1111 = vmatpush1.bf16.msra.mxu0 0
      %1112 = vmatprep.subr.bf16.mxu0 0
      %1113 = vmatpush1.bf16.msra.mxu0 0
      %1114 = vmatprep.subr.bf16.mxu0 0
      %1115 = vmatpush1.bf16.msra.mxu0 0
      %1116 = vmatprep.subr.bf16.mxu0 0
      %1117 = vmatpush1.bf16.msra.mxu0 0
      %1118 = vmatprep.subr.bf16.mxu0 0
      %1119 = vmatpush1.bf16.msra.mxu0 0
      %1120 = vmatprep.subr.bf16.mxu0 0
      %1121 = vmatpush1.bf16.msra.mxu0 0
      %1122 = vmatprep.subr.bf16.mxu0 0
      %1123 = vmatpush1.bf16.msra.mxu0 0
      %1124 = vmatprep.subr.bf16.mxu0 0
      %1125 = vmatpush1.bf16.msra.mxu0 0
      %1126 = vmatprep.subr.bf16.mxu0 0
      %1127 = vmatpush1.bf16.msra.mxu0 0
      %1128 = vmatprep.subr.bf16.mxu0 0
      %1129 = vmatpush1.bf16.msra.mxu0 0
      %1130 = vmatprep.subr.bf16.mxu0 0
      %1131 = vmatpush1.bf16.msra.mxu0 0
      %1132 = vmatprep.mubr.bf16.mxu0 0
      %1133 = vmatmul.mubr.bf16.gmra.mrb[0].mxu0 %v1095
      %v1134 = vpop.f32.mrb[0].mxu0
      %v1135 = vadd.f32 0.0, %v1134
      %v1136 = vpop.f32.mrb[0].mxu0
      %v1137 = vpop.f32.mrb[0].mxu0
      %v1138 = vpop.f32.mrb[0].mxu0
      %1139 = vdwg.mxu0
      %v1140 = vadd.f32 %v1076, %v1135
      %s1141 = scalar_lea.vmem %s2, 13
      %v1142 = vld [vmem:[%s1141] sm:$0x1]
      %v1144 = vlaneseq
      %v1145 = vshrl.u32 %v1144, 7
      %v1146 = vsub.s32 0, %v1145
      %v1147 = vrot.slane %v1142, %v1146
      %v1149 = vmul.f32 %v303, %v1147
      %v1150 = vpack.c.bf16 %v1149, %v1149
      %s1151 = scalar_lea.vmem %s1, 52
      %v1152 = vld [vmem:[%s1151] sm:$0xf]
      %v1154 = vsel %vm340, %v1152, 0
      %v1157 = vsel %vm344, %v1150, 0
      %1159 = vmatprep.subr.bf16.mxu0 0
      %1160 = vmatpush1.bf16.msra.mxu0 %v1157
      %1161 = vmatprep.subr.bf16.mxu0 0
      %1162 = vmatpush1.bf16.msra.mxu0 0
      %1163 = vmatprep.subr.bf16.mxu0 0
      %1164 = vmatpush1.bf16.msra.mxu0 0
      %1165 = vmatprep.subr.bf16.mxu0 0
      %1166 = vmatpush1.bf16.msra.mxu0 0
      %1167 = vmatprep.subr.bf16.mxu0 0
      %1168 = vmatpush1.bf16.msra.mxu0 0
      %1169 = vmatprep.subr.bf16.mxu0 0
      %1170 = vmatpush1.bf16.msra.mxu0 0
      %1171 = vmatprep.subr.bf16.mxu0 0
      %1172 = vmatpush1.bf16.msra.mxu0 0
      %1173 = vmatprep.subr.bf16.mxu0 0
      %1174 = vmatpush1.bf16.msra.mxu0 0
      %1175 = vmatprep.subr.bf16.mxu0 0
      %1176 = vmatpush1.bf16.msra.mxu0 0
      %1177 = vmatprep.subr.bf16.mxu0 0
      %1178 = vmatpush1.bf16.msra.mxu0 0
      %1179 = vmatprep.subr.bf16.mxu0 0
      %1180 = vmatpush1.bf16.msra.mxu0 0
      %1181 = vmatprep.subr.bf16.mxu0 0
      %1182 = vmatpush1.bf16.msra.mxu0 0
      %1183 = vmatprep.subr.bf16.mxu0 0
      %1184 = vmatpush1.bf16.msra.mxu0 0
      %1185 = vmatprep.subr.bf16.mxu0 0
      %1186 = vmatpush1.bf16.msra.mxu0 0
      %1187 = vmatprep.subr.bf16.mxu0 0
      %1188 = vmatpush1.bf16.msra.mxu0 0
      %1189 = vmatprep.subr.bf16.mxu0 0
      %1190 = vmatpush1.bf16.msra.mxu0 0
      %1191 = vmatprep.mubr.bf16.mxu0 0
      %1192 = vmatmul.mubr.bf16.gmra.mrb[0].mxu0 %v1154
      %v1193 = vpop.f32.mrb[0].mxu0
      %v1194 = vadd.f32 0.0, %v1193
      %v1195 = vpop.f32.mrb[0].mxu0
      %v1196 = vpop.f32.mrb[0].mxu0
      %v1197 = vpop.f32.mrb[0].mxu0
      %1198 = vdwg.mxu0
      %v1199 = vadd.f32 %v1140, %v1194
      %s1200 = scalar_lea.vmem %s2, 14
      %v1201 = vld [vmem:[%s1200] sm:$0x1]
      %v1203 = vlaneseq
      %v1204 = vshrl.u32 %v1203, 7
      %v1205 = vsub.s32 0, %v1204
      %v1206 = vrot.slane %v1201, %v1205
      %1207 = vrot.lane.b32.xlu0 %v1206, 1
      %v1208 = vpop.permute.xlu0 %1207
      %v1210 = vmul.f32 %v310, %v1208
      %v1211 = vpack.c.bf16 %v1210, %v1210
      %s1212 = scalar_lea.vmem %s1, 56
      %v1213 = vld [vmem:[%s1212] sm:$0xf]
      %1215 = vrot.lane.b32.xlu0 %v1211, 127
      %v1216 = vpop.permute.xlu0 %1215
      %v1218 = vsel %vm340, %v1213, 0
      %v1221 = vsel %vm344, %v1216, 0
      %1223 = vmatprep.subr.bf16.mxu0 0
      %1224 = vmatpush1.bf16.msra.mxu0 %v1221
      %1225 = vmatprep.subr.bf16.mxu0 0
      %1226 = vmatpush1.bf16.msra.mxu0 0
      %1227 = vmatprep.subr.bf16.mxu0 0
      %1228 = vmatpush1.bf16.msra.mxu0 0
      %1229 = vmatprep.subr.bf16.mxu0 0
      %1230 = vmatpush1.bf16.msra.mxu0 0
      %1231 = vmatprep.subr.bf16.mxu0 0
      %1232 = vmatpush1.bf16.msra.mxu0 0
      %1233 = vmatprep.subr.bf16.mxu0 0
      %1234 = vmatpush1.bf16.msra.mxu0 0
      %1235 = vmatprep.subr.bf16.mxu0 0
      %1236 = vmatpush1.bf16.msra.mxu0 0
      %1237 = vmatprep.subr.bf16.mxu0 0
      %1238 = vmatpush1.bf16.msra.mxu0 0
      %1239 = vmatprep.subr.bf16.mxu0 0
      %1240 = vmatpush1.bf16.msra.mxu0 0
      %1241 = vmatprep.subr.bf16.mxu0 0
      %1242 = vmatpush1.bf16.msra.mxu0 0
      %1243 = vmatprep.subr.bf16.mxu0 0
      %1244 = vmatpush1.bf16.msra.mxu0 0
      %1245 = vmatprep.subr.bf16.mxu0 0
      %1246 = vmatpush1.bf16.msra.mxu0 0
      %1247 = vmatprep.subr.bf16.mxu0 0
      %1248 = vmatpush1.bf16.msra.mxu0 0
      %1249 = vmatprep.subr.bf16.mxu0 0
      %1250 = vmatpush1.bf16.msra.mxu0 0
      %1251 = vmatprep.subr.bf16.mxu0 0
      %1252 = vmatpush1.bf16.msra.mxu0 0
      %1253 = vmatprep.subr.bf16.mxu0 0
      %1254 = vmatpush1.bf16.msra.mxu0 0
      %1255 = vmatprep.mubr.bf16.mxu0 0
      %1256 = vmatmul.mubr.bf16.gmra.mrb[0].mxu0 %v1218
      %v1257 = vpop.f32.mrb[0].mxu0
      %v1258 = vadd.f32 0.0, %v1257
      %v1259 = vpop.f32.mrb[0].mxu0
      %v1260 = vpop.f32.mrb[0].mxu0
      %v1261 = vpop.f32.mrb[0].mxu0
      %1262 = vdwg.mxu0
      %v1263 = vadd.f32 %v1199, %v1258
      %s1264 = scalar_lea.vmem %s2, 15
      %v1265 = vld [vmem:[%s1264] sm:$0x1]
      %v1267 = vlaneseq
      %v1268 = vshrl.u32 %v1267, 7
      %v1269 = vsub.s32 0, %v1268
      %v1270 = vrot.slane %v1265, %v1269
      %1271 = vrot.lane.b32.xlu0 %v1270, 3
      %v1272 = vpop.permute.xlu0 %1271
      %v1274 = vmul.f32 %v310, %v1272
      %v1275 = vpack.c.bf16 %v1274, %v1274
      %s1276 = scalar_lea.vmem %s1, 60
      %v1277 = vld [vmem:[%s1276] sm:$0xf]
      %1279 = vrot.lane.b32.xlu0 %v1275, 125
      %v1280 = vpop.permute.xlu0 %1279
      %v1282 = vsel %vm340, %v1277, 0
      %v1285 = vsel %vm344, %v1280, 0
      %1287 = vmatprep.subr.bf16.mxu0 0
      %1288 = vmatpush1.bf16.msra.mxu0 %v1285
      %1289 = vmatprep.subr.bf16.mxu0 0
      %1290 = vmatpush1.bf16.msra.mxu0 0
      %1291 = vmatprep.subr.bf16.mxu0 0
      %1292 = vmatpush1.bf16.msra.mxu0 0
      %1293 = vmatprep.subr.bf16.mxu0 0
      %1294 = vmatpush1.bf16.msra.mxu0 0
      %1295 = vmatprep.subr.bf16.mxu0 0
      %1296 = vmatpush1.bf16.msra.mxu0 0
      %1297 = vmatprep.subr.bf16.mxu0 0
      %1298 = vmatpush1.bf16.msra.mxu0 0
      %1299 = vmatprep.subr.bf16.mxu0 0
      %1300 = vmatpush1.bf16.msra.mxu0 0
      %1301 = vmatprep.subr.bf16.mxu0 0
      %1302 = vmatpush1.bf16.msra.mxu0 0
      %1303 = vmatprep.subr.bf16.mxu0 0
      %1304 = vmatpush1.bf16.msra.mxu0 0
      %1305 = vmatprep.subr.bf16.mxu0 0
      %1306 = vmatpush1.bf16.msra.mxu0 0
      %1307 = vmatprep.subr.bf16.mxu0 0
      %1308 = vmatpush1.bf16.msra.mxu0 0
      %1309 = vmatprep.subr.bf16.mxu0 0
      %1310 = vmatpush1.bf16.msra.mxu0 0
      %1311 = vmatprep.subr.bf16.mxu0 0
      %1312 = vmatpush1.bf16.msra.mxu0 0
      %1313 = vmatprep.subr.bf16.mxu0 0
      %1314 = vmatpush1.bf16.msra.mxu0 0
      %1315 = vmatprep.subr.bf16.mxu0 0
      %1316 = vmatpush1.bf16.msra.mxu0 0
      %1317 = vmatprep.subr.bf16.mxu0 0
      %1318 = vmatpush1.bf16.msra.mxu0 0
      %1319 = vmatprep.mubr.bf16.mxu0 0
      %1320 = vmatmul.mubr.bf16.gmra.mrb[0].mxu0 %v1282
      %v1321 = vpop.f32.mrb[0].mxu0
      %v1322 = vadd.f32 0.0, %v1321
      %v1323 = vpop.f32.mrb[0].mxu0
      %v1324 = vpop.f32.mrb[0].mxu0
      %v1325 = vpop.f32.mrb[0].mxu0
      %1326 = vdwg.mxu0
      %v1327 = vadd.f32 %v1263, %v1322
      %s1328 = scalar_lea.vmem %s2, 16
      %v1329 = vld [vmem:[%s1328] sm:$0x1]
      %v1331 = vlaneseq
      %v1332 = vshrl.u32 %v1331, 7
      %v1333 = vsub.s32 0, %v1332
      %v1334 = vrot.slane %v1329, %v1333
      %1335 = vrot.lane.b32.xlu0 %v1334, 4
      %v1336 = vpop.permute.xlu0 %1335
      %v1338 = vmul.f32 %v310, %v1336
      %v1339 = vpack.c.bf16 %v1338, %v1338
      %s1340 = scalar_lea.vmem %s1, 64
      %v1341 = vld [vmem:[%s1340] sm:$0xf]
      %1343 = vrot.lane.b32.xlu0 %v1339, 124
      %v1344 = vpop.permute.xlu0 %1343
      %v1346 = vsel %vm340, %v1341, 0
      %v1349 = vsel %vm344, %v1344, 0
      %1351 = vmatprep.subr.bf16.mxu0 0
      %1352 = vmatpush1.bf16.msra.mxu0 %v1349
      %1353 = vmatprep.subr.bf16.mxu0 0
      %1354 = vmatpush1.bf16.msra.mxu0 0
      %1355 = vmatprep.subr.bf16.mxu0 0
      %1356 = vmatpush1.bf16.msra.mxu0 0
      %1357 = vmatprep.subr.bf16.mxu0 0
      %1358 = vmatpush1.bf16.msra.mxu0 0
      %1359 = vmatprep.subr.bf16.mxu0 0
      %1360 = vmatpush1.bf16.msra.mxu0 0
      %1361 = vmatprep.subr.bf16.mxu0 0
      %1362 = vmatpush1.bf16.msra.mxu0 0
      %1363 = vmatprep.subr.bf16.mxu0 0
      %1364 = vmatpush1.bf16.msra.mxu0 0
      %1365 = vmatprep.subr.bf16.mxu0 0
      %1366 = vmatpush1.bf16.msra.mxu0 0
      %1367 = vmatprep.subr.bf16.mxu0 0
      %1368 = vmatpush1.bf16.msra.mxu0 0
      %1369 = vmatprep.subr.bf16.mxu0 0
      %1370 = vmatpush1.bf16.msra.mxu0 0
      %1371 = vmatprep.subr.bf16.mxu0 0
      %1372 = vmatpush1.bf16.msra.mxu0 0
      %1373 = vmatprep.subr.bf16.mxu0 0
      %1374 = vmatpush1.bf16.msra.mxu0 0
      %1375 = vmatprep.subr.bf16.mxu0 0
      %1376 = vmatpush1.bf16.msra.mxu0 0
      %1377 = vmatprep.subr.bf16.mxu0 0
      %1378 = vmatpush1.bf16.msra.mxu0 0
      %1379 = vmatprep.subr.bf16.mxu0 0
      %1380 = vmatpush1.bf16.msra.mxu0 0
      %1381 = vmatprep.subr.bf16.mxu0 0
      %1382 = vmatpush1.bf16.msra.mxu0 0
      %1383 = vmatprep.mubr.bf16.mxu0 0
      %1384 = vmatmul.mubr.bf16.gmra.mrb[0].mxu0 %v1346
      %v1385 = vpop.f32.mrb[0].mxu0
      %v1386 = vadd.f32 0.0, %v1385
      %v1387 = vpop.f32.mrb[0].mxu0
      %v1388 = vpop.f32.mrb[0].mxu0
      %v1389 = vpop.f32.mrb[0].mxu0
      %1390 = vdwg.mxu0
      %v1391 = vadd.f32 %v1327, %v1386
      %s1392 = scalar_lea.vmem %s2, 17
      %v1393 = vld [vmem:[%s1392] sm:$0x1]
      %v1395 = vlaneseq
      %v1396 = vshrl.u32 %v1395, 7
      %v1397 = vsub.s32 0, %v1396
      %v1398 = vrot.slane %v1393, %v1397
      %1399 = vrot.lane.b32.xlu0 %v1398, 5
      %v1400 = vpop.permute.xlu0 %1399
      %v1402 = vmul.f32 %v310, %v1400
      %v1403 = vpack.c.bf16 %v1402, %v1402
      %s1404 = scalar_lea.vmem %s1, 68
      %v1405 = vld [vmem:[%s1404] sm:$0xf]
      %1407 = vrot.lane.b32.xlu0 %v1403, 123
      %v1408 = vpop.permute.xlu0 %1407
      %v1410 = vsel %vm340, %v1405, 0
      %v1413 = vsel %vm344, %v1408, 0
      %1415 = vmatprep.subr.bf16.mxu0 0
      %1416 = vmatpush1.bf16.msra.mxu0 %v1413
      %1417 = vmatprep.subr.bf16.mxu0 0
      %1418 = vmatpush1.bf16.msra.mxu0 0
      %1419 = vmatprep.subr.bf16.mxu0 0
      %1420 = vmatpush1.bf16.msra.mxu0 0
      %1421 = vmatprep.subr.bf16.mxu0 0
      %1422 = vmatpush1.bf16.msra.mxu0 0
      %1423 = vmatprep.subr.bf16.mxu0 0
      %1424 = vmatpush1.bf16.msra.mxu0 0
      %1425 = vmatprep.subr.bf16.mxu0 0
      %1426 = vmatpush1.bf16.msra.mxu0 0
      %1427 = vmatprep.subr.bf16.mxu0 0
      %1428 = vmatpush1.bf16.msra.mxu0 0
      %1429 = vmatprep.subr.bf16.mxu0 0
      %1430 = vmatpush1.bf16.msra.mxu0 0
      %1431 = vmatprep.subr.bf16.mxu0 0
      %1432 = vmatpush1.bf16.msra.mxu0 0
      %1433 = vmatprep.subr.bf16.mxu0 0
      %1434 = vmatpush1.bf16.msra.mxu0 0
      %1435 = vmatprep.subr.bf16.mxu0 0
      %1436 = vmatpush1.bf16.msra.mxu0 0
      %1437 = vmatprep.subr.bf16.mxu0 0
      %1438 = vmatpush1.bf16.msra.mxu0 0
      %1439 = vmatprep.subr.bf16.mxu0 0
      %1440 = vmatpush1.bf16.msra.mxu0 0
      %1441 = vmatprep.subr.bf16.mxu0 0
      %1442 = vmatpush1.bf16.msra.mxu0 0
      %1443 = vmatprep.subr.bf16.mxu0 0
      %1444 = vmatpush1.bf16.msra.mxu0 0
      %1445 = vmatprep.subr.bf16.mxu0 0
      %1446 = vmatpush1.bf16.msra.mxu0 0
      %1447 = vmatprep.mubr.bf16.mxu0 0
      %1448 = vmatmul.mubr.bf16.gmra.mrb[0].mxu0 %v1410
      %v1449 = vpop.f32.mrb[0].mxu0
      %v1450 = vadd.f32 0.0, %v1449
      %v1451 = vpop.f32.mrb[0].mxu0
      %v1452 = vpop.f32.mrb[0].mxu0
      %v1453 = vpop.f32.mrb[0].mxu0
      %1454 = vdwg.mxu0
      %v1455 = vadd.f32 %v1391, %v1450
      %s1456 = scalar_lea.vmem %s2, 18
      %v1457 = vld [vmem:[%s1456] sm:$0x1]
      %v1459 = vlaneseq
      %v1460 = vshrl.u32 %v1459, 7
      %v1461 = vsub.s32 0, %v1460
      %v1462 = vrot.slane %v1457, %v1461
      %1463 = vrot.lane.b32.xlu0 %v1462, 11
      %v1464 = vpop.permute.xlu0 %1463
      %v1466 = vmul.f32 %v310, %v1464
      %v1467 = vpack.c.bf16 %v1466, %v1466
      %s1468 = scalar_lea.vmem %s1, 72
      %v1469 = vld [vmem:[%s1468] sm:$0xf]
      %1471 = vrot.lane.b32.xlu0 %v1467, 117
      %v1472 = vpop.permute.xlu0 %1471
      %v1474 = vsel %vm340, %v1469, 0
      %v1477 = vsel %vm344, %v1472, 0
      %1479 = vmatprep.subr.bf16.mxu0 0
      %1480 = vmatpush1.bf16.msra.mxu0 %v1477
      %1481 = vmatprep.subr.bf16.mxu0 0
      %1482 = vmatpush1.bf16.msra.mxu0 0
      %1483 = vmatprep.subr.bf16.mxu0 0
      %1484 = vmatpush1.bf16.msra.mxu0 0
      %1485 = vmatprep.subr.bf16.mxu0 0
      %1486 = vmatpush1.bf16.msra.mxu0 0
      %1487 = vmatprep.subr.bf16.mxu0 0
      %1488 = vmatpush1.bf16.msra.mxu0 0
      %1489 = vmatprep.subr.bf16.mxu0 0
      %1490 = vmatpush1.bf16.msra.mxu0 0
      %1491 = vmatprep.subr.bf16.mxu0 0
      %1492 = vmatpush1.bf16.msra.mxu0 0
      %1493 = vmatprep.subr.bf16.mxu0 0
      %1494 = vmatpush1.bf16.msra.mxu0 0
      %1495 = vmatprep.subr.bf16.mxu0 0
      %1496 = vmatpush1.bf16.msra.mxu0 0
      %1497 = vmatprep.subr.bf16.mxu0 0
      %1498 = vmatpush1.bf16.msra.mxu0 0
      %1499 = vmatprep.subr.bf16.mxu0 0
      %1500 = vmatpush1.bf16.msra.mxu0 0
      %1501 = vmatprep.subr.bf16.mxu0 0
      %1502 = vmatpush1.bf16.msra.mxu0 0
      %1503 = vmatprep.subr.bf16.mxu0 0
      %1504 = vmatpush1.bf16.msra.mxu0 0
      %1505 = vmatprep.subr.bf16.mxu0 0
      %1506 = vmatpush1.bf16.msra.mxu0 0
      %1507 = vmatprep.subr.bf16.mxu0 0
      %1508 = vmatpush1.bf16.msra.mxu0 0
      %1509 = vmatprep.subr.bf16.mxu0 0
      %1510 = vmatpush1.bf16.msra.mxu0 0
      %1511 = vmatprep.mubr.bf16.mxu0 0
      %1512 = vmatmul.mubr.bf16.gmra.mrb[0].mxu0 %v1474
      %v1513 = vpop.f32.mrb[0].mxu0
      %v1514 = vadd.f32 0.0, %v1513
      %v1515 = vpop.f32.mrb[0].mxu0
      %v1516 = vpop.f32.mrb[0].mxu0
      %v1517 = vpop.f32.mrb[0].mxu0
      %1518 = vdwg.mxu0
      %v1519 = vadd.f32 %v1455, %v1514
      %s1520 = scalar_lea.vmem %s2, 19
      %v1521 = vld [vmem:[%s1520] sm:$0x1]
      %v1523 = vlaneseq
      %v1524 = vshrl.u32 %v1523, 7
      %v1525 = vsub.s32 0, %v1524
      %v1526 = vrot.slane %v1521, %v1525
      %1527 = vrot.lane.b32.xlu0 %v1526, 12
      %v1528 = vpop.permute.xlu0 %1527
      %v1530 = vmul.f32 %v310, %v1528
      %v1531 = vpack.c.bf16 %v1530, %v1530
      %s1532 = scalar_lea.vmem %s1, 76
      %v1533 = vld [vmem:[%s1532] sm:$0xf]
      %1535 = vrot.lane.b32.xlu0 %v1531, 116
      %v1536 = vpop.permute.xlu0 %1535
      %v1538 = vsel %vm340, %v1533, 0
      %v1541 = vsel %vm344, %v1536, 0
      %1543 = vmatprep.subr.bf16.mxu0 0
      %1544 = vmatpush1.bf16.msra.mxu0 %v1541
      %1545 = vmatprep.subr.bf16.mxu0 0
      %1546 = vmatpush1.bf16.msra.mxu0 0
      %1547 = vmatprep.subr.bf16.mxu0 0
      %1548 = vmatpush1.bf16.msra.mxu0 0
      %1549 = vmatprep.subr.bf16.mxu0 0
      %1550 = vmatpush1.bf16.msra.mxu0 0
      %1551 = vmatprep.subr.bf16.mxu0 0
      %1552 = vmatpush1.bf16.msra.mxu0 0
      %1553 = vmatprep.subr.bf16.mxu0 0
      %1554 = vmatpush1.bf16.msra.mxu0 0
      %1555 = vmatprep.subr.bf16.mxu0 0
      %1556 = vmatpush1.bf16.msra.mxu0 0
      %1557 = vmatprep.subr.bf16.mxu0 0
      %1558 = vmatpush1.bf16.msra.mxu0 0
      %1559 = vmatprep.subr.bf16.mxu0 0
      %1560 = vmatpush1.bf16.msra.mxu0 0
      %1561 = vmatprep.subr.bf16.mxu0 0
      %1562 = vmatpush1.bf16.msra.mxu0 0
      %1563 = vmatprep.subr.bf16.mxu0 0
      %1564 = vmatpush1.bf16.msra.mxu0 0
      %1565 = vmatprep.subr.bf16.mxu0 0
      %1566 = vmatpush1.bf16.msra.mxu0 0
      %1567 = vmatprep.subr.bf16.mxu0 0
      %1568 = vmatpush1.bf16.msra.mxu0 0
      %1569 = vmatprep.subr.bf16.mxu0 0
      %1570 = vmatpush1.bf16.msra.mxu0 0
      %1571 = vmatprep.subr.bf16.mxu0 0
      %1572 = vmatpush1.bf16.msra.mxu0 0
      %1573 = vmatprep.subr.bf16.mxu0 0
      %1574 = vmatpush1.bf16.msra.mxu0 0
      %1575 = vmatprep.mubr.bf16.mxu0 0
      %1576 = vmatmul.mubr.bf16.gmra.mrb[0].mxu0 %v1538
      %v1577 = vpop.f32.mrb[0].mxu0
      %v1578 = vadd.f32 0.0, %v1577
      %v1579 = vpop.f32.mrb[0].mxu0
      %v1580 = vpop.f32.mrb[0].mxu0
      %v1581 = vpop.f32.mrb[0].mxu0
      %1582 = vdwg.mxu0
      %v1583 = vadd.f32 %v1519, %v1578
      %s1584 = scalar_lea.vmem %s2, 20
      %v1585 = vld [vmem:[%s1584] sm:$0x1]
      %v1587 = vlaneseq
      %v1588 = vshrl.u32 %v1587, 7
      %v1589 = vsub.s32 0, %v1588
      %v1590 = vrot.slane %v1585, %v1589
      %1591 = vrot.lane.b32.xlu0 %v1590, 13
      %v1592 = vpop.permute.xlu0 %1591
      %v1594 = vmul.f32 %v310, %v1592
      %v1595 = vpack.c.bf16 %v1594, %v1594
      %s1596 = scalar_lea.vmem %s1, 80
      %v1597 = vld [vmem:[%s1596] sm:$0xf]
      %1599 = vrot.lane.b32.xlu0 %v1595, 115
      %v1600 = vpop.permute.xlu0 %1599
      %v1602 = vsel %vm340, %v1597, 0
      %v1605 = vsel %vm344, %v1600, 0
      %1607 = vmatprep.subr.bf16.mxu0 0
      %1608 = vmatpush1.bf16.msra.mxu0 %v1605
      %1609 = vmatprep.subr.bf16.mxu0 0
      %1610 = vmatpush1.bf16.msra.mxu0 0
      %1611 = vmatprep.subr.bf16.mxu0 0
      %1612 = vmatpush1.bf16.msra.mxu0 0
      %1613 = vmatprep.subr.bf16.mxu0 0
      %1614 = vmatpush1.bf16.msra.mxu0 0
      %1615 = vmatprep.subr.bf16.mxu0 0
      %1616 = vmatpush1.bf16.msra.mxu0 0
      %1617 = vmatprep.subr.bf16.mxu0 0
      %1618 = vmatpush1.bf16.msra.mxu0 0
      %1619 = vmatprep.subr.bf16.mxu0 0
      %1620 = vmatpush1.bf16.msra.mxu0 0
      %1621 = vmatprep.subr.bf16.mxu0 0
      %1622 = vmatpush1.bf16.msra.mxu0 0
      %1623 = vmatprep.subr.bf16.mxu0 0
      %1624 = vmatpush1.bf16.msra.mxu0 0
      %1625 = vmatprep.subr.bf16.mxu0 0
      %1626 = vmatpush1.bf16.msra.mxu0 0
      %1627 = vmatprep.subr.bf16.mxu0 0
      %1628 = vmatpush1.bf16.msra.mxu0 0
      %1629 = vmatprep.subr.bf16.mxu0 0
      %1630 = vmatpush1.bf16.msra.mxu0 0
      %1631 = vmatprep.subr.bf16.mxu0 0
      %1632 = vmatpush1.bf16.msra.mxu0 0
      %1633 = vmatprep.subr.bf16.mxu0 0
      %1634 = vmatpush1.bf16.msra.mxu0 0
      %1635 = vmatprep.subr.bf16.mxu0 0
      %1636 = vmatpush1.bf16.msra.mxu0 0
      %1637 = vmatprep.subr.bf16.mxu0 0
      %1638 = vmatpush1.bf16.msra.mxu0 0
      %1639 = vmatprep.mubr.bf16.mxu0 0
      %1640 = vmatmul.mubr.bf16.gmra.mrb[0].mxu0 %v1602
      %v1641 = vpop.f32.mrb[0].mxu0
      %v1642 = vadd.f32 0.0, %v1641
      %v1643 = vpop.f32.mrb[0].mxu0
      %v1644 = vpop.f32.mrb[0].mxu0
      %v1645 = vpop.f32.mrb[0].mxu0
      %1646 = vdwg.mxu0
      %v1647 = vadd.f32 %v1583, %v1642
      %s1648 = scalar_lea.vmem %s2, 21
      %v1649 = vld [vmem:[%s1648] sm:$0x1]
      %v1651 = vlaneseq
      %v1652 = vshrl.u32 %v1651, 7
      %v1653 = vsub.s32 0, %v1652
      %v1654 = vrot.slane %v1649, %v1653
      %1655 = vrot.lane.b32.xlu0 %v1654, 15
      %v1656 = vpop.permute.xlu0 %1655
      %v1658 = vmul.f32 %v310, %v1656
      %v1659 = vpack.c.bf16 %v1658, %v1658
      %s1660 = scalar_lea.vmem %s1, 84
      %v1661 = vld [vmem:[%s1660] sm:$0xf]
      %1663 = vrot.lane.b32.xlu0 %v1659, 113
      %v1664 = vpop.permute.xlu0 %1663
      %v1666 = vsel %vm340, %v1661, 0
      %v1669 = vsel %vm344, %v1664, 0
      %1671 = vmatprep.subr.bf16.mxu0 0
      %1672 = vmatpush1.bf16.msra.mxu0 %v1669
      %1673 = vmatprep.subr.bf16.mxu0 0
      %1674 = vmatpush1.bf16.msra.mxu0 0
      %1675 = vmatprep.subr.bf16.mxu0 0
      %1676 = vmatpush1.bf16.msra.mxu0 0
      %1677 = vmatprep.subr.bf16.mxu0 0
      %1678 = vmatpush1.bf16.msra.mxu0 0
      %1679 = vmatprep.subr.bf16.mxu0 0
      %1680 = vmatpush1.bf16.msra.mxu0 0
      %1681 = vmatprep.subr.bf16.mxu0 0
      %1682 = vmatpush1.bf16.msra.mxu0 0
      %1683 = vmatprep.subr.bf16.mxu0 0
      %1684 = vmatpush1.bf16.msra.mxu0 0
      %1685 = vmatprep.subr.bf16.mxu0 0
      %1686 = vmatpush1.bf16.msra.mxu0 0
      %1687 = vmatprep.subr.bf16.mxu0 0
      %1688 = vmatpush1.bf16.msra.mxu0 0
      %1689 = vmatprep.subr.bf16.mxu0 0
      %1690 = vmatpush1.bf16.msra.mxu0 0
      %1691 = vmatprep.subr.bf16.mxu0 0
      %1692 = vmatpush1.bf16.msra.mxu0 0
      %1693 = vmatprep.subr.bf16.mxu0 0
      %1694 = vmatpush1.bf16.msra.mxu0 0
      %1695 = vmatprep.subr.bf16.mxu0 0
      %1696 = vmatpush1.bf16.msra.mxu0 0
      %1697 = vmatprep.subr.bf16.mxu0 0
      %1698 = vmatpush1.bf16.msra.mxu0 0
      %1699 = vmatprep.subr.bf16.mxu0 0
      %1700 = vmatpush1.bf16.msra.mxu0 0
      %1701 = vmatprep.subr.bf16.mxu0 0
      %1702 = vmatpush1.bf16.msra.mxu0 0
      %1703 = vmatprep.mubr.bf16.mxu0 0
      %1704 = vmatmul.mubr.bf16.gmra.mrb[0].mxu0 %v1666
      %v1705 = vpop.f32.mrb[0].mxu0
      %v1706 = vadd.f32 0.0, %v1705
      %v1707 = vpop.f32.mrb[0].mxu0
      %v1708 = vpop.f32.mrb[0].mxu0
      %v1709 = vpop.f32.mrb[0].mxu0
      %1710 = vdwg.mxu0
      %v1711 = vadd.f32 %v1647, %v1706
      %s1712 = scalar_lea.vmem %s2, 22
      %v1713 = vld [vmem:[%s1712] sm:$0x1]
      %v1715 = vlaneseq
      %v1716 = vshrl.u32 %v1715, 7
      %v1717 = vsub.s32 0, %v1716
      %v1718 = vrot.slane %v1713, %v1717
      %1719 = vrot.lane.b32.xlu0 %v1718, 16
      %v1720 = vpop.permute.xlu0 %1719
      %v1722 = vmul.f32 %v310, %v1720
      %v1723 = vpack.c.bf16 %v1722, %v1722
      %s1724 = scalar_lea.vmem %s1, 88
      %v1725 = vld [vmem:[%s1724] sm:$0xf]
      %1727 = vrot.lane.b32.xlu0 %v1723, 112
      %v1728 = vpop.permute.xlu0 %1727
      %v1730 = vsel %vm340, %v1725, 0
      %v1733 = vsel %vm344, %v1728, 0
      %1735 = vmatprep.subr.bf16.mxu0 0
      %1736 = vmatpush1.bf16.msra.mxu0 %v1733
      %1737 = vmatprep.subr.bf16.mxu0 0
      %1738 = vmatpush1.bf16.msra.mxu0 0
      %1739 = vmatprep.subr.bf16.mxu0 0
      %1740 = vmatpush1.bf16.msra.mxu0 0
      %1741 = vmatprep.subr.bf16.mxu0 0
      %1742 = vmatpush1.bf16.msra.mxu0 0
      %1743 = vmatprep.subr.bf16.mxu0 0
      %1744 = vmatpush1.bf16.msra.mxu0 0
      %1745 = vmatprep.subr.bf16.mxu0 0
      %1746 = vmatpush1.bf16.msra.mxu0 0
      %1747 = vmatprep.subr.bf16.mxu0 0
      %1748 = vmatpush1.bf16.msra.mxu0 0
      %1749 = vmatprep.subr.bf16.mxu0 0
      %1750 = vmatpush1.bf16.msra.mxu0 0
      %1751 = vmatprep.subr.bf16.mxu0 0
      %1752 = vmatpush1.bf16.msra.mxu0 0
      %1753 = vmatprep.subr.bf16.mxu0 0
      %1754 = vmatpush1.bf16.msra.mxu0 0
      %1755 = vmatprep.subr.bf16.mxu0 0
      %1756 = vmatpush1.bf16.msra.mxu0 0
      %1757 = vmatprep.subr.bf16.mxu0 0
      %1758 = vmatpush1.bf16.msra.mxu0 0
      %1759 = vmatprep.subr.bf16.mxu0 0
      %1760 = vmatpush1.bf16.msra.mxu0 0
      %1761 = vmatprep.subr.bf16.mxu0 0
      %1762 = vmatpush1.bf16.msra.mxu0 0
      %1763 = vmatprep.subr.bf16.mxu0 0
      %1764 = vmatpush1.bf16.msra.mxu0 0
      %1765 = vmatprep.subr.bf16.mxu0 0
      %1766 = vmatpush1.bf16.msra.mxu0 0
      %1767 = vmatprep.mubr.bf16.mxu0 0
      %1768 = vmatmul.mubr.bf16.gmra.mrb[0].mxu0 %v1730
      %v1769 = vpop.f32.mrb[0].mxu0
      %v1770 = vadd.f32 0.0, %v1769
      %v1771 = vpop.f32.mrb[0].mxu0
      %v1772 = vpop.f32.mrb[0].mxu0
      %v1773 = vpop.f32.mrb[0].mxu0
      %1774 = vdwg.mxu0
      %v1775 = vadd.f32 %v1711, %v1770
      %s1776 = scalar_lea.vmem %s2, 23
      %v1777 = vld [vmem:[%s1776] sm:$0x1]
      %v1779 = vlaneseq
      %v1780 = vshrl.u32 %v1779, 7
      %v1781 = vsub.s32 0, %v1780
      %v1782 = vrot.slane %v1777, %v1781
      %1783 = vrot.lane.b32.xlu0 %v1782, 17
      %v1784 = vpop.permute.xlu0 %1783
      %v1786 = vmul.f32 %v310, %v1784
      %v1787 = vpack.c.bf16 %v1786, %v1786
      %s1788 = scalar_lea.vmem %s1, 92
      %v1789 = vld [vmem:[%s1788] sm:$0xf]
      %1791 = vrot.lane.b32.xlu0 %v1787, 111
      %v1792 = vpop.permute.xlu0 %1791
      %v1794 = vsel %vm340, %v1789, 0
      %v1797 = vsel %vm344, %v1792, 0
      %1799 = vmatprep.subr.bf16.mxu0 0
      %1800 = vmatpush1.bf16.msra.mxu0 %v1797
      %1801 = vmatprep.subr.bf16.mxu0 0
      %1802 = vmatpush1.bf16.msra.mxu0 0
      %1803 = vmatprep.subr.bf16.mxu0 0
      %1804 = vmatpush1.bf16.msra.mxu0 0
      %1805 = vmatprep.subr.bf16.mxu0 0
      %1806 = vmatpush1.bf16.msra.mxu0 0
      %1807 = vmatprep.subr.bf16.mxu0 0
      %1808 = vmatpush1.bf16.msra.mxu0 0
      %1809 = vmatprep.subr.bf16.mxu0 0
      %1810 = vmatpush1.bf16.msra.mxu0 0
      %1811 = vmatprep.subr.bf16.mxu0 0
      %1812 = vmatpush1.bf16.msra.mxu0 0
      %1813 = vmatprep.subr.bf16.mxu0 0
      %1814 = vmatpush1.bf16.msra.mxu0 0
      %1815 = vmatprep.subr.bf16.mxu0 0
      %1816 = vmatpush1.bf16.msra.mxu0 0
      %1817 = vmatprep.subr.bf16.mxu0 0
      %1818 = vmatpush1.bf16.msra.mxu0 0
      %1819 = vmatprep.subr.bf16.mxu0 0
      %1820 = vmatpush1.bf16.msra.mxu0 0
      %1821 = vmatprep.subr.bf16.mxu0 0
      %1822 = vmatpush1.bf16.msra.mxu0 0
      %1823 = vmatprep.subr.bf16.mxu0 0
      %1824 = vmatpush1.bf16.msra.mxu0 0
      %1825 = vmatprep.subr.bf16.mxu0 0
      %1826 = vmatpush1.bf16.msra.mxu0 0
      %1827 = vmatprep.subr.bf16.mxu0 0
      %1828 = vmatpush1.bf16.msra.mxu0 0
      %1829 = vmatprep.subr.bf16.mxu0 0
      %1830 = vmatpush1.bf16.msra.mxu0 0
      %1831 = vmatprep.mubr.bf16.mxu0 0
      %1832 = vmatmul.mubr.bf16.gmra.mrb[0].mxu0 %v1794
      %v1833 = vpop.f32.mrb[0].mxu0
      %v1834 = vadd.f32 0.0, %v1833
      %v1835 = vpop.f32.mrb[0].mxu0
      %v1836 = vpop.f32.mrb[0].mxu0
      %v1837 = vpop.f32.mrb[0].mxu0
      %1838 = vdwg.mxu0
      %v1839 = vadd.f32 %v1775, %v1834
      %s1840 = scalar_lea.vmem %s2, 24
      %v1841 = vld [vmem:[%s1840] sm:$0x1]
      %v1843 = vlaneseq
      %v1844 = vshrl.u32 %v1843, 7
      %v1845 = vsub.s32 0, %v1844
      %v1846 = vrot.slane %v1841, %v1845
      %1847 = vrot.lane.b32.xlu0 %v1846, 19
      %v1848 = vpop.permute.xlu0 %1847
      %v1850 = vmul.f32 %v310, %v1848
      %v1851 = vpack.c.bf16 %v1850, %v1850
      %s1852 = scalar_lea.vmem %s1, 96
      %v1853 = vld [vmem:[%s1852] sm:$0xf]
      %1855 = vrot.lane.b32.xlu0 %v1851, 109
      %v1856 = vpop.permute.xlu0 %1855
      %v1858 = vsel %vm340, %v1853, 0
      %v1861 = vsel %vm344, %v1856, 0
      %1863 = vmatprep.subr.bf16.mxu0 0
      %1864 = vmatpush1.bf16.msra.mxu0 %v1861
      %1865 = vmatprep.subr.bf16.mxu0 0
      %1866 = vmatpush1.bf16.msra.mxu0 0
      %1867 = vmatprep.subr.bf16.mxu0 0
      %1868 = vmatpush1.bf16.msra.mxu0 0
      %1869 = vmatprep.subr.bf16.mxu0 0
      %1870 = vmatpush1.bf16.msra.mxu0 0
      %1871 = vmatprep.subr.bf16.mxu0 0
      %1872 = vmatpush1.bf16.msra.mxu0 0
      %1873 = vmatprep.subr.bf16.mxu0 0
      %1874 = vmatpush1.bf16.msra.mxu0 0
      %1875 = vmatprep.subr.bf16.mxu0 0
      %1876 = vmatpush1.bf16.msra.mxu0 0
      %1877 = vmatprep.subr.bf16.mxu0 0
      %1878 = vmatpush1.bf16.msra.mxu0 0
      %1879 = vmatprep.subr.bf16.mxu0 0
      %1880 = vmatpush1.bf16.msra.mxu0 0
      %1881 = vmatprep.subr.bf16.mxu0 0
      %1882 = vmatpush1.bf16.msra.mxu0 0
      %1883 = vmatprep.subr.bf16.mxu0 0
      %1884 = vmatpush1.bf16.msra.mxu0 0
      %1885 = vmatprep.subr.bf16.mxu0 0
      %1886 = vmatpush1.bf16.msra.mxu0 0
      %1887 = vmatprep.subr.bf16.mxu0 0
      %1888 = vmatpush1.bf16.msra.mxu0 0
      %1889 = vmatprep.subr.bf16.mxu0 0
      %1890 = vmatpush1.bf16.msra.mxu0 0
      %1891 = vmatprep.subr.bf16.mxu0 0
      %1892 = vmatpush1.bf16.msra.mxu0 0
      %1893 = vmatprep.subr.bf16.mxu0 0
      %1894 = vmatpush1.bf16.msra.mxu0 0
      %1895 = vmatprep.mubr.bf16.mxu0 0
      %1896 = vmatmul.mubr.bf16.gmra.mrb[0].mxu0 %v1858
      %v1897 = vpop.f32.mrb[0].mxu0
      %v1898 = vadd.f32 0.0, %v1897
      %v1899 = vpop.f32.mrb[0].mxu0
      %v1900 = vpop.f32.mrb[0].mxu0
      %v1901 = vpop.f32.mrb[0].mxu0
      %1902 = vdwg.mxu0
      %v1903 = vadd.f32 %v1839, %v1898
      %s1904 = scalar_lea.vmem %s2, 25
      %v1905 = vld [vmem:[%s1904] sm:$0x1]
      %v1907 = vlaneseq
      %v1908 = vshrl.u32 %v1907, 7
      %v1909 = vsub.s32 0, %v1908
      %v1910 = vrot.slane %v1905, %v1909
      %1911 = vrot.lane.b32.xlu0 %v1910, 20
      %v1912 = vpop.permute.xlu0 %1911
      %v1914 = vmul.f32 %v310, %v1912
      %v1915 = vpack.c.bf16 %v1914, %v1914
      %s1916 = scalar_lea.vmem %s1, 100
      %v1917 = vld [vmem:[%s1916] sm:$0xf]
      %1919 = vrot.lane.b32.xlu0 %v1915, 108
      %v1920 = vpop.permute.xlu0 %1919
      %v1922 = vsel %vm340, %v1917, 0
      %v1925 = vsel %vm344, %v1920, 0
      %1927 = vmatprep.subr.bf16.mxu0 0
      %1928 = vmatpush1.bf16.msra.mxu0 %v1925
      %1929 = vmatprep.subr.bf16.mxu0 0
      %1930 = vmatpush1.bf16.msra.mxu0 0
      %1931 = vmatprep.subr.bf16.mxu0 0
      %1932 = vmatpush1.bf16.msra.mxu0 0
      %1933 = vmatprep.subr.bf16.mxu0 0
      %1934 = vmatpush1.bf16.msra.mxu0 0
      %1935 = vmatprep.subr.bf16.mxu0 0
      %1936 = vmatpush1.bf16.msra.mxu0 0
      %1937 = vmatprep.subr.bf16.mxu0 0
      %1938 = vmatpush1.bf16.msra.mxu0 0
      %1939 = vmatprep.subr.bf16.mxu0 0
      %1940 = vmatpush1.bf16.msra.mxu0 0
      %1941 = vmatprep.subr.bf16.mxu0 0
      %1942 = vmatpush1.bf16.msra.mxu0 0
      %1943 = vmatprep.subr.bf16.mxu0 0
      %1944 = vmatpush1.bf16.msra.mxu0 0
      %1945 = vmatprep.subr.bf16.mxu0 0
      %1946 = vmatpush1.bf16.msra.mxu0 0
      %1947 = vmatprep.subr.bf16.mxu0 0
      %1948 = vmatpush1.bf16.msra.mxu0 0
      %1949 = vmatprep.subr.bf16.mxu0 0
      %1950 = vmatpush1.bf16.msra.mxu0 0
      %1951 = vmatprep.subr.bf16.mxu0 0
      %1952 = vmatpush1.bf16.msra.mxu0 0
      %1953 = vmatprep.subr.bf16.mxu0 0
      %1954 = vmatpush1.bf16.msra.mxu0 0
      %1955 = vmatprep.subr.bf16.mxu0 0
      %1956 = vmatpush1.bf16.msra.mxu0 0
      %1957 = vmatprep.subr.bf16.mxu0 0
      %1958 = vmatpush1.bf16.msra.mxu0 0
      %1959 = vmatprep.mubr.bf16.mxu0 0
      %1960 = vmatmul.mubr.bf16.gmra.mrb[0].mxu0 %v1922
      %v1961 = vpop.f32.mrb[0].mxu0
      %v1962 = vadd.f32 0.0, %v1961
      %v1963 = vpop.f32.mrb[0].mxu0
      %v1964 = vpop.f32.mrb[0].mxu0
      %v1965 = vpop.f32.mrb[0].mxu0
      %1966 = vdwg.mxu0
      %v1967 = vadd.f32 %v1903, %v1962
      %s1968 = scalar_lea.vmem %s2, 26
      %v1969 = vld [vmem:[%s1968] sm:$0x1]
      %v1971 = vlaneseq
      %v1972 = vshrl.u32 %v1971, 7
      %v1973 = vsub.s32 0, %v1972
      %v1974 = vrot.slane %v1969, %v1973
      %1975 = vrot.lane.b32.xlu0 %v1974, 21
      %v1976 = vpop.permute.xlu0 %1975
      %v1978 = vmul.f32 %v310, %v1976
      %v1979 = vpack.c.bf16 %v1978, %v1978
      %s1980 = scalar_lea.vmem %s1, 104
      %v1981 = vld [vmem:[%s1980] sm:$0xf]
      %1983 = vrot.lane.b32.xlu0 %v1979, 107
      %v1984 = vpop.permute.xlu0 %1983
      %v1986 = vsel %vm340, %v1981, 0
      %v1989 = vsel %vm344, %v1984, 0
      %1991 = vmatprep.subr.bf16.mxu0 0
      %1992 = vmatpush1.bf16.msra.mxu0 %v1989
      %1993 = vmatprep.subr.bf16.mxu0 0
      %1994 = vmatpush1.bf16.msra.mxu0 0
      %1995 = vmatprep.subr.bf16.mxu0 0
      %1996 = vmatpush1.bf16.msra.mxu0 0
      %1997 = vmatprep.subr.bf16.mxu0 0
      %1998 = vmatpush1.bf16.msra.mxu0 0
      %1999 = vmatprep.subr.bf16.mxu0 0
      %2000 = vmatpush1.bf16.msra.mxu0 0
      %2001 = vmatprep.subr.bf16.mxu0 0
      %2002 = vmatpush1.bf16.msra.mxu0 0
      %2003 = vmatprep.subr.bf16.mxu0 0
      %2004 = vmatpush1.bf16.msra.mxu0 0
      %2005 = vmatprep.subr.bf16.mxu0 0
      %2006 = vmatpush1.bf16.msra.mxu0 0
      %2007 = vmatprep.subr.bf16.mxu0 0
      %2008 = vmatpush1.bf16.msra.mxu0 0
      %2009 = vmatprep.subr.bf16.mxu0 0
      %2010 = vmatpush1.bf16.msra.mxu0 0
      %2011 = vmatprep.subr.bf16.mxu0 0
      %2012 = vmatpush1.bf16.msra.mxu0 0
      %2013 = vmatprep.subr.bf16.mxu0 0
      %2014 = vmatpush1.bf16.msra.mxu0 0
      %2015 = vmatprep.subr.bf16.mxu0 0
      %2016 = vmatpush1.bf16.msra.mxu0 0
      %2017 = vmatprep.subr.bf16.mxu0 0
      %2018 = vmatpush1.bf16.msra.mxu0 0
      %2019 = vmatprep.subr.bf16.mxu0 0
      %2020 = vmatpush1.bf16.msra.mxu0 0
      %2021 = vmatprep.subr.bf16.mxu0 0
      %2022 = vmatpush1.bf16.msra.mxu0 0
      %2023 = vmatprep.mubr.bf16.mxu0 0
      %2024 = vmatmul.mubr.bf16.gmra.mrb[0].mxu0 %v1986
      %v2025 = vpop.f32.mrb[0].mxu0
      %v2026 = vadd.f32 0.0, %v2025
      %v2027 = vpop.f32.mrb[0].mxu0
      %v2028 = vpop.f32.mrb[0].mxu0
      %v2029 = vpop.f32.mrb[0].mxu0
      %2030 = vdwg.mxu0
      %v2031 = vadd.f32 %v1967, %v2026
      %v2032 = vld [vmem:[%s3] sm:$0xff]
      %2034 = vset.pattern.permute.xlu0 0
      %2035 = vperm.xlu0 %2034, %v2032
      %v2036 = vpop.permute.xlu0 %2035
      %v2038 = vadd.f32 %v2031, %v2036
      %vm2039 = vcmask 523264
      %2040 = vst.msk [vmem:[%s280] sm:$0xff] %vm2039, %v2038
      %v2041 = vsel %vm2039, %v2038, 0.0
      %2042 = vadd.xlane.f32.xlu0 %v2041
      %v2043 = vpop.xlane.xlu0 %2042
      %vm2044 = vcmask 7168
      %2045 = vst.msk [vmem:[%s284] sm:$0xff] %vm2044, %v2043
      %v2046 = vmul.f32 %v2038, %v2038
      %v2047 = vsel %vm2039, %v2046, 0.0
      %2048 = vadd.xlane.f32.xlu0 %v2047
      %v2049 = vpop.xlane.xlu0 %2048
      %vm2050 = vcmask 15368
      %2051 = vst.msk [vmem:[%s284] sm:$0xff] %vm2050, %v2049
      %p2052 = scmp.lt.s32.totalorder %s19, 1
      %s2053 = scalar_select %p2052, %s19, 1
      %s2054 = smul.addr %s2053, 8
      %s2055 = scalar_lea.vmem %s6, %s2054
      %p2056 = scmp.lt.s32.totalorder %s19, 1
      %s2057 = scalar_select %p2056, %s19, 1
      %s2058 = smul.addr %s2057, 8
      %s2059 = scalar_lea.vmem %s7, %s2058
      // Predicated region
      $region45: #{pvconv_forward.7} parent=43 // pred_check
        %p2060 = pneg %p168
      $region46: #{pvconv_forward.7} parent=43 // pred_check_branch
        %2062 = sbr.rel (%p2060) target = $region48
      $region47: #{pvconv_forward.7} parent=43 // pred_region
        _
      $region48: #{pvconv_forward.7} parent=43 // pred_fallthru
        _
      // Predicated region
      $region49: #{pvconv_forward.7} parent=43 // pred_check
        %p2063 = pneg %p194
      $region50: #{pvconv_forward.7} parent=43 // pred_check_branch
        %2065 = sbr.rel (%p2063) target = $region52
      $region51: #{pvconv_forward.7} parent=43 // pred_region
        _
      $region52: #{pvconv_forward.7} parent=43 // pred_fallthru
        _
    $region44: #{pvconv_forward.7} parent=5 // pred_fallthru
      _
    %p2066 = scmp.le.s32.totalorder 2, %s14
    // Predicated region
    $region53: #{pvconv_forward.7} parent=5 // pred_check
      %p2067 = pneg %p2066
    $region54: #{pvconv_forward.7} parent=5 // pred_check_branch
      %2069 = sbr.rel (%p2067) target = $region56
    $region55: #{pvconv_forward.7} parent=5 // pred_region
      %s2070 = ssub.s32 %s14, 2
      // Predicated region
      $region57: #{pvconv_forward.7} parent=55 // pred_check
        %p2071 = pneg %p174
      $region58: #{pvconv_forward.7} parent=55 // pred_check_branch
        %2073 = sbr.rel (%p2071) target = $region60
      $region59: #{pvconv_forward.7} parent=55 // pred_region
        %p2074 = scmp.lt.s32.totalorder %s20, 1
        %s2075 = scalar_select %p2074, %s20, 1
        %s2076 = smul.addr %s2075, 8
        %s2077 = scalar_lea.vmem %s6, %s2076
      $region60: #{pvconv_forward.7} parent=55 // pred_fallthru
        _
      // Predicated region
      $region61: #{pvconv_forward.7} parent=55 // pred_check
        %p2078 = pneg %p200
      $region62: #{pvconv_forward.7} parent=55 // pred_check_branch
        %2080 = sbr.rel (%p2078) target = $region64
      $region63: #{pvconv_forward.7} parent=55 // pred_region
        %p2081 = scmp.lt.s32.totalorder %s20, 1
        %s2082 = scalar_select %p2081, %s20, 1
        %s2083 = smul.addr %s2082, 8
        %s2084 = scalar_lea.vmem %s7, %s2083
      $region64: #{pvconv_forward.7} parent=55 // pred_fallthru
        _
    $region56: #{pvconv_forward.7} parent=5 // pred_fallthru
      _
  $region6: #{pvconv_forward.7} parent=0 // loop_footer
    %s18 = sadd.s32 1, %s14
  $region7: #{pvconv_forward.7} parent=0 // loop_footer_branch
    %13 = sbr.rel target = $region3
  $region8: #{pvconv_forward.7} parent=0 // loop_exit
    _

</llo_original>
